<compile_context>
chip_gen: v7x
topology: tpu7x:2x2x1
jax: 0.10.0
libtpu: 0.0.40
codegen_flags: <defaults>
</compile_context>

<pallas_src>
import jax
import jax.numpy as jnp
from jax.experimental import pallas as pl
from jax.experimental.pallas import tpu as pltpu

M = 19  # fixed number of branches in selective_ts
_HIGHEST = jax.lax.Precision.HIGHEST


def _round_up(n, k):
    return ((n + k - 1) // k) * k


def _pick_batch_tile(bs, bs_tile):
    """Pick a sublane-aligned batch tile; prefer >= 2 grid steps when possible."""
    bt = min(bs_tile, _round_up(bs, 8))
    bt = max(_round_up(bt, 8), 8)
    bs_pad = _round_up(bs, bt)
    # >= 2 grid steps lets the "parallel" axis shard across v7x's 2 TensorCores.
    if bs_pad // bt < 2 and bs_pad >= 16:
        bt = _round_up(bs_pad // 2, 8)
        bs_pad = _round_up(bs, bt)
    return bt, bs_pad


def selective_ts_kernel(x_ref, w1r_ref, w2_ref, b_ref, s_ref, out_ref):
    """One batch tile of selective_ts.

    x_ref  : (bt, M*dim)  flat lane-dense batch tile (branch m at lanes m*dim..)
    w1r_ref: (M*dim, d)   fc weight tiled M times: x @ w1_rep == (sum_m x_m) @ w1
    w2_ref : (d, M*dim)   the 19 fc_i weights packed lane-dense
    b_ref  : (1, M*dim)   fused bias  b1 @ w2_flat + b2
    s_ref  : (M*dim, dim) 0/1 group-sum matrix (column c sums lanes {m*dim + c})
    out_ref: (bt, dim)
    """
    x = x_ref[...]  # (bt, M*dim)

    # fea_z = fc(sum_m x_m) == x @ w1_rep        (one K=608 MXU pass, no slices)
    fea_z = jnp.dot(x, w1r_ref[...], precision=_HIGHEST,
                    preferred_element_type=jnp.float32)          # (bt, d)

    # All 19 fc_i fused into one wide MXU matmul; b1 already folded on host.
    logits = jnp.dot(fea_z, w2_ref[...], precision=_HIGHEST,
                     preferred_element_type=jnp.float32) + b_ref[...]  # (bt, M*dim)

    # Numerically stable softmax over the M branch groups, kept lane-dense:
    # subtracting the row-wise max (an upper bound of every per-channel branch
    # max) is an equally valid stabilizer and avoids 19 width-32 lane extracts.
    row_max = jnp.max(logits, axis=-1, keepdims=True)            # (bt, 1)
    e = jnp.exp(logits - row_max)                                # (bt, M*dim)

    # Per-channel sums over the 19 branches as MXU group-sum reductions.
    denom = jnp.dot(e, s_ref[...], precision=_HIGHEST,
                    preferred_element_type=jnp.float32)          # (bt, dim)
    num = jnp.dot(x * e, s_ref[...], precision=_HIGHEST,
                  preferred_element_type=jnp.float32)            # (bt, dim)

    inv = pl.reciprocal(denom, approx=True)     # EUP seed, off the VALU path
    inv = inv * (2.0 - denom * inv)             # one Newton step -> ~f32 exact
    out_ref[...] = (num * inv).astype(out_ref.dtype)


def selective_ts_forward(x, w1, b1, w2, b2, *, bs_tile=1024, x_buffers=None):
    """Forward pass of selective_ts.

    x : (bs, M*dim) or (M*dim,) (treated as bs=1, mirroring the module).
    w1: (dim, d)   fc weight stored as (in, out);   b1: (d,)
    w2: (M, d, dim) fc_i weights stored as (in, out); b2: (M, dim)

    bs_tile: batch rows per grid step.  1024 fits v7x's 64 MiB VMEM; on
    v5e/v6e 2048-4096 squeezes out the last few % of HBM roofline.
    x_buffers=3 enables a deeper x pipeline (sweep only if the profile still
    shows exposed input DMA at the chosen tile size).
    """
    if x.ndim == 1:  # mirror the module's unsqueeze path
        x = x[None, :]
    bs, feat = x.shape
    dim = feat // M
    d = w1.shape[1]

    # ---- Host-side weight packing (tiny, one-time) ----
    # w2_flat[k, m*dim + c] = w2[m, k, c]
    w2_flat = jnp.transpose(w2, (1, 0, 2)).reshape(d, M * dim)
    # Fold b1 through w2 (no nonlinearity between fc and fc_i in the module).
    b_fold = (jnp.dot(b1, w2_flat, precision=_HIGHEST)
              + b2.reshape(M * dim)).reshape(1, M * dim)
    # x @ w1_rep == (sum over the 19 branches of x) @ w1
    w1_rep = jnp.tile(w1, (M, 1))                           # (M*dim, d)
    # 0/1 group-sum matrix: column c sums lanes {m*dim + c}
    s_mat = jnp.tile(jnp.eye(dim, dtype=x.dtype), (M, 1))   # (M*dim, dim)

    # ---- Batch tiling ----
    bt, bs_pad = _pick_batch_tile(bs, bs_tile)
    if bs_pad != bs:
        x = jnp.pad(x, ((0, bs_pad - bs), (0, 0)))
    grid = (bs_pad // bt,)

    # Explicit VMEM budget: double-buffered x/out tiles + resident weights
    # + live (bt, M*dim) f32 intermediates (logits, e, x*e), ~1.5x headroom.
    isz = x.dtype.itemsize
    vmem_bytes = (2 * bt * feat * isz + 2 * bt * dim * isz
                  + 4 * bt * feat * 4
                  + (2 * feat * d + feat * dim + 2 * feat) * 4)
    vmem_bytes = int(min(max(vmem_bytes * 3 // 2, 4 << 20), 96 << 20))

    x_spec_kwargs = {}
    if x_buffers is not None and x_buffers != 2:
        x_spec_kwargs["pipeline_mode"] = pl.Buffered(x_buffers)

    out = pl.pallas_call(
        selective_ts_kernel,
        out_shape=jax.ShapeDtypeStruct((bs_pad, dim), x.dtype),
        grid_spec=pltpu.PrefetchScalarGridSpec(
            num_scalar_prefetch=0,
            grid=grid,
            in_specs=[
                pl.BlockSpec((bt, feat), lambda i: (i, 0), **x_spec_kwargs),  # x tile
                pl.BlockSpec((feat, d), lambda i: (0, 0)),     # w1_rep   (resident)
                pl.BlockSpec((d, feat), lambda i: (0, 0)),     # w2_flat  (resident)
                pl.BlockSpec((1, feat), lambda i: (0, 0)),     # fused bias
                pl.BlockSpec((feat, dim), lambda i: (0, 0)),   # group-sum matrix
            ],
            out_specs=pl.BlockSpec((bt, dim), lambda i: (i, 0)),
        ),
        compiler_params=pltpu.CompilerParams(
            dimension_semantics=("parallel",),
            vmem_limit_bytes=vmem_bytes,
        ),
    )(x, w1_rep, w2_flat, b_fold, s_mat)
    return out[:bs]


def selective_ts_reference(x, w1, b1, w2, b2):
    """Pure-JAX reference mirroring the PyTorch forward exactly (f32 precision)."""
    bs = x.shape[0]
    dim = x.shape[1] // M
    x3 = x.reshape(bs, M, dim)
    fea_u = x3.sum(axis=1)                                           # (bs, dim)
    fea_z = jnp.dot(fea_u, w1, precision=_HIGHEST) + b1              # (bs, d)
    att = jnp.einsum("bd,mdc->bmc", fea_z, w2,
                     precision=_HIGHEST) + b2[None, :, :]            # (bs, M, dim)
    att = jax.nn.softmax(att, axis=1)                                # softmax over M
    return (x3 * att).sum(axis=1)                                    # (bs, dim)


if __name__ == "__main__":
    # Module config: selective_ts(dim=32, r=2) -> d = 16, M = 19
    dim = 32
    r = 2
    d = dim // r
    bs = 2

    key = jax.random.PRNGKey(0)
    k_x, k_w1, k_b1, k_w2, k_b2 = jax.random.split(key, 5)

    # Deterministic synthetic parameters (shapes from the module's __init__;
    # linear weights stored pre-transposed as (in_features, out_features)).
    x = jax.random.normal(k_x, (bs, M * dim), dtype=jnp.float32)
    w1 = jax.random.normal(k_w1, (dim, d), dtype=jnp.float32) * (1.0 / jnp.sqrt(dim))
    b1 = jax.random.normal(k_b1, (d,), dtype=jnp.float32) * 0.01
    w2 = jax.random.normal(k_w2, (M, d, dim), dtype=jnp.float32) * (1.0 / jnp.sqrt(d))
    b2 = jax.random.normal(k_b2, (M, dim), dtype=jnp.float32) * 0.01

    out = selective_ts_forward(x, w1, b1, w2, b2)
    out = jax.block_until_ready(out)

    ref = selective_ts_reference(x, w1, b1, w2, b2)
    assert out.shape == (bs, dim)
    assert jnp.allclose(out, ref, atol=1e-3, rtol=1e-3), "kernel mismatch vs reference"

    print("KERNEL_OK")
</pallas_src>

<mosaic_0001>
module attributes {stable_mosaic.version = 11 : i64} {
  func.func @selective_ts_kernel(%arg0: i32, %arg1: memref<8x608xf32, #tpu.memory_space<vmem>>, %arg2: memref<608x16xf32, #tpu.memory_space<vmem>>, %arg3: memref<16x608xf32, #tpu.memory_space<vmem>>, %arg4: memref<1x608xf32, #tpu.memory_space<vmem>>, %arg5: memref<608x32xf32, #tpu.memory_space<vmem>>, %arg6: memref<8x32xf32, #tpu.memory_space<vmem>>) attributes {dimension_semantics = [#tpu.dimension_semantics<parallel>], iteration_bounds = array<i64: 1>, scalar_prefetch = 0 : i64, scratch_operands = 0 : i64, tpu.core_type = #tpu.core_type<tc>, window_params = [{transform_indices = @transform_0, window_bounds = array<i64: 8, 608>}, {pipeline_mode = #tpu.pipeline_mode<synchronous>, transform_indices = @transform_1, window_bounds = array<i64: 608, 16>}, {pipeline_mode = #tpu.pipeline_mode<synchronous>, transform_indices = @transform_2, window_bounds = array<i64: 16, 608>}, {pipeline_mode = #tpu.pipeline_mode<synchronous>, transform_indices = @transform_3, window_bounds = array<i64: 1, 608>}, {pipeline_mode = #tpu.pipeline_mode<synchronous>, transform_indices = @transform_4, window_bounds = array<i64: 608, 32>}, {transform_indices = @transform_5, window_bounds = array<i64: 8, 32>}]} {
    %c0 = arith.constant 0 : index
    %c0_0 = arith.constant 0 : index
    %0 = vector.load %arg1[%c0, %c0_0] : memref<8x608xf32, #tpu.memory_space<vmem>>, vector<8x608xf32>
    %c0_1 = arith.constant 0 : index
    %c0_2 = arith.constant 0 : index
    %1 = vector.load %arg2[%c0_1, %c0_2] : memref<608x16xf32, #tpu.memory_space<vmem>>, vector<608x16xf32>
    %cst = arith.constant dense<0.000000e+00> : vector<8x16xf32>
    %2 = tpu.matmul %0, %1, %cst {dimension_numbers = #tpu.dot_dimension_numbers<[1], [0], [0], [1], [0, 0, 1, 1], [], []>, precision = #tpu.contract_precision<fp32>} : vector<8x608xf32>, vector<608x16xf32>, vector<8x16xf32> -> vector<8x16xf32>
    %c0_3 = arith.constant 0 : index
    %c0_4 = arith.constant 0 : index
    %3 = vector.load %arg3[%c0_3, %c0_4] : memref<16x608xf32, #tpu.memory_space<vmem>>, vector<16x608xf32>
    %cst_5 = arith.constant dense<0.000000e+00> : vector<8x608xf32>
    %4 = tpu.matmul %2, %3, %cst_5 {dimension_numbers = #tpu.dot_dimension_numbers<[1], [0], [0], [1], [0, 0, 1, 1], [], []>, precision = #tpu.contract_precision<fp32>} : vector<8x16xf32>, vector<16x608xf32>, vector<8x608xf32> -> vector<8x608xf32>
    %c0_6 = arith.constant 0 : index
    %c0_7 = arith.constant 0 : index
    %5 = vector.load %arg4[%c0_6, %c0_7] : memref<1x608xf32, #tpu.memory_space<vmem>>, vector<1x608xf32>
    %6 = vector.broadcast %5 : vector<1x608xf32> to vector<8x608xf32>
    %7 = arith.addf %4, %6 : vector<8x608xf32>
    %cst_8 = arith.constant dense<0xFF800000> : vector<8xf32>
    %8 = vector.multi_reduction <maximumf>, %7, %cst_8 [1] : vector<8x608xf32> to vector<8xf32>
    %9 = vector.shape_cast %8 : vector<8xf32> to vector<8x1xf32>
    %10 = vector.broadcast %9 : vector<8x1xf32> to vector<8x608xf32>
    %11 = arith.subf %7, %10 : vector<8x608xf32>
    %12 = math.exp %11 : vector<8x608xf32>
    %c0_9 = arith.constant 0 : index
    %c0_10 = arith.constant 0 : index
    %13 = vector.load %arg5[%c0_9, %c0_10] : memref<608x32xf32, #tpu.memory_space<vmem>>, vector<608x32xf32>
    %cst_11 = arith.constant dense<0.000000e+00> : vector<8x32xf32>
    %14 = tpu.matmul %12, %13, %cst_11 {dimension_numbers = #tpu.dot_dimension_numbers<[1], [0], [0], [1], [0, 0, 1, 1], [], []>, precision = #tpu.contract_precision<fp32>} : vector<8x608xf32>, vector<608x32xf32>, vector<8x32xf32> -> vector<8x32xf32>
    %15 = arith.mulf %0, %12 : vector<8x608xf32>
    %c0_12 = arith.constant 0 : index
    %c0_13 = arith.constant 0 : index
    %16 = vector.load %arg5[%c0_12, %c0_13] : memref<608x32xf32, #tpu.memory_space<vmem>>, vector<608x32xf32>
    %cst_14 = arith.constant dense<0.000000e+00> : vector<8x32xf32>
    %17 = tpu.matmul %15, %16, %cst_14 {dimension_numbers = #tpu.dot_dimension_numbers<[1], [0], [0], [1], [0, 0, 1, 1], [], []>, precision = #tpu.contract_precision<fp32>} : vector<8x608xf32>, vector<608x32xf32>, vector<8x32xf32> -> vector<8x32xf32>
    %18 = tpu.reciprocal %14 {approx = true} : vector<8x32xf32> -> vector<8x32xf32>
    %19 = arith.mulf %14, %18 : vector<8x32xf32>
    %cst_15 = arith.constant 2.000000e+00 : f32
    %20 = vector.broadcast %cst_15 : f32 to vector<8x32xf32>
    %21 = arith.subf %20, %19 : vector<8x32xf32>
    %22 = arith.mulf %18, %21 : vector<8x32xf32>
    %23 = arith.mulf %17, %22 : vector<8x32xf32>
    %c0_16 = arith.constant 0 : index
    %c0_17 = arith.constant 0 : index
    %24 = vector.load %arg6[%c0_16, %c0_17] : memref<8x32xf32, #tpu.memory_space<vmem>>, vector<8x32xf32>
    tpu.vector_store %arg6[%c0_16, %c0_17], %23 {strides = array<i32>} : memref<8x32xf32, #tpu.memory_space<vmem>>, vector<8x32xf32>,
    return
  }
  func.func @transform_0(%arg0: i32) -> (i32, i32) {
    %c0_i32 = arith.constant 0 : i32
    %c0_i32_0 = arith.constant 0 : i32
    return %arg0, %c0_i32 : i32, i32
  }
  func.func @transform_1(%arg0: i32) -> (i32, i32) {
    %c0_i32 = arith.constant 0 : i32
    %c0_i32_0 = arith.constant 0 : i32
    %c0_i32_1 = arith.constant 0 : i32
    return %c0_i32, %c0_i32_0 : i32, i32
  }
  func.func @transform_2(%arg0: i32) -> (i32, i32) {
    %c0_i32 = arith.constant 0 : i32
    %c0_i32_0 = arith.constant 0 : i32
    %c0_i32_1 = arith.constant 0 : i32
    return %c0_i32, %c0_i32_0 : i32, i32
  }
  func.func @transform_3(%arg0: i32) -> (i32, i32) {
    %c0_i32 = arith.constant 0 : i32
    %c0_i32_0 = arith.constant 0 : i32
    %c0_i32_1 = arith.constant 0 : i32
    return %c0_i32, %c0_i32_0 : i32, i32
  }
  func.func @transform_4(%arg0: i32) -> (i32, i32) {
    %c0_i32 = arith.constant 0 : i32
    %c0_i32_0 = arith.constant 0 : i32
    %c0_i32_1 = arith.constant 0 : i32
    return %c0_i32, %c0_i32_0 : i32, i32
  }
  func.func @transform_5(%arg0: i32) -> (i32, i32) {
    %c0_i32 = arith.constant 0 : i32
    %c0_i32_0 = arith.constant 0 : i32
    return %arg0, %c0_i32 : i32, i32
  }
}

</mosaic_0001>

<llo_original>
// kernel: tpu_custom_call.1
$region0: #{tpu_custom_call.1}
  #allocation0 [shape = 'u32[]', space=smem, size = 0x4, offset = 0x4, fixed_abs, tag = 'smem constant byte address 0x4 - core index']
  #allocation1 [shape = 'u32[144,128]{1,0:T(1,128)}', space=vmem, size = 0x12000, scoped, tag = 'internal scratch']
  %s0 = inlined_call_operand.vmem [shape: f32[8,608], index: 0, kind: input, shape index: {}]
  %s1 = inlined_call_operand.vmem [shape: f32[608,16], index: 1, kind: input, shape index: {}]
  %s2 = inlined_call_operand.vmem [shape: f32[16,608], index: 2, kind: input, shape index: {}]
  %s3 = inlined_call_operand.vmem [shape: f32[1,608], index: 3, kind: input, shape index: {}]
  %s4 = inlined_call_operand.vmem [shape: f32[608,32], index: 4, kind: input, shape index: {}]
  %s5 = inlined_call_operand.hbm [shape: f32[8,32], index: 5, kind: output, shape index: {}]
  %s6 = sld [smem:[#allocation0]]
  $region30: #{tpu_custom_call.1} parent=0
    _
  %s8 = ssub.s32 1, %s6
  %s9 = scalar_select 0, %s8, %s6
  $region1: #{tpu_custom_call.1} parent=0
    #allocation2 [shape = 'u8[4096]{0}', space=vmem, size = 0x1000, scoped, tag = 'output window, operand 0, single buffered']
    #allocation3 [shape = 's32[1]{0}', space=sflag, size = 0x4, scoped, tag = 'scoped memory for tpu_custom_call.1']
    %10 = vsyncpa [#allocation3], 0
    // Predicated region
    $region2: #{tpu_custom_call.1} parent=1 // pred_check
      _
    $region3: #{tpu_custom_call.1} parent=1 // pred_check_branch
      %12 = sbr.rel (0) target = $region5
    $region4: #{tpu_custom_call.1} parent=1 // pred_region
      _
    $region5: #{tpu_custom_call.1} parent=1 // pred_fallthru
      _
    // Predicated region
    $region6: #{tpu_custom_call.1} parent=1 // pred_check
      _
    $region7: #{tpu_custom_call.1} parent=1 // pred_check_branch
      %14 = sbr.rel (0) target = $region9
    $region8: #{tpu_custom_call.1} parent=1 // pred_region
      _
    $region9: #{tpu_custom_call.1} parent=1 // pred_fallthru
      _
    // Predicated region
    $region10: #{tpu_custom_call.1} parent=1 // pred_check
      _
    $region11: #{tpu_custom_call.1} parent=1 // pred_check_branch
      %16 = sbr.rel (0) target = $region13
    $region12: #{tpu_custom_call.1} parent=1 // pred_region
      _
    $region13: #{tpu_custom_call.1} parent=1 // pred_fallthru
      _
    // Predicated region
    $region14: #{tpu_custom_call.1} parent=1 // pred_check
      _
    $region15: #{tpu_custom_call.1} parent=1 // pred_check_branch
      %18 = sbr.rel (0) target = $region17
    $region16: #{tpu_custom_call.1} parent=1 // pred_region
      _
    $region17: #{tpu_custom_call.1} parent=1 // pred_fallthru
      _
    // Predicated region
    $region18: #{tpu_custom_call.1} parent=1 // pred_check
      _
    $region19: #{tpu_custom_call.1} parent=1 // pred_check_branch
      %20 = sbr.rel (0) target = $region21
    $region20: #{tpu_custom_call.1} parent=1 // pred_region
      _
    $region21: #{tpu_custom_call.1} parent=1 // pred_fallthru
      _
    %v21 = vld [vmem:[%s0] sm:$0xff]
    %v22 = vld [vmem:[%s0 + $0x8] sm:$0xff]
    %v23 = vld [vmem:[%s0 + $0x10] sm:$0xff]
    %v24 = vld [vmem:[%s0 + $0x18] sm:$0xff]
    %v25 = vld [vmem:[%s0 + $0x20] sm:$0xff]
    %v26 = vld [vmem:[%s1] sm:$0xff]
    %v27 = vld [vmem:[%s1 + $0x8] sm:$0xff]
    %v28 = vld [vmem:[%s1 + $0x10] sm:$0xff]
    %v29 = vld [vmem:[%s1 + $0x18] sm:$0xff]
    %v30 = vld [vmem:[%s1 + $0x20] sm:$0xff]
    %v31 = vld [vmem:[%s1 + $0x28] sm:$0xff]
    %v32 = vld [vmem:[%s1 + $0x30] sm:$0xff]
    %v33 = vld [vmem:[%s1 + $0x38] sm:$0xff]
    %v34 = vld [vmem:[%s1 + $0x40] sm:$0xff]
    %v35 = vld [vmem:[%s1 + $0x48] sm:$0xff]
    %v36 = vld [vmem:[%s1 + $0x50] sm:$0xff]
    %v37 = vld [vmem:[%s1 + $0x58] sm:$0xff]
    %v38 = vld [vmem:[%s1 + $0x60] sm:$0xff]
    %v39 = vld [vmem:[%s1 + $0x68] sm:$0xff]
    %v40 = vld [vmem:[%s1 + $0x70] sm:$0xff]
    %v41 = vld [vmem:[%s1 + $0x78] sm:$0xff]
    %v42 = vld [vmem:[%s1 + $0x80] sm:$0xff]
    %v43 = vld [vmem:[%s1 + $0x88] sm:$0xff]
    %v44 = vld [vmem:[%s1 + $0x90] sm:$0xff]
    %v45 = vld [vmem:[%s1 + $0x98] sm:$0xff]
    %v46 = vld [vmem:[%s1 + $0xa0] sm:$0xff]
    %v47 = vld [vmem:[%s1 + $0xa8] sm:$0xff]
    %v48 = vld [vmem:[%s1 + $0xb0] sm:$0xff]
    %v49 = vld [vmem:[%s1 + $0xb8] sm:$0xff]
    %v50 = vld [vmem:[%s1 + $0xc0] sm:$0xff]
    %v51 = vld [vmem:[%s1 + $0xc8] sm:$0xff]
    %v52 = vld [vmem:[%s1 + $0xd0] sm:$0xff]
    %v53 = vld [vmem:[%s1 + $0xd8] sm:$0xff]
    %v54 = vld [vmem:[%s1 + $0xe0] sm:$0xff]
    %v55 = vld [vmem:[%s1 + $0xe8] sm:$0xff]
    %v56 = vld [vmem:[%s1 + $0xf0] sm:$0xff]
    %v57 = vld [vmem:[%s1 + $0xf8] sm:$0xff]
    %v58 = vld [vmem:[%s1 + $0x100] sm:$0xff]
    %v59 = vld [vmem:[%s1 + $0x108] sm:$0xff]
    %v60 = vld [vmem:[%s1 + $0x110] sm:$0xff]
    %v61 = vld [vmem:[%s1 + $0x118] sm:$0xff]
    %v62 = vld [vmem:[%s1 + $0x120] sm:$0xff]
    %v63 = vld [vmem:[%s1 + $0x128] sm:$0xff]
    %v64 = vld [vmem:[%s1 + $0x130] sm:$0xff]
    %v65 = vld [vmem:[%s1 + $0x138] sm:$0xff]
    %v66 = vld [vmem:[%s1 + $0x140] sm:$0xff]
    %v67 = vld [vmem:[%s1 + $0x148] sm:$0xff]
    %v68 = vld [vmem:[%s1 + $0x150] sm:$0xff]
    %v69 = vld [vmem:[%s1 + $0x158] sm:$0xff]
    %v70 = vld [vmem:[%s1 + $0x160] sm:$0xff]
    %v71 = vld [vmem:[%s1 + $0x168] sm:$0xff]
    %v72 = vld [vmem:[%s1 + $0x170] sm:$0xff]
    %v73 = vld [vmem:[%s1 + $0x178] sm:$0xff]
    %v74 = vld [vmem:[%s1 + $0x180] sm:$0xff]
    %v75 = vld [vmem:[%s1 + $0x188] sm:$0xff]
    %v76 = vld [vmem:[%s1 + $0x190] sm:$0xff]
    %v77 = vld [vmem:[%s1 + $0x198] sm:$0xff]
    %v78 = vld [vmem:[%s1 + $0x1a0] sm:$0xff]
    %v79 = vld [vmem:[%s1 + $0x1a8] sm:$0xff]
    %v80 = vld [vmem:[%s1 + $0x1b0] sm:$0xff]
    %v81 = vld [vmem:[%s1 + $0x1b8] sm:$0xff]
    %v82 = vld [vmem:[%s1 + $0x1c0] sm:$0xff]
    %v83 = vld [vmem:[%s1 + $0x1c8] sm:$0xff]
    %v84 = vld [vmem:[%s1 + $0x1d0] sm:$0xff]
    %v85 = vld [vmem:[%s1 + $0x1d8] sm:$0xff]
    %v86 = vld [vmem:[%s1 + $0x1e0] sm:$0xff]
    %v87 = vld [vmem:[%s1 + $0x1e8] sm:$0xff]
    %v88 = vld [vmem:[%s1 + $0x1f0] sm:$0xff]
    %v89 = vld [vmem:[%s1 + $0x1f8] sm:$0xff]
    %v90 = vld [vmem:[%s1 + $0x200] sm:$0xff]
    %v91 = vld [vmem:[%s1 + $0x208] sm:$0xff]
    %v92 = vld [vmem:[%s1 + $0x210] sm:$0xff]
    %v93 = vld [vmem:[%s1 + $0x218] sm:$0xff]
    %v94 = vld [vmem:[%s1 + $0x220] sm:$0xff]
    %v95 = vld [vmem:[%s1 + $0x228] sm:$0xff]
    %v96 = vld [vmem:[%s1 + $0x230] sm:$0xff]
    %v97 = vld [vmem:[%s1 + $0x238] sm:$0xff]
    %v98 = vld [vmem:[%s1 + $0x240] sm:$0xff]
    %v99 = vld [vmem:[%s1 + $0x248] sm:$0xff]
    %v100 = vld [vmem:[%s1 + $0x250] sm:$0xff]
    %v101 = vld [vmem:[%s1 + $0x258] sm:$0xff]
    %vm102 = vcmask 785408
    %v104 = vsel %vm102, %v25, 0
    %106 = vmatprep.subr.mxu0 0.0
    %v107 = vand.u32 %v26, 4294901760
    %108 = vmatpush1.msra.mxu0 %v107
    %109 = vmatprep.subr.mxu0 0.0
    %v110 = vand.u32 %v27, 4294901760
    %111 = vmatpush1.msra.mxu0 %v110
    %112 = vmatprep.subr.mxu0 0.0
    %v113 = vand.u32 %v28, 4294901760
    %114 = vmatpush1.msra.mxu0 %v113
    %115 = vmatprep.subr.mxu0 0.0
    %v116 = vand.u32 %v29, 4294901760
    %117 = vmatpush1.msra.mxu0 %v116
    %118 = vmatprep.subr.mxu0 0.0
    %v119 = vand.u32 %v30, 4294901760
    %120 = vmatpush1.msra.mxu0 %v119
    %121 = vmatprep.subr.mxu0 0.0
    %v122 = vand.u32 %v31, 4294901760
    %123 = vmatpush1.msra.mxu0 %v122
    %124 = vmatprep.subr.mxu0 0.0
    %v125 = vand.u32 %v32, 4294901760
    %126 = vmatpush1.msra.mxu0 %v125
    %127 = vmatprep.subr.mxu0 0.0
    %v128 = vand.u32 %v33, 4294901760
    %129 = vmatpush1.msra.mxu0 %v128
    %130 = vmatprep.subr.mxu0 0.0
    %v131 = vand.u32 %v34, 4294901760
    %132 = vmatpush1.msra.mxu0 %v131
    %133 = vmatprep.subr.mxu0 0.0
    %v134 = vand.u32 %v35, 4294901760
    %135 = vmatpush1.msra.mxu0 %v134
    %136 = vmatprep.subr.mxu0 0.0
    %v137 = vand.u32 %v36, 4294901760
    %138 = vmatpush1.msra.mxu0 %v137
    %139 = vmatprep.subr.mxu0 0.0
    %v140 = vand.u32 %v37, 4294901760
    %141 = vmatpush1.msra.mxu0 %v140
    %142 = vmatprep.subr.mxu0 0.0
    %v143 = vand.u32 %v38, 4294901760
    %144 = vmatpush1.msra.mxu0 %v143
    %145 = vmatprep.subr.mxu0 0.0
    %v146 = vand.u32 %v39, 4294901760
    %147 = vmatpush1.msra.mxu0 %v146
    %148 = vmatprep.subr.mxu0 0.0
    %v149 = vand.u32 %v40, 4294901760
    %150 = vmatpush1.msra.mxu0 %v149
    %151 = vmatprep.subr.mxu0 0.0
    %v152 = vand.u32 %v41, 4294901760
    %153 = vmatpush1.msra.mxu0 %v152
    %154 = vmatprep.subr.mxu0 0.0
    %v155 = vand.u32 %v42, 4294901760
    %156 = vmatpush1.msra.mxu0 %v155
    %157 = vmatprep.subr.mxu0 0.0
    %v158 = vand.u32 %v43, 4294901760
    %159 = vmatpush1.msra.mxu0 %v158
    %160 = vmatprep.subr.mxu0 0.0
    %v161 = vand.u32 %v44, 4294901760
    %162 = vmatpush1.msra.mxu0 %v161
    %163 = vmatprep.subr.mxu0 0.0
    %v164 = vand.u32 %v45, 4294901760
    %165 = vmatpush1.msra.mxu0 %v164
    %166 = vmatprep.subr.mxu0 0.0
    %v167 = vand.u32 %v46, 4294901760
    %168 = vmatpush1.msra.mxu0 %v167
    %169 = vmatprep.subr.mxu0 0.0
    %v170 = vand.u32 %v47, 4294901760
    %171 = vmatpush1.msra.mxu0 %v170
    %172 = vmatprep.subr.mxu0 0.0
    %v173 = vand.u32 %v48, 4294901760
    %174 = vmatpush1.msra.mxu0 %v173
    %175 = vmatprep.subr.mxu0 0.0
    %v176 = vand.u32 %v49, 4294901760
    %177 = vmatpush1.msra.mxu0 %v176
    %178 = vmatprep.subr.mxu0 0.0
    %v179 = vand.u32 %v50, 4294901760
    %180 = vmatpush1.msra.mxu0 %v179
    %181 = vmatprep.subr.mxu0 0.0
    %v182 = vand.u32 %v51, 4294901760
    %183 = vmatpush1.msra.mxu0 %v182
    %184 = vmatprep.subr.mxu0 0.0
    %v185 = vand.u32 %v52, 4294901760
    %186 = vmatpush1.msra.mxu0 %v185
    %187 = vmatprep.subr.mxu0 0.0
    %v188 = vand.u32 %v53, 4294901760
    %189 = vmatpush1.msra.mxu0 %v188
    %190 = vmatprep.subr.mxu0 0.0
    %v191 = vand.u32 %v54, 4294901760
    %192 = vmatpush1.msra.mxu0 %v191
    %193 = vmatprep.subr.mxu0 0.0
    %v194 = vand.u32 %v55, 4294901760
    %195 = vmatpush1.msra.mxu0 %v194
    %196 = vmatprep.subr.mxu0 0.0
    %v197 = vand.u32 %v56, 4294901760
    %198 = vmatpush1.msra.mxu0 %v197
    %199 = vmatprep.subr.mxu0 0.0
    %v200 = vand.u32 %v57, 4294901760
    %201 = vmatpush1.msra.mxu0 %v200
    %v202 = vand.u32 %v22, 4294901760
    %v203 = vsub.f32 %v22, %v202
    %v204 = vand.u32 %v203, 4294901760
    %v205 = vsub.f32 %v203, %v204
    %v206 = vand.u32 %v205, 4294901760
    %207 = vmatprep.mubr.f32.mxu0 %v206
    %v208 = vand.u32 %v21, 4294901760
    %v209 = vsub.f32 %v21, %v208
    %v210 = vand.u32 %v209, 4294901760
    %v211 = vsub.f32 %v209, %v210
    %v212 = vand.u32 %v211, 4294901760
    %213 = vmatmul.mubr.f32.gmra.mrb[0].mxu0 %v212
    %v214 = vpop.f32.mrb[0].mxu0
    %v215 = vadd.f32 0.0, %v214
    %v216 = vpop.f32.mrb[0].mxu0
    %217 = vdwg.mxu0
    %218 = vmatprep.subr.mxu0 0.0
    %v219 = vand.u32 %v26, 4294901760
    %v220 = vsub.f32 %v26, %v219
    %v221 = vand.u32 %v220, 4294901760
    %v222 = vsub.f32 %v220, %v221
    %v223 = vand.u32 %v222, 4294901760
    %224 = vmatpush1.msra.mxu0 %v223
    %225 = vmatprep.subr.mxu0 0.0
    %v226 = vand.u32 %v27, 4294901760
    %v227 = vsub.f32 %v27, %v226
    %v228 = vand.u32 %v227, 4294901760
    %v229 = vsub.f32 %v227, %v228
    %v230 = vand.u32 %v229, 4294901760
    %231 = vmatpush1.msra.mxu0 %v230
    %232 = vmatprep.subr.mxu0 0.0
    %v233 = vand.u32 %v28, 4294901760
    %v234 = vsub.f32 %v28, %v233
    %v235 = vand.u32 %v234, 4294901760
    %v236 = vsub.f32 %v234, %v235
    %v237 = vand.u32 %v236, 4294901760
    %238 = vmatpush1.msra.mxu0 %v237
    %239 = vmatprep.subr.mxu0 0.0
    %v240 = vand.u32 %v29, 4294901760
    %v241 = vsub.f32 %v29, %v240
    %v242 = vand.u32 %v241, 4294901760
    %v243 = vsub.f32 %v241, %v242
    %v244 = vand.u32 %v243, 4294901760
    %245 = vmatpush1.msra.mxu0 %v244
    %246 = vmatprep.subr.mxu0 0.0
    %v247 = vand.u32 %v30, 4294901760
    %v248 = vsub.f32 %v30, %v247
    %v249 = vand.u32 %v248, 4294901760
    %v250 = vsub.f32 %v248, %v249
    %v251 = vand.u32 %v250, 4294901760
    %252 = vmatpush1.msra.mxu0 %v251
    %253 = vmatprep.subr.mxu0 0.0
    %v254 = vand.u32 %v31, 4294901760
    %v255 = vsub.f32 %v31, %v254
    %v256 = vand.u32 %v255, 4294901760
    %v257 = vsub.f32 %v255, %v256
    %v258 = vand.u32 %v257, 4294901760
    %259 = vmatpush1.msra.mxu0 %v258
    %260 = vmatprep.subr.mxu0 0.0
    %v261 = vand.u32 %v32, 4294901760
    %v262 = vsub.f32 %v32, %v261
    %v263 = vand.u32 %v262, 4294901760
    %v264 = vsub.f32 %v262, %v263
    %v265 = vand.u32 %v264, 4294901760
    %266 = vmatpush1.msra.mxu0 %v265
    %267 = vmatprep.subr.mxu0 0.0
    %v268 = vand.u32 %v33, 4294901760
    %v269 = vsub.f32 %v33, %v268
    %v270 = vand.u32 %v269, 4294901760
    %v271 = vsub.f32 %v269, %v270
    %v272 = vand.u32 %v271, 4294901760
    %273 = vmatpush1.msra.mxu0 %v272
    %274 = vmatprep.subr.mxu0 0.0
    %v275 = vand.u32 %v34, 4294901760
    %v276 = vsub.f32 %v34, %v275
    %v277 = vand.u32 %v276, 4294901760
    %v278 = vsub.f32 %v276, %v277
    %v279 = vand.u32 %v278, 4294901760
    %280 = vmatpush1.msra.mxu0 %v279
    %281 = vmatprep.subr.mxu0 0.0
    %v282 = vand.u32 %v35, 4294901760
    %v283 = vsub.f32 %v35, %v282
    %v284 = vand.u32 %v283, 4294901760
    %v285 = vsub.f32 %v283, %v284
    %v286 = vand.u32 %v285, 4294901760
    %287 = vmatpush1.msra.mxu0 %v286
    %288 = vmatprep.subr.mxu0 0.0
    %v289 = vand.u32 %v36, 4294901760
    %v290 = vsub.f32 %v36, %v289
    %v291 = vand.u32 %v290, 4294901760
    %v292 = vsub.f32 %v290, %v291
    %v293 = vand.u32 %v292, 4294901760
    %294 = vmatpush1.msra.mxu0 %v293
    %295 = vmatprep.subr.mxu0 0.0
    %v296 = vand.u32 %v37, 4294901760
    %v297 = vsub.f32 %v37, %v296
    %v298 = vand.u32 %v297, 4294901760
    %v299 = vsub.f32 %v297, %v298
    %v300 = vand.u32 %v299, 4294901760
    %301 = vmatpush1.msra.mxu0 %v300
    %302 = vmatprep.subr.mxu0 0.0
    %v303 = vand.u32 %v38, 4294901760
    %v304 = vsub.f32 %v38, %v303
    %v305 = vand.u32 %v304, 4294901760
    %v306 = vsub.f32 %v304, %v305
    %v307 = vand.u32 %v306, 4294901760
    %308 = vmatpush1.msra.mxu0 %v307
    %309 = vmatprep.subr.mxu0 0.0
    %v310 = vand.u32 %v39, 4294901760
    %v311 = vsub.f32 %v39, %v310
    %v312 = vand.u32 %v311, 4294901760
    %v313 = vsub.f32 %v311, %v312
    %v314 = vand.u32 %v313, 4294901760
    %315 = vmatpush1.msra.mxu0 %v314
    %316 = vmatprep.subr.mxu0 0.0
    %v317 = vand.u32 %v40, 4294901760
    %v318 = vsub.f32 %v40, %v317
    %v319 = vand.u32 %v318, 4294901760
    %v320 = vsub.f32 %v318, %v319
    %v321 = vand.u32 %v320, 4294901760
    %322 = vmatpush1.msra.mxu0 %v321
    %323 = vmatprep.subr.mxu0 0.0
    %v324 = vand.u32 %v41, 4294901760
    %v325 = vsub.f32 %v41, %v324
    %v326 = vand.u32 %v325, 4294901760
    %v327 = vsub.f32 %v325, %v326
    %v328 = vand.u32 %v327, 4294901760
    %329 = vmatpush1.msra.mxu0 %v328
    %330 = vmatprep.subr.mxu0 0.0
    %v331 = vand.u32 %v42, 4294901760
    %v332 = vsub.f32 %v42, %v331
    %v333 = vand.u32 %v332, 4294901760
    %v334 = vsub.f32 %v332, %v333
    %v335 = vand.u32 %v334, 4294901760
    %336 = vmatpush1.msra.mxu0 %v335
    %337 = vmatprep.subr.mxu0 0.0
    %v338 = vand.u32 %v43, 4294901760
    %v339 = vsub.f32 %v43, %v338
    %v340 = vand.u32 %v339, 4294901760
    %v341 = vsub.f32 %v339, %v340
    %v342 = vand.u32 %v341, 4294901760
    %343 = vmatpush1.msra.mxu0 %v342
    %344 = vmatprep.subr.mxu0 0.0
    %v345 = vand.u32 %v44, 4294901760
    %v346 = vsub.f32 %v44, %v345
    %v347 = vand.u32 %v346, 4294901760
    %v348 = vsub.f32 %v346, %v347
    %v349 = vand.u32 %v348, 4294901760
    %350 = vmatpush1.msra.mxu0 %v349
    %351 = vmatprep.subr.mxu0 0.0
    %v352 = vand.u32 %v45, 4294901760
    %v353 = vsub.f32 %v45, %v352
    %v354 = vand.u32 %v353, 4294901760
    %v355 = vsub.f32 %v353, %v354
    %v356 = vand.u32 %v355, 4294901760
    %357 = vmatpush1.msra.mxu0 %v356
    %358 = vmatprep.subr.mxu0 0.0
    %v359 = vand.u32 %v46, 4294901760
    %v360 = vsub.f32 %v46, %v359
    %v361 = vand.u32 %v360, 4294901760
    %v362 = vsub.f32 %v360, %v361
    %v363 = vand.u32 %v362, 4294901760
    %364 = vmatpush1.msra.mxu0 %v363
    %365 = vmatprep.subr.mxu0 0.0
    %v366 = vand.u32 %v47, 4294901760
    %v367 = vsub.f32 %v47, %v366
    %v368 = vand.u32 %v367, 4294901760
    %v369 = vsub.f32 %v367, %v368
    %v370 = vand.u32 %v369, 4294901760
    %371 = vmatpush1.msra.mxu0 %v370
    %372 = vmatprep.subr.mxu0 0.0
    %v373 = vand.u32 %v48, 4294901760
    %v374 = vsub.f32 %v48, %v373
    %v375 = vand.u32 %v374, 4294901760
    %v376 = vsub.f32 %v374, %v375
    %v377 = vand.u32 %v376, 4294901760
    %378 = vmatpush1.msra.mxu0 %v377
    %379 = vmatprep.subr.mxu0 0.0
    %v380 = vand.u32 %v49, 4294901760
    %v381 = vsub.f32 %v49, %v380
    %v382 = vand.u32 %v381, 4294901760
    %v383 = vsub.f32 %v381, %v382
    %v384 = vand.u32 %v383, 4294901760
    %385 = vmatpush1.msra.mxu0 %v384
    %386 = vmatprep.subr.mxu0 0.0
    %v387 = vand.u32 %v50, 4294901760
    %v388 = vsub.f32 %v50, %v387
    %v389 = vand.u32 %v388, 4294901760
    %v390 = vsub.f32 %v388, %v389
    %v391 = vand.u32 %v390, 4294901760
    %392 = vmatpush1.msra.mxu0 %v391
    %393 = vmatprep.subr.mxu0 0.0
    %v394 = vand.u32 %v51, 4294901760
    %v395 = vsub.f32 %v51, %v394
    %v396 = vand.u32 %v395, 4294901760
    %v397 = vsub.f32 %v395, %v396
    %v398 = vand.u32 %v397, 4294901760
    %399 = vmatpush1.msra.mxu0 %v398
    %400 = vmatprep.subr.mxu0 0.0
    %v401 = vand.u32 %v52, 4294901760
    %v402 = vsub.f32 %v52, %v401
    %v403 = vand.u32 %v402, 4294901760
    %v404 = vsub.f32 %v402, %v403
    %v405 = vand.u32 %v404, 4294901760
    %406 = vmatpush1.msra.mxu0 %v405
    %407 = vmatprep.subr.mxu0 0.0
    %v408 = vand.u32 %v53, 4294901760
    %v409 = vsub.f32 %v53, %v408
    %v410 = vand.u32 %v409, 4294901760
    %v411 = vsub.f32 %v409, %v410
    %v412 = vand.u32 %v411, 4294901760
    %413 = vmatpush1.msra.mxu0 %v412
    %414 = vmatprep.subr.mxu0 0.0
    %v415 = vand.u32 %v54, 4294901760
    %v416 = vsub.f32 %v54, %v415
    %v417 = vand.u32 %v416, 4294901760
    %v418 = vsub.f32 %v416, %v417
    %v419 = vand.u32 %v418, 4294901760
    %420 = vmatpush1.msra.mxu0 %v419
    %421 = vmatprep.subr.mxu0 0.0
    %v422 = vand.u32 %v55, 4294901760
    %v423 = vsub.f32 %v55, %v422
    %v424 = vand.u32 %v423, 4294901760
    %v425 = vsub.f32 %v423, %v424
    %v426 = vand.u32 %v425, 4294901760
    %427 = vmatpush1.msra.mxu0 %v426
    %428 = vmatprep.subr.mxu0 0.0
    %v429 = vand.u32 %v56, 4294901760
    %v430 = vsub.f32 %v56, %v429
    %v431 = vand.u32 %v430, 4294901760
    %v432 = vsub.f32 %v430, %v431
    %v433 = vand.u32 %v432, 4294901760
    %434 = vmatpush1.msra.mxu0 %v433
    %435 = vmatprep.subr.mxu0 0.0
    %v436 = vand.u32 %v57, 4294901760
    %v437 = vsub.f32 %v57, %v436
    %v438 = vand.u32 %v437, 4294901760
    %v439 = vsub.f32 %v437, %v438
    %v440 = vand.u32 %v439, 4294901760
    %441 = vmatpush1.msra.mxu0 %v440
    %v442 = vand.u32 %v22, 4294901760
    %443 = vmatprep.mubr.f32.mxu0 %v442
    %v444 = vand.u32 %v21, 4294901760
    %445 = vmatmul.mubr.f32.gmra.mrb[0].mxu0 %v444
    %v446 = vpop.f32.mrb[0].mxu0
    %v447 = vadd.f32 %v215, %v446
    %v448 = vpop.f32.mrb[0].mxu0
    %449 = vdwg.mxu0
    %450 = vmatprep.subr.mxu0 0.0
    %v451 = vand.u32 %v26, 4294901760
    %v452 = vsub.f32 %v26, %v451
    %453 = vmatpush1.msra.mxu0 %v452
    %454 = vmatprep.subr.mxu0 0.0
    %v455 = vand.u32 %v27, 4294901760
    %v456 = vsub.f32 %v27, %v455
    %457 = vmatpush1.msra.mxu0 %v456
    %458 = vmatprep.subr.mxu0 0.0
    %v459 = vand.u32 %v28, 4294901760
    %v460 = vsub.f32 %v28, %v459
    %461 = vmatpush1.msra.mxu0 %v460
    %462 = vmatprep.subr.mxu0 0.0
    %v463 = vand.u32 %v29, 4294901760
    %v464 = vsub.f32 %v29, %v463
    %465 = vmatpush1.msra.mxu0 %v464
    %466 = vmatprep.subr.mxu0 0.0
    %v467 = vand.u32 %v30, 4294901760
    %v468 = vsub.f32 %v30, %v467
    %469 = vmatpush1.msra.mxu0 %v468
    %470 = vmatprep.subr.mxu0 0.0
    %v471 = vand.u32 %v31, 4294901760
    %v472 = vsub.f32 %v31, %v471
    %473 = vmatpush1.msra.mxu0 %v472
    %474 = vmatprep.subr.mxu0 0.0
    %v475 = vand.u32 %v32, 4294901760
    %v476 = vsub.f32 %v32, %v475
    %477 = vmatpush1.msra.mxu0 %v476
    %478 = vmatprep.subr.mxu0 0.0
    %v479 = vand.u32 %v33, 4294901760
    %v480 = vsub.f32 %v33, %v479
    %481 = vmatpush1.msra.mxu0 %v480
    %482 = vmatprep.subr.mxu0 0.0
    %v483 = vand.u32 %v34, 4294901760
    %v484 = vsub.f32 %v34, %v483
    %485 = vmatpush1.msra.mxu0 %v484
    %486 = vmatprep.subr.mxu0 0.0
    %v487 = vand.u32 %v35, 4294901760
    %v488 = vsub.f32 %v35, %v487
    %489 = vmatpush1.msra.mxu0 %v488
    %490 = vmatprep.subr.mxu0 0.0
    %v491 = vand.u32 %v36, 4294901760
    %v492 = vsub.f32 %v36, %v491
    %493 = vmatpush1.msra.mxu0 %v492
    %494 = vmatprep.subr.mxu0 0.0
    %v495 = vand.u32 %v37, 4294901760
    %v496 = vsub.f32 %v37, %v495
    %497 = vmatpush1.msra.mxu0 %v496
    %498 = vmatprep.subr.mxu0 0.0
    %v499 = vand.u32 %v38, 4294901760
    %v500 = vsub.f32 %v38, %v499
    %501 = vmatpush1.msra.mxu0 %v500
    %502 = vmatprep.subr.mxu0 0.0
    %v503 = vand.u32 %v39, 4294901760
    %v504 = vsub.f32 %v39, %v503
    %505 = vmatpush1.msra.mxu0 %v504
    %506 = vmatprep.subr.mxu0 0.0
    %v507 = vand.u32 %v40, 4294901760
    %v508 = vsub.f32 %v40, %v507
    %509 = vmatpush1.msra.mxu0 %v508
    %510 = vmatprep.subr.mxu0 0.0
    %v511 = vand.u32 %v41, 4294901760
    %v512 = vsub.f32 %v41, %v511
    %513 = vmatpush1.msra.mxu0 %v512
    %514 = vmatprep.subr.mxu0 0.0
    %v515 = vand.u32 %v42, 4294901760
    %v516 = vsub.f32 %v42, %v515
    %517 = vmatpush1.msra.mxu0 %v516
    %518 = vmatprep.subr.mxu0 0.0
    %v519 = vand.u32 %v43, 4294901760
    %v520 = vsub.f32 %v43, %v519
    %521 = vmatpush1.msra.mxu0 %v520
    %522 = vmatprep.subr.mxu0 0.0
    %v523 = vand.u32 %v44, 4294901760
    %v524 = vsub.f32 %v44, %v523
    %525 = vmatpush1.msra.mxu0 %v524
    %526 = vmatprep.subr.mxu0 0.0
    %v527 = vand.u32 %v45, 4294901760
    %v528 = vsub.f32 %v45, %v527
    %529 = vmatpush1.msra.mxu0 %v528
    %530 = vmatprep.subr.mxu0 0.0
    %v531 = vand.u32 %v46, 4294901760
    %v532 = vsub.f32 %v46, %v531
    %533 = vmatpush1.msra.mxu0 %v532
    %534 = vmatprep.subr.mxu0 0.0
    %v535 = vand.u32 %v47, 4294901760
    %v536 = vsub.f32 %v47, %v535
    %537 = vmatpush1.msra.mxu0 %v536
    %538 = vmatprep.subr.mxu0 0.0
    %v539 = vand.u32 %v48, 4294901760
    %v540 = vsub.f32 %v48, %v539
    %541 = vmatpush1.msra.mxu0 %v540
    %542 = vmatprep.subr.mxu0 0.0
    %v543 = vand.u32 %v49, 4294901760
    %v544 = vsub.f32 %v49, %v543
    %545 = vmatpush1.msra.mxu0 %v544
    %546 = vmatprep.subr.mxu0 0.0
    %v547 = vand.u32 %v50, 4294901760
    %v548 = vsub.f32 %v50, %v547
    %549 = vmatpush1.msra.mxu0 %v548
    %550 = vmatprep.subr.mxu0 0.0
    %v551 = vand.u32 %v51, 4294901760
    %v552 = vsub.f32 %v51, %v551
    %553 = vmatpush1.msra.mxu0 %v552
    %554 = vmatprep.subr.mxu0 0.0
    %v555 = vand.u32 %v52, 4294901760
    %v556 = vsub.f32 %v52, %v555
    %557 = vmatpush1.msra.mxu0 %v556
    %558 = vmatprep.subr.mxu0 0.0
    %v559 = vand.u32 %v53, 4294901760
    %v560 = vsub.f32 %v53, %v559
    %561 = vmatpush1.msra.mxu0 %v560
    %562 = vmatprep.subr.mxu0 0.0
    %v563 = vand.u32 %v54, 4294901760
    %v564 = vsub.f32 %v54, %v563
    %565 = vmatpush1.msra.mxu0 %v564
    %566 = vmatprep.subr.mxu0 0.0
    %v567 = vand.u32 %v55, 4294901760
    %v568 = vsub.f32 %v55, %v567
    %569 = vmatpush1.msra.mxu0 %v568
    %570 = vmatprep.subr.mxu0 0.0
    %v571 = vand.u32 %v56, 4294901760
    %v572 = vsub.f32 %v56, %v571
    %573 = vmatpush1.msra.mxu0 %v572
    %574 = vmatprep.subr.mxu0 0.0
    %v575 = vand.u32 %v57, 4294901760
    %v576 = vsub.f32 %v57, %v575
    %577 = vmatpush1.msra.mxu0 %v576
    %v578 = vand.u32 %v22, 4294901760
    %v579 = vsub.f32 %v22, %v578
    %580 = vmatprep.mubr.f32.mxu0 %v579
    %v581 = vand.u32 %v21, 4294901760
    %v582 = vsub.f32 %v21, %v581
    %583 = vmatmul.mubr.f32.gmra.mrb[0].mxu0 %v582
    %v584 = vpop.f32.mrb[0].mxu0
    %v585 = vadd.f32 %v447, %v584
    %v586 = vpop.f32.mrb[0].mxu0
    %587 = vdwg.mxu0
    %588 = vmatprep.subr.mxu0 0.0
    %v589 = vand.u32 %v26, 4294901760
    %590 = vmatpush1.msra.mxu0 %v589
    %591 = vmatprep.subr.mxu0 0.0
    %v592 = vand.u32 %v27, 4294901760
    %593 = vmatpush1.msra.mxu0 %v592
    %594 = vmatprep.subr.mxu0 0.0
    %v595 = vand.u32 %v28, 4294901760
    %596 = vmatpush1.msra.mxu0 %v595
    %597 = vmatprep.subr.mxu0 0.0
    %v598 = vand.u32 %v29, 4294901760
    %599 = vmatpush1.msra.mxu0 %v598
    %600 = vmatprep.subr.mxu0 0.0
    %v601 = vand.u32 %v30, 4294901760
    %602 = vmatpush1.msra.mxu0 %v601
    %603 = vmatprep.subr.mxu0 0.0
    %v604 = vand.u32 %v31, 4294901760
    %605 = vmatpush1.msra.mxu0 %v604
    %606 = vmatprep.subr.mxu0 0.0
    %v607 = vand.u32 %v32, 4294901760
    %608 = vmatpush1.msra.mxu0 %v607
    %609 = vmatprep.subr.mxu0 0.0
    %v610 = vand.u32 %v33, 4294901760
    %611 = vmatpush1.msra.mxu0 %v610
    %612 = vmatprep.subr.mxu0 0.0
    %v613 = vand.u32 %v34, 4294901760
    %614 = vmatpush1.msra.mxu0 %v613
    %615 = vmatprep.subr.mxu0 0.0
    %v616 = vand.u32 %v35, 4294901760
    %617 = vmatpush1.msra.mxu0 %v616
    %618 = vmatprep.subr.mxu0 0.0
    %v619 = vand.u32 %v36, 4294901760
    %620 = vmatpush1.msra.mxu0 %v619
    %621 = vmatprep.subr.mxu0 0.0
    %v622 = vand.u32 %v37, 4294901760
    %623 = vmatpush1.msra.mxu0 %v622
    %624 = vmatprep.subr.mxu0 0.0
    %v625 = vand.u32 %v38, 4294901760
    %626 = vmatpush1.msra.mxu0 %v625
    %627 = vmatprep.subr.mxu0 0.0
    %v628 = vand.u32 %v39, 4294901760
    %629 = vmatpush1.msra.mxu0 %v628
    %630 = vmatprep.subr.mxu0 0.0
    %v631 = vand.u32 %v40, 4294901760
    %632 = vmatpush1.msra.mxu0 %v631
    %633 = vmatprep.subr.mxu0 0.0
    %v634 = vand.u32 %v41, 4294901760
    %635 = vmatpush1.msra.mxu0 %v634
    %636 = vmatprep.subr.mxu0 0.0
    %v637 = vand.u32 %v42, 4294901760
    %638 = vmatpush1.msra.mxu0 %v637
    %639 = vmatprep.subr.mxu0 0.0
    %v640 = vand.u32 %v43, 4294901760
    %641 = vmatpush1.msra.mxu0 %v640
    %642 = vmatprep.subr.mxu0 0.0
    %v643 = vand.u32 %v44, 4294901760
    %644 = vmatpush1.msra.mxu0 %v643
    %645 = vmatprep.subr.mxu0 0.0
    %v646 = vand.u32 %v45, 4294901760
    %647 = vmatpush1.msra.mxu0 %v646
    %648 = vmatprep.subr.mxu0 0.0
    %v649 = vand.u32 %v46, 4294901760
    %650 = vmatpush1.msra.mxu0 %v649
    %651 = vmatprep.subr.mxu0 0.0
    %v652 = vand.u32 %v47, 4294901760
    %653 = vmatpush1.msra.mxu0 %v652
    %654 = vmatprep.subr.mxu0 0.0
    %v655 = vand.u32 %v48, 4294901760
    %656 = vmatpush1.msra.mxu0 %v655
    %657 = vmatprep.subr.mxu0 0.0
    %v658 = vand.u32 %v49, 4294901760
    %659 = vmatpush1.msra.mxu0 %v658
    %660 = vmatprep.subr.mxu0 0.0
    %v661 = vand.u32 %v50, 4294901760
    %662 = vmatpush1.msra.mxu0 %v661
    %663 = vmatprep.subr.mxu0 0.0
    %v664 = vand.u32 %v51, 4294901760
    %665 = vmatpush1.msra.mxu0 %v664
    %666 = vmatprep.subr.mxu0 0.0
    %v667 = vand.u32 %v52, 4294901760
    %668 = vmatpush1.msra.mxu0 %v667
    %669 = vmatprep.subr.mxu0 0.0
    %v670 = vand.u32 %v53, 4294901760
    %671 = vmatpush1.msra.mxu0 %v670
    %672 = vmatprep.subr.mxu0 0.0
    %v673 = vand.u32 %v54, 4294901760
    %674 = vmatpush1.msra.mxu0 %v673
    %675 = vmatprep.subr.mxu0 0.0
    %v676 = vand.u32 %v55, 4294901760
    %677 = vmatpush1.msra.mxu0 %v676
    %678 = vmatprep.subr.mxu0 0.0
    %v679 = vand.u32 %v56, 4294901760
    %680 = vmatpush1.msra.mxu0 %v679
    %681 = vmatprep.subr.mxu0 0.0
    %v682 = vand.u32 %v57, 4294901760
    %683 = vmatpush1.msra.mxu0 %v682
    %v684 = vand.u32 %v22, 4294901760
    %v685 = vsub.f32 %v22, %v684
    %v686 = vand.u32 %v685, 4294901760
    %687 = vmatprep.mubr.f32.mxu0 %v686
    %v688 = vand.u32 %v21, 4294901760
    %v689 = vsub.f32 %v21, %v688
    %v690 = vand.u32 %v689, 4294901760
    %691 = vmatmul.mubr.f32.gmra.mrb[0].mxu0 %v690
    %v692 = vpop.f32.mrb[0].mxu0
    %v693 = vadd.f32 %v585, %v692
    %v694 = vpop.f32.mrb[0].mxu0
    %695 = vdwg.mxu0
    %696 = vmatprep.subr.mxu0 0.0
    %v697 = vand.u32 %v26, 4294901760
    %v698 = vsub.f32 %v26, %v697
    %v699 = vand.u32 %v698, 4294901760
    %700 = vmatpush1.msra.mxu0 %v699
    %701 = vmatprep.subr.mxu0 0.0
    %v702 = vand.u32 %v27, 4294901760
    %v703 = vsub.f32 %v27, %v702
    %v704 = vand.u32 %v703, 4294901760
    %705 = vmatpush1.msra.mxu0 %v704
    %706 = vmatprep.subr.mxu0 0.0
    %v707 = vand.u32 %v28, 4294901760
    %v708 = vsub.f32 %v28, %v707
    %v709 = vand.u32 %v708, 4294901760
    %710 = vmatpush1.msra.mxu0 %v709
    %711 = vmatprep.subr.mxu0 0.0
    %v712 = vand.u32 %v29, 4294901760
    %v713 = vsub.f32 %v29, %v712
    %v714 = vand.u32 %v713, 4294901760
    %715 = vmatpush1.msra.mxu0 %v714
    %716 = vmatprep.subr.mxu0 0.0
    %v717 = vand.u32 %v30, 4294901760
    %v718 = vsub.f32 %v30, %v717
    %v719 = vand.u32 %v718, 4294901760
    %720 = vmatpush1.msra.mxu0 %v719
    %721 = vmatprep.subr.mxu0 0.0
    %v722 = vand.u32 %v31, 4294901760
    %v723 = vsub.f32 %v31, %v722
    %v724 = vand.u32 %v723, 4294901760
    %725 = vmatpush1.msra.mxu0 %v724
    %726 = vmatprep.subr.mxu0 0.0
    %v727 = vand.u32 %v32, 4294901760
    %v728 = vsub.f32 %v32, %v727
    %v729 = vand.u32 %v728, 4294901760
    %730 = vmatpush1.msra.mxu0 %v729
    %731 = vmatprep.subr.mxu0 0.0
    %v732 = vand.u32 %v33, 4294901760
    %v733 = vsub.f32 %v33, %v732
    %v734 = vand.u32 %v733, 4294901760
    %735 = vmatpush1.msra.mxu0 %v734
    %736 = vmatprep.subr.mxu0 0.0
    %v737 = vand.u32 %v34, 4294901760
    %v738 = vsub.f32 %v34, %v737
    %v739 = vand.u32 %v738, 4294901760
    %740 = vmatpush1.msra.mxu0 %v739
    %741 = vmatprep.subr.mxu0 0.0
    %v742 = vand.u32 %v35, 4294901760
    %v743 = vsub.f32 %v35, %v742
    %v744 = vand.u32 %v743, 4294901760
    %745 = vmatpush1.msra.mxu0 %v744
    %746 = vmatprep.subr.mxu0 0.0
    %v747 = vand.u32 %v36, 4294901760
    %v748 = vsub.f32 %v36, %v747
    %v749 = vand.u32 %v748, 4294901760
    %750 = vmatpush1.msra.mxu0 %v749
    %751 = vmatprep.subr.mxu0 0.0
    %v752 = vand.u32 %v37, 4294901760
    %v753 = vsub.f32 %v37, %v752
    %v754 = vand.u32 %v753, 4294901760
    %755 = vmatpush1.msra.mxu0 %v754
    %756 = vmatprep.subr.mxu0 0.0
    %v757 = vand.u32 %v38, 4294901760
    %v758 = vsub.f32 %v38, %v757
    %v759 = vand.u32 %v758, 4294901760
    %760 = vmatpush1.msra.mxu0 %v759
    %761 = vmatprep.subr.mxu0 0.0
    %v762 = vand.u32 %v39, 4294901760
    %v763 = vsub.f32 %v39, %v762
    %v764 = vand.u32 %v763, 4294901760
    %765 = vmatpush1.msra.mxu0 %v764
    %766 = vmatprep.subr.mxu0 0.0
    %v767 = vand.u32 %v40, 4294901760
    %v768 = vsub.f32 %v40, %v767
    %v769 = vand.u32 %v768, 4294901760
    %770 = vmatpush1.msra.mxu0 %v769
    %771 = vmatprep.subr.mxu0 0.0
    %v772 = vand.u32 %v41, 4294901760
    %v773 = vsub.f32 %v41, %v772
    %v774 = vand.u32 %v773, 4294901760
    %775 = vmatpush1.msra.mxu0 %v774
    %776 = vmatprep.subr.mxu0 0.0
    %v777 = vand.u32 %v42, 4294901760
    %v778 = vsub.f32 %v42, %v777
    %v779 = vand.u32 %v778, 4294901760
    %780 = vmatpush1.msra.mxu0 %v779
    %781 = vmatprep.subr.mxu0 0.0
    %v782 = vand.u32 %v43, 4294901760
    %v783 = vsub.f32 %v43, %v782
    %v784 = vand.u32 %v783, 4294901760
    %785 = vmatpush1.msra.mxu0 %v784
    %786 = vmatprep.subr.mxu0 0.0
    %v787 = vand.u32 %v44, 4294901760
    %v788 = vsub.f32 %v44, %v787
    %v789 = vand.u32 %v788, 4294901760
    %790 = vmatpush1.msra.mxu0 %v789
    %791 = vmatprep.subr.mxu0 0.0
    %v792 = vand.u32 %v45, 4294901760
    %v793 = vsub.f32 %v45, %v792
    %v794 = vand.u32 %v793, 4294901760
    %795 = vmatpush1.msra.mxu0 %v794
    %796 = vmatprep.subr.mxu0 0.0
    %v797 = vand.u32 %v46, 4294901760
    %v798 = vsub.f32 %v46, %v797
    %v799 = vand.u32 %v798, 4294901760
    %800 = vmatpush1.msra.mxu0 %v799
    %801 = vmatprep.subr.mxu0 0.0
    %v802 = vand.u32 %v47, 4294901760
    %v803 = vsub.f32 %v47, %v802
    %v804 = vand.u32 %v803, 4294901760
    %805 = vmatpush1.msra.mxu0 %v804
    %806 = vmatprep.subr.mxu0 0.0
    %v807 = vand.u32 %v48, 4294901760
    %v808 = vsub.f32 %v48, %v807
    %v809 = vand.u32 %v808, 4294901760
    %810 = vmatpush1.msra.mxu0 %v809
    %811 = vmatprep.subr.mxu0 0.0
    %v812 = vand.u32 %v49, 4294901760
    %v813 = vsub.f32 %v49, %v812
    %v814 = vand.u32 %v813, 4294901760
    %815 = vmatpush1.msra.mxu0 %v814
    %816 = vmatprep.subr.mxu0 0.0
    %v817 = vand.u32 %v50, 4294901760
    %v818 = vsub.f32 %v50, %v817
    %v819 = vand.u32 %v818, 4294901760
    %820 = vmatpush1.msra.mxu0 %v819
    %821 = vmatprep.subr.mxu0 0.0
    %v822 = vand.u32 %v51, 4294901760
    %v823 = vsub.f32 %v51, %v822
    %v824 = vand.u32 %v823, 4294901760
    %825 = vmatpush1.msra.mxu0 %v824
    %826 = vmatprep.subr.mxu0 0.0
    %v827 = vand.u32 %v52, 4294901760
    %v828 = vsub.f32 %v52, %v827
    %v829 = vand.u32 %v828, 4294901760
    %830 = vmatpush1.msra.mxu0 %v829
    %831 = vmatprep.subr.mxu0 0.0
    %v832 = vand.u32 %v53, 4294901760
    %v833 = vsub.f32 %v53, %v832
    %v834 = vand.u32 %v833, 4294901760
    %835 = vmatpush1.msra.mxu0 %v834
    %836 = vmatprep.subr.mxu0 0.0
    %v837 = vand.u32 %v54, 4294901760
    %v838 = vsub.f32 %v54, %v837
    %v839 = vand.u32 %v838, 4294901760
    %840 = vmatpush1.msra.mxu0 %v839
    %841 = vmatprep.subr.mxu0 0.0
    %v842 = vand.u32 %v55, 4294901760
    %v843 = vsub.f32 %v55, %v842
    %v844 = vand.u32 %v843, 4294901760
    %845 = vmatpush1.msra.mxu0 %v844
    %846 = vmatprep.subr.mxu0 0.0
    %v847 = vand.u32 %v56, 4294901760
    %v848 = vsub.f32 %v56, %v847
    %v849 = vand.u32 %v848, 4294901760
    %850 = vmatpush1.msra.mxu0 %v849
    %851 = vmatprep.subr.mxu0 0.0
    %v852 = vand.u32 %v57, 4294901760
    %v853 = vsub.f32 %v57, %v852
    %v854 = vand.u32 %v853, 4294901760
    %855 = vmatpush1.msra.mxu0 %v854
    %v856 = vand.u32 %v22, 4294901760
    %857 = vmatprep.mubr.f32.mxu0 %v856
    %v858 = vand.u32 %v21, 4294901760
    %859 = vmatmul.mubr.f32.gmra.mrb[0].mxu0 %v858
    %v860 = vpop.f32.mrb[0].mxu0
    %v861 = vadd.f32 %v693, %v860
    %v862 = vpop.f32.mrb[0].mxu0
    %863 = vdwg.mxu0
    %864 = vmatprep.subr.mxu0 0.0
    %v865 = vand.u32 %v26, 4294901760
    %866 = vmatpush1.msra.mxu0 %v865
    %867 = vmatprep.subr.mxu0 0.0
    %v868 = vand.u32 %v27, 4294901760
    %869 = vmatpush1.msra.mxu0 %v868
    %870 = vmatprep.subr.mxu0 0.0
    %v871 = vand.u32 %v28, 4294901760
    %872 = vmatpush1.msra.mxu0 %v871
    %873 = vmatprep.subr.mxu0 0.0
    %v874 = vand.u32 %v29, 4294901760
    %875 = vmatpush1.msra.mxu0 %v874
    %876 = vmatprep.subr.mxu0 0.0
    %v877 = vand.u32 %v30, 4294901760
    %878 = vmatpush1.msra.mxu0 %v877
    %879 = vmatprep.subr.mxu0 0.0
    %v880 = vand.u32 %v31, 4294901760
    %881 = vmatpush1.msra.mxu0 %v880
    %882 = vmatprep.subr.mxu0 0.0
    %v883 = vand.u32 %v32, 4294901760
    %884 = vmatpush1.msra.mxu0 %v883
    %885 = vmatprep.subr.mxu0 0.0
    %v886 = vand.u32 %v33, 4294901760
    %887 = vmatpush1.msra.mxu0 %v886
    %888 = vmatprep.subr.mxu0 0.0
    %v889 = vand.u32 %v34, 4294901760
    %890 = vmatpush1.msra.mxu0 %v889
    %891 = vmatprep.subr.mxu0 0.0
    %v892 = vand.u32 %v35, 4294901760
    %893 = vmatpush1.msra.mxu0 %v892
    %894 = vmatprep.subr.mxu0 0.0
    %v895 = vand.u32 %v36, 4294901760
    %896 = vmatpush1.msra.mxu0 %v895
    %897 = vmatprep.subr.mxu0 0.0
    %v898 = vand.u32 %v37, 4294901760
    %899 = vmatpush1.msra.mxu0 %v898
    %900 = vmatprep.subr.mxu0 0.0
    %v901 = vand.u32 %v38, 4294901760
    %902 = vmatpush1.msra.mxu0 %v901
    %903 = vmatprep.subr.mxu0 0.0
    %v904 = vand.u32 %v39, 4294901760
    %905 = vmatpush1.msra.mxu0 %v904
    %906 = vmatprep.subr.mxu0 0.0
    %v907 = vand.u32 %v40, 4294901760
    %908 = vmatpush1.msra.mxu0 %v907
    %909 = vmatprep.subr.mxu0 0.0
    %v910 = vand.u32 %v41, 4294901760
    %911 = vmatpush1.msra.mxu0 %v910
    %912 = vmatprep.subr.mxu0 0.0
    %v913 = vand.u32 %v42, 4294901760
    %914 = vmatpush1.msra.mxu0 %v913
    %915 = vmatprep.subr.mxu0 0.0
    %v916 = vand.u32 %v43, 4294901760
    %917 = vmatpush1.msra.mxu0 %v916
    %918 = vmatprep.subr.mxu0 0.0
    %v919 = vand.u32 %v44, 4294901760
    %920 = vmatpush1.msra.mxu0 %v919
    %921 = vmatprep.subr.mxu0 0.0
    %v922 = vand.u32 %v45, 4294901760
    %923 = vmatpush1.msra.mxu0 %v922
    %924 = vmatprep.subr.mxu0 0.0
    %v925 = vand.u32 %v46, 4294901760
    %926 = vmatpush1.msra.mxu0 %v925
    %927 = vmatprep.subr.mxu0 0.0
    %v928 = vand.u32 %v47, 4294901760
    %929 = vmatpush1.msra.mxu0 %v928
    %930 = vmatprep.subr.mxu0 0.0
    %v931 = vand.u32 %v48, 4294901760
    %932 = vmatpush1.msra.mxu0 %v931
    %933 = vmatprep.subr.mxu0 0.0
    %v934 = vand.u32 %v49, 4294901760
    %935 = vmatpush1.msra.mxu0 %v934
    %936 = vmatprep.subr.mxu0 0.0
    %v937 = vand.u32 %v50, 4294901760
    %938 = vmatpush1.msra.mxu0 %v937
    %939 = vmatprep.subr.mxu0 0.0
    %v940 = vand.u32 %v51, 4294901760
    %941 = vmatpush1.msra.mxu0 %v940
    %942 = vmatprep.subr.mxu0 0.0
    %v943 = vand.u32 %v52, 4294901760
    %944 = vmatpush1.msra.mxu0 %v943
    %945 = vmatprep.subr.mxu0 0.0
    %v946 = vand.u32 %v53, 4294901760
    %947 = vmatpush1.msra.mxu0 %v946
    %948 = vmatprep.subr.mxu0 0.0
    %v949 = vand.u32 %v54, 4294901760
    %950 = vmatpush1.msra.mxu0 %v949
    %951 = vmatprep.subr.mxu0 0.0
    %v952 = vand.u32 %v55, 4294901760
    %953 = vmatpush1.msra.mxu0 %v952
    %954 = vmatprep.subr.mxu0 0.0
    %v955 = vand.u32 %v56, 4294901760
    %956 = vmatpush1.msra.mxu0 %v955
    %957 = vmatprep.subr.mxu0 0.0
    %v958 = vand.u32 %v57, 4294901760
    %959 = vmatpush1.msra.mxu0 %v958
    %v960 = vand.u32 %v22, 4294901760
    %961 = vmatprep.mubr.f32.mxu0 %v960
    %v962 = vand.u32 %v21, 4294901760
    %963 = vmatmul.mubr.f32.gmra.mrb[0].mxu0 %v962
    %v964 = vpop.f32.mrb[0].mxu0
    %v965 = vadd.f32 %v861, %v964
    %v966 = vpop.f32.mrb[0].mxu0
    %967 = vdwg.mxu0
    %968 = vmatprep.subr.mxu0 0.0
    %v969 = vand.u32 %v58, 4294901760
    %970 = vmatpush1.msra.mxu0 %v969
    %971 = vmatprep.subr.mxu0 0.0
    %v972 = vand.u32 %v59, 4294901760
    %973 = vmatpush1.msra.mxu0 %v972
    %974 = vmatprep.subr.mxu0 0.0
    %v975 = vand.u32 %v60, 4294901760
    %976 = vmatpush1.msra.mxu0 %v975
    %977 = vmatprep.subr.mxu0 0.0
    %v978 = vand.u32 %v61, 4294901760
    %979 = vmatpush1.msra.mxu0 %v978
    %980 = vmatprep.subr.mxu0 0.0
    %v981 = vand.u32 %v62, 4294901760
    %982 = vmatpush1.msra.mxu0 %v981
    %983 = vmatprep.subr.mxu0 0.0
    %v984 = vand.u32 %v63, 4294901760
    %985 = vmatpush1.msra.mxu0 %v984
    %986 = vmatprep.subr.mxu0 0.0
    %v987 = vand.u32 %v64, 4294901760
    %988 = vmatpush1.msra.mxu0 %v987
    %989 = vmatprep.subr.mxu0 0.0
    %v990 = vand.u32 %v65, 4294901760
    %991 = vmatpush1.msra.mxu0 %v990
    %992 = vmatprep.subr.mxu0 0.0
    %v993 = vand.u32 %v66, 4294901760
    %994 = vmatpush1.msra.mxu0 %v993
    %995 = vmatprep.subr.mxu0 0.0
    %v996 = vand.u32 %v67, 4294901760
    %997 = vmatpush1.msra.mxu0 %v996
    %998 = vmatprep.subr.mxu0 0.0
    %v999 = vand.u32 %v68, 4294901760
    %1000 = vmatpush1.msra.mxu0 %v999
    %1001 = vmatprep.subr.mxu0 0.0
    %v1002 = vand.u32 %v69, 4294901760
    %1003 = vmatpush1.msra.mxu0 %v1002
    %1004 = vmatprep.subr.mxu0 0.0
    %v1005 = vand.u32 %v70, 4294901760
    %1006 = vmatpush1.msra.mxu0 %v1005
    %1007 = vmatprep.subr.mxu0 0.0
    %v1008 = vand.u32 %v71, 4294901760
    %1009 = vmatpush1.msra.mxu0 %v1008
    %1010 = vmatprep.subr.mxu0 0.0
    %v1011 = vand.u32 %v72, 4294901760
    %1012 = vmatpush1.msra.mxu0 %v1011
    %1013 = vmatprep.subr.mxu0 0.0
    %v1014 = vand.u32 %v73, 4294901760
    %1015 = vmatpush1.msra.mxu0 %v1014
    %1016 = vmatprep.subr.mxu0 0.0
    %v1017 = vand.u32 %v74, 4294901760
    %1018 = vmatpush1.msra.mxu0 %v1017
    %1019 = vmatprep.subr.mxu0 0.0
    %v1020 = vand.u32 %v75, 4294901760
    %1021 = vmatpush1.msra.mxu0 %v1020
    %1022 = vmatprep.subr.mxu0 0.0
    %v1023 = vand.u32 %v76, 4294901760
    %1024 = vmatpush1.msra.mxu0 %v1023
    %1025 = vmatprep.subr.mxu0 0.0
    %v1026 = vand.u32 %v77, 4294901760
    %1027 = vmatpush1.msra.mxu0 %v1026
    %1028 = vmatprep.subr.mxu0 0.0
    %v1029 = vand.u32 %v78, 4294901760
    %1030 = vmatpush1.msra.mxu0 %v1029
    %1031 = vmatprep.subr.mxu0 0.0
    %v1032 = vand.u32 %v79, 4294901760
    %1033 = vmatpush1.msra.mxu0 %v1032
    %1034 = vmatprep.subr.mxu0 0.0
    %v1035 = vand.u32 %v80, 4294901760
    %1036 = vmatpush1.msra.mxu0 %v1035
    %1037 = vmatprep.subr.mxu0 0.0
    %v1038 = vand.u32 %v81, 4294901760
    %1039 = vmatpush1.msra.mxu0 %v1038
    %1040 = vmatprep.subr.mxu0 0.0
    %v1041 = vand.u32 %v82, 4294901760
    %1042 = vmatpush1.msra.mxu0 %v1041
    %1043 = vmatprep.subr.mxu0 0.0
    %v1044 = vand.u32 %v83, 4294901760
    %1045 = vmatpush1.msra.mxu0 %v1044
    %1046 = vmatprep.subr.mxu0 0.0
    %v1047 = vand.u32 %v84, 4294901760
    %1048 = vmatpush1.msra.mxu0 %v1047
    %1049 = vmatprep.subr.mxu0 0.0
    %v1050 = vand.u32 %v85, 4294901760
    %1051 = vmatpush1.msra.mxu0 %v1050
    %1052 = vmatprep.subr.mxu0 0.0
    %v1053 = vand.u32 %v86, 4294901760
    %1054 = vmatpush1.msra.mxu0 %v1053
    %1055 = vmatprep.subr.mxu0 0.0
    %v1056 = vand.u32 %v87, 4294901760
    %1057 = vmatpush1.msra.mxu0 %v1056
    %1058 = vmatprep.subr.mxu0 0.0
    %v1059 = vand.u32 %v88, 4294901760
    %1060 = vmatpush1.msra.mxu0 %v1059
    %1061 = vmatprep.subr.mxu0 0.0
    %v1062 = vand.u32 %v89, 4294901760
    %1063 = vmatpush1.msra.mxu0 %v1062
    %v1064 = vand.u32 %v24, 4294901760
    %v1065 = vsub.f32 %v24, %v1064
    %v1066 = vand.u32 %v1065, 4294901760
    %v1067 = vsub.f32 %v1065, %v1066
    %v1068 = vand.u32 %v1067, 4294901760
    %1069 = vmatprep.mubr.f32.mxu0 %v1068
    %v1070 = vand.u32 %v23, 4294901760
    %v1071 = vsub.f32 %v23, %v1070
    %v1072 = vand.u32 %v1071, 4294901760
    %v1073 = vsub.f32 %v1071, %v1072
    %v1074 = vand.u32 %v1073, 4294901760
    %1075 = vmatmul.mubr.f32.gmra.mrb[0].mxu0 %v1074
    %v1076 = vpop.f32.mrb[0].mxu0
    %v1077 = vadd.f32 %v965, %v1076
    %v1078 = vpop.f32.mrb[0].mxu0
    %1079 = vdwg.mxu0
    %1080 = vmatprep.subr.mxu0 0.0
    %v1081 = vand.u32 %v58, 4294901760
    %v1082 = vsub.f32 %v58, %v1081
    %v1083 = vand.u32 %v1082, 4294901760
    %v1084 = vsub.f32 %v1082, %v1083
    %v1085 = vand.u32 %v1084, 4294901760
    %1086 = vmatpush1.msra.mxu0 %v1085
    %1087 = vmatprep.subr.mxu0 0.0
    %v1088 = vand.u32 %v59, 4294901760
    %v1089 = vsub.f32 %v59, %v1088
    %v1090 = vand.u32 %v1089, 4294901760
    %v1091 = vsub.f32 %v1089, %v1090
    %v1092 = vand.u32 %v1091, 4294901760
    %1093 = vmatpush1.msra.mxu0 %v1092
    %1094 = vmatprep.subr.mxu0 0.0
    %v1095 = vand.u32 %v60, 4294901760
    %v1096 = vsub.f32 %v60, %v1095
    %v1097 = vand.u32 %v1096, 4294901760
    %v1098 = vsub.f32 %v1096, %v1097
    %v1099 = vand.u32 %v1098, 4294901760
    %1100 = vmatpush1.msra.mxu0 %v1099
    %1101 = vmatprep.subr.mxu0 0.0
    %v1102 = vand.u32 %v61, 4294901760
    %v1103 = vsub.f32 %v61, %v1102
    %v1104 = vand.u32 %v1103, 4294901760
    %v1105 = vsub.f32 %v1103, %v1104
    %v1106 = vand.u32 %v1105, 4294901760
    %1107 = vmatpush1.msra.mxu0 %v1106
    %1108 = vmatprep.subr.mxu0 0.0
    %v1109 = vand.u32 %v62, 4294901760
    %v1110 = vsub.f32 %v62, %v1109
    %v1111 = vand.u32 %v1110, 4294901760
    %v1112 = vsub.f32 %v1110, %v1111
    %v1113 = vand.u32 %v1112, 4294901760
    %1114 = vmatpush1.msra.mxu0 %v1113
    %1115 = vmatprep.subr.mxu0 0.0
    %v1116 = vand.u32 %v63, 4294901760
    %v1117 = vsub.f32 %v63, %v1116
    %v1118 = vand.u32 %v1117, 4294901760
    %v1119 = vsub.f32 %v1117, %v1118
    %v1120 = vand.u32 %v1119, 4294901760
    %1121 = vmatpush1.msra.mxu0 %v1120
    %1122 = vmatprep.subr.mxu0 0.0
    %v1123 = vand.u32 %v64, 4294901760
    %v1124 = vsub.f32 %v64, %v1123
    %v1125 = vand.u32 %v1124, 4294901760
    %v1126 = vsub.f32 %v1124, %v1125
    %v1127 = vand.u32 %v1126, 4294901760
    %1128 = vmatpush1.msra.mxu0 %v1127
    %1129 = vmatprep.subr.mxu0 0.0
    %v1130 = vand.u32 %v65, 4294901760
    %v1131 = vsub.f32 %v65, %v1130
    %v1132 = vand.u32 %v1131, 4294901760
    %v1133 = vsub.f32 %v1131, %v1132
    %v1134 = vand.u32 %v1133, 4294901760
    %1135 = vmatpush1.msra.mxu0 %v1134
    %1136 = vmatprep.subr.mxu0 0.0
    %v1137 = vand.u32 %v66, 4294901760
    %v1138 = vsub.f32 %v66, %v1137
    %v1139 = vand.u32 %v1138, 4294901760
    %v1140 = vsub.f32 %v1138, %v1139
    %v1141 = vand.u32 %v1140, 4294901760
    %1142 = vmatpush1.msra.mxu0 %v1141
    %1143 = vmatprep.subr.mxu0 0.0
    %v1144 = vand.u32 %v67, 4294901760
    %v1145 = vsub.f32 %v67, %v1144
    %v1146 = vand.u32 %v1145, 4294901760
    %v1147 = vsub.f32 %v1145, %v1146
    %v1148 = vand.u32 %v1147, 4294901760
    %1149 = vmatpush1.msra.mxu0 %v1148
    %1150 = vmatprep.subr.mxu0 0.0
    %v1151 = vand.u32 %v68, 4294901760
    %v1152 = vsub.f32 %v68, %v1151
    %v1153 = vand.u32 %v1152, 4294901760
    %v1154 = vsub.f32 %v1152, %v1153
    %v1155 = vand.u32 %v1154, 4294901760
    %1156 = vmatpush1.msra.mxu0 %v1155
    %1157 = vmatprep.subr.mxu0 0.0
    %v1158 = vand.u32 %v69, 4294901760
    %v1159 = vsub.f32 %v69, %v1158
    %v1160 = vand.u32 %v1159, 4294901760
    %v1161 = vsub.f32 %v1159, %v1160
    %v1162 = vand.u32 %v1161, 4294901760
    %1163 = vmatpush1.msra.mxu0 %v1162
    %1164 = vmatprep.subr.mxu0 0.0
    %v1165 = vand.u32 %v70, 4294901760
    %v1166 = vsub.f32 %v70, %v1165
    %v1167 = vand.u32 %v1166, 4294901760
    %v1168 = vsub.f32 %v1166, %v1167
    %v1169 = vand.u32 %v1168, 4294901760
    %1170 = vmatpush1.msra.mxu0 %v1169
    %1171 = vmatprep.subr.mxu0 0.0
    %v1172 = vand.u32 %v71, 4294901760
    %v1173 = vsub.f32 %v71, %v1172
    %v1174 = vand.u32 %v1173, 4294901760
    %v1175 = vsub.f32 %v1173, %v1174
    %v1176 = vand.u32 %v1175, 4294901760
    %1177 = vmatpush1.msra.mxu0 %v1176
    %1178 = vmatprep.subr.mxu0 0.0
    %v1179 = vand.u32 %v72, 4294901760
    %v1180 = vsub.f32 %v72, %v1179
    %v1181 = vand.u32 %v1180, 4294901760
    %v1182 = vsub.f32 %v1180, %v1181
    %v1183 = vand.u32 %v1182, 4294901760
    %1184 = vmatpush1.msra.mxu0 %v1183
    %1185 = vmatprep.subr.mxu0 0.0
    %v1186 = vand.u32 %v73, 4294901760
    %v1187 = vsub.f32 %v73, %v1186
    %v1188 = vand.u32 %v1187, 4294901760
    %v1189 = vsub.f32 %v1187, %v1188
    %v1190 = vand.u32 %v1189, 4294901760
    %1191 = vmatpush1.msra.mxu0 %v1190
    %1192 = vmatprep.subr.mxu0 0.0
    %v1193 = vand.u32 %v74, 4294901760
    %v1194 = vsub.f32 %v74, %v1193
    %v1195 = vand.u32 %v1194, 4294901760
    %v1196 = vsub.f32 %v1194, %v1195
    %v1197 = vand.u32 %v1196, 4294901760
    %1198 = vmatpush1.msra.mxu0 %v1197
    %1199 = vmatprep.subr.mxu0 0.0
    %v1200 = vand.u32 %v75, 4294901760
    %v1201 = vsub.f32 %v75, %v1200
    %v1202 = vand.u32 %v1201, 4294901760
    %v1203 = vsub.f32 %v1201, %v1202
    %v1204 = vand.u32 %v1203, 4294901760
    %1205 = vmatpush1.msra.mxu0 %v1204
    %1206 = vmatprep.subr.mxu0 0.0
    %v1207 = vand.u32 %v76, 4294901760
    %v1208 = vsub.f32 %v76, %v1207
    %v1209 = vand.u32 %v1208, 4294901760
    %v1210 = vsub.f32 %v1208, %v1209
    %v1211 = vand.u32 %v1210, 4294901760
    %1212 = vmatpush1.msra.mxu0 %v1211
    %1213 = vmatprep.subr.mxu0 0.0
    %v1214 = vand.u32 %v77, 4294901760
    %v1215 = vsub.f32 %v77, %v1214
    %v1216 = vand.u32 %v1215, 4294901760
    %v1217 = vsub.f32 %v1215, %v1216
    %v1218 = vand.u32 %v1217, 4294901760
    %1219 = vmatpush1.msra.mxu0 %v1218
    %1220 = vmatprep.subr.mxu0 0.0
    %v1221 = vand.u32 %v78, 4294901760
    %v1222 = vsub.f32 %v78, %v1221
    %v1223 = vand.u32 %v1222, 4294901760
    %v1224 = vsub.f32 %v1222, %v1223
    %v1225 = vand.u32 %v1224, 4294901760
    %1226 = vmatpush1.msra.mxu0 %v1225
    %1227 = vmatprep.subr.mxu0 0.0
    %v1228 = vand.u32 %v79, 4294901760
    %v1229 = vsub.f32 %v79, %v1228
    %v1230 = vand.u32 %v1229, 4294901760
    %v1231 = vsub.f32 %v1229, %v1230
    %v1232 = vand.u32 %v1231, 4294901760
    %1233 = vmatpush1.msra.mxu0 %v1232
    %1234 = vmatprep.subr.mxu0 0.0
    %v1235 = vand.u32 %v80, 4294901760
    %v1236 = vsub.f32 %v80, %v1235
    %v1237 = vand.u32 %v1236, 4294901760
    %v1238 = vsub.f32 %v1236, %v1237
    %v1239 = vand.u32 %v1238, 4294901760
    %1240 = vmatpush1.msra.mxu0 %v1239
    %1241 = vmatprep.subr.mxu0 0.0
    %v1242 = vand.u32 %v81, 4294901760
    %v1243 = vsub.f32 %v81, %v1242
    %v1244 = vand.u32 %v1243, 4294901760
    %v1245 = vsub.f32 %v1243, %v1244
    %v1246 = vand.u32 %v1245, 4294901760
    %1247 = vmatpush1.msra.mxu0 %v1246
    %1248 = vmatprep.subr.mxu0 0.0
    %v1249 = vand.u32 %v82, 4294901760
    %v1250 = vsub.f32 %v82, %v1249
    %v1251 = vand.u32 %v1250, 4294901760
    %v1252 = vsub.f32 %v1250, %v1251
    %v1253 = vand.u32 %v1252, 4294901760
    %1254 = vmatpush1.msra.mxu0 %v1253
    %1255 = vmatprep.subr.mxu0 0.0
    %v1256 = vand.u32 %v83, 4294901760
    %v1257 = vsub.f32 %v83, %v1256
    %v1258 = vand.u32 %v1257, 4294901760
    %v1259 = vsub.f32 %v1257, %v1258
    %v1260 = vand.u32 %v1259, 4294901760
    %1261 = vmatpush1.msra.mxu0 %v1260
    %1262 = vmatprep.subr.mxu0 0.0
    %v1263 = vand.u32 %v84, 4294901760
    %v1264 = vsub.f32 %v84, %v1263
    %v1265 = vand.u32 %v1264, 4294901760
    %v1266 = vsub.f32 %v1264, %v1265
    %v1267 = vand.u32 %v1266, 4294901760
    %1268 = vmatpush1.msra.mxu0 %v1267
    %1269 = vmatprep.subr.mxu0 0.0
    %v1270 = vand.u32 %v85, 4294901760
    %v1271 = vsub.f32 %v85, %v1270
    %v1272 = vand.u32 %v1271, 4294901760
    %v1273 = vsub.f32 %v1271, %v1272
    %v1274 = vand.u32 %v1273, 4294901760
    %1275 = vmatpush1.msra.mxu0 %v1274
    %1276 = vmatprep.subr.mxu0 0.0
    %v1277 = vand.u32 %v86, 4294901760
    %v1278 = vsub.f32 %v86, %v1277
    %v1279 = vand.u32 %v1278, 4294901760
    %v1280 = vsub.f32 %v1278, %v1279
    %v1281 = vand.u32 %v1280, 4294901760
    %1282 = vmatpush1.msra.mxu0 %v1281
    %1283 = vmatprep.subr.mxu0 0.0
    %v1284 = vand.u32 %v87, 4294901760
    %v1285 = vsub.f32 %v87, %v1284
    %v1286 = vand.u32 %v1285, 4294901760
    %v1287 = vsub.f32 %v1285, %v1286
    %v1288 = vand.u32 %v1287, 4294901760
    %1289 = vmatpush1.msra.mxu0 %v1288
    %1290 = vmatprep.subr.mxu0 0.0
    %v1291 = vand.u32 %v88, 4294901760
    %v1292 = vsub.f32 %v88, %v1291
    %v1293 = vand.u32 %v1292, 4294901760
    %v1294 = vsub.f32 %v1292, %v1293
    %v1295 = vand.u32 %v1294, 4294901760
    %1296 = vmatpush1.msra.mxu0 %v1295
    %1297 = vmatprep.subr.mxu0 0.0
    %v1298 = vand.u32 %v89, 4294901760
    %v1299 = vsub.f32 %v89, %v1298
    %v1300 = vand.u32 %v1299, 4294901760
    %v1301 = vsub.f32 %v1299, %v1300
    %v1302 = vand.u32 %v1301, 4294901760
    %1303 = vmatpush1.msra.mxu0 %v1302
    %v1304 = vand.u32 %v24, 4294901760
    %1305 = vmatprep.mubr.f32.mxu0 %v1304
    %v1306 = vand.u32 %v23, 4294901760
    %1307 = vmatmul.mubr.f32.gmra.mrb[0].mxu0 %v1306
    %v1308 = vpop.f32.mrb[0].mxu0
    %v1309 = vadd.f32 %v1077, %v1308
    %v1310 = vpop.f32.mrb[0].mxu0
    %1311 = vdwg.mxu0
    %1312 = vmatprep.subr.mxu0 0.0
    %v1313 = vand.u32 %v58, 4294901760
    %v1314 = vsub.f32 %v58, %v1313
    %1315 = vmatpush1.msra.mxu0 %v1314
    %1316 = vmatprep.subr.mxu0 0.0
    %v1317 = vand.u32 %v59, 4294901760
    %v1318 = vsub.f32 %v59, %v1317
    %1319 = vmatpush1.msra.mxu0 %v1318
    %1320 = vmatprep.subr.mxu0 0.0
    %v1321 = vand.u32 %v60, 4294901760
    %v1322 = vsub.f32 %v60, %v1321
    %1323 = vmatpush1.msra.mxu0 %v1322
    %1324 = vmatprep.subr.mxu0 0.0
    %v1325 = vand.u32 %v61, 4294901760
    %v1326 = vsub.f32 %v61, %v1325
    %1327 = vmatpush1.msra.mxu0 %v1326
    %1328 = vmatprep.subr.mxu0 0.0
    %v1329 = vand.u32 %v62, 4294901760
    %v1330 = vsub.f32 %v62, %v1329
    %1331 = vmatpush1.msra.mxu0 %v1330
    %1332 = vmatprep.subr.mxu0 0.0
    %v1333 = vand.u32 %v63, 4294901760
    %v1334 = vsub.f32 %v63, %v1333
    %1335 = vmatpush1.msra.mxu0 %v1334
    %1336 = vmatprep.subr.mxu0 0.0
    %v1337 = vand.u32 %v64, 4294901760
    %v1338 = vsub.f32 %v64, %v1337
    %1339 = vmatpush1.msra.mxu0 %v1338
    %1340 = vmatprep.subr.mxu0 0.0
    %v1341 = vand.u32 %v65, 4294901760
    %v1342 = vsub.f32 %v65, %v1341
    %1343 = vmatpush1.msra.mxu0 %v1342
    %1344 = vmatprep.subr.mxu0 0.0
    %v1345 = vand.u32 %v66, 4294901760
    %v1346 = vsub.f32 %v66, %v1345
    %1347 = vmatpush1.msra.mxu0 %v1346
    %1348 = vmatprep.subr.mxu0 0.0
    %v1349 = vand.u32 %v67, 4294901760
    %v1350 = vsub.f32 %v67, %v1349
    %1351 = vmatpush1.msra.mxu0 %v1350
    %1352 = vmatprep.subr.mxu0 0.0
    %v1353 = vand.u32 %v68, 4294901760
    %v1354 = vsub.f32 %v68, %v1353
    %1355 = vmatpush1.msra.mxu0 %v1354
    %1356 = vmatprep.subr.mxu0 0.0
    %v1357 = vand.u32 %v69, 4294901760
    %v1358 = vsub.f32 %v69, %v1357
    %1359 = vmatpush1.msra.mxu0 %v1358
    %1360 = vmatprep.subr.mxu0 0.0
    %v1361 = vand.u32 %v70, 4294901760
    %v1362 = vsub.f32 %v70, %v1361
    %1363 = vmatpush1.msra.mxu0 %v1362
    %1364 = vmatprep.subr.mxu0 0.0
    %v1365 = vand.u32 %v71, 4294901760
    %v1366 = vsub.f32 %v71, %v1365
    %1367 = vmatpush1.msra.mxu0 %v1366
    %1368 = vmatprep.subr.mxu0 0.0
    %v1369 = vand.u32 %v72, 4294901760
    %v1370 = vsub.f32 %v72, %v1369
    %1371 = vmatpush1.msra.mxu0 %v1370
    %1372 = vmatprep.subr.mxu0 0.0
    %v1373 = vand.u32 %v73, 4294901760
    %v1374 = vsub.f32 %v73, %v1373
    %1375 = vmatpush1.msra.mxu0 %v1374
    %1376 = vmatprep.subr.mxu0 0.0
    %v1377 = vand.u32 %v74, 4294901760
    %v1378 = vsub.f32 %v74, %v1377
    %1379 = vmatpush1.msra.mxu0 %v1378
    %1380 = vmatprep.subr.mxu0 0.0
    %v1381 = vand.u32 %v75, 4294901760
    %v1382 = vsub.f32 %v75, %v1381
    %1383 = vmatpush1.msra.mxu0 %v1382
    %1384 = vmatprep.subr.mxu0 0.0
    %v1385 = vand.u32 %v76, 4294901760
    %v1386 = vsub.f32 %v76, %v1385
    %1387 = vmatpush1.msra.mxu0 %v1386
    %1388 = vmatprep.subr.mxu0 0.0
    %v1389 = vand.u32 %v77, 4294901760
    %v1390 = vsub.f32 %v77, %v1389
    %1391 = vmatpush1.msra.mxu0 %v1390
    %1392 = vmatprep.subr.mxu0 0.0
    %v1393 = vand.u32 %v78, 4294901760
    %v1394 = vsub.f32 %v78, %v1393
    %1395 = vmatpush1.msra.mxu0 %v1394
    %1396 = vmatprep.subr.mxu0 0.0
    %v1397 = vand.u32 %v79, 4294901760
    %v1398 = vsub.f32 %v79, %v1397
    %1399 = vmatpush1.msra.mxu0 %v1398
    %1400 = vmatprep.subr.mxu0 0.0
    %v1401 = vand.u32 %v80, 4294901760
    %v1402 = vsub.f32 %v80, %v1401
    %1403 = vmatpush1.msra.mxu0 %v1402
    %1404 = vmatprep.subr.mxu0 0.0
    %v1405 = vand.u32 %v81, 4294901760
    %v1406 = vsub.f32 %v81, %v1405
    %1407 = vmatpush1.msra.mxu0 %v1406
    %1408 = vmatprep.subr.mxu0 0.0
    %v1409 = vand.u32 %v82, 4294901760
    %v1410 = vsub.f32 %v82, %v1409
    %1411 = vmatpush1.msra.mxu0 %v1410
    %1412 = vmatprep.subr.mxu0 0.0
    %v1413 = vand.u32 %v83, 4294901760
    %v1414 = vsub.f32 %v83, %v1413
    %1415 = vmatpush1.msra.mxu0 %v1414
    %1416 = vmatprep.subr.mxu0 0.0
    %v1417 = vand.u32 %v84, 4294901760
    %v1418 = vsub.f32 %v84, %v1417
    %1419 = vmatpush1.msra.mxu0 %v1418
    %1420 = vmatprep.subr.mxu0 0.0
    %v1421 = vand.u32 %v85, 4294901760
    %v1422 = vsub.f32 %v85, %v1421
    %1423 = vmatpush1.msra.mxu0 %v1422
    %1424 = vmatprep.subr.mxu0 0.0
    %v1425 = vand.u32 %v86, 4294901760
    %v1426 = vsub.f32 %v86, %v1425
    %1427 = vmatpush1.msra.mxu0 %v1426
    %1428 = vmatprep.subr.mxu0 0.0
    %v1429 = vand.u32 %v87, 4294901760
    %v1430 = vsub.f32 %v87, %v1429
    %1431 = vmatpush1.msra.mxu0 %v1430
    %1432 = vmatprep.subr.mxu0 0.0
    %v1433 = vand.u32 %v88, 4294901760
    %v1434 = vsub.f32 %v88, %v1433
    %1435 = vmatpush1.msra.mxu0 %v1434
    %1436 = vmatprep.subr.mxu0 0.0
    %v1437 = vand.u32 %v89, 4294901760
    %v1438 = vsub.f32 %v89, %v1437
    %1439 = vmatpush1.msra.mxu0 %v1438
    %v1440 = vand.u32 %v24, 4294901760
    %v1441 = vsub.f32 %v24, %v1440
    %1442 = vmatprep.mubr.f32.mxu0 %v1441
    %v1443 = vand.u32 %v23, 4294901760
    %v1444 = vsub.f32 %v23, %v1443
    %1445 = vmatmul.mubr.f32.gmra.mrb[0].mxu0 %v1444
    %v1446 = vpop.f32.mrb[0].mxu0
    %v1447 = vadd.f32 %v1309, %v1446
    %v1448 = vpop.f32.mrb[0].mxu0
    %1449 = vdwg.mxu0
    %1450 = vmatprep.subr.mxu0 0.0
    %v1451 = vand.u32 %v58, 4294901760
    %1452 = vmatpush1.msra.mxu0 %v1451
    %1453 = vmatprep.subr.mxu0 0.0
    %v1454 = vand.u32 %v59, 4294901760
    %1455 = vmatpush1.msra.mxu0 %v1454
    %1456 = vmatprep.subr.mxu0 0.0
    %v1457 = vand.u32 %v60, 4294901760
    %1458 = vmatpush1.msra.mxu0 %v1457
    %1459 = vmatprep.subr.mxu0 0.0
    %v1460 = vand.u32 %v61, 4294901760
    %1461 = vmatpush1.msra.mxu0 %v1460
    %1462 = vmatprep.subr.mxu0 0.0
    %v1463 = vand.u32 %v62, 4294901760
    %1464 = vmatpush1.msra.mxu0 %v1463
    %1465 = vmatprep.subr.mxu0 0.0
    %v1466 = vand.u32 %v63, 4294901760
    %1467 = vmatpush1.msra.mxu0 %v1466
    %1468 = vmatprep.subr.mxu0 0.0
    %v1469 = vand.u32 %v64, 4294901760
    %1470 = vmatpush1.msra.mxu0 %v1469
    %1471 = vmatprep.subr.mxu0 0.0
    %v1472 = vand.u32 %v65, 4294901760
    %1473 = vmatpush1.msra.mxu0 %v1472
    %1474 = vmatprep.subr.mxu0 0.0
    %v1475 = vand.u32 %v66, 4294901760
    %1476 = vmatpush1.msra.mxu0 %v1475
    %1477 = vmatprep.subr.mxu0 0.0
    %v1478 = vand.u32 %v67, 4294901760
    %1479 = vmatpush1.msra.mxu0 %v1478
    %1480 = vmatprep.subr.mxu0 0.0
    %v1481 = vand.u32 %v68, 4294901760
    %1482 = vmatpush1.msra.mxu0 %v1481
    %1483 = vmatprep.subr.mxu0 0.0
    %v1484 = vand.u32 %v69, 4294901760
    %1485 = vmatpush1.msra.mxu0 %v1484
    %1486 = vmatprep.subr.mxu0 0.0
    %v1487 = vand.u32 %v70, 4294901760
    %1488 = vmatpush1.msra.mxu0 %v1487
    %1489 = vmatprep.subr.mxu0 0.0
    %v1490 = vand.u32 %v71, 4294901760
    %1491 = vmatpush1.msra.mxu0 %v1490
    %1492 = vmatprep.subr.mxu0 0.0
    %v1493 = vand.u32 %v72, 4294901760
    %1494 = vmatpush1.msra.mxu0 %v1493
    %1495 = vmatprep.subr.mxu0 0.0
    %v1496 = vand.u32 %v73, 4294901760
    %1497 = vmatpush1.msra.mxu0 %v1496
    %1498 = vmatprep.subr.mxu0 0.0
    %v1499 = vand.u32 %v74, 4294901760
    %1500 = vmatpush1.msra.mxu0 %v1499
    %1501 = vmatprep.subr.mxu0 0.0
    %v1502 = vand.u32 %v75, 4294901760
    %1503 = vmatpush1.msra.mxu0 %v1502
    %1504 = vmatprep.subr.mxu0 0.0
    %v1505 = vand.u32 %v76, 4294901760
    %1506 = vmatpush1.msra.mxu0 %v1505
    %1507 = vmatprep.subr.mxu0 0.0
    %v1508 = vand.u32 %v77, 4294901760
    %1509 = vmatpush1.msra.mxu0 %v1508
    %1510 = vmatprep.subr.mxu0 0.0
    %v1511 = vand.u32 %v78, 4294901760
    %1512 = vmatpush1.msra.mxu0 %v1511
    %1513 = vmatprep.subr.mxu0 0.0
    %v1514 = vand.u32 %v79, 4294901760
    %1515 = vmatpush1.msra.mxu0 %v1514
    %1516 = vmatprep.subr.mxu0 0.0
    %v1517 = vand.u32 %v80, 4294901760
    %1518 = vmatpush1.msra.mxu0 %v1517
    %1519 = vmatprep.subr.mxu0 0.0
    %v1520 = vand.u32 %v81, 4294901760
    %1521 = vmatpush1.msra.mxu0 %v1520
    %1522 = vmatprep.subr.mxu0 0.0
    %v1523 = vand.u32 %v82, 4294901760
    %1524 = vmatpush1.msra.mxu0 %v1523
    %1525 = vmatprep.subr.mxu0 0.0
    %v1526 = vand.u32 %v83, 4294901760
    %1527 = vmatpush1.msra.mxu0 %v1526
    %1528 = vmatprep.subr.mxu0 0.0
    %v1529 = vand.u32 %v84, 4294901760
    %1530 = vmatpush1.msra.mxu0 %v1529
    %1531 = vmatprep.subr.mxu0 0.0
    %v1532 = vand.u32 %v85, 4294901760
    %1533 = vmatpush1.msra.mxu0 %v1532
    %1534 = vmatprep.subr.mxu0 0.0
    %v1535 = vand.u32 %v86, 4294901760
    %1536 = vmatpush1.msra.mxu0 %v1535
    %1537 = vmatprep.subr.mxu0 0.0
    %v1538 = vand.u32 %v87, 4294901760
    %1539 = vmatpush1.msra.mxu0 %v1538
    %1540 = vmatprep.subr.mxu0 0.0
    %v1541 = vand.u32 %v88, 4294901760
    %1542 = vmatpush1.msra.mxu0 %v1541
    %1543 = vmatprep.subr.mxu0 0.0
    %v1544 = vand.u32 %v89, 4294901760
    %1545 = vmatpush1.msra.mxu0 %v1544
    %v1546 = vand.u32 %v24, 4294901760
    %v1547 = vsub.f32 %v24, %v1546
    %v1548 = vand.u32 %v1547, 4294901760
    %1549 = vmatprep.mubr.f32.mxu0 %v1548
    %v1550 = vand.u32 %v23, 4294901760
    %v1551 = vsub.f32 %v23, %v1550
    %v1552 = vand.u32 %v1551, 4294901760
    %1553 = vmatmul.mubr.f32.gmra.mrb[0].mxu0 %v1552
    %v1554 = vpop.f32.mrb[0].mxu0
    %v1555 = vadd.f32 %v1447, %v1554
    %v1556 = vpop.f32.mrb[0].mxu0
    %1557 = vdwg.mxu0
    %1558 = vmatprep.subr.mxu0 0.0
    %v1559 = vand.u32 %v58, 4294901760
    %v1560 = vsub.f32 %v58, %v1559
    %v1561 = vand.u32 %v1560, 4294901760
    %1562 = vmatpush1.msra.mxu0 %v1561
    %1563 = vmatprep.subr.mxu0 0.0
    %v1564 = vand.u32 %v59, 4294901760
    %v1565 = vsub.f32 %v59, %v1564
    %v1566 = vand.u32 %v1565, 4294901760
    %1567 = vmatpush1.msra.mxu0 %v1566
    %1568 = vmatprep.subr.mxu0 0.0
    %v1569 = vand.u32 %v60, 4294901760
    %v1570 = vsub.f32 %v60, %v1569
    %v1571 = vand.u32 %v1570, 4294901760
    %1572 = vmatpush1.msra.mxu0 %v1571
    %1573 = vmatprep.subr.mxu0 0.0
    %v1574 = vand.u32 %v61, 4294901760
    %v1575 = vsub.f32 %v61, %v1574
    %v1576 = vand.u32 %v1575, 4294901760
    %1577 = vmatpush1.msra.mxu0 %v1576
    %1578 = vmatprep.subr.mxu0 0.0
    %v1579 = vand.u32 %v62, 4294901760
    %v1580 = vsub.f32 %v62, %v1579
    %v1581 = vand.u32 %v1580, 4294901760
    %1582 = vmatpush1.msra.mxu0 %v1581
    %1583 = vmatprep.subr.mxu0 0.0
    %v1584 = vand.u32 %v63, 4294901760
    %v1585 = vsub.f32 %v63, %v1584
    %v1586 = vand.u32 %v1585, 4294901760
    %1587 = vmatpush1.msra.mxu0 %v1586
    %1588 = vmatprep.subr.mxu0 0.0
    %v1589 = vand.u32 %v64, 4294901760
    %v1590 = vsub.f32 %v64, %v1589
    %v1591 = vand.u32 %v1590, 4294901760
    %1592 = vmatpush1.msra.mxu0 %v1591
    %1593 = vmatprep.subr.mxu0 0.0
    %v1594 = vand.u32 %v65, 4294901760
    %v1595 = vsub.f32 %v65, %v1594
    %v1596 = vand.u32 %v1595, 4294901760
    %1597 = vmatpush1.msra.mxu0 %v1596
    %1598 = vmatprep.subr.mxu0 0.0
    %v1599 = vand.u32 %v66, 4294901760
    %v1600 = vsub.f32 %v66, %v1599
    %v1601 = vand.u32 %v1600, 4294901760
    %1602 = vmatpush1.msra.mxu0 %v1601
    %1603 = vmatprep.subr.mxu0 0.0
    %v1604 = vand.u32 %v67, 4294901760
    %v1605 = vsub.f32 %v67, %v1604
    %v1606 = vand.u32 %v1605, 4294901760
    %1607 = vmatpush1.msra.mxu0 %v1606
    %1608 = vmatprep.subr.mxu0 0.0
    %v1609 = vand.u32 %v68, 4294901760
    %v1610 = vsub.f32 %v68, %v1609
    %v1611 = vand.u32 %v1610, 4294901760
    %1612 = vmatpush1.msra.mxu0 %v1611
    %1613 = vmatprep.subr.mxu0 0.0
    %v1614 = vand.u32 %v69, 4294901760
    %v1615 = vsub.f32 %v69, %v1614
    %v1616 = vand.u32 %v1615, 4294901760
    %1617 = vmatpush1.msra.mxu0 %v1616
    %1618 = vmatprep.subr.mxu0 0.0
    %v1619 = vand.u32 %v70, 4294901760
    %v1620 = vsub.f32 %v70, %v1619
    %v1621 = vand.u32 %v1620, 4294901760
    %1622 = vmatpush1.msra.mxu0 %v1621
    %1623 = vmatprep.subr.mxu0 0.0
    %v1624 = vand.u32 %v71, 4294901760
    %v1625 = vsub.f32 %v71, %v1624
    %v1626 = vand.u32 %v1625, 4294901760
    %1627 = vmatpush1.msra.mxu0 %v1626
    %1628 = vmatprep.subr.mxu0 0.0
    %v1629 = vand.u32 %v72, 4294901760
    %v1630 = vsub.f32 %v72, %v1629
    %v1631 = vand.u32 %v1630, 4294901760
    %1632 = vmatpush1.msra.mxu0 %v1631
    %1633 = vmatprep.subr.mxu0 0.0
    %v1634 = vand.u32 %v73, 4294901760
    %v1635 = vsub.f32 %v73, %v1634
    %v1636 = vand.u32 %v1635, 4294901760
    %1637 = vmatpush1.msra.mxu0 %v1636
    %1638 = vmatprep.subr.mxu0 0.0
    %v1639 = vand.u32 %v74, 4294901760
    %v1640 = vsub.f32 %v74, %v1639
    %v1641 = vand.u32 %v1640, 4294901760
    %1642 = vmatpush1.msra.mxu0 %v1641
    %1643 = vmatprep.subr.mxu0 0.0
    %v1644 = vand.u32 %v75, 4294901760
    %v1645 = vsub.f32 %v75, %v1644
    %v1646 = vand.u32 %v1645, 4294901760
    %1647 = vmatpush1.msra.mxu0 %v1646
    %1648 = vmatprep.subr.mxu0 0.0
    %v1649 = vand.u32 %v76, 4294901760
    %v1650 = vsub.f32 %v76, %v1649
    %v1651 = vand.u32 %v1650, 4294901760
    %1652 = vmatpush1.msra.mxu0 %v1651
    %1653 = vmatprep.subr.mxu0 0.0
    %v1654 = vand.u32 %v77, 4294901760
    %v1655 = vsub.f32 %v77, %v1654
    %v1656 = vand.u32 %v1655, 4294901760
    %1657 = vmatpush1.msra.mxu0 %v1656
    %1658 = vmatprep.subr.mxu0 0.0
    %v1659 = vand.u32 %v78, 4294901760
    %v1660 = vsub.f32 %v78, %v1659
    %v1661 = vand.u32 %v1660, 4294901760
    %1662 = vmatpush1.msra.mxu0 %v1661
    %1663 = vmatprep.subr.mxu0 0.0
    %v1664 = vand.u32 %v79, 4294901760
    %v1665 = vsub.f32 %v79, %v1664
    %v1666 = vand.u32 %v1665, 4294901760
    %1667 = vmatpush1.msra.mxu0 %v1666
    %1668 = vmatprep.subr.mxu0 0.0
    %v1669 = vand.u32 %v80, 4294901760
    %v1670 = vsub.f32 %v80, %v1669
    %v1671 = vand.u32 %v1670, 4294901760
    %1672 = vmatpush1.msra.mxu0 %v1671
    %1673 = vmatprep.subr.mxu0 0.0
    %v1674 = vand.u32 %v81, 4294901760
    %v1675 = vsub.f32 %v81, %v1674
    %v1676 = vand.u32 %v1675, 4294901760
    %1677 = vmatpush1.msra.mxu0 %v1676
    %1678 = vmatprep.subr.mxu0 0.0
    %v1679 = vand.u32 %v82, 4294901760
    %v1680 = vsub.f32 %v82, %v1679
    %v1681 = vand.u32 %v1680, 4294901760
    %1682 = vmatpush1.msra.mxu0 %v1681
    %1683 = vmatprep.subr.mxu0 0.0
    %v1684 = vand.u32 %v83, 4294901760
    %v1685 = vsub.f32 %v83, %v1684
    %v1686 = vand.u32 %v1685, 4294901760
    %1687 = vmatpush1.msra.mxu0 %v1686
    %1688 = vmatprep.subr.mxu0 0.0
    %v1689 = vand.u32 %v84, 4294901760
    %v1690 = vsub.f32 %v84, %v1689
    %v1691 = vand.u32 %v1690, 4294901760
    %1692 = vmatpush1.msra.mxu0 %v1691
    %1693 = vmatprep.subr.mxu0 0.0
    %v1694 = vand.u32 %v85, 4294901760
    %v1695 = vsub.f32 %v85, %v1694
    %v1696 = vand.u32 %v1695, 4294901760
    %1697 = vmatpush1.msra.mxu0 %v1696
    %1698 = vmatprep.subr.mxu0 0.0
    %v1699 = vand.u32 %v86, 4294901760
    %v1700 = vsub.f32 %v86, %v1699
    %v1701 = vand.u32 %v1700, 4294901760
    %1702 = vmatpush1.msra.mxu0 %v1701
    %1703 = vmatprep.subr.mxu0 0.0
    %v1704 = vand.u32 %v87, 4294901760
    %v1705 = vsub.f32 %v87, %v1704
    %v1706 = vand.u32 %v1705, 4294901760
    %1707 = vmatpush1.msra.mxu0 %v1706
    %1708 = vmatprep.subr.mxu0 0.0
    %v1709 = vand.u32 %v88, 4294901760
    %v1710 = vsub.f32 %v88, %v1709
    %v1711 = vand.u32 %v1710, 4294901760
    %1712 = vmatpush1.msra.mxu0 %v1711
    %1713 = vmatprep.subr.mxu0 0.0
    %v1714 = vand.u32 %v89, 4294901760
    %v1715 = vsub.f32 %v89, %v1714
    %v1716 = vand.u32 %v1715, 4294901760
    %1717 = vmatpush1.msra.mxu0 %v1716
    %v1718 = vand.u32 %v24, 4294901760
    %1719 = vmatprep.mubr.f32.mxu0 %v1718
    %v1720 = vand.u32 %v23, 4294901760
    %1721 = vmatmul.mubr.f32.gmra.mrb[0].mxu0 %v1720
    %v1722 = vpop.f32.mrb[0].mxu0
    %v1723 = vadd.f32 %v1555, %v1722
    %v1724 = vpop.f32.mrb[0].mxu0
    %1725 = vdwg.mxu0
    %1726 = vmatprep.subr.mxu0 0.0
    %v1727 = vand.u32 %v58, 4294901760
    %1728 = vmatpush1.msra.mxu0 %v1727
    %1729 = vmatprep.subr.mxu0 0.0
    %v1730 = vand.u32 %v59, 4294901760
    %1731 = vmatpush1.msra.mxu0 %v1730
    %1732 = vmatprep.subr.mxu0 0.0
    %v1733 = vand.u32 %v60, 4294901760
    %1734 = vmatpush1.msra.mxu0 %v1733
    %1735 = vmatprep.subr.mxu0 0.0
    %v1736 = vand.u32 %v61, 4294901760
    %1737 = vmatpush1.msra.mxu0 %v1736
    %1738 = vmatprep.subr.mxu0 0.0
    %v1739 = vand.u32 %v62, 4294901760
    %1740 = vmatpush1.msra.mxu0 %v1739
    %1741 = vmatprep.subr.mxu0 0.0
    %v1742 = vand.u32 %v63, 4294901760
    %1743 = vmatpush1.msra.mxu0 %v1742
    %1744 = vmatprep.subr.mxu0 0.0
    %v1745 = vand.u32 %v64, 4294901760
    %1746 = vmatpush1.msra.mxu0 %v1745
    %1747 = vmatprep.subr.mxu0 0.0
    %v1748 = vand.u32 %v65, 4294901760
    %1749 = vmatpush1.msra.mxu0 %v1748
    %1750 = vmatprep.subr.mxu0 0.0
    %v1751 = vand.u32 %v66, 4294901760
    %1752 = vmatpush1.msra.mxu0 %v1751
    %1753 = vmatprep.subr.mxu0 0.0
    %v1754 = vand.u32 %v67, 4294901760
    %1755 = vmatpush1.msra.mxu0 %v1754
    %1756 = vmatprep.subr.mxu0 0.0
    %v1757 = vand.u32 %v68, 4294901760
    %1758 = vmatpush1.msra.mxu0 %v1757
    %1759 = vmatprep.subr.mxu0 0.0
    %v1760 = vand.u32 %v69, 4294901760
    %1761 = vmatpush1.msra.mxu0 %v1760
    %1762 = vmatprep.subr.mxu0 0.0
    %v1763 = vand.u32 %v70, 4294901760
    %1764 = vmatpush1.msra.mxu0 %v1763
    %1765 = vmatprep.subr.mxu0 0.0
    %v1766 = vand.u32 %v71, 4294901760
    %1767 = vmatpush1.msra.mxu0 %v1766
    %1768 = vmatprep.subr.mxu0 0.0
    %v1769 = vand.u32 %v72, 4294901760
    %1770 = vmatpush1.msra.mxu0 %v1769
    %1771 = vmatprep.subr.mxu0 0.0
    %v1772 = vand.u32 %v73, 4294901760
    %1773 = vmatpush1.msra.mxu0 %v1772
    %1774 = vmatprep.subr.mxu0 0.0
    %v1775 = vand.u32 %v74, 4294901760
    %1776 = vmatpush1.msra.mxu0 %v1775
    %1777 = vmatprep.subr.mxu0 0.0
    %v1778 = vand.u32 %v75, 4294901760
    %1779 = vmatpush1.msra.mxu0 %v1778
    %1780 = vmatprep.subr.mxu0 0.0
    %v1781 = vand.u32 %v76, 4294901760
    %1782 = vmatpush1.msra.mxu0 %v1781
    %1783 = vmatprep.subr.mxu0 0.0
    %v1784 = vand.u32 %v77, 4294901760
    %1785 = vmatpush1.msra.mxu0 %v1784
    %1786 = vmatprep.subr.mxu0 0.0
    %v1787 = vand.u32 %v78, 4294901760
    %1788 = vmatpush1.msra.mxu0 %v1787
    %1789 = vmatprep.subr.mxu0 0.0
    %v1790 = vand.u32 %v79, 4294901760
    %1791 = vmatpush1.msra.mxu0 %v1790
    %1792 = vmatprep.subr.mxu0 0.0
    %v1793 = vand.u32 %v80, 4294901760
    %1794 = vmatpush1.msra.mxu0 %v1793
    %1795 = vmatprep.subr.mxu0 0.0
    %v1796 = vand.u32 %v81, 4294901760
    %1797 = vmatpush1.msra.mxu0 %v1796
    %1798 = vmatprep.subr.mxu0 0.0
    %v1799 = vand.u32 %v82, 4294901760
    %1800 = vmatpush1.msra.mxu0 %v1799
    %1801 = vmatprep.subr.mxu0 0.0
    %v1802 = vand.u32 %v83, 4294901760
    %1803 = vmatpush1.msra.mxu0 %v1802
    %1804 = vmatprep.subr.mxu0 0.0
    %v1805 = vand.u32 %v84, 4294901760
    %1806 = vmatpush1.msra.mxu0 %v1805
    %1807 = vmatprep.subr.mxu0 0.0
    %v1808 = vand.u32 %v85, 4294901760
    %1809 = vmatpush1.msra.mxu0 %v1808
    %1810 = vmatprep.subr.mxu0 0.0
    %v1811 = vand.u32 %v86, 4294901760
    %1812 = vmatpush1.msra.mxu0 %v1811
    %1813 = vmatprep.subr.mxu0 0.0
    %v1814 = vand.u32 %v87, 4294901760
    %1815 = vmatpush1.msra.mxu0 %v1814
    %1816 = vmatprep.subr.mxu0 0.0
    %v1817 = vand.u32 %v88, 4294901760
    %1818 = vmatpush1.msra.mxu0 %v1817
    %1819 = vmatprep.subr.mxu0 0.0
    %v1820 = vand.u32 %v89, 4294901760
    %1821 = vmatpush1.msra.mxu0 %v1820
    %v1822 = vand.u32 %v24, 4294901760
    %1823 = vmatprep.mubr.f32.mxu0 %v1822
    %v1824 = vand.u32 %v23, 4294901760
    %1825 = vmatmul.mubr.f32.gmra.mrb[0].mxu0 %v1824
    %v1826 = vpop.f32.mrb[0].mxu0
    %v1827 = vadd.f32 %v1723, %v1826
    %v1828 = vpop.f32.mrb[0].mxu0
    %1829 = vdwg.mxu0
    %1830 = vmatprep.subr.mxu0 0.0
    %v1831 = vand.u32 %v90, 4294901760
    %1832 = vmatpush1.msra.mxu0 %v1831
    %1833 = vmatprep.subr.mxu0 0.0
    %v1834 = vand.u32 %v91, 4294901760
    %1835 = vmatpush1.msra.mxu0 %v1834
    %1836 = vmatprep.subr.mxu0 0.0
    %v1837 = vand.u32 %v92, 4294901760
    %1838 = vmatpush1.msra.mxu0 %v1837
    %1839 = vmatprep.subr.mxu0 0.0
    %v1840 = vand.u32 %v93, 4294901760
    %1841 = vmatpush1.msra.mxu0 %v1840
    %1842 = vmatprep.subr.mxu0 0.0
    %v1843 = vand.u32 %v94, 4294901760
    %1844 = vmatpush1.msra.mxu0 %v1843
    %1845 = vmatprep.subr.mxu0 0.0
    %v1846 = vand.u32 %v95, 4294901760
    %1847 = vmatpush1.msra.mxu0 %v1846
    %1848 = vmatprep.subr.mxu0 0.0
    %v1849 = vand.u32 %v96, 4294901760
    %1850 = vmatpush1.msra.mxu0 %v1849
    %1851 = vmatprep.subr.mxu0 0.0
    %v1852 = vand.u32 %v97, 4294901760
    %1853 = vmatpush1.msra.mxu0 %v1852
    %1854 = vmatprep.subr.mxu0 0.0
    %v1855 = vand.u32 %v98, 4294901760
    %1856 = vmatpush1.msra.mxu0 %v1855
    %1857 = vmatprep.subr.mxu0 0.0
    %v1858 = vand.u32 %v99, 4294901760
    %1859 = vmatpush1.msra.mxu0 %v1858
    %1860 = vmatprep.subr.mxu0 0.0
    %v1861 = vand.u32 %v100, 4294901760
    %1862 = vmatpush1.msra.mxu0 %v1861
    %1863 = vmatprep.subr.mxu0 0.0
    %v1864 = vand.u32 %v101, 4294901760
    %1865 = vmatpush1.msra.mxu0 %v1864
    %1866 = vmatprep.subr.mxu0 0.0
    %1867 = vmatpush1.msra.mxu0 0.0
    %1868 = vmatprep.subr.mxu0 0.0
    %1869 = vmatpush1.msra.mxu0 0.0
    %1870 = vmatprep.subr.mxu0 0.0
    %1871 = vmatpush1.msra.mxu0 0.0
    %1872 = vmatprep.subr.mxu0 0.0
    %1873 = vmatpush1.msra.mxu0 0.0
    %1874 = vmatprep.subr.mxu0 0.0
    %1875 = vmatpush1.msra.mxu0 0.0
    %1876 = vmatprep.subr.mxu0 0.0
    %1877 = vmatpush1.msra.mxu0 0.0
    %1878 = vmatprep.subr.mxu0 0.0
    %1879 = vmatpush1.msra.mxu0 0.0
    %1880 = vmatprep.subr.mxu0 0.0
    %1881 = vmatpush1.msra.mxu0 0.0
    %1882 = vmatprep.subr.mxu0 0.0
    %1883 = vmatpush1.msra.mxu0 0.0
    %1884 = vmatprep.subr.mxu0 0.0
    %1885 = vmatpush1.msra.mxu0 0.0
    %1886 = vmatprep.subr.mxu0 0.0
    %1887 = vmatpush1.msra.mxu0 0.0
    %1888 = vmatprep.subr.mxu0 0.0
    %1889 = vmatpush1.msra.mxu0 0.0
    %1890 = vmatprep.subr.mxu0 0.0
    %1891 = vmatpush1.msra.mxu0 0.0
    %1892 = vmatprep.subr.mxu0 0.0
    %1893 = vmatpush1.msra.mxu0 0.0
    %1894 = vmatprep.subr.mxu0 0.0
    %1895 = vmatpush1.msra.mxu0 0.0
    %1896 = vmatprep.subr.mxu0 0.0
    %1897 = vmatpush1.msra.mxu0 0.0
    %1898 = vmatprep.subr.mxu0 0.0
    %1899 = vmatpush1.msra.mxu0 0.0
    %1900 = vmatprep.subr.mxu0 0.0
    %1901 = vmatpush1.msra.mxu0 0.0
    %1902 = vmatprep.subr.mxu0 0.0
    %1903 = vmatpush1.msra.mxu0 0.0
    %1904 = vmatprep.subr.mxu0 0.0
    %1905 = vmatpush1.msra.mxu0 0.0
    %1906 = vmatprep.mubr.f32.mxu0 0.0
    %v1907 = vand.u32 %v104, 4294901760
    %v1908 = vsub.f32 %v104, %v1907
    %v1909 = vand.u32 %v1908, 4294901760
    %v1910 = vsub.f32 %v1908, %v1909
    %v1911 = vand.u32 %v1910, 4294901760
    %1912 = vmatmul.mubr.f32.gmra.mrb[0].mxu0 %v1911
    %v1913 = vpop.f32.mrb[0].mxu0
    %v1914 = vadd.f32 %v1827, %v1913
    %v1915 = vpop.f32.mrb[0].mxu0
    %1916 = vdwg.mxu0
    %1917 = vmatprep.subr.mxu0 0.0
    %v1918 = vand.u32 %v90, 4294901760
    %v1919 = vsub.f32 %v90, %v1918
    %v1920 = vand.u32 %v1919, 4294901760
    %v1921 = vsub.f32 %v1919, %v1920
    %v1922 = vand.u32 %v1921, 4294901760
    %1923 = vmatpush1.msra.mxu0 %v1922
    %1924 = vmatprep.subr.mxu0 0.0
    %v1925 = vand.u32 %v91, 4294901760
    %v1926 = vsub.f32 %v91, %v1925
    %v1927 = vand.u32 %v1926, 4294901760
    %v1928 = vsub.f32 %v1926, %v1927
    %v1929 = vand.u32 %v1928, 4294901760
    %1930 = vmatpush1.msra.mxu0 %v1929
    %1931 = vmatprep.subr.mxu0 0.0
    %v1932 = vand.u32 %v92, 4294901760
    %v1933 = vsub.f32 %v92, %v1932
    %v1934 = vand.u32 %v1933, 4294901760
    %v1935 = vsub.f32 %v1933, %v1934
    %v1936 = vand.u32 %v1935, 4294901760
    %1937 = vmatpush1.msra.mxu0 %v1936
    %1938 = vmatprep.subr.mxu0 0.0
    %v1939 = vand.u32 %v93, 4294901760
    %v1940 = vsub.f32 %v93, %v1939
    %v1941 = vand.u32 %v1940, 4294901760
    %v1942 = vsub.f32 %v1940, %v1941
    %v1943 = vand.u32 %v1942, 4294901760
    %1944 = vmatpush1.msra.mxu0 %v1943
    %1945 = vmatprep.subr.mxu0 0.0
    %v1946 = vand.u32 %v94, 4294901760
    %v1947 = vsub.f32 %v94, %v1946
    %v1948 = vand.u32 %v1947, 4294901760
    %v1949 = vsub.f32 %v1947, %v1948
    %v1950 = vand.u32 %v1949, 4294901760
    %1951 = vmatpush1.msra.mxu0 %v1950
    %1952 = vmatprep.subr.mxu0 0.0
    %v1953 = vand.u32 %v95, 4294901760
    %v1954 = vsub.f32 %v95, %v1953
    %v1955 = vand.u32 %v1954, 4294901760
    %v1956 = vsub.f32 %v1954, %v1955
    %v1957 = vand.u32 %v1956, 4294901760
    %1958 = vmatpush1.msra.mxu0 %v1957
    %1959 = vmatprep.subr.mxu0 0.0
    %v1960 = vand.u32 %v96, 4294901760
    %v1961 = vsub.f32 %v96, %v1960
    %v1962 = vand.u32 %v1961, 4294901760
    %v1963 = vsub.f32 %v1961, %v1962
    %v1964 = vand.u32 %v1963, 4294901760
    %1965 = vmatpush1.msra.mxu0 %v1964
    %1966 = vmatprep.subr.mxu0 0.0
    %v1967 = vand.u32 %v97, 4294901760
    %v1968 = vsub.f32 %v97, %v1967
    %v1969 = vand.u32 %v1968, 4294901760
    %v1970 = vsub.f32 %v1968, %v1969
    %v1971 = vand.u32 %v1970, 4294901760
    %1972 = vmatpush1.msra.mxu0 %v1971
    %1973 = vmatprep.subr.mxu0 0.0
    %v1974 = vand.u32 %v98, 4294901760
    %v1975 = vsub.f32 %v98, %v1974
    %v1976 = vand.u32 %v1975, 4294901760
    %v1977 = vsub.f32 %v1975, %v1976
    %v1978 = vand.u32 %v1977, 4294901760
    %1979 = vmatpush1.msra.mxu0 %v1978
    %1980 = vmatprep.subr.mxu0 0.0
    %v1981 = vand.u32 %v99, 4294901760
    %v1982 = vsub.f32 %v99, %v1981
    %v1983 = vand.u32 %v1982, 4294901760
    %v1984 = vsub.f32 %v1982, %v1983
    %v1985 = vand.u32 %v1984, 4294901760
    %1986 = vmatpush1.msra.mxu0 %v1985
    %1987 = vmatprep.subr.mxu0 0.0
    %v1988 = vand.u32 %v100, 4294901760
    %v1989 = vsub.f32 %v100, %v1988
    %v1990 = vand.u32 %v1989, 4294901760
    %v1991 = vsub.f32 %v1989, %v1990
    %v1992 = vand.u32 %v1991, 4294901760
    %1993 = vmatpush1.msra.mxu0 %v1992
    %1994 = vmatprep.subr.mxu0 0.0
    %v1995 = vand.u32 %v101, 4294901760
    %v1996 = vsub.f32 %v101, %v1995
    %v1997 = vand.u32 %v1996, 4294901760
    %v1998 = vsub.f32 %v1996, %v1997
    %v1999 = vand.u32 %v1998, 4294901760
    %2000 = vmatpush1.msra.mxu0 %v1999
    %2001 = vmatprep.subr.mxu0 0.0
    %2002 = vmatpush1.msra.mxu0 0.0
    %2003 = vmatprep.subr.mxu0 0.0
    %2004 = vmatpush1.msra.mxu0 0.0
    %2005 = vmatprep.subr.mxu0 0.0
    %2006 = vmatpush1.msra.mxu0 0.0
    %2007 = vmatprep.subr.mxu0 0.0
    %2008 = vmatpush1.msra.mxu0 0.0
    %2009 = vmatprep.subr.mxu0 0.0
    %2010 = vmatpush1.msra.mxu0 0.0
    %2011 = vmatprep.subr.mxu0 0.0
    %2012 = vmatpush1.msra.mxu0 0.0
    %2013 = vmatprep.subr.mxu0 0.0
    %2014 = vmatpush1.msra.mxu0 0.0
    %2015 = vmatprep.subr.mxu0 0.0
    %2016 = vmatpush1.msra.mxu0 0.0
    %2017 = vmatprep.subr.mxu0 0.0
    %2018 = vmatpush1.msra.mxu0 0.0
    %2019 = vmatprep.subr.mxu0 0.0
    %2020 = vmatpush1.msra.mxu0 0.0
    %2021 = vmatprep.subr.mxu0 0.0
    %2022 = vmatpush1.msra.mxu0 0.0
    %2023 = vmatprep.subr.mxu0 0.0
    %2024 = vmatpush1.msra.mxu0 0.0
    %2025 = vmatprep.subr.mxu0 0.0
    %2026 = vmatpush1.msra.mxu0 0.0
    %2027 = vmatprep.subr.mxu0 0.0
    %2028 = vmatpush1.msra.mxu0 0.0
    %2029 = vmatprep.subr.mxu0 0.0
    %2030 = vmatpush1.msra.mxu0 0.0
    %2031 = vmatprep.subr.mxu0 0.0
    %2032 = vmatpush1.msra.mxu0 0.0
    %2033 = vmatprep.subr.mxu0 0.0
    %2034 = vmatpush1.msra.mxu0 0.0
    %2035 = vmatprep.subr.mxu0 0.0
    %2036 = vmatpush1.msra.mxu0 0.0
    %2037 = vmatprep.subr.mxu0 0.0
    %2038 = vmatpush1.msra.mxu0 0.0
    %2039 = vmatprep.subr.mxu0 0.0
    %2040 = vmatpush1.msra.mxu0 0.0
    %2041 = vmatprep.mubr.f32.mxu0 0.0
    %v2042 = vand.u32 %v104, 4294901760
    %2043 = vmatmul.mubr.f32.gmra.mrb[0].mxu0 %v2042
    %v2044 = vpop.f32.mrb[0].mxu0
    %v2045 = vadd.f32 %v1914, %v2044
    %v2046 = vpop.f32.mrb[0].mxu0
    %2047 = vdwg.mxu0
    %2048 = vmatprep.subr.mxu0 0.0
    %v2049 = vand.u32 %v90, 4294901760
    %v2050 = vsub.f32 %v90, %v2049
    %2051 = vmatpush1.msra.mxu0 %v2050
    %2052 = vmatprep.subr.mxu0 0.0
    %v2053 = vand.u32 %v91, 4294901760
    %v2054 = vsub.f32 %v91, %v2053
    %2055 = vmatpush1.msra.mxu0 %v2054
    %2056 = vmatprep.subr.mxu0 0.0
    %v2057 = vand.u32 %v92, 4294901760
    %v2058 = vsub.f32 %v92, %v2057
    %2059 = vmatpush1.msra.mxu0 %v2058
    %2060 = vmatprep.subr.mxu0 0.0
    %v2061 = vand.u32 %v93, 4294901760
    %v2062 = vsub.f32 %v93, %v2061
    %2063 = vmatpush1.msra.mxu0 %v2062
    %2064 = vmatprep.subr.mxu0 0.0
    %v2065 = vand.u32 %v94, 4294901760
    %v2066 = vsub.f32 %v94, %v2065
    %2067 = vmatpush1.msra.mxu0 %v2066
    %2068 = vmatprep.subr.mxu0 0.0
    %v2069 = vand.u32 %v95, 4294901760
    %v2070 = vsub.f32 %v95, %v2069
    %2071 = vmatpush1.msra.mxu0 %v2070
    %2072 = vmatprep.subr.mxu0 0.0
    %v2073 = vand.u32 %v96, 4294901760
    %v2074 = vsub.f32 %v96, %v2073
    %2075 = vmatpush1.msra.mxu0 %v2074
    %2076 = vmatprep.subr.mxu0 0.0
    %v2077 = vand.u32 %v97, 4294901760
    %v2078 = vsub.f32 %v97, %v2077
    %2079 = vmatpush1.msra.mxu0 %v2078
    %2080 = vmatprep.subr.mxu0 0.0
    %v2081 = vand.u32 %v98, 4294901760
    %v2082 = vsub.f32 %v98, %v2081
    %2083 = vmatpush1.msra.mxu0 %v2082
    %2084 = vmatprep.subr.mxu0 0.0
    %v2085 = vand.u32 %v99, 4294901760
    %v2086 = vsub.f32 %v99, %v2085
    %2087 = vmatpush1.msra.mxu0 %v2086
    %2088 = vmatprep.subr.mxu0 0.0
    %v2089 = vand.u32 %v100, 4294901760
    %v2090 = vsub.f32 %v100, %v2089
    %2091 = vmatpush1.msra.mxu0 %v2090
    %2092 = vmatprep.subr.mxu0 0.0
    %v2093 = vand.u32 %v101, 4294901760
    %v2094 = vsub.f32 %v101, %v2093
    %2095 = vmatpush1.msra.mxu0 %v2094
    %2096 = vmatprep.subr.mxu0 0.0
    %2097 = vmatpush1.msra.mxu0 0.0
    %2098 = vmatprep.subr.mxu0 0.0
    %2099 = vmatpush1.msra.mxu0 0.0
    %2100 = vmatprep.subr.mxu0 0.0
    %2101 = vmatpush1.msra.mxu0 0.0
    %2102 = vmatprep.subr.mxu0 0.0
    %2103 = vmatpush1.msra.mxu0 0.0
    %2104 = vmatprep.subr.mxu0 0.0
    %2105 = vmatpush1.msra.mxu0 0.0
    %2106 = vmatprep.subr.mxu0 0.0
    %2107 = vmatpush1.msra.mxu0 0.0
    %2108 = vmatprep.subr.mxu0 0.0
    %2109 = vmatpush1.msra.mxu0 0.0
    %2110 = vmatprep.subr.mxu0 0.0
    %2111 = vmatpush1.msra.mxu0 0.0
    %2112 = vmatprep.subr.mxu0 0.0
    %2113 = vmatpush1.msra.mxu0 0.0
    %2114 = vmatprep.subr.mxu0 0.0
    %2115 = vmatpush1.msra.mxu0 0.0
    %2116 = vmatprep.subr.mxu0 0.0
    %2117 = vmatpush1.msra.mxu0 0.0
    %2118 = vmatprep.subr.mxu0 0.0
    %2119 = vmatpush1.msra.mxu0 0.0
    %2120 = vmatprep.subr.mxu0 0.0
    %2121 = vmatpush1.msra.mxu0 0.0
    %2122 = vmatprep.subr.mxu0 0.0
    %2123 = vmatpush1.msra.mxu0 0.0
    %2124 = vmatprep.subr.mxu0 0.0
    %2125 = vmatpush1.msra.mxu0 0.0
    %2126 = vmatprep.subr.mxu0 0.0
    %2127 = vmatpush1.msra.mxu0 0.0
    %2128 = vmatprep.subr.mxu0 0.0
    %2129 = vmatpush1.msra.mxu0 0.0
    %2130 = vmatprep.subr.mxu0 0.0
    %2131 = vmatpush1.msra.mxu0 0.0
    %2132 = vmatprep.subr.mxu0 0.0
    %2133 = vmatpush1.msra.mxu0 0.0
    %2134 = vmatprep.subr.mxu0 0.0
    %2135 = vmatpush1.msra.mxu0 0.0
    %2136 = vmatprep.mubr.f32.mxu0 0.0
    %v2137 = vand.u32 %v104, 4294901760
    %v2138 = vsub.f32 %v104, %v2137
    %2139 = vmatmul.mubr.f32.gmra.mrb[0].mxu0 %v2138
    %v2140 = vpop.f32.mrb[0].mxu0
    %v2141 = vadd.f32 %v2045, %v2140
    %v2142 = vpop.f32.mrb[0].mxu0
    %2143 = vdwg.mxu0
    %2144 = vmatprep.subr.mxu0 0.0
    %v2145 = vand.u32 %v90, 4294901760
    %2146 = vmatpush1.msra.mxu0 %v2145
    %2147 = vmatprep.subr.mxu0 0.0
    %v2148 = vand.u32 %v91, 4294901760
    %2149 = vmatpush1.msra.mxu0 %v2148
    %2150 = vmatprep.subr.mxu0 0.0
    %v2151 = vand.u32 %v92, 4294901760
    %2152 = vmatpush1.msra.mxu0 %v2151
    %2153 = vmatprep.subr.mxu0 0.0
    %v2154 = vand.u32 %v93, 4294901760
    %2155 = vmatpush1.msra.mxu0 %v2154
    %2156 = vmatprep.subr.mxu0 0.0
    %v2157 = vand.u32 %v94, 4294901760
    %2158 = vmatpush1.msra.mxu0 %v2157
    %2159 = vmatprep.subr.mxu0 0.0
    %v2160 = vand.u32 %v95, 4294901760
    %2161 = vmatpush1.msra.mxu0 %v2160
    %2162 = vmatprep.subr.mxu0 0.0
    %v2163 = vand.u32 %v96, 4294901760
    %2164 = vmatpush1.msra.mxu0 %v2163
    %2165 = vmatprep.subr.mxu0 0.0
    %v2166 = vand.u32 %v97, 4294901760
    %2167 = vmatpush1.msra.mxu0 %v2166
    %2168 = vmatprep.subr.mxu0 0.0
    %v2169 = vand.u32 %v98, 4294901760
    %2170 = vmatpush1.msra.mxu0 %v2169
    %2171 = vmatprep.subr.mxu0 0.0
    %v2172 = vand.u32 %v99, 4294901760
    %2173 = vmatpush1.msra.mxu0 %v2172
    %2174 = vmatprep.subr.mxu0 0.0
    %v2175 = vand.u32 %v100, 4294901760
    %2176 = vmatpush1.msra.mxu0 %v2175
    %2177 = vmatprep.subr.mxu0 0.0
    %v2178 = vand.u32 %v101, 4294901760
    %2179 = vmatpush1.msra.mxu0 %v2178
    %2180 = vmatprep.subr.mxu0 0.0
    %2181 = vmatpush1.msra.mxu0 0.0
    %2182 = vmatprep.subr.mxu0 0.0
    %2183 = vmatpush1.msra.mxu0 0.0
    %2184 = vmatprep.subr.mxu0 0.0
    %2185 = vmatpush1.msra.mxu0 0.0
    %2186 = vmatprep.subr.mxu0 0.0
    %2187 = vmatpush1.msra.mxu0 0.0
    %2188 = vmatprep.subr.mxu0 0.0
    %2189 = vmatpush1.msra.mxu0 0.0
    %2190 = vmatprep.subr.mxu0 0.0
    %2191 = vmatpush1.msra.mxu0 0.0
    %2192 = vmatprep.subr.mxu0 0.0
    %2193 = vmatpush1.msra.mxu0 0.0
    %2194 = vmatprep.subr.mxu0 0.0
    %2195 = vmatpush1.msra.mxu0 0.0
    %2196 = vmatprep.subr.mxu0 0.0
    %2197 = vmatpush1.msra.mxu0 0.0
    %2198 = vmatprep.subr.mxu0 0.0
    %2199 = vmatpush1.msra.mxu0 0.0
    %2200 = vmatprep.subr.mxu0 0.0
    %2201 = vmatpush1.msra.mxu0 0.0
    %2202 = vmatprep.subr.mxu0 0.0
    %2203 = vmatpush1.msra.mxu0 0.0
    %2204 = vmatprep.subr.mxu0 0.0
    %2205 = vmatpush1.msra.mxu0 0.0
    %2206 = vmatprep.subr.mxu0 0.0
    %2207 = vmatpush1.msra.mxu0 0.0
    %2208 = vmatprep.subr.mxu0 0.0
    %2209 = vmatpush1.msra.mxu0 0.0
    %2210 = vmatprep.subr.mxu0 0.0
    %2211 = vmatpush1.msra.mxu0 0.0
    %2212 = vmatprep.subr.mxu0 0.0
    %2213 = vmatpush1.msra.mxu0 0.0
    %2214 = vmatprep.subr.mxu0 0.0
    %2215 = vmatpush1.msra.mxu0 0.0
    %2216 = vmatprep.subr.mxu0 0.0
    %2217 = vmatpush1.msra.mxu0 0.0
    %2218 = vmatprep.subr.mxu0 0.0
    %2219 = vmatpush1.msra.mxu0 0.0
    %2220 = vmatprep.mubr.f32.mxu0 0.0
    %v2221 = vand.u32 %v104, 4294901760
    %v2222 = vsub.f32 %v104, %v2221
    %v2223 = vand.u32 %v2222, 4294901760
    %2224 = vmatmul.mubr.f32.gmra.mrb[0].mxu0 %v2223
    %v2225 = vpop.f32.mrb[0].mxu0
    %v2226 = vadd.f32 %v2141, %v2225
    %v2227 = vpop.f32.mrb[0].mxu0
    %2228 = vdwg.mxu0
    %2229 = vmatprep.subr.mxu0 0.0
    %v2230 = vand.u32 %v90, 4294901760
    %v2231 = vsub.f32 %v90, %v2230
    %v2232 = vand.u32 %v2231, 4294901760
    %2233 = vmatpush1.msra.mxu0 %v2232
    %2234 = vmatprep.subr.mxu0 0.0
    %v2235 = vand.u32 %v91, 4294901760
    %v2236 = vsub.f32 %v91, %v2235
    %v2237 = vand.u32 %v2236, 4294901760
    %2238 = vmatpush1.msra.mxu0 %v2237
    %2239 = vmatprep.subr.mxu0 0.0
    %v2240 = vand.u32 %v92, 4294901760
    %v2241 = vsub.f32 %v92, %v2240
    %v2242 = vand.u32 %v2241, 4294901760
    %2243 = vmatpush1.msra.mxu0 %v2242
    %2244 = vmatprep.subr.mxu0 0.0
    %v2245 = vand.u32 %v93, 4294901760
    %v2246 = vsub.f32 %v93, %v2245
    %v2247 = vand.u32 %v2246, 4294901760
    %2248 = vmatpush1.msra.mxu0 %v2247
    %2249 = vmatprep.subr.mxu0 0.0
    %v2250 = vand.u32 %v94, 4294901760
    %v2251 = vsub.f32 %v94, %v2250
    %v2252 = vand.u32 %v2251, 4294901760
    %2253 = vmatpush1.msra.mxu0 %v2252
    %2254 = vmatprep.subr.mxu0 0.0
    %v2255 = vand.u32 %v95, 4294901760
    %v2256 = vsub.f32 %v95, %v2255
    %v2257 = vand.u32 %v2256, 4294901760
    %2258 = vmatpush1.msra.mxu0 %v2257
    %2259 = vmatprep.subr.mxu0 0.0
    %v2260 = vand.u32 %v96, 4294901760
    %v2261 = vsub.f32 %v96, %v2260
    %v2262 = vand.u32 %v2261, 4294901760
    %2263 = vmatpush1.msra.mxu0 %v2262
    %2264 = vmatprep.subr.mxu0 0.0
    %v2265 = vand.u32 %v97, 4294901760
    %v2266 = vsub.f32 %v97, %v2265
    %v2267 = vand.u32 %v2266, 4294901760
    %2268 = vmatpush1.msra.mxu0 %v2267
    %2269 = vmatprep.subr.mxu0 0.0
    %v2270 = vand.u32 %v98, 4294901760
    %v2271 = vsub.f32 %v98, %v2270
    %v2272 = vand.u32 %v2271, 4294901760
    %2273 = vmatpush1.msra.mxu0 %v2272
    %2274 = vmatprep.subr.mxu0 0.0
    %v2275 = vand.u32 %v99, 4294901760
    %v2276 = vsub.f32 %v99, %v2275
    %v2277 = vand.u32 %v2276, 4294901760
    %2278 = vmatpush1.msra.mxu0 %v2277
    %2279 = vmatprep.subr.mxu0 0.0
    %v2280 = vand.u32 %v100, 4294901760
    %v2281 = vsub.f32 %v100, %v2280
    %v2282 = vand.u32 %v2281, 4294901760
    %2283 = vmatpush1.msra.mxu0 %v2282
    %2284 = vmatprep.subr.mxu0 0.0
    %v2285 = vand.u32 %v101, 4294901760
    %v2286 = vsub.f32 %v101, %v2285
    %v2287 = vand.u32 %v2286, 4294901760
    %2288 = vmatpush1.msra.mxu0 %v2287
    %2289 = vmatprep.subr.mxu0 0.0
    %2290 = vmatpush1.msra.mxu0 0.0
    %2291 = vmatprep.subr.mxu0 0.0
    %2292 = vmatpush1.msra.mxu0 0.0
    %2293 = vmatprep.subr.mxu0 0.0
    %2294 = vmatpush1.msra.mxu0 0.0
    %2295 = vmatprep.subr.mxu0 0.0
    %2296 = vmatpush1.msra.mxu0 0.0
    %2297 = vmatprep.subr.mxu0 0.0
    %2298 = vmatpush1.msra.mxu0 0.0
    %2299 = vmatprep.subr.mxu0 0.0
    %2300 = vmatpush1.msra.mxu0 0.0
    %2301 = vmatprep.subr.mxu0 0.0
    %2302 = vmatpush1.msra.mxu0 0.0
    %2303 = vmatprep.subr.mxu0 0.0
    %2304 = vmatpush1.msra.mxu0 0.0
    %2305 = vmatprep.subr.mxu0 0.0
    %2306 = vmatpush1.msra.mxu0 0.0
    %2307 = vmatprep.subr.mxu0 0.0
    %2308 = vmatpush1.msra.mxu0 0.0
    %2309 = vmatprep.subr.mxu0 0.0
    %2310 = vmatpush1.msra.mxu0 0.0
    %2311 = vmatprep.subr.mxu0 0.0
    %2312 = vmatpush1.msra.mxu0 0.0
    %2313 = vmatprep.subr.mxu0 0.0
    %2314 = vmatpush1.msra.mxu0 0.0
    %2315 = vmatprep.subr.mxu0 0.0
    %2316 = vmatpush1.msra.mxu0 0.0
    %2317 = vmatprep.subr.mxu0 0.0
    %2318 = vmatpush1.msra.mxu0 0.0
    %2319 = vmatprep.subr.mxu0 0.0
    %2320 = vmatpush1.msra.mxu0 0.0
    %2321 = vmatprep.subr.mxu0 0.0
    %2322 = vmatpush1.msra.mxu0 0.0
    %2323 = vmatprep.subr.mxu0 0.0
    %2324 = vmatpush1.msra.mxu0 0.0
    %2325 = vmatprep.subr.mxu0 0.0
    %2326 = vmatpush1.msra.mxu0 0.0
    %2327 = vmatprep.subr.mxu0 0.0
    %2328 = vmatpush1.msra.mxu0 0.0
    %2329 = vmatprep.mubr.f32.mxu0 0.0
    %v2330 = vand.u32 %v104, 4294901760
    %2331 = vmatmul.mubr.f32.gmra.mrb[0].mxu0 %v2330
    %v2332 = vpop.f32.mrb[0].mxu0
    %v2333 = vadd.f32 %v2226, %v2332
    %v2334 = vpop.f32.mrb[0].mxu0
    %2335 = vdwg.mxu0
    %2336 = vmatprep.subr.mxu0 0.0
    %v2337 = vand.u32 %v90, 4294901760
    %2338 = vmatpush1.msra.mxu0 %v2337
    %2339 = vmatprep.subr.mxu0 0.0
    %v2340 = vand.u32 %v91, 4294901760
    %2341 = vmatpush1.msra.mxu0 %v2340
    %2342 = vmatprep.subr.mxu0 0.0
    %v2343 = vand.u32 %v92, 4294901760
    %2344 = vmatpush1.msra.mxu0 %v2343
    %2345 = vmatprep.subr.mxu0 0.0
    %v2346 = vand.u32 %v93, 4294901760
    %2347 = vmatpush1.msra.mxu0 %v2346
    %2348 = vmatprep.subr.mxu0 0.0
    %v2349 = vand.u32 %v94, 4294901760
    %2350 = vmatpush1.msra.mxu0 %v2349
    %2351 = vmatprep.subr.mxu0 0.0
    %v2352 = vand.u32 %v95, 4294901760
    %2353 = vmatpush1.msra.mxu0 %v2352
    %2354 = vmatprep.subr.mxu0 0.0
    %v2355 = vand.u32 %v96, 4294901760
    %2356 = vmatpush1.msra.mxu0 %v2355
    %2357 = vmatprep.subr.mxu0 0.0
    %v2358 = vand.u32 %v97, 4294901760
    %2359 = vmatpush1.msra.mxu0 %v2358
    %2360 = vmatprep.subr.mxu0 0.0
    %v2361 = vand.u32 %v98, 4294901760
    %2362 = vmatpush1.msra.mxu0 %v2361
    %2363 = vmatprep.subr.mxu0 0.0
    %v2364 = vand.u32 %v99, 4294901760
    %2365 = vmatpush1.msra.mxu0 %v2364
    %2366 = vmatprep.subr.mxu0 0.0
    %v2367 = vand.u32 %v100, 4294901760
    %2368 = vmatpush1.msra.mxu0 %v2367
    %2369 = vmatprep.subr.mxu0 0.0
    %v2370 = vand.u32 %v101, 4294901760
    %2371 = vmatpush1.msra.mxu0 %v2370
    %2372 = vmatprep.subr.mxu0 0.0
    %2373 = vmatpush1.msra.mxu0 0.0
    %2374 = vmatprep.subr.mxu0 0.0
    %2375 = vmatpush1.msra.mxu0 0.0
    %2376 = vmatprep.subr.mxu0 0.0
    %2377 = vmatpush1.msra.mxu0 0.0
    %2378 = vmatprep.subr.mxu0 0.0
    %2379 = vmatpush1.msra.mxu0 0.0
    %2380 = vmatprep.subr.mxu0 0.0
    %2381 = vmatpush1.msra.mxu0 0.0
    %2382 = vmatprep.subr.mxu0 0.0
    %2383 = vmatpush1.msra.mxu0 0.0
    %2384 = vmatprep.subr.mxu0 0.0
    %2385 = vmatpush1.msra.mxu0 0.0
    %2386 = vmatprep.subr.mxu0 0.0
    %2387 = vmatpush1.msra.mxu0 0.0
    %2388 = vmatprep.subr.mxu0 0.0
    %2389 = vmatpush1.msra.mxu0 0.0
    %2390 = vmatprep.subr.mxu0 0.0
    %2391 = vmatpush1.msra.mxu0 0.0
    %2392 = vmatprep.subr.mxu0 0.0
    %2393 = vmatpush1.msra.mxu0 0.0
    %2394 = vmatprep.subr.mxu0 0.0
    %2395 = vmatpush1.msra.mxu0 0.0
    %2396 = vmatprep.subr.mxu0 0.0
    %2397 = vmatpush1.msra.mxu0 0.0
    %2398 = vmatprep.subr.mxu0 0.0
    %2399 = vmatpush1.msra.mxu0 0.0
    %2400 = vmatprep.subr.mxu0 0.0
    %2401 = vmatpush1.msra.mxu0 0.0
    %2402 = vmatprep.subr.mxu0 0.0
    %2403 = vmatpush1.msra.mxu0 0.0
    %2404 = vmatprep.subr.mxu0 0.0
    %2405 = vmatpush1.msra.mxu0 0.0
    %2406 = vmatprep.subr.mxu0 0.0
    %2407 = vmatpush1.msra.mxu0 0.0
    %2408 = vmatprep.subr.mxu0 0.0
    %2409 = vmatpush1.msra.mxu0 0.0
    %2410 = vmatprep.subr.mxu0 0.0
    %2411 = vmatpush1.msra.mxu0 0.0
    %2412 = vmatprep.mubr.f32.mxu0 0.0
    %v2413 = vand.u32 %v104, 4294901760
    %2414 = vmatmul.mubr.f32.gmra.mrb[0].mxu0 %v2413
    %v2415 = vpop.f32.mrb[0].mxu0
    %v2416 = vadd.f32 %v2333, %v2415
    %v2417 = vpop.f32.mrb[0].mxu0
    %2418 = vdwg.mxu0
    %v2419 = vld [vmem:[%s2] sm:$0xff]
    %v2420 = vld [vmem:[%s2 + $0x8] sm:$0xff]
    %v2421 = vld [vmem:[%s2 + $0x10] sm:$0xff]
    %v2422 = vld [vmem:[%s2 + $0x18] sm:$0xff]
    %v2423 = vld [vmem:[%s2 + $0x20] sm:$0xff]
    %v2424 = vld [vmem:[%s2 + $0x28] sm:$0xff]
    %v2425 = vld [vmem:[%s2 + $0x30] sm:$0xff]
    %v2426 = vld [vmem:[%s2 + $0x38] sm:$0xff]
    %v2427 = vld [vmem:[%s2 + $0x40] sm:$0xff]
    %v2428 = vld [vmem:[%s2 + $0x48] sm:$0xff]
    %v2429 = vld [vmem:[%s3] sm:$0x1f]
    %v2431 = vlaneseq
    %v2432 = vshrl.u32 %v2431, 7
    %v2433 = vsub.s32 0, %v2432
    %v2434 = vrot.slane %v2429, %v2433
    %v2435 = vlaneseq
    %v2436 = vshrl.u32 %v2435, 7
    %v2437 = vsub.s32 1, %v2436
    %v2438 = vrot.slane %v2429, %v2437
    %v2439 = vlaneseq
    %v2440 = vshrl.u32 %v2439, 7
    %v2441 = vsub.s32 2, %v2440
    %v2442 = vrot.slane %v2429, %v2441
    %v2443 = vlaneseq
    %v2444 = vshrl.u32 %v2443, 7
    %v2445 = vsub.s32 3, %v2444
    %v2446 = vrot.slane %v2429, %v2445
    %v2447 = vlaneseq
    %v2448 = vshrl.u32 %v2447, 7
    %v2449 = vsub.s32 4, %v2448
    %v2450 = vrot.slane %v2429, %v2449
    %vm2456 = vcmask 130048
    %v2458 = vsel %vm2456, %v2416, 0
    %v2460 = vand.u32 %v2420, 4294901760
    %2461 = vmatprep.subr.mxu0 %v2460
    %v2462 = vand.u32 %v2419, 4294901760
    %2463 = vmatpush1.msra.mxu0 %v2462
    %v2464 = vand.u32 %v2425, 4294901760
    %2465 = vmatprep.subr.mxu0 %v2464
    %v2466 = vand.u32 %v2424, 4294901760
    %2467 = vmatpush1.msra.mxu0 %v2466
    %2468 = vmatprep.subr.mxu0 0.0
    %2469 = vmatpush1.msra.mxu0 0.0
    %2470 = vmatprep.subr.mxu0 0.0
    %2471 = vmatpush1.msra.mxu0 0.0
    %2472 = vmatprep.subr.mxu0 0.0
    %2473 = vmatpush1.msra.mxu0 0.0
    %2474 = vmatprep.subr.mxu0 0.0
    %2475 = vmatpush1.msra.mxu0 0.0
    %2476 = vmatprep.subr.mxu0 0.0
    %2477 = vmatpush1.msra.mxu0 0.0
    %2478 = vmatprep.subr.mxu0 0.0
    %2479 = vmatpush1.msra.mxu0 0.0
    %2480 = vmatprep.subr.mxu0 0.0
    %2481 = vmatpush1.msra.mxu0 0.0
    %2482 = vmatprep.subr.mxu0 0.0
    %2483 = vmatpush1.msra.mxu0 0.0
    %2484 = vmatprep.subr.mxu0 0.0
    %2485 = vmatpush1.msra.mxu0 0.0
    %2486 = vmatprep.subr.mxu0 0.0
    %2487 = vmatpush1.msra.mxu0 0.0
    %2488 = vmatprep.subr.mxu0 0.0
    %2489 = vmatpush1.msra.mxu0 0.0
    %2490 = vmatprep.subr.mxu0 0.0
    %2491 = vmatpush1.msra.mxu0 0.0
    %2492 = vmatprep.subr.mxu0 0.0
    %2493 = vmatpush1.msra.mxu0 0.0
    %2494 = vmatprep.subr.mxu0 0.0
    %2495 = vmatpush1.msra.mxu0 0.0
    %2496 = vmatprep.subr.mxu0 0.0
    %2497 = vmatpush1.msra.mxu0 0.0
    %2498 = vmatprep.subr.mxu0 0.0
    %2499 = vmatpush1.msra.mxu0 0.0
    %2500 = vmatprep.subr.mxu0 0.0
    %2501 = vmatpush1.msra.mxu0 0.0
    %2502 = vmatprep.subr.mxu0 0.0
    %2503 = vmatpush1.msra.mxu0 0.0
    %2504 = vmatprep.subr.mxu0 0.0
    %2505 = vmatpush1.msra.mxu0 0.0
    %2506 = vmatprep.subr.mxu0 0.0
    %2507 = vmatpush1.msra.mxu0 0.0
    %2508 = vmatprep.subr.mxu0 0.0
    %2509 = vmatpush1.msra.mxu0 0.0
    %2510 = vmatprep.subr.mxu0 0.0
    %2511 = vmatpush1.msra.mxu0 0.0
    %2512 = vmatprep.subr.mxu0 0.0
    %2513 = vmatpush1.msra.mxu0 0.0
    %2514 = vmatprep.subr.mxu0 0.0
    %2515 = vmatpush1.msra.mxu0 0.0
    %2516 = vmatprep.subr.mxu0 0.0
    %2517 = vmatpush1.msra.mxu0 0.0
    %2518 = vmatprep.subr.mxu0 0.0
    %2519 = vmatpush1.msra.mxu0 0.0
    %2520 = vmatprep.subr.mxu0 0.0
    %2521 = vmatpush1.msra.mxu0 0.0
    %2522 = vmatprep.subr.mxu0 0.0
    %2523 = vmatpush1.msra.mxu0 0.0
    %2524 = vmatprep.subr.mxu0 0.0
    %2525 = vmatpush1.msra.mxu0 0.0
    %2526 = vmatprep.subr.mxu0 0.0
    %2527 = vmatpush1.msra.mxu0 0.0
    %2528 = vmatprep.mubr.f32.mxu0 0.0
    %v2529 = vand.u32 %v2458, 4294901760
    %v2530 = vsub.f32 %v2458, %v2529
    %v2531 = vand.u32 %v2530, 4294901760
    %v2532 = vsub.f32 %v2530, %v2531
    %v2533 = vand.u32 %v2532, 4294901760
    %2534 = vmatmul.mubr.f32.gmra.mrb[0].mxu0 %v2533
    %v2535 = vpop.f32.mrb[0].mxu0
    %v2536 = vadd.f32 %v2434, %v2535
    %v2537 = vpop.f32.mrb[0].mxu0
    %v2538 = vadd.f32 %v2438, %v2537
    %2539 = vdwg.mxu0
    %v2540 = vand.u32 %v2420, 4294901760
    %v2541 = vsub.f32 %v2420, %v2540
    %v2542 = vand.u32 %v2541, 4294901760
    %v2543 = vsub.f32 %v2541, %v2542
    %v2544 = vand.u32 %v2543, 4294901760
    %2545 = vmatprep.subr.mxu0 %v2544
    %v2546 = vand.u32 %v2419, 4294901760
    %v2547 = vsub.f32 %v2419, %v2546
    %v2548 = vand.u32 %v2547, 4294901760
    %v2549 = vsub.f32 %v2547, %v2548
    %v2550 = vand.u32 %v2549, 4294901760
    %2551 = vmatpush1.msra.mxu0 %v2550
    %v2552 = vand.u32 %v2425, 4294901760
    %v2553 = vsub.f32 %v2425, %v2552
    %v2554 = vand.u32 %v2553, 4294901760
    %v2555 = vsub.f32 %v2553, %v2554
    %v2556 = vand.u32 %v2555, 4294901760
    %2557 = vmatprep.subr.mxu0 %v2556
    %v2558 = vand.u32 %v2424, 4294901760
    %v2559 = vsub.f32 %v2424, %v2558
    %v2560 = vand.u32 %v2559, 4294901760
    %v2561 = vsub.f32 %v2559, %v2560
    %v2562 = vand.u32 %v2561, 4294901760
    %2563 = vmatpush1.msra.mxu0 %v2562
    %2564 = vmatprep.subr.mxu0 0.0
    %2565 = vmatpush1.msra.mxu0 0.0
    %2566 = vmatprep.subr.mxu0 0.0
    %2567 = vmatpush1.msra.mxu0 0.0
    %2568 = vmatprep.subr.mxu0 0.0
    %2569 = vmatpush1.msra.mxu0 0.0
    %2570 = vmatprep.subr.mxu0 0.0
    %2571 = vmatpush1.msra.mxu0 0.0
    %2572 = vmatprep.subr.mxu0 0.0
    %2573 = vmatpush1.msra.mxu0 0.0
    %2574 = vmatprep.subr.mxu0 0.0
    %2575 = vmatpush1.msra.mxu0 0.0
    %2576 = vmatprep.subr.mxu0 0.0
    %2577 = vmatpush1.msra.mxu0 0.0
    %2578 = vmatprep.subr.mxu0 0.0
    %2579 = vmatpush1.msra.mxu0 0.0
    %2580 = vmatprep.subr.mxu0 0.0
    %2581 = vmatpush1.msra.mxu0 0.0
    %2582 = vmatprep.subr.mxu0 0.0
    %2583 = vmatpush1.msra.mxu0 0.0
    %2584 = vmatprep.subr.mxu0 0.0
    %2585 = vmatpush1.msra.mxu0 0.0
    %2586 = vmatprep.subr.mxu0 0.0
    %2587 = vmatpush1.msra.mxu0 0.0
    %2588 = vmatprep.subr.mxu0 0.0
    %2589 = vmatpush1.msra.mxu0 0.0
    %2590 = vmatprep.subr.mxu0 0.0
    %2591 = vmatpush1.msra.mxu0 0.0
    %2592 = vmatprep.subr.mxu0 0.0
    %2593 = vmatpush1.msra.mxu0 0.0
    %2594 = vmatprep.subr.mxu0 0.0
    %2595 = vmatpush1.msra.mxu0 0.0
    %2596 = vmatprep.subr.mxu0 0.0
    %2597 = vmatpush1.msra.mxu0 0.0
    %2598 = vmatprep.subr.mxu0 0.0
    %2599 = vmatpush1.msra.mxu0 0.0
    %2600 = vmatprep.subr.mxu0 0.0
    %2601 = vmatpush1.msra.mxu0 0.0
    %2602 = vmatprep.subr.mxu0 0.0
    %2603 = vmatpush1.msra.mxu0 0.0
    %2604 = vmatprep.subr.mxu0 0.0
    %2605 = vmatpush1.msra.mxu0 0.0
    %2606 = vmatprep.subr.mxu0 0.0
    %2607 = vmatpush1.msra.mxu0 0.0
    %2608 = vmatprep.subr.mxu0 0.0
    %2609 = vmatpush1.msra.mxu0 0.0
    %2610 = vmatprep.subr.mxu0 0.0
    %2611 = vmatpush1.msra.mxu0 0.0
    %2612 = vmatprep.subr.mxu0 0.0
    %2613 = vmatpush1.msra.mxu0 0.0
    %2614 = vmatprep.subr.mxu0 0.0
    %2615 = vmatpush1.msra.mxu0 0.0
    %2616 = vmatprep.subr.mxu0 0.0
    %2617 = vmatpush1.msra.mxu0 0.0
    %2618 = vmatprep.subr.mxu0 0.0
    %2619 = vmatpush1.msra.mxu0 0.0
    %2620 = vmatprep.subr.mxu0 0.0
    %2621 = vmatpush1.msra.mxu0 0.0
    %2622 = vmatprep.subr.mxu0 0.0
    %2623 = vmatpush1.msra.mxu0 0.0
    %2624 = vmatprep.mubr.f32.mxu0 0.0
    %v2625 = vand.u32 %v2458, 4294901760
    %2626 = vmatmul.mubr.f32.gmra.mrb[0].mxu0 %v2625
    %v2627 = vpop.f32.mrb[0].mxu0
    %v2628 = vadd.f32 %v2536, %v2627
    %v2629 = vpop.f32.mrb[0].mxu0
    %v2630 = vadd.f32 %v2538, %v2629
    %2631 = vdwg.mxu0
    %v2632 = vand.u32 %v2420, 4294901760
    %v2633 = vsub.f32 %v2420, %v2632
    %2634 = vmatprep.subr.mxu0 %v2633
    %v2635 = vand.u32 %v2419, 4294901760
    %v2636 = vsub.f32 %v2419, %v2635
    %2637 = vmatpush1.msra.mxu0 %v2636
    %v2638 = vand.u32 %v2425, 4294901760
    %v2639 = vsub.f32 %v2425, %v2638
    %2640 = vmatprep.subr.mxu0 %v2639
    %v2641 = vand.u32 %v2424, 4294901760
    %v2642 = vsub.f32 %v2424, %v2641
    %2643 = vmatpush1.msra.mxu0 %v2642
    %2644 = vmatprep.subr.mxu0 0.0
    %2645 = vmatpush1.msra.mxu0 0.0
    %2646 = vmatprep.subr.mxu0 0.0
    %2647 = vmatpush1.msra.mxu0 0.0
    %2648 = vmatprep.subr.mxu0 0.0
    %2649 = vmatpush1.msra.mxu0 0.0
    %2650 = vmatprep.subr.mxu0 0.0
    %2651 = vmatpush1.msra.mxu0 0.0
    %2652 = vmatprep.subr.mxu0 0.0
    %2653 = vmatpush1.msra.mxu0 0.0
    %2654 = vmatprep.subr.mxu0 0.0
    %2655 = vmatpush1.msra.mxu0 0.0
    %2656 = vmatprep.subr.mxu0 0.0
    %2657 = vmatpush1.msra.mxu0 0.0
    %2658 = vmatprep.subr.mxu0 0.0
    %2659 = vmatpush1.msra.mxu0 0.0
    %2660 = vmatprep.subr.mxu0 0.0
    %2661 = vmatpush1.msra.mxu0 0.0
    %2662 = vmatprep.subr.mxu0 0.0
    %2663 = vmatpush1.msra.mxu0 0.0
    %2664 = vmatprep.subr.mxu0 0.0
    %2665 = vmatpush1.msra.mxu0 0.0
    %2666 = vmatprep.subr.mxu0 0.0
    %2667 = vmatpush1.msra.mxu0 0.0
    %2668 = vmatprep.subr.mxu0 0.0
    %2669 = vmatpush1.msra.mxu0 0.0
    %2670 = vmatprep.subr.mxu0 0.0
    %2671 = vmatpush1.msra.mxu0 0.0
    %2672 = vmatprep.subr.mxu0 0.0
    %2673 = vmatpush1.msra.mxu0 0.0
    %2674 = vmatprep.subr.mxu0 0.0
    %2675 = vmatpush1.msra.mxu0 0.0
    %2676 = vmatprep.subr.mxu0 0.0
    %2677 = vmatpush1.msra.mxu0 0.0
    %2678 = vmatprep.subr.mxu0 0.0
    %2679 = vmatpush1.msra.mxu0 0.0
    %2680 = vmatprep.subr.mxu0 0.0
    %2681 = vmatpush1.msra.mxu0 0.0
    %2682 = vmatprep.subr.mxu0 0.0
    %2683 = vmatpush1.msra.mxu0 0.0
    %2684 = vmatprep.subr.mxu0 0.0
    %2685 = vmatpush1.msra.mxu0 0.0
    %2686 = vmatprep.subr.mxu0 0.0
    %2687 = vmatpush1.msra.mxu0 0.0
    %2688 = vmatprep.subr.mxu0 0.0
    %2689 = vmatpush1.msra.mxu0 0.0
    %2690 = vmatprep.subr.mxu0 0.0
    %2691 = vmatpush1.msra.mxu0 0.0
    %2692 = vmatprep.subr.mxu0 0.0
    %2693 = vmatpush1.msra.mxu0 0.0
    %2694 = vmatprep.subr.mxu0 0.0
    %2695 = vmatpush1.msra.mxu0 0.0
    %2696 = vmatprep.subr.mxu0 0.0
    %2697 = vmatpush1.msra.mxu0 0.0
    %2698 = vmatprep.subr.mxu0 0.0
    %2699 = vmatpush1.msra.mxu0 0.0
    %2700 = vmatprep.subr.mxu0 0.0
    %2701 = vmatpush1.msra.mxu0 0.0
    %2702 = vmatprep.subr.mxu0 0.0
    %2703 = vmatpush1.msra.mxu0 0.0
    %2704 = vmatprep.mubr.f32.mxu0 0.0
    %v2705 = vand.u32 %v2458, 4294901760
    %v2706 = vsub.f32 %v2458, %v2705
    %2707 = vmatmul.mubr.f32.gmra.mrb[0].mxu0 %v2706
    %v2708 = vpop.f32.mrb[0].mxu0
    %v2709 = vadd.f32 %v2628, %v2708
    %v2710 = vpop.f32.mrb[0].mxu0
    %v2711 = vadd.f32 %v2630, %v2710
    %2712 = vdwg.mxu0
    %v2713 = vand.u32 %v2420, 4294901760
    %2714 = vmatprep.subr.mxu0 %v2713
    %v2715 = vand.u32 %v2419, 4294901760
    %2716 = vmatpush1.msra.mxu0 %v2715
    %v2717 = vand.u32 %v2425, 4294901760
    %2718 = vmatprep.subr.mxu0 %v2717
    %v2719 = vand.u32 %v2424, 4294901760
    %2720 = vmatpush1.msra.mxu0 %v2719
    %2721 = vmatprep.subr.mxu0 0.0
    %2722 = vmatpush1.msra.mxu0 0.0
    %2723 = vmatprep.subr.mxu0 0.0
    %2724 = vmatpush1.msra.mxu0 0.0
    %2725 = vmatprep.subr.mxu0 0.0
    %2726 = vmatpush1.msra.mxu0 0.0
    %2727 = vmatprep.subr.mxu0 0.0
    %2728 = vmatpush1.msra.mxu0 0.0
    %2729 = vmatprep.subr.mxu0 0.0
    %2730 = vmatpush1.msra.mxu0 0.0
    %2731 = vmatprep.subr.mxu0 0.0
    %2732 = vmatpush1.msra.mxu0 0.0
    %2733 = vmatprep.subr.mxu0 0.0
    %2734 = vmatpush1.msra.mxu0 0.0
    %2735 = vmatprep.subr.mxu0 0.0
    %2736 = vmatpush1.msra.mxu0 0.0
    %2737 = vmatprep.subr.mxu0 0.0
    %2738 = vmatpush1.msra.mxu0 0.0
    %2739 = vmatprep.subr.mxu0 0.0
    %2740 = vmatpush1.msra.mxu0 0.0
    %2741 = vmatprep.subr.mxu0 0.0
    %2742 = vmatpush1.msra.mxu0 0.0
    %2743 = vmatprep.subr.mxu0 0.0
    %2744 = vmatpush1.msra.mxu0 0.0
    %2745 = vmatprep.subr.mxu0 0.0
    %2746 = vmatpush1.msra.mxu0 0.0
    %2747 = vmatprep.subr.mxu0 0.0
    %2748 = vmatpush1.msra.mxu0 0.0
    %2749 = vmatprep.subr.mxu0 0.0
    %2750 = vmatpush1.msra.mxu0 0.0
    %2751 = vmatprep.subr.mxu0 0.0
    %2752 = vmatpush1.msra.mxu0 0.0
    %2753 = vmatprep.subr.mxu0 0.0
    %2754 = vmatpush1.msra.mxu0 0.0
    %2755 = vmatprep.subr.mxu0 0.0
    %2756 = vmatpush1.msra.mxu0 0.0
    %2757 = vmatprep.subr.mxu0 0.0
    %2758 = vmatpush1.msra.mxu0 0.0
    %2759 = vmatprep.subr.mxu0 0.0
    %2760 = vmatpush1.msra.mxu0 0.0
    %2761 = vmatprep.subr.mxu0 0.0
    %2762 = vmatpush1.msra.mxu0 0.0
    %2763 = vmatprep.subr.mxu0 0.0
    %2764 = vmatpush1.msra.mxu0 0.0
    %2765 = vmatprep.subr.mxu0 0.0
    %2766 = vmatpush1.msra.mxu0 0.0
    %2767 = vmatprep.subr.mxu0 0.0
    %2768 = vmatpush1.msra.mxu0 0.0
    %2769 = vmatprep.subr.mxu0 0.0
    %2770 = vmatpush1.msra.mxu0 0.0
    %2771 = vmatprep.subr.mxu0 0.0
    %2772 = vmatpush1.msra.mxu0 0.0
    %2773 = vmatprep.subr.mxu0 0.0
    %2774 = vmatpush1.msra.mxu0 0.0
    %2775 = vmatprep.subr.mxu0 0.0
    %2776 = vmatpush1.msra.mxu0 0.0
    %2777 = vmatprep.subr.mxu0 0.0
    %2778 = vmatpush1.msra.mxu0 0.0
    %2779 = vmatprep.subr.mxu0 0.0
    %2780 = vmatpush1.msra.mxu0 0.0
    %2781 = vmatprep.mubr.f32.mxu0 0.0
    %v2782 = vand.u32 %v2458, 4294901760
    %v2783 = vsub.f32 %v2458, %v2782
    %v2784 = vand.u32 %v2783, 4294901760
    %2785 = vmatmul.mubr.f32.gmra.mrb[0].mxu0 %v2784
    %v2786 = vpop.f32.mrb[0].mxu0
    %v2787 = vadd.f32 %v2709, %v2786
    %v2788 = vpop.f32.mrb[0].mxu0
    %v2789 = vadd.f32 %v2711, %v2788
    %2790 = vdwg.mxu0
    %v2791 = vand.u32 %v2420, 4294901760
    %v2792 = vsub.f32 %v2420, %v2791
    %v2793 = vand.u32 %v2792, 4294901760
    %2794 = vmatprep.subr.mxu0 %v2793
    %v2795 = vand.u32 %v2419, 4294901760
    %v2796 = vsub.f32 %v2419, %v2795
    %v2797 = vand.u32 %v2796, 4294901760
    %2798 = vmatpush1.msra.mxu0 %v2797
    %v2799 = vand.u32 %v2425, 4294901760
    %v2800 = vsub.f32 %v2425, %v2799
    %v2801 = vand.u32 %v2800, 4294901760
    %2802 = vmatprep.subr.mxu0 %v2801
    %v2803 = vand.u32 %v2424, 4294901760
    %v2804 = vsub.f32 %v2424, %v2803
    %v2805 = vand.u32 %v2804, 4294901760
    %2806 = vmatpush1.msra.mxu0 %v2805
    %2807 = vmatprep.subr.mxu0 0.0
    %2808 = vmatpush1.msra.mxu0 0.0
    %2809 = vmatprep.subr.mxu0 0.0
    %2810 = vmatpush1.msra.mxu0 0.0
    %2811 = vmatprep.subr.mxu0 0.0
    %2812 = vmatpush1.msra.mxu0 0.0
    %2813 = vmatprep.subr.mxu0 0.0
    %2814 = vmatpush1.msra.mxu0 0.0
    %2815 = vmatprep.subr.mxu0 0.0
    %2816 = vmatpush1.msra.mxu0 0.0
    %2817 = vmatprep.subr.mxu0 0.0
    %2818 = vmatpush1.msra.mxu0 0.0
    %2819 = vmatprep.subr.mxu0 0.0
    %2820 = vmatpush1.msra.mxu0 0.0
    %2821 = vmatprep.subr.mxu0 0.0
    %2822 = vmatpush1.msra.mxu0 0.0
    %2823 = vmatprep.subr.mxu0 0.0
    %2824 = vmatpush1.msra.mxu0 0.0
    %2825 = vmatprep.subr.mxu0 0.0
    %2826 = vmatpush1.msra.mxu0 0.0
    %2827 = vmatprep.subr.mxu0 0.0
    %2828 = vmatpush1.msra.mxu0 0.0
    %2829 = vmatprep.subr.mxu0 0.0
    %2830 = vmatpush1.msra.mxu0 0.0
    %2831 = vmatprep.subr.mxu0 0.0
    %2832 = vmatpush1.msra.mxu0 0.0
    %2833 = vmatprep.subr.mxu0 0.0
    %2834 = vmatpush1.msra.mxu0 0.0
    %2835 = vmatprep.subr.mxu0 0.0
    %2836 = vmatpush1.msra.mxu0 0.0
    %2837 = vmatprep.subr.mxu0 0.0
    %2838 = vmatpush1.msra.mxu0 0.0
    %2839 = vmatprep.subr.mxu0 0.0
    %2840 = vmatpush1.msra.mxu0 0.0
    %2841 = vmatprep.subr.mxu0 0.0
    %2842 = vmatpush1.msra.mxu0 0.0
    %2843 = vmatprep.subr.mxu0 0.0
    %2844 = vmatpush1.msra.mxu0 0.0
    %2845 = vmatprep.subr.mxu0 0.0
    %2846 = vmatpush1.msra.mxu0 0.0
    %2847 = vmatprep.subr.mxu0 0.0
    %2848 = vmatpush1.msra.mxu0 0.0
    %2849 = vmatprep.subr.mxu0 0.0
    %2850 = vmatpush1.msra.mxu0 0.0
    %2851 = vmatprep.subr.mxu0 0.0
    %2852 = vmatpush1.msra.mxu0 0.0
    %2853 = vmatprep.subr.mxu0 0.0
    %2854 = vmatpush1.msra.mxu0 0.0
    %2855 = vmatprep.subr.mxu0 0.0
    %2856 = vmatpush1.msra.mxu0 0.0
    %2857 = vmatprep.subr.mxu0 0.0
    %2858 = vmatpush1.msra.mxu0 0.0
    %2859 = vmatprep.subr.mxu0 0.0
    %2860 = vmatpush1.msra.mxu0 0.0
    %2861 = vmatprep.subr.mxu0 0.0
    %2862 = vmatpush1.msra.mxu0 0.0
    %2863 = vmatprep.subr.mxu0 0.0
    %2864 = vmatpush1.msra.mxu0 0.0
    %2865 = vmatprep.subr.mxu0 0.0
    %2866 = vmatpush1.msra.mxu0 0.0
    %2867 = vmatprep.mubr.f32.mxu0 0.0
    %v2868 = vand.u32 %v2458, 4294901760
    %2869 = vmatmul.mubr.f32.gmra.mrb[0].mxu0 %v2868
    %v2870 = vpop.f32.mrb[0].mxu0
    %v2871 = vadd.f32 %v2787, %v2870
    %v2872 = vpop.f32.mrb[0].mxu0
    %v2873 = vadd.f32 %v2789, %v2872
    %2874 = vdwg.mxu0
    %v2875 = vand.u32 %v2420, 4294901760
    %2876 = vmatprep.subr.mxu0 %v2875
    %v2877 = vand.u32 %v2419, 4294901760
    %2878 = vmatpush1.msra.mxu0 %v2877
    %v2879 = vand.u32 %v2425, 4294901760
    %2880 = vmatprep.subr.mxu0 %v2879
    %v2881 = vand.u32 %v2424, 4294901760
    %2882 = vmatpush1.msra.mxu0 %v2881
    %2883 = vmatprep.subr.mxu0 0.0
    %2884 = vmatpush1.msra.mxu0 0.0
    %2885 = vmatprep.subr.mxu0 0.0
    %2886 = vmatpush1.msra.mxu0 0.0
    %2887 = vmatprep.subr.mxu0 0.0
    %2888 = vmatpush1.msra.mxu0 0.0
    %2889 = vmatprep.subr.mxu0 0.0
    %2890 = vmatpush1.msra.mxu0 0.0
    %2891 = vmatprep.subr.mxu0 0.0
    %2892 = vmatpush1.msra.mxu0 0.0
    %2893 = vmatprep.subr.mxu0 0.0
    %2894 = vmatpush1.msra.mxu0 0.0
    %2895 = vmatprep.subr.mxu0 0.0
    %2896 = vmatpush1.msra.mxu0 0.0
    %2897 = vmatprep.subr.mxu0 0.0
    %2898 = vmatpush1.msra.mxu0 0.0
    %2899 = vmatprep.subr.mxu0 0.0
    %2900 = vmatpush1.msra.mxu0 0.0
    %2901 = vmatprep.subr.mxu0 0.0
    %2902 = vmatpush1.msra.mxu0 0.0
    %2903 = vmatprep.subr.mxu0 0.0
    %2904 = vmatpush1.msra.mxu0 0.0
    %2905 = vmatprep.subr.mxu0 0.0
    %2906 = vmatpush1.msra.mxu0 0.0
    %2907 = vmatprep.subr.mxu0 0.0
    %2908 = vmatpush1.msra.mxu0 0.0
    %2909 = vmatprep.subr.mxu0 0.0
    %2910 = vmatpush1.msra.mxu0 0.0
    %2911 = vmatprep.subr.mxu0 0.0
    %2912 = vmatpush1.msra.mxu0 0.0
    %2913 = vmatprep.subr.mxu0 0.0
    %2914 = vmatpush1.msra.mxu0 0.0
    %2915 = vmatprep.subr.mxu0 0.0
    %2916 = vmatpush1.msra.mxu0 0.0
    %2917 = vmatprep.subr.mxu0 0.0
    %2918 = vmatpush1.msra.mxu0 0.0
    %2919 = vmatprep.subr.mxu0 0.0
    %2920 = vmatpush1.msra.mxu0 0.0
    %2921 = vmatprep.subr.mxu0 0.0
    %2922 = vmatpush1.msra.mxu0 0.0
    %2923 = vmatprep.subr.mxu0 0.0
    %2924 = vmatpush1.msra.mxu0 0.0
    %2925 = vmatprep.subr.mxu0 0.0
    %2926 = vmatpush1.msra.mxu0 0.0
    %2927 = vmatprep.subr.mxu0 0.0
    %2928 = vmatpush1.msra.mxu0 0.0
    %2929 = vmatprep.subr.mxu0 0.0
    %2930 = vmatpush1.msra.mxu0 0.0
    %2931 = vmatprep.subr.mxu0 0.0
    %2932 = vmatpush1.msra.mxu0 0.0
    %2933 = vmatprep.subr.mxu0 0.0
    %2934 = vmatpush1.msra.mxu0 0.0
    %2935 = vmatprep.subr.mxu0 0.0
    %2936 = vmatpush1.msra.mxu0 0.0
    %2937 = vmatprep.subr.mxu0 0.0
    %2938 = vmatpush1.msra.mxu0 0.0
    %2939 = vmatprep.subr.mxu0 0.0
    %2940 = vmatpush1.msra.mxu0 0.0
    %2941 = vmatprep.subr.mxu0 0.0
    %2942 = vmatpush1.msra.mxu0 0.0
    %2943 = vmatprep.mubr.f32.mxu0 0.0
    %v2944 = vand.u32 %v2458, 4294901760
    %2945 = vmatmul.mubr.f32.gmra.mrb[0].mxu0 %v2944
    %v2946 = vpop.f32.mrb[0].mxu0
    %v2947 = vadd.f32 %v2871, %v2946
    %v2948 = vpop.f32.mrb[0].mxu0
    %v2949 = vadd.f32 %v2873, %v2948
    %2950 = vdwg.mxu0
    %v2951 = vand.u32 %v2422, 4294901760
    %2952 = vmatprep.subr.mxu0 %v2951
    %v2953 = vand.u32 %v2421, 4294901760
    %2954 = vmatpush1.msra.mxu0 %v2953
    %v2955 = vand.u32 %v2427, 4294901760
    %2956 = vmatprep.subr.mxu0 %v2955
    %v2957 = vand.u32 %v2426, 4294901760
    %2958 = vmatpush1.msra.mxu0 %v2957
    %2959 = vmatprep.subr.mxu0 0.0
    %2960 = vmatpush1.msra.mxu0 0.0
    %2961 = vmatprep.subr.mxu0 0.0
    %2962 = vmatpush1.msra.mxu0 0.0
    %2963 = vmatprep.subr.mxu0 0.0
    %2964 = vmatpush1.msra.mxu0 0.0
    %2965 = vmatprep.subr.mxu0 0.0
    %2966 = vmatpush1.msra.mxu0 0.0
    %2967 = vmatprep.subr.mxu0 0.0
    %2968 = vmatpush1.msra.mxu0 0.0
    %2969 = vmatprep.subr.mxu0 0.0
    %2970 = vmatpush1.msra.mxu0 0.0
    %2971 = vmatprep.subr.mxu0 0.0
    %2972 = vmatpush1.msra.mxu0 0.0
    %2973 = vmatprep.subr.mxu0 0.0
    %2974 = vmatpush1.msra.mxu0 0.0
    %2975 = vmatprep.subr.mxu0 0.0
    %2976 = vmatpush1.msra.mxu0 0.0
    %2977 = vmatprep.subr.mxu0 0.0
    %2978 = vmatpush1.msra.mxu0 0.0
    %2979 = vmatprep.subr.mxu0 0.0
    %2980 = vmatpush1.msra.mxu0 0.0
    %2981 = vmatprep.subr.mxu0 0.0
    %2982 = vmatpush1.msra.mxu0 0.0
    %2983 = vmatprep.subr.mxu0 0.0
    %2984 = vmatpush1.msra.mxu0 0.0
    %2985 = vmatprep.subr.mxu0 0.0
    %2986 = vmatpush1.msra.mxu0 0.0
    %2987 = vmatprep.subr.mxu0 0.0
    %2988 = vmatpush1.msra.mxu0 0.0
    %2989 = vmatprep.subr.mxu0 0.0
    %2990 = vmatpush1.msra.mxu0 0.0
    %2991 = vmatprep.subr.mxu0 0.0
    %2992 = vmatpush1.msra.mxu0 0.0
    %2993 = vmatprep.subr.mxu0 0.0
    %2994 = vmatpush1.msra.mxu0 0.0
    %2995 = vmatprep.subr.mxu0 0.0
    %2996 = vmatpush1.msra.mxu0 0.0
    %2997 = vmatprep.subr.mxu0 0.0
    %2998 = vmatpush1.msra.mxu0 0.0
    %2999 = vmatprep.subr.mxu0 0.0
    %3000 = vmatpush1.msra.mxu0 0.0
    %3001 = vmatprep.subr.mxu0 0.0
    %3002 = vmatpush1.msra.mxu0 0.0
    %3003 = vmatprep.subr.mxu0 0.0
    %3004 = vmatpush1.msra.mxu0 0.0
    %3005 = vmatprep.subr.mxu0 0.0
    %3006 = vmatpush1.msra.mxu0 0.0
    %3007 = vmatprep.subr.mxu0 0.0
    %3008 = vmatpush1.msra.mxu0 0.0
    %3009 = vmatprep.subr.mxu0 0.0
    %3010 = vmatpush1.msra.mxu0 0.0
    %3011 = vmatprep.subr.mxu0 0.0
    %3012 = vmatpush1.msra.mxu0 0.0
    %3013 = vmatprep.subr.mxu0 0.0
    %3014 = vmatpush1.msra.mxu0 0.0
    %3015 = vmatprep.subr.mxu0 0.0
    %3016 = vmatpush1.msra.mxu0 0.0
    %3017 = vmatprep.subr.mxu0 0.0
    %3018 = vmatpush1.msra.mxu0 0.0
    %3019 = vmatprep.mubr.f32.mxu0 0.0
    %v3020 = vand.u32 %v2458, 4294901760
    %v3021 = vsub.f32 %v2458, %v3020
    %v3022 = vand.u32 %v3021, 4294901760
    %v3023 = vsub.f32 %v3021, %v3022
    %v3024 = vand.u32 %v3023, 4294901760
    %3025 = vmatmul.mubr.f32.gmra.mrb[0].mxu0 %v3024
    %v3026 = vpop.f32.mrb[0].mxu0
    %v3027 = vadd.f32 %v2442, %v3026
    %v3028 = vpop.f32.mrb[0].mxu0
    %v3029 = vadd.f32 %v2446, %v3028
    %3030 = vdwg.mxu0
    %v3031 = vand.u32 %v2422, 4294901760
    %v3032 = vsub.f32 %v2422, %v3031
    %v3033 = vand.u32 %v3032, 4294901760
    %v3034 = vsub.f32 %v3032, %v3033
    %v3035 = vand.u32 %v3034, 4294901760
    %3036 = vmatprep.subr.mxu0 %v3035
    %v3037 = vand.u32 %v2421, 4294901760
    %v3038 = vsub.f32 %v2421, %v3037
    %v3039 = vand.u32 %v3038, 4294901760
    %v3040 = vsub.f32 %v3038, %v3039
    %v3041 = vand.u32 %v3040, 4294901760
    %3042 = vmatpush1.msra.mxu0 %v3041
    %v3043 = vand.u32 %v2427, 4294901760
    %v3044 = vsub.f32 %v2427, %v3043
    %v3045 = vand.u32 %v3044, 4294901760
    %v3046 = vsub.f32 %v3044, %v3045
    %v3047 = vand.u32 %v3046, 4294901760
    %3048 = vmatprep.subr.mxu0 %v3047
    %v3049 = vand.u32 %v2426, 4294901760
    %v3050 = vsub.f32 %v2426, %v3049
    %v3051 = vand.u32 %v3050, 4294901760
    %v3052 = vsub.f32 %v3050, %v3051
    %v3053 = vand.u32 %v3052, 4294901760
    %3054 = vmatpush1.msra.mxu0 %v3053
    %3055 = vmatprep.subr.mxu0 0.0
    %3056 = vmatpush1.msra.mxu0 0.0
    %3057 = vmatprep.subr.mxu0 0.0
    %3058 = vmatpush1.msra.mxu0 0.0
    %3059 = vmatprep.subr.mxu0 0.0
    %3060 = vmatpush1.msra.mxu0 0.0
    %3061 = vmatprep.subr.mxu0 0.0
    %3062 = vmatpush1.msra.mxu0 0.0
    %3063 = vmatprep.subr.mxu0 0.0
    %3064 = vmatpush1.msra.mxu0 0.0
    %3065 = vmatprep.subr.mxu0 0.0
    %3066 = vmatpush1.msra.mxu0 0.0
    %3067 = vmatprep.subr.mxu0 0.0
    %3068 = vmatpush1.msra.mxu0 0.0
    %3069 = vmatprep.subr.mxu0 0.0
    %3070 = vmatpush1.msra.mxu0 0.0
    %3071 = vmatprep.subr.mxu0 0.0
    %3072 = vmatpush1.msra.mxu0 0.0
    %3073 = vmatprep.subr.mxu0 0.0
    %3074 = vmatpush1.msra.mxu0 0.0
    %3075 = vmatprep.subr.mxu0 0.0
    %3076 = vmatpush1.msra.mxu0 0.0
    %3077 = vmatprep.subr.mxu0 0.0
    %3078 = vmatpush1.msra.mxu0 0.0
    %3079 = vmatprep.subr.mxu0 0.0
    %3080 = vmatpush1.msra.mxu0 0.0
    %3081 = vmatprep.subr.mxu0 0.0
    %3082 = vmatpush1.msra.mxu0 0.0
    %3083 = vmatprep.subr.mxu0 0.0
    %3084 = vmatpush1.msra.mxu0 0.0
    %3085 = vmatprep.subr.mxu0 0.0
    %3086 = vmatpush1.msra.mxu0 0.0
    %3087 = vmatprep.subr.mxu0 0.0
    %3088 = vmatpush1.msra.mxu0 0.0
    %3089 = vmatprep.subr.mxu0 0.0
    %3090 = vmatpush1.msra.mxu0 0.0
    %3091 = vmatprep.subr.mxu0 0.0
    %3092 = vmatpush1.msra.mxu0 0.0
    %3093 = vmatprep.subr.mxu0 0.0
    %3094 = vmatpush1.msra.mxu0 0.0
    %3095 = vmatprep.subr.mxu0 0.0
    %3096 = vmatpush1.msra.mxu0 0.0
    %3097 = vmatprep.subr.mxu0 0.0
    %3098 = vmatpush1.msra.mxu0 0.0
    %3099 = vmatprep.subr.mxu0 0.0
    %3100 = vmatpush1.msra.mxu0 0.0
    %3101 = vmatprep.subr.mxu0 0.0
    %3102 = vmatpush1.msra.mxu0 0.0
    %3103 = vmatprep.subr.mxu0 0.0
    %3104 = vmatpush1.msra.mxu0 0.0
    %3105 = vmatprep.subr.mxu0 0.0
    %3106 = vmatpush1.msra.mxu0 0.0
    %3107 = vmatprep.subr.mxu0 0.0
    %3108 = vmatpush1.msra.mxu0 0.0
    %3109 = vmatprep.subr.mxu0 0.0
    %3110 = vmatpush1.msra.mxu0 0.0
    %3111 = vmatprep.subr.mxu0 0.0
    %3112 = vmatpush1.msra.mxu0 0.0
    %3113 = vmatprep.subr.mxu0 0.0
    %3114 = vmatpush1.msra.mxu0 0.0
    %3115 = vmatprep.mubr.f32.mxu0 0.0
    %v3116 = vand.u32 %v2458, 4294901760
    %3117 = vmatmul.mubr.f32.gmra.mrb[0].mxu0 %v3116
    %v3118 = vpop.f32.mrb[0].mxu0
    %v3119 = vadd.f32 %v3027, %v3118
    %v3120 = vpop.f32.mrb[0].mxu0
    %v3121 = vadd.f32 %v3029, %v3120
    %3122 = vdwg.mxu0
    %v3123 = vand.u32 %v2422, 4294901760
    %v3124 = vsub.f32 %v2422, %v3123
    %3125 = vmatprep.subr.mxu0 %v3124
    %v3126 = vand.u32 %v2421, 4294901760
    %v3127 = vsub.f32 %v2421, %v3126
    %3128 = vmatpush1.msra.mxu0 %v3127
    %v3129 = vand.u32 %v2427, 4294901760
    %v3130 = vsub.f32 %v2427, %v3129
    %3131 = vmatprep.subr.mxu0 %v3130
    %v3132 = vand.u32 %v2426, 4294901760
    %v3133 = vsub.f32 %v2426, %v3132
    %3134 = vmatpush1.msra.mxu0 %v3133
    %3135 = vmatprep.subr.mxu0 0.0
    %3136 = vmatpush1.msra.mxu0 0.0
    %3137 = vmatprep.subr.mxu0 0.0
    %3138 = vmatpush1.msra.mxu0 0.0
    %3139 = vmatprep.subr.mxu0 0.0
    %3140 = vmatpush1.msra.mxu0 0.0
    %3141 = vmatprep.subr.mxu0 0.0
    %3142 = vmatpush1.msra.mxu0 0.0
    %3143 = vmatprep.subr.mxu0 0.0
    %3144 = vmatpush1.msra.mxu0 0.0
    %3145 = vmatprep.subr.mxu0 0.0
    %3146 = vmatpush1.msra.mxu0 0.0
    %3147 = vmatprep.subr.mxu0 0.0
    %3148 = vmatpush1.msra.mxu0 0.0
    %3149 = vmatprep.subr.mxu0 0.0
    %3150 = vmatpush1.msra.mxu0 0.0
    %3151 = vmatprep.subr.mxu0 0.0
    %3152 = vmatpush1.msra.mxu0 0.0
    %3153 = vmatprep.subr.mxu0 0.0
    %3154 = vmatpush1.msra.mxu0 0.0
    %3155 = vmatprep.subr.mxu0 0.0
    %3156 = vmatpush1.msra.mxu0 0.0
    %3157 = vmatprep.subr.mxu0 0.0
    %3158 = vmatpush1.msra.mxu0 0.0
    %3159 = vmatprep.subr.mxu0 0.0
    %3160 = vmatpush1.msra.mxu0 0.0
    %3161 = vmatprep.subr.mxu0 0.0
    %3162 = vmatpush1.msra.mxu0 0.0
    %3163 = vmatprep.subr.mxu0 0.0
    %3164 = vmatpush1.msra.mxu0 0.0
    %3165 = vmatprep.subr.mxu0 0.0
    %3166 = vmatpush1.msra.mxu0 0.0
    %3167 = vmatprep.subr.mxu0 0.0
    %3168 = vmatpush1.msra.mxu0 0.0
    %3169 = vmatprep.subr.mxu0 0.0
    %3170 = vmatpush1.msra.mxu0 0.0
    %3171 = vmatprep.subr.mxu0 0.0
    %3172 = vmatpush1.msra.mxu0 0.0
    %3173 = vmatprep.subr.mxu0 0.0
    %3174 = vmatpush1.msra.mxu0 0.0
    %3175 = vmatprep.subr.mxu0 0.0
    %3176 = vmatpush1.msra.mxu0 0.0
    %3177 = vmatprep.subr.mxu0 0.0
    %3178 = vmatpush1.msra.mxu0 0.0
    %3179 = vmatprep.subr.mxu0 0.0
    %3180 = vmatpush1.msra.mxu0 0.0
    %3181 = vmatprep.subr.mxu0 0.0
    %3182 = vmatpush1.msra.mxu0 0.0
    %3183 = vmatprep.subr.mxu0 0.0
    %3184 = vmatpush1.msra.mxu0 0.0
    %3185 = vmatprep.subr.mxu0 0.0
    %3186 = vmatpush1.msra.mxu0 0.0
    %3187 = vmatprep.subr.mxu0 0.0
    %3188 = vmatpush1.msra.mxu0 0.0
    %3189 = vmatprep.subr.mxu0 0.0
    %3190 = vmatpush1.msra.mxu0 0.0
    %3191 = vmatprep.subr.mxu0 0.0
    %3192 = vmatpush1.msra.mxu0 0.0
    %3193 = vmatprep.subr.mxu0 0.0
    %3194 = vmatpush1.msra.mxu0 0.0
    %3195 = vmatprep.mubr.f32.mxu0 0.0
    %v3196 = vand.u32 %v2458, 4294901760
    %v3197 = vsub.f32 %v2458, %v3196
    %3198 = vmatmul.mubr.f32.gmra.mrb[0].mxu0 %v3197
    %v3199 = vpop.f32.mrb[0].mxu0
    %v3200 = vadd.f32 %v3119, %v3199
    %v3201 = vpop.f32.mrb[0].mxu0
    %v3202 = vadd.f32 %v3121, %v3201
    %3203 = vdwg.mxu0
    %v3204 = vand.u32 %v2422, 4294901760
    %3205 = vmatprep.subr.mxu0 %v3204
    %v3206 = vand.u32 %v2421, 4294901760
    %3207 = vmatpush1.msra.mxu0 %v3206
    %v3208 = vand.u32 %v2427, 4294901760
    %3209 = vmatprep.subr.mxu0 %v3208
    %v3210 = vand.u32 %v2426, 4294901760
    %3211 = vmatpush1.msra.mxu0 %v3210
    %3212 = vmatprep.subr.mxu0 0.0
    %3213 = vmatpush1.msra.mxu0 0.0
    %3214 = vmatprep.subr.mxu0 0.0
    %3215 = vmatpush1.msra.mxu0 0.0
    %3216 = vmatprep.subr.mxu0 0.0
    %3217 = vmatpush1.msra.mxu0 0.0
    %3218 = vmatprep.subr.mxu0 0.0
    %3219 = vmatpush1.msra.mxu0 0.0
    %3220 = vmatprep.subr.mxu0 0.0
    %3221 = vmatpush1.msra.mxu0 0.0
    %3222 = vmatprep.subr.mxu0 0.0
    %3223 = vmatpush1.msra.mxu0 0.0
    %3224 = vmatprep.subr.mxu0 0.0
    %3225 = vmatpush1.msra.mxu0 0.0
    %3226 = vmatprep.subr.mxu0 0.0
    %3227 = vmatpush1.msra.mxu0 0.0
    %3228 = vmatprep.subr.mxu0 0.0
    %3229 = vmatpush1.msra.mxu0 0.0
    %3230 = vmatprep.subr.mxu0 0.0
    %3231 = vmatpush1.msra.mxu0 0.0
    %3232 = vmatprep.subr.mxu0 0.0
    %3233 = vmatpush1.msra.mxu0 0.0
    %3234 = vmatprep.subr.mxu0 0.0
    %3235 = vmatpush1.msra.mxu0 0.0
    %3236 = vmatprep.subr.mxu0 0.0
    %3237 = vmatpush1.msra.mxu0 0.0
    %3238 = vmatprep.subr.mxu0 0.0
    %3239 = vmatpush1.msra.mxu0 0.0
    %3240 = vmatprep.subr.mxu0 0.0
    %3241 = vmatpush1.msra.mxu0 0.0
    %3242 = vmatprep.subr.mxu0 0.0
    %3243 = vmatpush1.msra.mxu0 0.0
    %3244 = vmatprep.subr.mxu0 0.0
    %3245 = vmatpush1.msra.mxu0 0.0
    %3246 = vmatprep.subr.mxu0 0.0
    %3247 = vmatpush1.msra.mxu0 0.0
    %3248 = vmatprep.subr.mxu0 0.0
    %3249 = vmatpush1.msra.mxu0 0.0
    %3250 = vmatprep.subr.mxu0 0.0
    %3251 = vmatpush1.msra.mxu0 0.0
    %3252 = vmatprep.subr.mxu0 0.0
    %3253 = vmatpush1.msra.mxu0 0.0
    %3254 = vmatprep.subr.mxu0 0.0
    %3255 = vmatpush1.msra.mxu0 0.0
    %3256 = vmatprep.subr.mxu0 0.0
    %3257 = vmatpush1.msra.mxu0 0.0
    %3258 = vmatprep.subr.mxu0 0.0
    %3259 = vmatpush1.msra.mxu0 0.0
    %3260 = vmatprep.subr.mxu0 0.0
    %3261 = vmatpush1.msra.mxu0 0.0
    %3262 = vmatprep.subr.mxu0 0.0
    %3263 = vmatpush1.msra.mxu0 0.0
    %3264 = vmatprep.subr.mxu0 0.0
    %3265 = vmatpush1.msra.mxu0 0.0
    %3266 = vmatprep.subr.mxu0 0.0
    %3267 = vmatpush1.msra.mxu0 0.0
    %3268 = vmatprep.subr.mxu0 0.0
    %3269 = vmatpush1.msra.mxu0 0.0
    %3270 = vmatprep.subr.mxu0 0.0
    %3271 = vmatpush1.msra.mxu0 0.0
    %3272 = vmatprep.mubr.f32.mxu0 0.0
    %v3273 = vand.u32 %v2458, 4294901760
    %v3274 = vsub.f32 %v2458, %v3273
    %v3275 = vand.u32 %v3274, 4294901760
    %3276 = vmatmul.mubr.f32.gmra.mrb[0].mxu0 %v3275
    %v3277 = vpop.f32.mrb[0].mxu0
    %v3278 = vadd.f32 %v3200, %v3277
    %v3279 = vpop.f32.mrb[0].mxu0
    %v3280 = vadd.f32 %v3202, %v3279
    %3281 = vdwg.mxu0
    %v3282 = vand.u32 %v2422, 4294901760
    %v3283 = vsub.f32 %v2422, %v3282
    %v3284 = vand.u32 %v3283, 4294901760
    %3285 = vmatprep.subr.mxu0 %v3284
    %v3286 = vand.u32 %v2421, 4294901760
    %v3287 = vsub.f32 %v2421, %v3286
    %v3288 = vand.u32 %v3287, 4294901760
    %3289 = vmatpush1.msra.mxu0 %v3288
    %v3290 = vand.u32 %v2427, 4294901760
    %v3291 = vsub.f32 %v2427, %v3290
    %v3292 = vand.u32 %v3291, 4294901760
    %3293 = vmatprep.subr.mxu0 %v3292
    %v3294 = vand.u32 %v2426, 4294901760
    %v3295 = vsub.f32 %v2426, %v3294
    %v3296 = vand.u32 %v3295, 4294901760
    %3297 = vmatpush1.msra.mxu0 %v3296
    %3298 = vmatprep.subr.mxu0 0.0
    %3299 = vmatpush1.msra.mxu0 0.0
    %3300 = vmatprep.subr.mxu0 0.0
    %3301 = vmatpush1.msra.mxu0 0.0
    %3302 = vmatprep.subr.mxu0 0.0
    %3303 = vmatpush1.msra.mxu0 0.0
    %3304 = vmatprep.subr.mxu0 0.0
    %3305 = vmatpush1.msra.mxu0 0.0
    %3306 = vmatprep.subr.mxu0 0.0
    %3307 = vmatpush1.msra.mxu0 0.0
    %3308 = vmatprep.subr.mxu0 0.0
    %3309 = vmatpush1.msra.mxu0 0.0
    %3310 = vmatprep.subr.mxu0 0.0
    %3311 = vmatpush1.msra.mxu0 0.0
    %3312 = vmatprep.subr.mxu0 0.0
    %3313 = vmatpush1.msra.mxu0 0.0
    %3314 = vmatprep.subr.mxu0 0.0
    %3315 = vmatpush1.msra.mxu0 0.0
    %3316 = vmatprep.subr.mxu0 0.0
    %3317 = vmatpush1.msra.mxu0 0.0
    %3318 = vmatprep.subr.mxu0 0.0
    %3319 = vmatpush1.msra.mxu0 0.0
    %3320 = vmatprep.subr.mxu0 0.0
    %3321 = vmatpush1.msra.mxu0 0.0
    %3322 = vmatprep.subr.mxu0 0.0
    %3323 = vmatpush1.msra.mxu0 0.0
    %3324 = vmatprep.subr.mxu0 0.0
    %3325 = vmatpush1.msra.mxu0 0.0
    %3326 = vmatprep.subr.mxu0 0.0
    %3327 = vmatpush1.msra.mxu0 0.0
    %3328 = vmatprep.subr.mxu0 0.0
    %3329 = vmatpush1.msra.mxu0 0.0
    %3330 = vmatprep.subr.mxu0 0.0
    %3331 = vmatpush1.msra.mxu0 0.0
    %3332 = vmatprep.subr.mxu0 0.0
    %3333 = vmatpush1.msra.mxu0 0.0
    %3334 = vmatprep.subr.mxu0 0.0
    %3335 = vmatpush1.msra.mxu0 0.0
    %3336 = vmatprep.subr.mxu0 0.0
    %3337 = vmatpush1.msra.mxu0 0.0
    %3338 = vmatprep.subr.mxu0 0.0
    %3339 = vmatpush1.msra.mxu0 0.0
    %3340 = vmatprep.subr.mxu0 0.0
    %3341 = vmatpush1.msra.mxu0 0.0
    %3342 = vmatprep.subr.mxu0 0.0
    %3343 = vmatpush1.msra.mxu0 0.0
    %3344 = vmatprep.subr.mxu0 0.0
    %3345 = vmatpush1.msra.mxu0 0.0
    %3346 = vmatprep.subr.mxu0 0.0
    %3347 = vmatpush1.msra.mxu0 0.0
    %3348 = vmatprep.subr.mxu0 0.0
    %3349 = vmatpush1.msra.mxu0 0.0
    %3350 = vmatprep.subr.mxu0 0.0
    %3351 = vmatpush1.msra.mxu0 0.0
    %3352 = vmatprep.subr.mxu0 0.0
    %3353 = vmatpush1.msra.mxu0 0.0
    %3354 = vmatprep.subr.mxu0 0.0
    %3355 = vmatpush1.msra.mxu0 0.0
    %3356 = vmatprep.subr.mxu0 0.0
    %3357 = vmatpush1.msra.mxu0 0.0
    %3358 = vmatprep.mubr.f32.mxu0 0.0
    %v3359 = vand.u32 %v2458, 4294901760
    %3360 = vmatmul.mubr.f32.gmra.mrb[0].mxu0 %v3359
    %v3361 = vpop.f32.mrb[0].mxu0
    %v3362 = vadd.f32 %v3278, %v3361
    %v3363 = vpop.f32.mrb[0].mxu0
    %v3364 = vadd.f32 %v3280, %v3363
    %3365 = vdwg.mxu0
    %v3366 = vand.u32 %v2422, 4294901760
    %3367 = vmatprep.subr.mxu0 %v3366
    %v3368 = vand.u32 %v2421, 4294901760
    %3369 = vmatpush1.msra.mxu0 %v3368
    %v3370 = vand.u32 %v2427, 4294901760
    %3371 = vmatprep.subr.mxu0 %v3370
    %v3372 = vand.u32 %v2426, 4294901760
    %3373 = vmatpush1.msra.mxu0 %v3372
    %3374 = vmatprep.subr.mxu0 0.0
    %3375 = vmatpush1.msra.mxu0 0.0
    %3376 = vmatprep.subr.mxu0 0.0
    %3377 = vmatpush1.msra.mxu0 0.0
    %3378 = vmatprep.subr.mxu0 0.0
    %3379 = vmatpush1.msra.mxu0 0.0
    %3380 = vmatprep.subr.mxu0 0.0
    %3381 = vmatpush1.msra.mxu0 0.0
    %3382 = vmatprep.subr.mxu0 0.0
    %3383 = vmatpush1.msra.mxu0 0.0
    %3384 = vmatprep.subr.mxu0 0.0
    %3385 = vmatpush1.msra.mxu0 0.0
    %3386 = vmatprep.subr.mxu0 0.0
    %3387 = vmatpush1.msra.mxu0 0.0
    %3388 = vmatprep.subr.mxu0 0.0
    %3389 = vmatpush1.msra.mxu0 0.0
    %3390 = vmatprep.subr.mxu0 0.0
    %3391 = vmatpush1.msra.mxu0 0.0
    %3392 = vmatprep.subr.mxu0 0.0
    %3393 = vmatpush1.msra.mxu0 0.0
    %3394 = vmatprep.subr.mxu0 0.0
    %3395 = vmatpush1.msra.mxu0 0.0
    %3396 = vmatprep.subr.mxu0 0.0
    %3397 = vmatpush1.msra.mxu0 0.0
    %3398 = vmatprep.subr.mxu0 0.0
    %3399 = vmatpush1.msra.mxu0 0.0
    %3400 = vmatprep.subr.mxu0 0.0
    %3401 = vmatpush1.msra.mxu0 0.0
    %3402 = vmatprep.subr.mxu0 0.0
    %3403 = vmatpush1.msra.mxu0 0.0
    %3404 = vmatprep.subr.mxu0 0.0
    %3405 = vmatpush1.msra.mxu0 0.0
    %3406 = vmatprep.subr.mxu0 0.0
    %3407 = vmatpush1.msra.mxu0 0.0
    %3408 = vmatprep.subr.mxu0 0.0
    %3409 = vmatpush1.msra.mxu0 0.0
    %3410 = vmatprep.subr.mxu0 0.0
    %3411 = vmatpush1.msra.mxu0 0.0
    %3412 = vmatprep.subr.mxu0 0.0
    %3413 = vmatpush1.msra.mxu0 0.0
    %3414 = vmatprep.subr.mxu0 0.0
    %3415 = vmatpush1.msra.mxu0 0.0
    %3416 = vmatprep.subr.mxu0 0.0
    %3417 = vmatpush1.msra.mxu0 0.0
    %3418 = vmatprep.subr.mxu0 0.0
    %3419 = vmatpush1.msra.mxu0 0.0
    %3420 = vmatprep.subr.mxu0 0.0
    %3421 = vmatpush1.msra.mxu0 0.0
    %3422 = vmatprep.subr.mxu0 0.0
    %3423 = vmatpush1.msra.mxu0 0.0
    %3424 = vmatprep.subr.mxu0 0.0
    %3425 = vmatpush1.msra.mxu0 0.0
    %3426 = vmatprep.subr.mxu0 0.0
    %3427 = vmatpush1.msra.mxu0 0.0
    %3428 = vmatprep.subr.mxu0 0.0
    %3429 = vmatpush1.msra.mxu0 0.0
    %3430 = vmatprep.subr.mxu0 0.0
    %3431 = vmatpush1.msra.mxu0 0.0
    %3432 = vmatprep.subr.mxu0 0.0
    %3433 = vmatpush1.msra.mxu0 0.0
    %3434 = vmatprep.mubr.f32.mxu0 0.0
    %v3435 = vand.u32 %v2458, 4294901760
    %3436 = vmatmul.mubr.f32.gmra.mrb[0].mxu0 %v3435
    %v3437 = vpop.f32.mrb[0].mxu0
    %v3438 = vadd.f32 %v3362, %v3437
    %v3439 = vpop.f32.mrb[0].mxu0
    %v3440 = vadd.f32 %v3364, %v3439
    %3441 = vdwg.mxu0
    %3442 = vmatprep.subr.mxu0 0.0
    %v3443 = vand.u32 %v2423, 4294901760
    %3444 = vmatpush1.msra.mxu0 %v3443
    %3445 = vmatprep.subr.mxu0 0.0
    %v3446 = vand.u32 %v2428, 4294901760
    %3447 = vmatpush1.msra.mxu0 %v3446
    %3448 = vmatprep.subr.mxu0 0.0
    %3449 = vmatpush1.msra.mxu0 0.0
    %3450 = vmatprep.subr.mxu0 0.0
    %3451 = vmatpush1.msra.mxu0 0.0
    %3452 = vmatprep.subr.mxu0 0.0
    %3453 = vmatpush1.msra.mxu0 0.0
    %3454 = vmatprep.subr.mxu0 0.0
    %3455 = vmatpush1.msra.mxu0 0.0
    %3456 = vmatprep.subr.mxu0 0.0
    %3457 = vmatpush1.msra.mxu0 0.0
    %3458 = vmatprep.subr.mxu0 0.0
    %3459 = vmatpush1.msra.mxu0 0.0
    %3460 = vmatprep.subr.mxu0 0.0
    %3461 = vmatpush1.msra.mxu0 0.0
    %3462 = vmatprep.subr.mxu0 0.0
    %3463 = vmatpush1.msra.mxu0 0.0
    %3464 = vmatprep.subr.mxu0 0.0
    %3465 = vmatpush1.msra.mxu0 0.0
    %3466 = vmatprep.subr.mxu0 0.0
    %3467 = vmatpush1.msra.mxu0 0.0
    %3468 = vmatprep.subr.mxu0 0.0
    %3469 = vmatpush1.msra.mxu0 0.0
    %3470 = vmatprep.subr.mxu0 0.0
    %3471 = vmatpush1.msra.mxu0 0.0
    %3472 = vmatprep.subr.mxu0 0.0
    %3473 = vmatpush1.msra.mxu0 0.0
    %3474 = vmatprep.subr.mxu0 0.0
    %3475 = vmatpush1.msra.mxu0 0.0
    %3476 = vmatprep.subr.mxu0 0.0
    %3477 = vmatpush1.msra.mxu0 0.0
    %3478 = vmatprep.subr.mxu0 0.0
    %3479 = vmatpush1.msra.mxu0 0.0
    %3480 = vmatprep.subr.mxu0 0.0
    %3481 = vmatpush1.msra.mxu0 0.0
    %3482 = vmatprep.subr.mxu0 0.0
    %3483 = vmatpush1.msra.mxu0 0.0
    %3484 = vmatprep.subr.mxu0 0.0
    %3485 = vmatpush1.msra.mxu0 0.0
    %3486 = vmatprep.subr.mxu0 0.0
    %3487 = vmatpush1.msra.mxu0 0.0
    %3488 = vmatprep.subr.mxu0 0.0
    %3489 = vmatpush1.msra.mxu0 0.0
    %3490 = vmatprep.subr.mxu0 0.0
    %3491 = vmatpush1.msra.mxu0 0.0
    %3492 = vmatprep.subr.mxu0 0.0
    %3493 = vmatpush1.msra.mxu0 0.0
    %3494 = vmatprep.subr.mxu0 0.0
    %3495 = vmatpush1.msra.mxu0 0.0
    %3496 = vmatprep.subr.mxu0 0.0
    %3497 = vmatpush1.msra.mxu0 0.0
    %3498 = vmatprep.subr.mxu0 0.0
    %3499 = vmatpush1.msra.mxu0 0.0
    %3500 = vmatprep.subr.mxu0 0.0
    %3501 = vmatpush1.msra.mxu0 0.0
    %3502 = vmatprep.subr.mxu0 0.0
    %3503 = vmatpush1.msra.mxu0 0.0
    %3504 = vmatprep.subr.mxu0 0.0
    %3505 = vmatpush1.msra.mxu0 0.0
    %3506 = vmatprep.subr.mxu0 0.0
    %3507 = vmatpush1.msra.mxu0 0.0
    %3508 = vmatprep.mubr.f32.mxu0 0.0
    %v3509 = vand.u32 %v2458, 4294901760
    %v3510 = vsub.f32 %v2458, %v3509
    %v3511 = vand.u32 %v3510, 4294901760
    %v3512 = vsub.f32 %v3510, %v3511
    %v3513 = vand.u32 %v3512, 4294901760
    %3514 = vmatmul.mubr.f32.gmra.mrb[0].mxu0 %v3513
    %v3515 = vpop.f32.mrb[0].mxu0
    %v3516 = vadd.f32 %v2450, %v3515
    %v3517 = vpop.f32.mrb[0].mxu0
    %3518 = vdwg.mxu0
    %3519 = vmatprep.subr.mxu0 0.0
    %v3520 = vand.u32 %v2423, 4294901760
    %v3521 = vsub.f32 %v2423, %v3520
    %v3522 = vand.u32 %v3521, 4294901760
    %v3523 = vsub.f32 %v3521, %v3522
    %v3524 = vand.u32 %v3523, 4294901760
    %3525 = vmatpush1.msra.mxu0 %v3524
    %3526 = vmatprep.subr.mxu0 0.0
    %v3527 = vand.u32 %v2428, 4294901760
    %v3528 = vsub.f32 %v2428, %v3527
    %v3529 = vand.u32 %v3528, 4294901760
    %v3530 = vsub.f32 %v3528, %v3529
    %v3531 = vand.u32 %v3530, 4294901760
    %3532 = vmatpush1.msra.mxu0 %v3531
    %3533 = vmatprep.subr.mxu0 0.0
    %3534 = vmatpush1.msra.mxu0 0.0
    %3535 = vmatprep.subr.mxu0 0.0
    %3536 = vmatpush1.msra.mxu0 0.0
    %3537 = vmatprep.subr.mxu0 0.0
    %3538 = vmatpush1.msra.mxu0 0.0
    %3539 = vmatprep.subr.mxu0 0.0
    %3540 = vmatpush1.msra.mxu0 0.0
    %3541 = vmatprep.subr.mxu0 0.0
    %3542 = vmatpush1.msra.mxu0 0.0
    %3543 = vmatprep.subr.mxu0 0.0
    %3544 = vmatpush1.msra.mxu0 0.0
    %3545 = vmatprep.subr.mxu0 0.0
    %3546 = vmatpush1.msra.mxu0 0.0
    %3547 = vmatprep.subr.mxu0 0.0
    %3548 = vmatpush1.msra.mxu0 0.0
    %3549 = vmatprep.subr.mxu0 0.0
    %3550 = vmatpush1.msra.mxu0 0.0
    %3551 = vmatprep.subr.mxu0 0.0
    %3552 = vmatpush1.msra.mxu0 0.0
    %3553 = vmatprep.subr.mxu0 0.0
    %3554 = vmatpush1.msra.mxu0 0.0
    %3555 = vmatprep.subr.mxu0 0.0
    %3556 = vmatpush1.msra.mxu0 0.0
    %3557 = vmatprep.subr.mxu0 0.0
    %3558 = vmatpush1.msra.mxu0 0.0
    %3559 = vmatprep.subr.mxu0 0.0
    %3560 = vmatpush1.msra.mxu0 0.0
    %3561 = vmatprep.subr.mxu0 0.0
    %3562 = vmatpush1.msra.mxu0 0.0
    %3563 = vmatprep.subr.mxu0 0.0
    %3564 = vmatpush1.msra.mxu0 0.0
    %3565 = vmatprep.subr.mxu0 0.0
    %3566 = vmatpush1.msra.mxu0 0.0
    %3567 = vmatprep.subr.mxu0 0.0
    %3568 = vmatpush1.msra.mxu0 0.0
    %3569 = vmatprep.subr.mxu0 0.0
    %3570 = vmatpush1.msra.mxu0 0.0
    %3571 = vmatprep.subr.mxu0 0.0
    %3572 = vmatpush1.msra.mxu0 0.0
    %3573 = vmatprep.subr.mxu0 0.0
    %3574 = vmatpush1.msra.mxu0 0.0
    %3575 = vmatprep.subr.mxu0 0.0
    %3576 = vmatpush1.msra.mxu0 0.0
    %3577 = vmatprep.subr.mxu0 0.0
    %3578 = vmatpush1.msra.mxu0 0.0
    %3579 = vmatprep.subr.mxu0 0.0
    %3580 = vmatpush1.msra.mxu0 0.0
    %3581 = vmatprep.subr.mxu0 0.0
    %3582 = vmatpush1.msra.mxu0 0.0
    %3583 = vmatprep.subr.mxu0 0.0
    %3584 = vmatpush1.msra.mxu0 0.0
    %3585 = vmatprep.subr.mxu0 0.0
    %3586 = vmatpush1.msra.mxu0 0.0
    %3587 = vmatprep.subr.mxu0 0.0
    %3588 = vmatpush1.msra.mxu0 0.0
    %3589 = vmatprep.subr.mxu0 0.0
    %3590 = vmatpush1.msra.mxu0 0.0
    %3591 = vmatprep.subr.mxu0 0.0
    %3592 = vmatpush1.msra.mxu0 0.0
    %3593 = vmatprep.mubr.f32.mxu0 0.0
    %v3594 = vand.u32 %v2458, 4294901760
    %3595 = vmatmul.mubr.f32.gmra.mrb[0].mxu0 %v3594
    %v3596 = vpop.f32.mrb[0].mxu0
    %v3597 = vadd.f32 %v3516, %v3596
    %v3598 = vpop.f32.mrb[0].mxu0
    %3599 = vdwg.mxu0
    %3600 = vmatprep.subr.mxu0 0.0
    %v3601 = vand.u32 %v2423, 4294901760
    %v3602 = vsub.f32 %v2423, %v3601
    %3603 = vmatpush1.msra.mxu0 %v3602
    %3604 = vmatprep.subr.mxu0 0.0
    %v3605 = vand.u32 %v2428, 4294901760
    %v3606 = vsub.f32 %v2428, %v3605
    %3607 = vmatpush1.msra.mxu0 %v3606
    %3608 = vmatprep.subr.mxu0 0.0
    %3609 = vmatpush1.msra.mxu0 0.0
    %3610 = vmatprep.subr.mxu0 0.0
    %3611 = vmatpush1.msra.mxu0 0.0
    %3612 = vmatprep.subr.mxu0 0.0
    %3613 = vmatpush1.msra.mxu0 0.0
    %3614 = vmatprep.subr.mxu0 0.0
    %3615 = vmatpush1.msra.mxu0 0.0
    %3616 = vmatprep.subr.mxu0 0.0
    %3617 = vmatpush1.msra.mxu0 0.0
    %3618 = vmatprep.subr.mxu0 0.0
    %3619 = vmatpush1.msra.mxu0 0.0
    %3620 = vmatprep.subr.mxu0 0.0
    %3621 = vmatpush1.msra.mxu0 0.0
    %3622 = vmatprep.subr.mxu0 0.0
    %3623 = vmatpush1.msra.mxu0 0.0
    %3624 = vmatprep.subr.mxu0 0.0
    %3625 = vmatpush1.msra.mxu0 0.0
    %3626 = vmatprep.subr.mxu0 0.0
    %3627 = vmatpush1.msra.mxu0 0.0
    %3628 = vmatprep.subr.mxu0 0.0
    %3629 = vmatpush1.msra.mxu0 0.0
    %3630 = vmatprep.subr.mxu0 0.0
    %3631 = vmatpush1.msra.mxu0 0.0
    %3632 = vmatprep.subr.mxu0 0.0
    %3633 = vmatpush1.msra.mxu0 0.0
    %3634 = vmatprep.subr.mxu0 0.0
    %3635 = vmatpush1.msra.mxu0 0.0
    %3636 = vmatprep.subr.mxu0 0.0
    %3637 = vmatpush1.msra.mxu0 0.0
    %3638 = vmatprep.subr.mxu0 0.0
    %3639 = vmatpush1.msra.mxu0 0.0
    %3640 = vmatprep.subr.mxu0 0.0
    %3641 = vmatpush1.msra.mxu0 0.0
    %3642 = vmatprep.subr.mxu0 0.0
    %3643 = vmatpush1.msra.mxu0 0.0
    %3644 = vmatprep.subr.mxu0 0.0
    %3645 = vmatpush1.msra.mxu0 0.0
    %3646 = vmatprep.subr.mxu0 0.0
    %3647 = vmatpush1.msra.mxu0 0.0
    %3648 = vmatprep.subr.mxu0 0.0
    %3649 = vmatpush1.msra.mxu0 0.0
    %3650 = vmatprep.subr.mxu0 0.0
    %3651 = vmatpush1.msra.mxu0 0.0
    %3652 = vmatprep.subr.mxu0 0.0
    %3653 = vmatpush1.msra.mxu0 0.0
    %3654 = vmatprep.subr.mxu0 0.0
    %3655 = vmatpush1.msra.mxu0 0.0
    %3656 = vmatprep.subr.mxu0 0.0
    %3657 = vmatpush1.msra.mxu0 0.0
    %3658 = vmatprep.subr.mxu0 0.0
    %3659 = vmatpush1.msra.mxu0 0.0
    %3660 = vmatprep.subr.mxu0 0.0
    %3661 = vmatpush1.msra.mxu0 0.0
    %3662 = vmatprep.subr.mxu0 0.0
    %3663 = vmatpush1.msra.mxu0 0.0
    %3664 = vmatprep.subr.mxu0 0.0
    %3665 = vmatpush1.msra.mxu0 0.0
    %3666 = vmatprep.subr.mxu0 0.0
    %3667 = vmatpush1.msra.mxu0 0.0
    %3668 = vmatprep.mubr.f32.mxu0 0.0
    %v3669 = vand.u32 %v2458, 4294901760
    %v3670 = vsub.f32 %v2458, %v3669
    %3671 = vmatmul.mubr.f32.gmra.mrb[0].mxu0 %v3670
    %v3672 = vpop.f32.mrb[0].mxu0
    %v3673 = vadd.f32 %v3597, %v3672
    %v3674 = vpop.f32.mrb[0].mxu0
    %3675 = vdwg.mxu0
    %3676 = vmatprep.subr.mxu0 0.0
    %v3677 = vand.u32 %v2423, 4294901760
    %3678 = vmatpush1.msra.mxu0 %v3677
    %3679 = vmatprep.subr.mxu0 0.0
    %v3680 = vand.u32 %v2428, 4294901760
    %3681 = vmatpush1.msra.mxu0 %v3680
    %3682 = vmatprep.subr.mxu0 0.0
    %3683 = vmatpush1.msra.mxu0 0.0
    %3684 = vmatprep.subr.mxu0 0.0
    %3685 = vmatpush1.msra.mxu0 0.0
    %3686 = vmatprep.subr.mxu0 0.0
    %3687 = vmatpush1.msra.mxu0 0.0
    %3688 = vmatprep.subr.mxu0 0.0
    %3689 = vmatpush1.msra.mxu0 0.0
    %3690 = vmatprep.subr.mxu0 0.0
    %3691 = vmatpush1.msra.mxu0 0.0
    %3692 = vmatprep.subr.mxu0 0.0
    %3693 = vmatpush1.msra.mxu0 0.0
    %3694 = vmatprep.subr.mxu0 0.0
    %3695 = vmatpush1.msra.mxu0 0.0
    %3696 = vmatprep.subr.mxu0 0.0
    %3697 = vmatpush1.msra.mxu0 0.0
    %3698 = vmatprep.subr.mxu0 0.0
    %3699 = vmatpush1.msra.mxu0 0.0
    %3700 = vmatprep.subr.mxu0 0.0
    %3701 = vmatpush1.msra.mxu0 0.0
    %3702 = vmatprep.subr.mxu0 0.0
    %3703 = vmatpush1.msra.mxu0 0.0
    %3704 = vmatprep.subr.mxu0 0.0
    %3705 = vmatpush1.msra.mxu0 0.0
    %3706 = vmatprep.subr.mxu0 0.0
    %3707 = vmatpush1.msra.mxu0 0.0
    %3708 = vmatprep.subr.mxu0 0.0
    %3709 = vmatpush1.msra.mxu0 0.0
    %3710 = vmatprep.subr.mxu0 0.0
    %3711 = vmatpush1.msra.mxu0 0.0
    %3712 = vmatprep.subr.mxu0 0.0
    %3713 = vmatpush1.msra.mxu0 0.0
    %3714 = vmatprep.subr.mxu0 0.0
    %3715 = vmatpush1.msra.mxu0 0.0
    %3716 = vmatprep.subr.mxu0 0.0
    %3717 = vmatpush1.msra.mxu0 0.0
    %3718 = vmatprep.subr.mxu0 0.0
    %3719 = vmatpush1.msra.mxu0 0.0
    %3720 = vmatprep.subr.mxu0 0.0
    %3721 = vmatpush1.msra.mxu0 0.0
    %3722 = vmatprep.subr.mxu0 0.0
    %3723 = vmatpush1.msra.mxu0 0.0
    %3724 = vmatprep.subr.mxu0 0.0
    %3725 = vmatpush1.msra.mxu0 0.0
    %3726 = vmatprep.subr.mxu0 0.0
    %3727 = vmatpush1.msra.mxu0 0.0
    %3728 = vmatprep.subr.mxu0 0.0
    %3729 = vmatpush1.msra.mxu0 0.0
    %3730 = vmatprep.subr.mxu0 0.0
    %3731 = vmatpush1.msra.mxu0 0.0
    %3732 = vmatprep.subr.mxu0 0.0
    %3733 = vmatpush1.msra.mxu0 0.0
    %3734 = vmatprep.subr.mxu0 0.0
    %3735 = vmatpush1.msra.mxu0 0.0
    %3736 = vmatprep.subr.mxu0 0.0
    %3737 = vmatpush1.msra.mxu0 0.0
    %3738 = vmatprep.subr.mxu0 0.0
    %3739 = vmatpush1.msra.mxu0 0.0
    %3740 = vmatprep.subr.mxu0 0.0
    %3741 = vmatpush1.msra.mxu0 0.0
    %3742 = vmatprep.mubr.f32.mxu0 0.0
    %v3743 = vand.u32 %v2458, 4294901760
    %v3744 = vsub.f32 %v2458, %v3743
    %v3745 = vand.u32 %v3744, 4294901760
    %3746 = vmatmul.mubr.f32.gmra.mrb[0].mxu0 %v3745
    %v3747 = vpop.f32.mrb[0].mxu0
    %v3748 = vadd.f32 %v3673, %v3747
    %v3749 = vpop.f32.mrb[0].mxu0
    %3750 = vdwg.mxu0
    %3751 = vmatprep.subr.mxu0 0.0
    %v3752 = vand.u32 %v2423, 4294901760
    %v3753 = vsub.f32 %v2423, %v3752
    %v3754 = vand.u32 %v3753, 4294901760
    %3755 = vmatpush1.msra.mxu0 %v3754
    %3756 = vmatprep.subr.mxu0 0.0
    %v3757 = vand.u32 %v2428, 4294901760
    %v3758 = vsub.f32 %v2428, %v3757
    %v3759 = vand.u32 %v3758, 4294901760
    %3760 = vmatpush1.msra.mxu0 %v3759
    %3761 = vmatprep.subr.mxu0 0.0
    %3762 = vmatpush1.msra.mxu0 0.0
    %3763 = vmatprep.subr.mxu0 0.0
    %3764 = vmatpush1.msra.mxu0 0.0
    %3765 = vmatprep.subr.mxu0 0.0
    %3766 = vmatpush1.msra.mxu0 0.0
    %3767 = vmatprep.subr.mxu0 0.0
    %3768 = vmatpush1.msra.mxu0 0.0
    %3769 = vmatprep.subr.mxu0 0.0
    %3770 = vmatpush1.msra.mxu0 0.0
    %3771 = vmatprep.subr.mxu0 0.0
    %3772 = vmatpush1.msra.mxu0 0.0
    %3773 = vmatprep.subr.mxu0 0.0
    %3774 = vmatpush1.msra.mxu0 0.0
    %3775 = vmatprep.subr.mxu0 0.0
    %3776 = vmatpush1.msra.mxu0 0.0
    %3777 = vmatprep.subr.mxu0 0.0
    %3778 = vmatpush1.msra.mxu0 0.0
    %3779 = vmatprep.subr.mxu0 0.0
    %3780 = vmatpush1.msra.mxu0 0.0
    %3781 = vmatprep.subr.mxu0 0.0
    %3782 = vmatpush1.msra.mxu0 0.0
    %3783 = vmatprep.subr.mxu0 0.0
    %3784 = vmatpush1.msra.mxu0 0.0
    %3785 = vmatprep.subr.mxu0 0.0
    %3786 = vmatpush1.msra.mxu0 0.0
    %3787 = vmatprep.subr.mxu0 0.0
    %3788 = vmatpush1.msra.mxu0 0.0
    %3789 = vmatprep.subr.mxu0 0.0
    %3790 = vmatpush1.msra.mxu0 0.0
    %3791 = vmatprep.subr.mxu0 0.0
    %3792 = vmatpush1.msra.mxu0 0.0
    %3793 = vmatprep.subr.mxu0 0.0
    %3794 = vmatpush1.msra.mxu0 0.0
    %3795 = vmatprep.subr.mxu0 0.0
    %3796 = vmatpush1.msra.mxu0 0.0
    %3797 = vmatprep.subr.mxu0 0.0
    %3798 = vmatpush1.msra.mxu0 0.0
    %3799 = vmatprep.subr.mxu0 0.0
    %3800 = vmatpush1.msra.mxu0 0.0
    %3801 = vmatprep.subr.mxu0 0.0
    %3802 = vmatpush1.msra.mxu0 0.0
    %3803 = vmatprep.subr.mxu0 0.0
    %3804 = vmatpush1.msra.mxu0 0.0
    %3805 = vmatprep.subr.mxu0 0.0
    %3806 = vmatpush1.msra.mxu0 0.0
    %3807 = vmatprep.subr.mxu0 0.0
    %3808 = vmatpush1.msra.mxu0 0.0
    %3809 = vmatprep.subr.mxu0 0.0
    %3810 = vmatpush1.msra.mxu0 0.0
    %3811 = vmatprep.subr.mxu0 0.0
    %3812 = vmatpush1.msra.mxu0 0.0
    %3813 = vmatprep.subr.mxu0 0.0
    %3814 = vmatpush1.msra.mxu0 0.0
    %3815 = vmatprep.subr.mxu0 0.0
    %3816 = vmatpush1.msra.mxu0 0.0
    %3817 = vmatprep.subr.mxu0 0.0
    %3818 = vmatpush1.msra.mxu0 0.0
    %3819 = vmatprep.subr.mxu0 0.0
    %3820 = vmatpush1.msra.mxu0 0.0
    %3821 = vmatprep.mubr.f32.mxu0 0.0
    %v3822 = vand.u32 %v2458, 4294901760
    %3823 = vmatmul.mubr.f32.gmra.mrb[0].mxu0 %v3822
    %v3824 = vpop.f32.mrb[0].mxu0
    %v3825 = vadd.f32 %v3748, %v3824
    %v3826 = vpop.f32.mrb[0].mxu0
    %3827 = vdwg.mxu0
    %3828 = vmatprep.subr.mxu0 0.0
    %v3829 = vand.u32 %v2423, 4294901760
    %3830 = vmatpush1.msra.mxu0 %v3829
    %3831 = vmatprep.subr.mxu0 0.0
    %v3832 = vand.u32 %v2428, 4294901760
    %3833 = vmatpush1.msra.mxu0 %v3832
    %3834 = vmatprep.subr.mxu0 0.0
    %3835 = vmatpush1.msra.mxu0 0.0
    %3836 = vmatprep.subr.mxu0 0.0
    %3837 = vmatpush1.msra.mxu0 0.0
    %3838 = vmatprep.subr.mxu0 0.0
    %3839 = vmatpush1.msra.mxu0 0.0
    %3840 = vmatprep.subr.mxu0 0.0
    %3841 = vmatpush1.msra.mxu0 0.0
    %3842 = vmatprep.subr.mxu0 0.0
    %3843 = vmatpush1.msra.mxu0 0.0
    %3844 = vmatprep.subr.mxu0 0.0
    %3845 = vmatpush1.msra.mxu0 0.0
    %3846 = vmatprep.subr.mxu0 0.0
    %3847 = vmatpush1.msra.mxu0 0.0
    %3848 = vmatprep.subr.mxu0 0.0
    %3849 = vmatpush1.msra.mxu0 0.0
    %3850 = vmatprep.subr.mxu0 0.0
    %3851 = vmatpush1.msra.mxu0 0.0
    %3852 = vmatprep.subr.mxu0 0.0
    %3853 = vmatpush1.msra.mxu0 0.0
    %3854 = vmatprep.subr.mxu0 0.0
    %3855 = vmatpush1.msra.mxu0 0.0
    %3856 = vmatprep.subr.mxu0 0.0
    %3857 = vmatpush1.msra.mxu0 0.0
    %3858 = vmatprep.subr.mxu0 0.0
    %3859 = vmatpush1.msra.mxu0 0.0
    %3860 = vmatprep.subr.mxu0 0.0
    %3861 = vmatpush1.msra.mxu0 0.0
    %3862 = vmatprep.subr.mxu0 0.0
    %3863 = vmatpush1.msra.mxu0 0.0
    %3864 = vmatprep.subr.mxu0 0.0
    %3865 = vmatpush1.msra.mxu0 0.0
    %3866 = vmatprep.subr.mxu0 0.0
    %3867 = vmatpush1.msra.mxu0 0.0
    %3868 = vmatprep.subr.mxu0 0.0
    %3869 = vmatpush1.msra.mxu0 0.0
    %3870 = vmatprep.subr.mxu0 0.0
    %3871 = vmatpush1.msra.mxu0 0.0
    %3872 = vmatprep.subr.mxu0 0.0
    %3873 = vmatpush1.msra.mxu0 0.0
    %3874 = vmatprep.subr.mxu0 0.0
    %3875 = vmatpush1.msra.mxu0 0.0
    %3876 = vmatprep.subr.mxu0 0.0
    %3877 = vmatpush1.msra.mxu0 0.0
    %3878 = vmatprep.subr.mxu0 0.0
    %3879 = vmatpush1.msra.mxu0 0.0
    %3880 = vmatprep.subr.mxu0 0.0
    %3881 = vmatpush1.msra.mxu0 0.0
    %3882 = vmatprep.subr.mxu0 0.0
    %3883 = vmatpush1.msra.mxu0 0.0
    %3884 = vmatprep.subr.mxu0 0.0
    %3885 = vmatpush1.msra.mxu0 0.0
    %3886 = vmatprep.subr.mxu0 0.0
    %3887 = vmatpush1.msra.mxu0 0.0
    %3888 = vmatprep.subr.mxu0 0.0
    %3889 = vmatpush1.msra.mxu0 0.0
    %3890 = vmatprep.subr.mxu0 0.0
    %3891 = vmatpush1.msra.mxu0 0.0
    %3892 = vmatprep.subr.mxu0 0.0
    %3893 = vmatpush1.msra.mxu0 0.0
    %3894 = vmatprep.mubr.f32.mxu0 0.0
    %v3895 = vand.u32 %v2458, 4294901760
    %3896 = vmatmul.mubr.f32.gmra.mrb[0].mxu0 %v3895
    %v3897 = vpop.f32.mrb[0].mxu0
    %v3898 = vadd.f32 %v3825, %v3897
    %v3899 = vpop.f32.mrb[0].mxu0
    %3900 = vdwg.mxu0
    %v3901 = vsel %vm102, %v3898, -inf
    %v3902 = vmax.f32 %v2947, %v3901
    %v3903 = vmax.f32 %v3902, %v2949
    %v3904 = vmax.f32 %v3438, %v3440
    %v3905 = vmax.f32 %v3903, %v3904
    %3906 = vmax.xlane.f32.xlu0 %v3905
    %v3907 = vpop.xlane.xlu0 %3906
    %v3908 = vsub.f32 %v2947, %v3907
    %v3909 = vsub.f32 %v2949, %v3907
    %v3910 = vsub.f32 %v3438, %v3907
    %v3911 = vsub.f32 %v3440, %v3907
    %v3912 = vsub.f32 %v3898, %v3907
    %v3913 = vmul.f32 %v3908, 1.442695
    %v3914 = vpow.pop %v3913
    %v3915 = vmul.f32 %v3909, 1.442695
    %v3916 = vpow.pop %v3915
    %v3917 = vmul.f32 %v3910, 1.442695
    %v3918 = vpow.pop %v3917
    %v3919 = vmul.f32 %v3911, 1.442695
    %v3920 = vpow.pop %v3919
    %v3921 = vmul.f32 %v3912, 1.442695
    %v3922 = vpow.pop %v3921
    %v3923 = vld [vmem:[%s4] sm:$0xff]
    %v3924 = vld [vmem:[%s4 + $0x8] sm:$0xff]
    %v3925 = vld [vmem:[%s4 + $0x10] sm:$0xff]
    %v3926 = vld [vmem:[%s4 + $0x18] sm:$0xff]
    %v3927 = vld [vmem:[%s4 + $0x20] sm:$0xff]
    %v3928 = vld [vmem:[%s4 + $0x28] sm:$0xff]
    %v3929 = vld [vmem:[%s4 + $0x30] sm:$0xff]
    %v3930 = vld [vmem:[%s4 + $0x38] sm:$0xff]
    %v3931 = vld [vmem:[%s4 + $0x40] sm:$0xff]
    %v3932 = vld [vmem:[%s4 + $0x48] sm:$0xff]
    %v3933 = vld [vmem:[%s4 + $0x50] sm:$0xff]
    %v3934 = vld [vmem:[%s4 + $0x58] sm:$0xff]
    %v3935 = vld [vmem:[%s4 + $0x60] sm:$0xff]
    %v3936 = vld [vmem:[%s4 + $0x68] sm:$0xff]
    %v3937 = vld [vmem:[%s4 + $0x70] sm:$0xff]
    %v3938 = vld [vmem:[%s4 + $0x78] sm:$0xff]
    %v3939 = vld [vmem:[%s4 + $0x80] sm:$0xff]
    %v3940 = vld [vmem:[%s4 + $0x88] sm:$0xff]
    %v3941 = vld [vmem:[%s4 + $0x90] sm:$0xff]
    %v3942 = vld [vmem:[%s4 + $0x98] sm:$0xff]
    %v3943 = vld [vmem:[%s4 + $0xa0] sm:$0xff]
    %v3944 = vld [vmem:[%s4 + $0xa8] sm:$0xff]
    %v3945 = vld [vmem:[%s4 + $0xb0] sm:$0xff]
    %v3946 = vld [vmem:[%s4 + $0xb8] sm:$0xff]
    %v3947 = vld [vmem:[%s4 + $0xc0] sm:$0xff]
    %v3948 = vld [vmem:[%s4 + $0xc8] sm:$0xff]
    %v3949 = vld [vmem:[%s4 + $0xd0] sm:$0xff]
    %v3950 = vld [vmem:[%s4 + $0xd8] sm:$0xff]
    %v3951 = vld [vmem:[%s4 + $0xe0] sm:$0xff]
    %v3952 = vld [vmem:[%s4 + $0xe8] sm:$0xff]
    %v3953 = vld [vmem:[%s4 + $0xf0] sm:$0xff]
    %v3954 = vld [vmem:[%s4 + $0xf8] sm:$0xff]
    %v3955 = vld [vmem:[%s4 + $0x100] sm:$0xff]
    %v3956 = vld [vmem:[%s4 + $0x108] sm:$0xff]
    %v3957 = vld [vmem:[%s4 + $0x110] sm:$0xff]
    %v3958 = vld [vmem:[%s4 + $0x118] sm:$0xff]
    %v3959 = vld [vmem:[%s4 + $0x120] sm:$0xff]
    %v3960 = vld [vmem:[%s4 + $0x128] sm:$0xff]
    %v3961 = vld [vmem:[%s4 + $0x130] sm:$0xff]
    %v3962 = vld [vmem:[%s4 + $0x138] sm:$0xff]
    %v3963 = vld [vmem:[%s4 + $0x140] sm:$0xff]
    %v3964 = vld [vmem:[%s4 + $0x148] sm:$0xff]
    %v3965 = vld [vmem:[%s4 + $0x150] sm:$0xff]
    %v3966 = vld [vmem:[%s4 + $0x158] sm:$0xff]
    %v3967 = vld [vmem:[%s4 + $0x160] sm:$0xff]
    %v3968 = vld [vmem:[%s4 + $0x168] sm:$0xff]
    %v3969 = vld [vmem:[%s4 + $0x170] sm:$0xff]
    %v3970 = vld [vmem:[%s4 + $0x178] sm:$0xff]
    %v3971 = vld [vmem:[%s4 + $0x180] sm:$0xff]
    %v3972 = vld [vmem:[%s4 + $0x188] sm:$0xff]
    %v3973 = vld [vmem:[%s4 + $0x190] sm:$0xff]
    %v3974 = vld [vmem:[%s4 + $0x198] sm:$0xff]
    %v3975 = vld [vmem:[%s4 + $0x1a0] sm:$0xff]
    %v3976 = vld [vmem:[%s4 + $0x1a8] sm:$0xff]
    %v3977 = vld [vmem:[%s4 + $0x1b0] sm:$0xff]
    %v3978 = vld [vmem:[%s4 + $0x1b8] sm:$0xff]
    %v3979 = vld [vmem:[%s4 + $0x1c0] sm:$0xff]
    %v3980 = vld [vmem:[%s4 + $0x1c8] sm:$0xff]
    %v3981 = vld [vmem:[%s4 + $0x1d0] sm:$0xff]
    %v3982 = vld [vmem:[%s4 + $0x1d8] sm:$0xff]
    %v3983 = vld [vmem:[%s4 + $0x1e0] sm:$0xff]
    %v3984 = vld [vmem:[%s4 + $0x1e8] sm:$0xff]
    %v3985 = vld [vmem:[%s4 + $0x1f0] sm:$0xff]
    %v3986 = vld [vmem:[%s4 + $0x1f8] sm:$0xff]
    %v3987 = vld [vmem:[%s4 + $0x200] sm:$0xff]
    %v3988 = vld [vmem:[%s4 + $0x208] sm:$0xff]
    %v3989 = vld [vmem:[%s4 + $0x210] sm:$0xff]
    %v3990 = vld [vmem:[%s4 + $0x218] sm:$0xff]
    %v3991 = vld [vmem:[%s4 + $0x220] sm:$0xff]
    %v3992 = vld [vmem:[%s4 + $0x228] sm:$0xff]
    %v3993 = vld [vmem:[%s4 + $0x230] sm:$0xff]
    %v3994 = vld [vmem:[%s4 + $0x238] sm:$0xff]
    %v3995 = vld [vmem:[%s4 + $0x240] sm:$0xff]
    %v3996 = vld [vmem:[%s4 + $0x248] sm:$0xff]
    %v3997 = vld [vmem:[%s4 + $0x250] sm:$0xff]
    %v3998 = vld [vmem:[%s4 + $0x258] sm:$0xff]
    %v4000 = vsel %vm102, %v3922, 0
    %4002 = vmatprep.subr.mxu0 0.0
    %v4003 = vand.u32 %v3923, 4294901760
    %4004 = vmatpush1.msra.mxu0 %v4003
    %4005 = vmatprep.subr.mxu0 0.0
    %v4006 = vand.u32 %v3924, 4294901760
    %4007 = vmatpush1.msra.mxu0 %v4006
    %4008 = vmatprep.subr.mxu0 0.0
    %v4009 = vand.u32 %v3925, 4294901760
    %4010 = vmatpush1.msra.mxu0 %v4009
    %4011 = vmatprep.subr.mxu0 0.0
    %v4012 = vand.u32 %v3926, 4294901760
    %4013 = vmatpush1.msra.mxu0 %v4012
    %4014 = vmatprep.subr.mxu0 0.0
    %v4015 = vand.u32 %v3927, 4294901760
    %4016 = vmatpush1.msra.mxu0 %v4015
    %4017 = vmatprep.subr.mxu0 0.0
    %v4018 = vand.u32 %v3928, 4294901760
    %4019 = vmatpush1.msra.mxu0 %v4018
    %4020 = vmatprep.subr.mxu0 0.0
    %v4021 = vand.u32 %v3929, 4294901760
    %4022 = vmatpush1.msra.mxu0 %v4021
    %4023 = vmatprep.subr.mxu0 0.0
    %v4024 = vand.u32 %v3930, 4294901760
    %4025 = vmatpush1.msra.mxu0 %v4024
    %4026 = vmatprep.subr.mxu0 0.0
    %v4027 = vand.u32 %v3931, 4294901760
    %4028 = vmatpush1.msra.mxu0 %v4027
    %4029 = vmatprep.subr.mxu0 0.0
    %v4030 = vand.u32 %v3932, 4294901760
    %4031 = vmatpush1.msra.mxu0 %v4030
    %4032 = vmatprep.subr.mxu0 0.0
    %v4033 = vand.u32 %v3933, 4294901760
    %4034 = vmatpush1.msra.mxu0 %v4033
    %4035 = vmatprep.subr.mxu0 0.0
    %v4036 = vand.u32 %v3934, 4294901760
    %4037 = vmatpush1.msra.mxu0 %v4036
    %4038 = vmatprep.subr.mxu0 0.0
    %v4039 = vand.u32 %v3935, 4294901760
    %4040 = vmatpush1.msra.mxu0 %v4039
    %4041 = vmatprep.subr.mxu0 0.0
    %v4042 = vand.u32 %v3936, 4294901760
    %4043 = vmatpush1.msra.mxu0 %v4042
    %4044 = vmatprep.subr.mxu0 0.0
    %v4045 = vand.u32 %v3937, 4294901760
    %4046 = vmatpush1.msra.mxu0 %v4045
    %4047 = vmatprep.subr.mxu0 0.0
    %v4048 = vand.u32 %v3938, 4294901760
    %4049 = vmatpush1.msra.mxu0 %v4048
    %4050 = vmatprep.subr.mxu0 0.0
    %v4051 = vand.u32 %v3939, 4294901760
    %4052 = vmatpush1.msra.mxu0 %v4051
    %4053 = vmatprep.subr.mxu0 0.0
    %v4054 = vand.u32 %v3940, 4294901760
    %4055 = vmatpush1.msra.mxu0 %v4054
    %4056 = vmatprep.subr.mxu0 0.0
    %v4057 = vand.u32 %v3941, 4294901760
    %4058 = vmatpush1.msra.mxu0 %v4057
    %4059 = vmatprep.subr.mxu0 0.0
    %v4060 = vand.u32 %v3942, 4294901760
    %4061 = vmatpush1.msra.mxu0 %v4060
    %4062 = vmatprep.subr.mxu0 0.0
    %v4063 = vand.u32 %v3943, 4294901760
    %4064 = vmatpush1.msra.mxu0 %v4063
    %4065 = vmatprep.subr.mxu0 0.0
    %v4066 = vand.u32 %v3944, 4294901760
    %4067 = vmatpush1.msra.mxu0 %v4066
    %4068 = vmatprep.subr.mxu0 0.0
    %v4069 = vand.u32 %v3945, 4294901760
    %4070 = vmatpush1.msra.mxu0 %v4069
    %4071 = vmatprep.subr.mxu0 0.0
    %v4072 = vand.u32 %v3946, 4294901760
    %4073 = vmatpush1.msra.mxu0 %v4072
    %4074 = vmatprep.subr.mxu0 0.0
    %v4075 = vand.u32 %v3947, 4294901760
    %4076 = vmatpush1.msra.mxu0 %v4075
    %4077 = vmatprep.subr.mxu0 0.0
    %v4078 = vand.u32 %v3948, 4294901760
    %4079 = vmatpush1.msra.mxu0 %v4078
    %4080 = vmatprep.subr.mxu0 0.0
    %v4081 = vand.u32 %v3949, 4294901760
    %4082 = vmatpush1.msra.mxu0 %v4081
    %4083 = vmatprep.subr.mxu0 0.0
    %v4084 = vand.u32 %v3950, 4294901760
    %4085 = vmatpush1.msra.mxu0 %v4084
    %4086 = vmatprep.subr.mxu0 0.0
    %v4087 = vand.u32 %v3951, 4294901760
    %4088 = vmatpush1.msra.mxu0 %v4087
    %4089 = vmatprep.subr.mxu0 0.0
    %v4090 = vand.u32 %v3952, 4294901760
    %4091 = vmatpush1.msra.mxu0 %v4090
    %4092 = vmatprep.subr.mxu0 0.0
    %v4093 = vand.u32 %v3953, 4294901760
    %4094 = vmatpush1.msra.mxu0 %v4093
    %4095 = vmatprep.subr.mxu0 0.0
    %v4096 = vand.u32 %v3954, 4294901760
    %4097 = vmatpush1.msra.mxu0 %v4096
    %v4098 = vand.u32 %v3916, 4294901760
    %v4099 = vsub.f32 %v3916, %v4098
    %v4100 = vand.u32 %v4099, 4294901760
    %v4101 = vsub.f32 %v4099, %v4100
    %v4102 = vand.u32 %v4101, 4294901760
    %4103 = vmatprep.mubr.f32.mxu0 %v4102
    %v4104 = vand.u32 %v3914, 4294901760
    %v4105 = vsub.f32 %v3914, %v4104
    %v4106 = vand.u32 %v4105, 4294901760
    %v4107 = vsub.f32 %v4105, %v4106
    %v4108 = vand.u32 %v4107, 4294901760
    %4109 = vmatmul.mubr.f32.gmra.mrb[0].mxu0 %v4108
    %v4110 = vpop.f32.mrb[0].mxu0
    %v4111 = vadd.f32 0.0, %v4110
    %v4112 = vpop.f32.mrb[0].mxu0
    %4113 = vdwg.mxu0
    %4114 = vmatprep.subr.mxu0 0.0
    %v4115 = vand.u32 %v3923, 4294901760
    %v4116 = vsub.f32 %v3923, %v4115
    %v4117 = vand.u32 %v4116, 4294901760
    %v4118 = vsub.f32 %v4116, %v4117
    %v4119 = vand.u32 %v4118, 4294901760
    %4120 = vmatpush1.msra.mxu0 %v4119
    %4121 = vmatprep.subr.mxu0 0.0
    %v4122 = vand.u32 %v3924, 4294901760
    %v4123 = vsub.f32 %v3924, %v4122
    %v4124 = vand.u32 %v4123, 4294901760
    %v4125 = vsub.f32 %v4123, %v4124
    %v4126 = vand.u32 %v4125, 4294901760
    %4127 = vmatpush1.msra.mxu0 %v4126
    %4128 = vmatprep.subr.mxu0 0.0
    %v4129 = vand.u32 %v3925, 4294901760
    %v4130 = vsub.f32 %v3925, %v4129
    %v4131 = vand.u32 %v4130, 4294901760
    %v4132 = vsub.f32 %v4130, %v4131
    %v4133 = vand.u32 %v4132, 4294901760
    %4134 = vmatpush1.msra.mxu0 %v4133
    %4135 = vmatprep.subr.mxu0 0.0
    %v4136 = vand.u32 %v3926, 4294901760
    %v4137 = vsub.f32 %v3926, %v4136
    %v4138 = vand.u32 %v4137, 4294901760
    %v4139 = vsub.f32 %v4137, %v4138
    %v4140 = vand.u32 %v4139, 4294901760
    %4141 = vmatpush1.msra.mxu0 %v4140
    %4142 = vmatprep.subr.mxu0 0.0
    %v4143 = vand.u32 %v3927, 4294901760
    %v4144 = vsub.f32 %v3927, %v4143
    %v4145 = vand.u32 %v4144, 4294901760
    %v4146 = vsub.f32 %v4144, %v4145
    %v4147 = vand.u32 %v4146, 4294901760
    %4148 = vmatpush1.msra.mxu0 %v4147
    %4149 = vmatprep.subr.mxu0 0.0
    %v4150 = vand.u32 %v3928, 4294901760
    %v4151 = vsub.f32 %v3928, %v4150
    %v4152 = vand.u32 %v4151, 4294901760
    %v4153 = vsub.f32 %v4151, %v4152
    %v4154 = vand.u32 %v4153, 4294901760
    %4155 = vmatpush1.msra.mxu0 %v4154
    %4156 = vmatprep.subr.mxu0 0.0
    %v4157 = vand.u32 %v3929, 4294901760
    %v4158 = vsub.f32 %v3929, %v4157
    %v4159 = vand.u32 %v4158, 4294901760
    %v4160 = vsub.f32 %v4158, %v4159
    %v4161 = vand.u32 %v4160, 4294901760
    %4162 = vmatpush1.msra.mxu0 %v4161
    %4163 = vmatprep.subr.mxu0 0.0
    %v4164 = vand.u32 %v3930, 4294901760
    %v4165 = vsub.f32 %v3930, %v4164
    %v4166 = vand.u32 %v4165, 4294901760
    %v4167 = vsub.f32 %v4165, %v4166
    %v4168 = vand.u32 %v4167, 4294901760
    %4169 = vmatpush1.msra.mxu0 %v4168
    %4170 = vmatprep.subr.mxu0 0.0
    %v4171 = vand.u32 %v3931, 4294901760
    %v4172 = vsub.f32 %v3931, %v4171
    %v4173 = vand.u32 %v4172, 4294901760
    %v4174 = vsub.f32 %v4172, %v4173
    %v4175 = vand.u32 %v4174, 4294901760
    %4176 = vmatpush1.msra.mxu0 %v4175
    %4177 = vmatprep.subr.mxu0 0.0
    %v4178 = vand.u32 %v3932, 4294901760
    %v4179 = vsub.f32 %v3932, %v4178
    %v4180 = vand.u32 %v4179, 4294901760
    %v4181 = vsub.f32 %v4179, %v4180
    %v4182 = vand.u32 %v4181, 4294901760
    %4183 = vmatpush1.msra.mxu0 %v4182
    %4184 = vmatprep.subr.mxu0 0.0
    %v4185 = vand.u32 %v3933, 4294901760
    %v4186 = vsub.f32 %v3933, %v4185
    %v4187 = vand.u32 %v4186, 4294901760
    %v4188 = vsub.f32 %v4186, %v4187
    %v4189 = vand.u32 %v4188, 4294901760
    %4190 = vmatpush1.msra.mxu0 %v4189
    %4191 = vmatprep.subr.mxu0 0.0
    %v4192 = vand.u32 %v3934, 4294901760
    %v4193 = vsub.f32 %v3934, %v4192
    %v4194 = vand.u32 %v4193, 4294901760
    %v4195 = vsub.f32 %v4193, %v4194
    %v4196 = vand.u32 %v4195, 4294901760
    %4197 = vmatpush1.msra.mxu0 %v4196
    %4198 = vmatprep.subr.mxu0 0.0
    %v4199 = vand.u32 %v3935, 4294901760
    %v4200 = vsub.f32 %v3935, %v4199
    %v4201 = vand.u32 %v4200, 4294901760
    %v4202 = vsub.f32 %v4200, %v4201
    %v4203 = vand.u32 %v4202, 4294901760
    %4204 = vmatpush1.msra.mxu0 %v4203
    %4205 = vmatprep.subr.mxu0 0.0
    %v4206 = vand.u32 %v3936, 4294901760
    %v4207 = vsub.f32 %v3936, %v4206
    %v4208 = vand.u32 %v4207, 4294901760
    %v4209 = vsub.f32 %v4207, %v4208
    %v4210 = vand.u32 %v4209, 4294901760
    %4211 = vmatpush1.msra.mxu0 %v4210
    %4212 = vmatprep.subr.mxu0 0.0
    %v4213 = vand.u32 %v3937, 4294901760
    %v4214 = vsub.f32 %v3937, %v4213
    %v4215 = vand.u32 %v4214, 4294901760
    %v4216 = vsub.f32 %v4214, %v4215
    %v4217 = vand.u32 %v4216, 4294901760
    %4218 = vmatpush1.msra.mxu0 %v4217
    %4219 = vmatprep.subr.mxu0 0.0
    %v4220 = vand.u32 %v3938, 4294901760
    %v4221 = vsub.f32 %v3938, %v4220
    %v4222 = vand.u32 %v4221, 4294901760
    %v4223 = vsub.f32 %v4221, %v4222
    %v4224 = vand.u32 %v4223, 4294901760
    %4225 = vmatpush1.msra.mxu0 %v4224
    %4226 = vmatprep.subr.mxu0 0.0
    %v4227 = vand.u32 %v3939, 4294901760
    %v4228 = vsub.f32 %v3939, %v4227
    %v4229 = vand.u32 %v4228, 4294901760
    %v4230 = vsub.f32 %v4228, %v4229
    %v4231 = vand.u32 %v4230, 4294901760
    %4232 = vmatpush1.msra.mxu0 %v4231
    %4233 = vmatprep.subr.mxu0 0.0
    %v4234 = vand.u32 %v3940, 4294901760
    %v4235 = vsub.f32 %v3940, %v4234
    %v4236 = vand.u32 %v4235, 4294901760
    %v4237 = vsub.f32 %v4235, %v4236
    %v4238 = vand.u32 %v4237, 4294901760
    %4239 = vmatpush1.msra.mxu0 %v4238
    %4240 = vmatprep.subr.mxu0 0.0
    %v4241 = vand.u32 %v3941, 4294901760
    %v4242 = vsub.f32 %v3941, %v4241
    %v4243 = vand.u32 %v4242, 4294901760
    %v4244 = vsub.f32 %v4242, %v4243
    %v4245 = vand.u32 %v4244, 4294901760
    %4246 = vmatpush1.msra.mxu0 %v4245
    %4247 = vmatprep.subr.mxu0 0.0
    %v4248 = vand.u32 %v3942, 4294901760
    %v4249 = vsub.f32 %v3942, %v4248
    %v4250 = vand.u32 %v4249, 4294901760
    %v4251 = vsub.f32 %v4249, %v4250
    %v4252 = vand.u32 %v4251, 4294901760
    %4253 = vmatpush1.msra.mxu0 %v4252
    %4254 = vmatprep.subr.mxu0 0.0
    %v4255 = vand.u32 %v3943, 4294901760
    %v4256 = vsub.f32 %v3943, %v4255
    %v4257 = vand.u32 %v4256, 4294901760
    %v4258 = vsub.f32 %v4256, %v4257
    %v4259 = vand.u32 %v4258, 4294901760
    %4260 = vmatpush1.msra.mxu0 %v4259
    %4261 = vmatprep.subr.mxu0 0.0
    %v4262 = vand.u32 %v3944, 4294901760
    %v4263 = vsub.f32 %v3944, %v4262
    %v4264 = vand.u32 %v4263, 4294901760
    %v4265 = vsub.f32 %v4263, %v4264
    %v4266 = vand.u32 %v4265, 4294901760
    %4267 = vmatpush1.msra.mxu0 %v4266
    %4268 = vmatprep.subr.mxu0 0.0
    %v4269 = vand.u32 %v3945, 4294901760
    %v4270 = vsub.f32 %v3945, %v4269
    %v4271 = vand.u32 %v4270, 4294901760
    %v4272 = vsub.f32 %v4270, %v4271
    %v4273 = vand.u32 %v4272, 4294901760
    %4274 = vmatpush1.msra.mxu0 %v4273
    %4275 = vmatprep.subr.mxu0 0.0
    %v4276 = vand.u32 %v3946, 4294901760
    %v4277 = vsub.f32 %v3946, %v4276
    %v4278 = vand.u32 %v4277, 4294901760
    %v4279 = vsub.f32 %v4277, %v4278
    %v4280 = vand.u32 %v4279, 4294901760
    %4281 = vmatpush1.msra.mxu0 %v4280
    %4282 = vmatprep.subr.mxu0 0.0
    %v4283 = vand.u32 %v3947, 4294901760
    %v4284 = vsub.f32 %v3947, %v4283
    %v4285 = vand.u32 %v4284, 4294901760
    %v4286 = vsub.f32 %v4284, %v4285
    %v4287 = vand.u32 %v4286, 4294901760
    %4288 = vmatpush1.msra.mxu0 %v4287
    %4289 = vmatprep.subr.mxu0 0.0
    %v4290 = vand.u32 %v3948, 4294901760
    %v4291 = vsub.f32 %v3948, %v4290
    %v4292 = vand.u32 %v4291, 4294901760
    %v4293 = vsub.f32 %v4291, %v4292
    %v4294 = vand.u32 %v4293, 4294901760
    %4295 = vmatpush1.msra.mxu0 %v4294
    %4296 = vmatprep.subr.mxu0 0.0
    %v4297 = vand.u32 %v3949, 4294901760
    %v4298 = vsub.f32 %v3949, %v4297
    %v4299 = vand.u32 %v4298, 4294901760
    %v4300 = vsub.f32 %v4298, %v4299
    %v4301 = vand.u32 %v4300, 4294901760
    %4302 = vmatpush1.msra.mxu0 %v4301
    %4303 = vmatprep.subr.mxu0 0.0
    %v4304 = vand.u32 %v3950, 4294901760
    %v4305 = vsub.f32 %v3950, %v4304
    %v4306 = vand.u32 %v4305, 4294901760
    %v4307 = vsub.f32 %v4305, %v4306
    %v4308 = vand.u32 %v4307, 4294901760
    %4309 = vmatpush1.msra.mxu0 %v4308
    %4310 = vmatprep.subr.mxu0 0.0
    %v4311 = vand.u32 %v3951, 4294901760
    %v4312 = vsub.f32 %v3951, %v4311
    %v4313 = vand.u32 %v4312, 4294901760
    %v4314 = vsub.f32 %v4312, %v4313
    %v4315 = vand.u32 %v4314, 4294901760
    %4316 = vmatpush1.msra.mxu0 %v4315
    %4317 = vmatprep.subr.mxu0 0.0
    %v4318 = vand.u32 %v3952, 4294901760
    %v4319 = vsub.f32 %v3952, %v4318
    %v4320 = vand.u32 %v4319, 4294901760
    %v4321 = vsub.f32 %v4319, %v4320
    %v4322 = vand.u32 %v4321, 4294901760
    %4323 = vmatpush1.msra.mxu0 %v4322
    %4324 = vmatprep.subr.mxu0 0.0
    %v4325 = vand.u32 %v3953, 4294901760
    %v4326 = vsub.f32 %v3953, %v4325
    %v4327 = vand.u32 %v4326, 4294901760
    %v4328 = vsub.f32 %v4326, %v4327
    %v4329 = vand.u32 %v4328, 4294901760
    %4330 = vmatpush1.msra.mxu0 %v4329
    %4331 = vmatprep.subr.mxu0 0.0
    %v4332 = vand.u32 %v3954, 4294901760
    %v4333 = vsub.f32 %v3954, %v4332
    %v4334 = vand.u32 %v4333, 4294901760
    %v4335 = vsub.f32 %v4333, %v4334
    %v4336 = vand.u32 %v4335, 4294901760
    %4337 = vmatpush1.msra.mxu0 %v4336
    %v4338 = vand.u32 %v3916, 4294901760
    %4339 = vmatprep.mubr.f32.mxu0 %v4338
    %v4340 = vand.u32 %v3914, 4294901760
    %4341 = vmatmul.mubr.f32.gmra.mrb[0].mxu0 %v4340
    %v4342 = vpop.f32.mrb[0].mxu0
    %v4343 = vadd.f32 %v4111, %v4342
    %v4344 = vpop.f32.mrb[0].mxu0
    %4345 = vdwg.mxu0
    %4346 = vmatprep.subr.mxu0 0.0
    %v4347 = vand.u32 %v3923, 4294901760
    %v4348 = vsub.f32 %v3923, %v4347
    %4349 = vmatpush1.msra.mxu0 %v4348
    %4350 = vmatprep.subr.mxu0 0.0
    %v4351 = vand.u32 %v3924, 4294901760
    %v4352 = vsub.f32 %v3924, %v4351
    %4353 = vmatpush1.msra.mxu0 %v4352
    %4354 = vmatprep.subr.mxu0 0.0
    %v4355 = vand.u32 %v3925, 4294901760
    %v4356 = vsub.f32 %v3925, %v4355
    %4357 = vmatpush1.msra.mxu0 %v4356
    %4358 = vmatprep.subr.mxu0 0.0
    %v4359 = vand.u32 %v3926, 4294901760
    %v4360 = vsub.f32 %v3926, %v4359
    %4361 = vmatpush1.msra.mxu0 %v4360
    %4362 = vmatprep.subr.mxu0 0.0
    %v4363 = vand.u32 %v3927, 4294901760
    %v4364 = vsub.f32 %v3927, %v4363
    %4365 = vmatpush1.msra.mxu0 %v4364
    %4366 = vmatprep.subr.mxu0 0.0
    %v4367 = vand.u32 %v3928, 4294901760
    %v4368 = vsub.f32 %v3928, %v4367
    %4369 = vmatpush1.msra.mxu0 %v4368
    %4370 = vmatprep.subr.mxu0 0.0
    %v4371 = vand.u32 %v3929, 4294901760
    %v4372 = vsub.f32 %v3929, %v4371
    %4373 = vmatpush1.msra.mxu0 %v4372
    %4374 = vmatprep.subr.mxu0 0.0
    %v4375 = vand.u32 %v3930, 4294901760
    %v4376 = vsub.f32 %v3930, %v4375
    %4377 = vmatpush1.msra.mxu0 %v4376
    %4378 = vmatprep.subr.mxu0 0.0
    %v4379 = vand.u32 %v3931, 4294901760
    %v4380 = vsub.f32 %v3931, %v4379
    %4381 = vmatpush1.msra.mxu0 %v4380
    %4382 = vmatprep.subr.mxu0 0.0
    %v4383 = vand.u32 %v3932, 4294901760
    %v4384 = vsub.f32 %v3932, %v4383
    %4385 = vmatpush1.msra.mxu0 %v4384
    %4386 = vmatprep.subr.mxu0 0.0
    %v4387 = vand.u32 %v3933, 4294901760
    %v4388 = vsub.f32 %v3933, %v4387
    %4389 = vmatpush1.msra.mxu0 %v4388
    %4390 = vmatprep.subr.mxu0 0.0
    %v4391 = vand.u32 %v3934, 4294901760
    %v4392 = vsub.f32 %v3934, %v4391
    %4393 = vmatpush1.msra.mxu0 %v4392
    %4394 = vmatprep.subr.mxu0 0.0
    %v4395 = vand.u32 %v3935, 4294901760
    %v4396 = vsub.f32 %v3935, %v4395
    %4397 = vmatpush1.msra.mxu0 %v4396
    %4398 = vmatprep.subr.mxu0 0.0
    %v4399 = vand.u32 %v3936, 4294901760
    %v4400 = vsub.f32 %v3936, %v4399
    %4401 = vmatpush1.msra.mxu0 %v4400
    %4402 = vmatprep.subr.mxu0 0.0
    %v4403 = vand.u32 %v3937, 4294901760
    %v4404 = vsub.f32 %v3937, %v4403
    %4405 = vmatpush1.msra.mxu0 %v4404
    %4406 = vmatprep.subr.mxu0 0.0
    %v4407 = vand.u32 %v3938, 4294901760
    %v4408 = vsub.f32 %v3938, %v4407
    %4409 = vmatpush1.msra.mxu0 %v4408
    %4410 = vmatprep.subr.mxu0 0.0
    %v4411 = vand.u32 %v3939, 4294901760
    %v4412 = vsub.f32 %v3939, %v4411
    %4413 = vmatpush1.msra.mxu0 %v4412
    %4414 = vmatprep.subr.mxu0 0.0
    %v4415 = vand.u32 %v3940, 4294901760
    %v4416 = vsub.f32 %v3940, %v4415
    %4417 = vmatpush1.msra.mxu0 %v4416
    %4418 = vmatprep.subr.mxu0 0.0
    %v4419 = vand.u32 %v3941, 4294901760
    %v4420 = vsub.f32 %v3941, %v4419
    %4421 = vmatpush1.msra.mxu0 %v4420
    %4422 = vmatprep.subr.mxu0 0.0
    %v4423 = vand.u32 %v3942, 4294901760
    %v4424 = vsub.f32 %v3942, %v4423
    %4425 = vmatpush1.msra.mxu0 %v4424
    %4426 = vmatprep.subr.mxu0 0.0
    %v4427 = vand.u32 %v3943, 4294901760
    %v4428 = vsub.f32 %v3943, %v4427
    %4429 = vmatpush1.msra.mxu0 %v4428
    %4430 = vmatprep.subr.mxu0 0.0
    %v4431 = vand.u32 %v3944, 4294901760
    %v4432 = vsub.f32 %v3944, %v4431
    %4433 = vmatpush1.msra.mxu0 %v4432
    %4434 = vmatprep.subr.mxu0 0.0
    %v4435 = vand.u32 %v3945, 4294901760
    %v4436 = vsub.f32 %v3945, %v4435
    %4437 = vmatpush1.msra.mxu0 %v4436
    %4438 = vmatprep.subr.mxu0 0.0
    %v4439 = vand.u32 %v3946, 4294901760
    %v4440 = vsub.f32 %v3946, %v4439
    %4441 = vmatpush1.msra.mxu0 %v4440
    %4442 = vmatprep.subr.mxu0 0.0
    %v4443 = vand.u32 %v3947, 4294901760
    %v4444 = vsub.f32 %v3947, %v4443
    %4445 = vmatpush1.msra.mxu0 %v4444
    %4446 = vmatprep.subr.mxu0 0.0
    %v4447 = vand.u32 %v3948, 4294901760
    %v4448 = vsub.f32 %v3948, %v4447
    %4449 = vmatpush1.msra.mxu0 %v4448
    %4450 = vmatprep.subr.mxu0 0.0
    %v4451 = vand.u32 %v3949, 4294901760
    %v4452 = vsub.f32 %v3949, %v4451
    %4453 = vmatpush1.msra.mxu0 %v4452
    %4454 = vmatprep.subr.mxu0 0.0
    %v4455 = vand.u32 %v3950, 4294901760
    %v4456 = vsub.f32 %v3950, %v4455
    %4457 = vmatpush1.msra.mxu0 %v4456
    %4458 = vmatprep.subr.mxu0 0.0
    %v4459 = vand.u32 %v3951, 4294901760
    %v4460 = vsub.f32 %v3951, %v4459
    %4461 = vmatpush1.msra.mxu0 %v4460
    %4462 = vmatprep.subr.mxu0 0.0
    %v4463 = vand.u32 %v3952, 4294901760
    %v4464 = vsub.f32 %v3952, %v4463
    %4465 = vmatpush1.msra.mxu0 %v4464
    %4466 = vmatprep.subr.mxu0 0.0
    %v4467 = vand.u32 %v3953, 4294901760
    %v4468 = vsub.f32 %v3953, %v4467
    %4469 = vmatpush1.msra.mxu0 %v4468
    %4470 = vmatprep.subr.mxu0 0.0
    %v4471 = vand.u32 %v3954, 4294901760
    %v4472 = vsub.f32 %v3954, %v4471
    %4473 = vmatpush1.msra.mxu0 %v4472
    %v4474 = vand.u32 %v3916, 4294901760
    %v4475 = vsub.f32 %v3916, %v4474
    %4476 = vmatprep.mubr.f32.mxu0 %v4475
    %v4477 = vand.u32 %v3914, 4294901760
    %v4478 = vsub.f32 %v3914, %v4477
    %4479 = vmatmul.mubr.f32.gmra.mrb[0].mxu0 %v4478
    %v4480 = vpop.f32.mrb[0].mxu0
    %v4481 = vadd.f32 %v4343, %v4480
    %v4482 = vpop.f32.mrb[0].mxu0
    %4483 = vdwg.mxu0
    %4484 = vmatprep.subr.mxu0 0.0
    %v4485 = vand.u32 %v3923, 4294901760
    %4486 = vmatpush1.msra.mxu0 %v4485
    %4487 = vmatprep.subr.mxu0 0.0
    %v4488 = vand.u32 %v3924, 4294901760
    %4489 = vmatpush1.msra.mxu0 %v4488
    %4490 = vmatprep.subr.mxu0 0.0
    %v4491 = vand.u32 %v3925, 4294901760
    %4492 = vmatpush1.msra.mxu0 %v4491
    %4493 = vmatprep.subr.mxu0 0.0
    %v4494 = vand.u32 %v3926, 4294901760
    %4495 = vmatpush1.msra.mxu0 %v4494
    %4496 = vmatprep.subr.mxu0 0.0
    %v4497 = vand.u32 %v3927, 4294901760
    %4498 = vmatpush1.msra.mxu0 %v4497
    %4499 = vmatprep.subr.mxu0 0.0
    %v4500 = vand.u32 %v3928, 4294901760
    %4501 = vmatpush1.msra.mxu0 %v4500
    %4502 = vmatprep.subr.mxu0 0.0
    %v4503 = vand.u32 %v3929, 4294901760
    %4504 = vmatpush1.msra.mxu0 %v4503
    %4505 = vmatprep.subr.mxu0 0.0
    %v4506 = vand.u32 %v3930, 4294901760
    %4507 = vmatpush1.msra.mxu0 %v4506
    %4508 = vmatprep.subr.mxu0 0.0
    %v4509 = vand.u32 %v3931, 4294901760
    %4510 = vmatpush1.msra.mxu0 %v4509
    %4511 = vmatprep.subr.mxu0 0.0
    %v4512 = vand.u32 %v3932, 4294901760
    %4513 = vmatpush1.msra.mxu0 %v4512
    %4514 = vmatprep.subr.mxu0 0.0
    %v4515 = vand.u32 %v3933, 4294901760
    %4516 = vmatpush1.msra.mxu0 %v4515
    %4517 = vmatprep.subr.mxu0 0.0
    %v4518 = vand.u32 %v3934, 4294901760
    %4519 = vmatpush1.msra.mxu0 %v4518
    %4520 = vmatprep.subr.mxu0 0.0
    %v4521 = vand.u32 %v3935, 4294901760
    %4522 = vmatpush1.msra.mxu0 %v4521
    %4523 = vmatprep.subr.mxu0 0.0
    %v4524 = vand.u32 %v3936, 4294901760
    %4525 = vmatpush1.msra.mxu0 %v4524
    %4526 = vmatprep.subr.mxu0 0.0
    %v4527 = vand.u32 %v3937, 4294901760
    %4528 = vmatpush1.msra.mxu0 %v4527
    %4529 = vmatprep.subr.mxu0 0.0
    %v4530 = vand.u32 %v3938, 4294901760
    %4531 = vmatpush1.msra.mxu0 %v4530
    %4532 = vmatprep.subr.mxu0 0.0
    %v4533 = vand.u32 %v3939, 4294901760
    %4534 = vmatpush1.msra.mxu0 %v4533
    %4535 = vmatprep.subr.mxu0 0.0
    %v4536 = vand.u32 %v3940, 4294901760
    %4537 = vmatpush1.msra.mxu0 %v4536
    %4538 = vmatprep.subr.mxu0 0.0
    %v4539 = vand.u32 %v3941, 4294901760
    %4540 = vmatpush1.msra.mxu0 %v4539
    %4541 = vmatprep.subr.mxu0 0.0
    %v4542 = vand.u32 %v3942, 4294901760
    %4543 = vmatpush1.msra.mxu0 %v4542
    %4544 = vmatprep.subr.mxu0 0.0
    %v4545 = vand.u32 %v3943, 4294901760
    %4546 = vmatpush1.msra.mxu0 %v4545
    %4547 = vmatprep.subr.mxu0 0.0
    %v4548 = vand.u32 %v3944, 4294901760
    %4549 = vmatpush1.msra.mxu0 %v4548
    %4550 = vmatprep.subr.mxu0 0.0
    %v4551 = vand.u32 %v3945, 4294901760
    %4552 = vmatpush1.msra.mxu0 %v4551
    %4553 = vmatprep.subr.mxu0 0.0
    %v4554 = vand.u32 %v3946, 4294901760
    %4555 = vmatpush1.msra.mxu0 %v4554
    %4556 = vmatprep.subr.mxu0 0.0
    %v4557 = vand.u32 %v3947, 4294901760
    %4558 = vmatpush1.msra.mxu0 %v4557
    %4559 = vmatprep.subr.mxu0 0.0
    %v4560 = vand.u32 %v3948, 4294901760
    %4561 = vmatpush1.msra.mxu0 %v4560
    %4562 = vmatprep.subr.mxu0 0.0
    %v4563 = vand.u32 %v3949, 4294901760
    %4564 = vmatpush1.msra.mxu0 %v4563
    %4565 = vmatprep.subr.mxu0 0.0
    %v4566 = vand.u32 %v3950, 4294901760
    %4567 = vmatpush1.msra.mxu0 %v4566
    %4568 = vmatprep.subr.mxu0 0.0
    %v4569 = vand.u32 %v3951, 4294901760
    %4570 = vmatpush1.msra.mxu0 %v4569
    %4571 = vmatprep.subr.mxu0 0.0
    %v4572 = vand.u32 %v3952, 4294901760
    %4573 = vmatpush1.msra.mxu0 %v4572
    %4574 = vmatprep.subr.mxu0 0.0
    %v4575 = vand.u32 %v3953, 4294901760
    %4576 = vmatpush1.msra.mxu0 %v4575
    %4577 = vmatprep.subr.mxu0 0.0
    %v4578 = vand.u32 %v3954, 4294901760
    %4579 = vmatpush1.msra.mxu0 %v4578
    %v4580 = vand.u32 %v3916, 4294901760
    %v4581 = vsub.f32 %v3916, %v4580
    %v4582 = vand.u32 %v4581, 4294901760
    %4583 = vmatprep.mubr.f32.mxu0 %v4582
    %v4584 = vand.u32 %v3914, 4294901760
    %v4585 = vsub.f32 %v3914, %v4584
    %v4586 = vand.u32 %v4585, 4294901760
    %4587 = vmatmul.mubr.f32.gmra.mrb[0].mxu0 %v4586
    %v4588 = vpop.f32.mrb[0].mxu0
    %v4589 = vadd.f32 %v4481, %v4588
    %v4590 = vpop.f32.mrb[0].mxu0
    %4591 = vdwg.mxu0
    %4592 = vmatprep.subr.mxu0 0.0
    %v4593 = vand.u32 %v3923, 4294901760
    %v4594 = vsub.f32 %v3923, %v4593
    %v4595 = vand.u32 %v4594, 4294901760
    %4596 = vmatpush1.msra.mxu0 %v4595
    %4597 = vmatprep.subr.mxu0 0.0
    %v4598 = vand.u32 %v3924, 4294901760
    %v4599 = vsub.f32 %v3924, %v4598
    %v4600 = vand.u32 %v4599, 4294901760
    %4601 = vmatpush1.msra.mxu0 %v4600
    %4602 = vmatprep.subr.mxu0 0.0
    %v4603 = vand.u32 %v3925, 4294901760
    %v4604 = vsub.f32 %v3925, %v4603
    %v4605 = vand.u32 %v4604, 4294901760
    %4606 = vmatpush1.msra.mxu0 %v4605
    %4607 = vmatprep.subr.mxu0 0.0
    %v4608 = vand.u32 %v3926, 4294901760
    %v4609 = vsub.f32 %v3926, %v4608
    %v4610 = vand.u32 %v4609, 4294901760
    %4611 = vmatpush1.msra.mxu0 %v4610
    %4612 = vmatprep.subr.mxu0 0.0
    %v4613 = vand.u32 %v3927, 4294901760
    %v4614 = vsub.f32 %v3927, %v4613
    %v4615 = vand.u32 %v4614, 4294901760
    %4616 = vmatpush1.msra.mxu0 %v4615
    %4617 = vmatprep.subr.mxu0 0.0
    %v4618 = vand.u32 %v3928, 4294901760
    %v4619 = vsub.f32 %v3928, %v4618
    %v4620 = vand.u32 %v4619, 4294901760
    %4621 = vmatpush1.msra.mxu0 %v4620
    %4622 = vmatprep.subr.mxu0 0.0
    %v4623 = vand.u32 %v3929, 4294901760
    %v4624 = vsub.f32 %v3929, %v4623
    %v4625 = vand.u32 %v4624, 4294901760
    %4626 = vmatpush1.msra.mxu0 %v4625
    %4627 = vmatprep.subr.mxu0 0.0
    %v4628 = vand.u32 %v3930, 4294901760
    %v4629 = vsub.f32 %v3930, %v4628
    %v4630 = vand.u32 %v4629, 4294901760
    %4631 = vmatpush1.msra.mxu0 %v4630
    %4632 = vmatprep.subr.mxu0 0.0
    %v4633 = vand.u32 %v3931, 4294901760
    %v4634 = vsub.f32 %v3931, %v4633
    %v4635 = vand.u32 %v4634, 4294901760
    %4636 = vmatpush1.msra.mxu0 %v4635
    %4637 = vmatprep.subr.mxu0 0.0
    %v4638 = vand.u32 %v3932, 4294901760
    %v4639 = vsub.f32 %v3932, %v4638
    %v4640 = vand.u32 %v4639, 4294901760
    %4641 = vmatpush1.msra.mxu0 %v4640
    %4642 = vmatprep.subr.mxu0 0.0
    %v4643 = vand.u32 %v3933, 4294901760
    %v4644 = vsub.f32 %v3933, %v4643
    %v4645 = vand.u32 %v4644, 4294901760
    %4646 = vmatpush1.msra.mxu0 %v4645
    %4647 = vmatprep.subr.mxu0 0.0
    %v4648 = vand.u32 %v3934, 4294901760
    %v4649 = vsub.f32 %v3934, %v4648
    %v4650 = vand.u32 %v4649, 4294901760
    %4651 = vmatpush1.msra.mxu0 %v4650
    %4652 = vmatprep.subr.mxu0 0.0
    %v4653 = vand.u32 %v3935, 4294901760
    %v4654 = vsub.f32 %v3935, %v4653
    %v4655 = vand.u32 %v4654, 4294901760
    %4656 = vmatpush1.msra.mxu0 %v4655
    %4657 = vmatprep.subr.mxu0 0.0
    %v4658 = vand.u32 %v3936, 4294901760
    %v4659 = vsub.f32 %v3936, %v4658
    %v4660 = vand.u32 %v4659, 4294901760
    %4661 = vmatpush1.msra.mxu0 %v4660
    %4662 = vmatprep.subr.mxu0 0.0
    %v4663 = vand.u32 %v3937, 4294901760
    %v4664 = vsub.f32 %v3937, %v4663
    %v4665 = vand.u32 %v4664, 4294901760
    %4666 = vmatpush1.msra.mxu0 %v4665
    %4667 = vmatprep.subr.mxu0 0.0
    %v4668 = vand.u32 %v3938, 4294901760
    %v4669 = vsub.f32 %v3938, %v4668
    %v4670 = vand.u32 %v4669, 4294901760
    %4671 = vmatpush1.msra.mxu0 %v4670
    %4672 = vmatprep.subr.mxu0 0.0
    %v4673 = vand.u32 %v3939, 4294901760
    %v4674 = vsub.f32 %v3939, %v4673
    %v4675 = vand.u32 %v4674, 4294901760
    %4676 = vmatpush1.msra.mxu0 %v4675
    %4677 = vmatprep.subr.mxu0 0.0
    %v4678 = vand.u32 %v3940, 4294901760
    %v4679 = vsub.f32 %v3940, %v4678
    %v4680 = vand.u32 %v4679, 4294901760
    %4681 = vmatpush1.msra.mxu0 %v4680
    %4682 = vmatprep.subr.mxu0 0.0
    %v4683 = vand.u32 %v3941, 4294901760
    %v4684 = vsub.f32 %v3941, %v4683
    %v4685 = vand.u32 %v4684, 4294901760
    %4686 = vmatpush1.msra.mxu0 %v4685
    %4687 = vmatprep.subr.mxu0 0.0
    %v4688 = vand.u32 %v3942, 4294901760
    %v4689 = vsub.f32 %v3942, %v4688
    %v4690 = vand.u32 %v4689, 4294901760
    %4691 = vmatpush1.msra.mxu0 %v4690
    %4692 = vmatprep.subr.mxu0 0.0
    %v4693 = vand.u32 %v3943, 4294901760
    %v4694 = vsub.f32 %v3943, %v4693
    %v4695 = vand.u32 %v4694, 4294901760
    %4696 = vmatpush1.msra.mxu0 %v4695
    %4697 = vmatprep.subr.mxu0 0.0
    %v4698 = vand.u32 %v3944, 4294901760
    %v4699 = vsub.f32 %v3944, %v4698
    %v4700 = vand.u32 %v4699, 4294901760
    %4701 = vmatpush1.msra.mxu0 %v4700
    %4702 = vmatprep.subr.mxu0 0.0
    %v4703 = vand.u32 %v3945, 4294901760
    %v4704 = vsub.f32 %v3945, %v4703
    %v4705 = vand.u32 %v4704, 4294901760
    %4706 = vmatpush1.msra.mxu0 %v4705
    %4707 = vmatprep.subr.mxu0 0.0
    %v4708 = vand.u32 %v3946, 4294901760
    %v4709 = vsub.f32 %v3946, %v4708
    %v4710 = vand.u32 %v4709, 4294901760
    %4711 = vmatpush1.msra.mxu0 %v4710
    %4712 = vmatprep.subr.mxu0 0.0
    %v4713 = vand.u32 %v3947, 4294901760
    %v4714 = vsub.f32 %v3947, %v4713
    %v4715 = vand.u32 %v4714, 4294901760
    %4716 = vmatpush1.msra.mxu0 %v4715
    %4717 = vmatprep.subr.mxu0 0.0
    %v4718 = vand.u32 %v3948, 4294901760
    %v4719 = vsub.f32 %v3948, %v4718
    %v4720 = vand.u32 %v4719, 4294901760
    %4721 = vmatpush1.msra.mxu0 %v4720
    %4722 = vmatprep.subr.mxu0 0.0
    %v4723 = vand.u32 %v3949, 4294901760
    %v4724 = vsub.f32 %v3949, %v4723
    %v4725 = vand.u32 %v4724, 4294901760
    %4726 = vmatpush1.msra.mxu0 %v4725
    %4727 = vmatprep.subr.mxu0 0.0
    %v4728 = vand.u32 %v3950, 4294901760
    %v4729 = vsub.f32 %v3950, %v4728
    %v4730 = vand.u32 %v4729, 4294901760
    %4731 = vmatpush1.msra.mxu0 %v4730
    %4732 = vmatprep.subr.mxu0 0.0
    %v4733 = vand.u32 %v3951, 4294901760
    %v4734 = vsub.f32 %v3951, %v4733
    %v4735 = vand.u32 %v4734, 4294901760
    %4736 = vmatpush1.msra.mxu0 %v4735
    %4737 = vmatprep.subr.mxu0 0.0
    %v4738 = vand.u32 %v3952, 4294901760
    %v4739 = vsub.f32 %v3952, %v4738
    %v4740 = vand.u32 %v4739, 4294901760
    %4741 = vmatpush1.msra.mxu0 %v4740
    %4742 = vmatprep.subr.mxu0 0.0
    %v4743 = vand.u32 %v3953, 4294901760
    %v4744 = vsub.f32 %v3953, %v4743
    %v4745 = vand.u32 %v4744, 4294901760
    %4746 = vmatpush1.msra.mxu0 %v4745
    %4747 = vmatprep.subr.mxu0 0.0
    %v4748 = vand.u32 %v3954, 4294901760
    %v4749 = vsub.f32 %v3954, %v4748
    %v4750 = vand.u32 %v4749, 4294901760
    %4751 = vmatpush1.msra.mxu0 %v4750
    %v4752 = vand.u32 %v3916, 4294901760
    %4753 = vmatprep.mubr.f32.mxu0 %v4752
    %v4754 = vand.u32 %v3914, 4294901760
    %4755 = vmatmul.mubr.f32.gmra.mrb[0].mxu0 %v4754
    %v4756 = vpop.f32.mrb[0].mxu0
    %v4757 = vadd.f32 %v4589, %v4756
    %v4758 = vpop.f32.mrb[0].mxu0
    %4759 = vdwg.mxu0
    %4760 = vmatprep.subr.mxu0 0.0
    %v4761 = vand.u32 %v3923, 4294901760
    %4762 = vmatpush1.msra.mxu0 %v4761
    %4763 = vmatprep.subr.mxu0 0.0
    %v4764 = vand.u32 %v3924, 4294901760
    %4765 = vmatpush1.msra.mxu0 %v4764
    %4766 = vmatprep.subr.mxu0 0.0
    %v4767 = vand.u32 %v3925, 4294901760
    %4768 = vmatpush1.msra.mxu0 %v4767
    %4769 = vmatprep.subr.mxu0 0.0
    %v4770 = vand.u32 %v3926, 4294901760
    %4771 = vmatpush1.msra.mxu0 %v4770
    %4772 = vmatprep.subr.mxu0 0.0
    %v4773 = vand.u32 %v3927, 4294901760
    %4774 = vmatpush1.msra.mxu0 %v4773
    %4775 = vmatprep.subr.mxu0 0.0
    %v4776 = vand.u32 %v3928, 4294901760
    %4777 = vmatpush1.msra.mxu0 %v4776
    %4778 = vmatprep.subr.mxu0 0.0
    %v4779 = vand.u32 %v3929, 4294901760
    %4780 = vmatpush1.msra.mxu0 %v4779
    %4781 = vmatprep.subr.mxu0 0.0
    %v4782 = vand.u32 %v3930, 4294901760
    %4783 = vmatpush1.msra.mxu0 %v4782
    %4784 = vmatprep.subr.mxu0 0.0
    %v4785 = vand.u32 %v3931, 4294901760
    %4786 = vmatpush1.msra.mxu0 %v4785
    %4787 = vmatprep.subr.mxu0 0.0
    %v4788 = vand.u32 %v3932, 4294901760
    %4789 = vmatpush1.msra.mxu0 %v4788
    %4790 = vmatprep.subr.mxu0 0.0
    %v4791 = vand.u32 %v3933, 4294901760
    %4792 = vmatpush1.msra.mxu0 %v4791
    %4793 = vmatprep.subr.mxu0 0.0
    %v4794 = vand.u32 %v3934, 4294901760
    %4795 = vmatpush1.msra.mxu0 %v4794
    %4796 = vmatprep.subr.mxu0 0.0
    %v4797 = vand.u32 %v3935, 4294901760
    %4798 = vmatpush1.msra.mxu0 %v4797
    %4799 = vmatprep.subr.mxu0 0.0
    %v4800 = vand.u32 %v3936, 4294901760
    %4801 = vmatpush1.msra.mxu0 %v4800
    %4802 = vmatprep.subr.mxu0 0.0
    %v4803 = vand.u32 %v3937, 4294901760
    %4804 = vmatpush1.msra.mxu0 %v4803
    %4805 = vmatprep.subr.mxu0 0.0
    %v4806 = vand.u32 %v3938, 4294901760
    %4807 = vmatpush1.msra.mxu0 %v4806
    %4808 = vmatprep.subr.mxu0 0.0
    %v4809 = vand.u32 %v3939, 4294901760
    %4810 = vmatpush1.msra.mxu0 %v4809
    %4811 = vmatprep.subr.mxu0 0.0
    %v4812 = vand.u32 %v3940, 4294901760
    %4813 = vmatpush1.msra.mxu0 %v4812
    %4814 = vmatprep.subr.mxu0 0.0
    %v4815 = vand.u32 %v3941, 4294901760
    %4816 = vmatpush1.msra.mxu0 %v4815
    %4817 = vmatprep.subr.mxu0 0.0
    %v4818 = vand.u32 %v3942, 4294901760
    %4819 = vmatpush1.msra.mxu0 %v4818
    %4820 = vmatprep.subr.mxu0 0.0
    %v4821 = vand.u32 %v3943, 4294901760
    %4822 = vmatpush1.msra.mxu0 %v4821
    %4823 = vmatprep.subr.mxu0 0.0
    %v4824 = vand.u32 %v3944, 4294901760
    %4825 = vmatpush1.msra.mxu0 %v4824
    %4826 = vmatprep.subr.mxu0 0.0
    %v4827 = vand.u32 %v3945, 4294901760
    %4828 = vmatpush1.msra.mxu0 %v4827
    %4829 = vmatprep.subr.mxu0 0.0
    %v4830 = vand.u32 %v3946, 4294901760
    %4831 = vmatpush1.msra.mxu0 %v4830
    %4832 = vmatprep.subr.mxu0 0.0
    %v4833 = vand.u32 %v3947, 4294901760
    %4834 = vmatpush1.msra.mxu0 %v4833
    %4835 = vmatprep.subr.mxu0 0.0
    %v4836 = vand.u32 %v3948, 4294901760
    %4837 = vmatpush1.msra.mxu0 %v4836
    %4838 = vmatprep.subr.mxu0 0.0
    %v4839 = vand.u32 %v3949, 4294901760
    %4840 = vmatpush1.msra.mxu0 %v4839
    %4841 = vmatprep.subr.mxu0 0.0
    %v4842 = vand.u32 %v3950, 4294901760
    %4843 = vmatpush1.msra.mxu0 %v4842
    %4844 = vmatprep.subr.mxu0 0.0
    %v4845 = vand.u32 %v3951, 4294901760
    %4846 = vmatpush1.msra.mxu0 %v4845
    %4847 = vmatprep.subr.mxu0 0.0
    %v4848 = vand.u32 %v3952, 4294901760
    %4849 = vmatpush1.msra.mxu0 %v4848
    %4850 = vmatprep.subr.mxu0 0.0
    %v4851 = vand.u32 %v3953, 4294901760
    %4852 = vmatpush1.msra.mxu0 %v4851
    %4853 = vmatprep.subr.mxu0 0.0
    %v4854 = vand.u32 %v3954, 4294901760
    %4855 = vmatpush1.msra.mxu0 %v4854
    %v4856 = vand.u32 %v3916, 4294901760
    %4857 = vmatprep.mubr.f32.mxu0 %v4856
    %v4858 = vand.u32 %v3914, 4294901760
    %4859 = vmatmul.mubr.f32.gmra.mrb[0].mxu0 %v4858
    %v4860 = vpop.f32.mrb[0].mxu0
    %v4861 = vadd.f32 %v4757, %v4860
    %v4862 = vpop.f32.mrb[0].mxu0
    %4863 = vdwg.mxu0
    %4864 = vmatprep.subr.mxu0 0.0
    %v4865 = vand.u32 %v3955, 4294901760
    %4866 = vmatpush1.msra.mxu0 %v4865
    %4867 = vmatprep.subr.mxu0 0.0
    %v4868 = vand.u32 %v3956, 4294901760
    %4869 = vmatpush1.msra.mxu0 %v4868
    %4870 = vmatprep.subr.mxu0 0.0
    %v4871 = vand.u32 %v3957, 4294901760
    %4872 = vmatpush1.msra.mxu0 %v4871
    %4873 = vmatprep.subr.mxu0 0.0
    %v4874 = vand.u32 %v3958, 4294901760
    %4875 = vmatpush1.msra.mxu0 %v4874
    %4876 = vmatprep.subr.mxu0 0.0
    %v4877 = vand.u32 %v3959, 4294901760
    %4878 = vmatpush1.msra.mxu0 %v4877
    %4879 = vmatprep.subr.mxu0 0.0
    %v4880 = vand.u32 %v3960, 4294901760
    %4881 = vmatpush1.msra.mxu0 %v4880
    %4882 = vmatprep.subr.mxu0 0.0
    %v4883 = vand.u32 %v3961, 4294901760
    %4884 = vmatpush1.msra.mxu0 %v4883
    %4885 = vmatprep.subr.mxu0 0.0
    %v4886 = vand.u32 %v3962, 4294901760
    %4887 = vmatpush1.msra.mxu0 %v4886
    %4888 = vmatprep.subr.mxu0 0.0
    %v4889 = vand.u32 %v3963, 4294901760
    %4890 = vmatpush1.msra.mxu0 %v4889
    %4891 = vmatprep.subr.mxu0 0.0
    %v4892 = vand.u32 %v3964, 4294901760
    %4893 = vmatpush1.msra.mxu0 %v4892
    %4894 = vmatprep.subr.mxu0 0.0
    %v4895 = vand.u32 %v3965, 4294901760
    %4896 = vmatpush1.msra.mxu0 %v4895
    %4897 = vmatprep.subr.mxu0 0.0
    %v4898 = vand.u32 %v3966, 4294901760
    %4899 = vmatpush1.msra.mxu0 %v4898
    %4900 = vmatprep.subr.mxu0 0.0
    %v4901 = vand.u32 %v3967, 4294901760
    %4902 = vmatpush1.msra.mxu0 %v4901
    %4903 = vmatprep.subr.mxu0 0.0
    %v4904 = vand.u32 %v3968, 4294901760
    %4905 = vmatpush1.msra.mxu0 %v4904
    %4906 = vmatprep.subr.mxu0 0.0
    %v4907 = vand.u32 %v3969, 4294901760
    %4908 = vmatpush1.msra.mxu0 %v4907
    %4909 = vmatprep.subr.mxu0 0.0
    %v4910 = vand.u32 %v3970, 4294901760
    %4911 = vmatpush1.msra.mxu0 %v4910
    %4912 = vmatprep.subr.mxu0 0.0
    %v4913 = vand.u32 %v3971, 4294901760
    %4914 = vmatpush1.msra.mxu0 %v4913
    %4915 = vmatprep.subr.mxu0 0.0
    %v4916 = vand.u32 %v3972, 4294901760
    %4917 = vmatpush1.msra.mxu0 %v4916
    %4918 = vmatprep.subr.mxu0 0.0
    %v4919 = vand.u32 %v3973, 4294901760
    %4920 = vmatpush1.msra.mxu0 %v4919
    %4921 = vmatprep.subr.mxu0 0.0
    %v4922 = vand.u32 %v3974, 4294901760
    %4923 = vmatpush1.msra.mxu0 %v4922
    %4924 = vmatprep.subr.mxu0 0.0
    %v4925 = vand.u32 %v3975, 4294901760
    %4926 = vmatpush1.msra.mxu0 %v4925
    %4927 = vmatprep.subr.mxu0 0.0
    %v4928 = vand.u32 %v3976, 4294901760
    %4929 = vmatpush1.msra.mxu0 %v4928
    %4930 = vmatprep.subr.mxu0 0.0
    %v4931 = vand.u32 %v3977, 4294901760
    %4932 = vmatpush1.msra.mxu0 %v4931
    %4933 = vmatprep.subr.mxu0 0.0
    %v4934 = vand.u32 %v3978, 4294901760
    %4935 = vmatpush1.msra.mxu0 %v4934
    %4936 = vmatprep.subr.mxu0 0.0
    %v4937 = vand.u32 %v3979, 4294901760
    %4938 = vmatpush1.msra.mxu0 %v4937
    %4939 = vmatprep.subr.mxu0 0.0
    %v4940 = vand.u32 %v3980, 4294901760
    %4941 = vmatpush1.msra.mxu0 %v4940
    %4942 = vmatprep.subr.mxu0 0.0
    %v4943 = vand.u32 %v3981, 4294901760
    %4944 = vmatpush1.msra.mxu0 %v4943
    %4945 = vmatprep.subr.mxu0 0.0
    %v4946 = vand.u32 %v3982, 4294901760
    %4947 = vmatpush1.msra.mxu0 %v4946
    %4948 = vmatprep.subr.mxu0 0.0
    %v4949 = vand.u32 %v3983, 4294901760
    %4950 = vmatpush1.msra.mxu0 %v4949
    %4951 = vmatprep.subr.mxu0 0.0
    %v4952 = vand.u32 %v3984, 4294901760
    %4953 = vmatpush1.msra.mxu0 %v4952
    %4954 = vmatprep.subr.mxu0 0.0
    %v4955 = vand.u32 %v3985, 4294901760
    %4956 = vmatpush1.msra.mxu0 %v4955
    %4957 = vmatprep.subr.mxu0 0.0
    %v4958 = vand.u32 %v3986, 4294901760
    %4959 = vmatpush1.msra.mxu0 %v4958
    %v4960 = vand.u32 %v3920, 4294901760
    %v4961 = vsub.f32 %v3920, %v4960
    %v4962 = vand.u32 %v4961, 4294901760
    %v4963 = vsub.f32 %v4961, %v4962
    %v4964 = vand.u32 %v4963, 4294901760
    %4965 = vmatprep.mubr.f32.mxu0 %v4964
    %v4966 = vand.u32 %v3918, 4294901760
    %v4967 = vsub.f32 %v3918, %v4966
    %v4968 = vand.u32 %v4967, 4294901760
    %v4969 = vsub.f32 %v4967, %v4968
    %v4970 = vand.u32 %v4969, 4294901760
    %4971 = vmatmul.mubr.f32.gmra.mrb[0].mxu0 %v4970
    %v4972 = vpop.f32.mrb[0].mxu0
    %v4973 = vadd.f32 %v4861, %v4972
    %v4974 = vpop.f32.mrb[0].mxu0
    %4975 = vdwg.mxu0
    %4976 = vmatprep.subr.mxu0 0.0
    %v4977 = vand.u32 %v3955, 4294901760
    %v4978 = vsub.f32 %v3955, %v4977
    %v4979 = vand.u32 %v4978, 4294901760
    %v4980 = vsub.f32 %v4978, %v4979
    %v4981 = vand.u32 %v4980, 4294901760
    %4982 = vmatpush1.msra.mxu0 %v4981
    %4983 = vmatprep.subr.mxu0 0.0
    %v4984 = vand.u32 %v3956, 4294901760
    %v4985 = vsub.f32 %v3956, %v4984
    %v4986 = vand.u32 %v4985, 4294901760
    %v4987 = vsub.f32 %v4985, %v4986
    %v4988 = vand.u32 %v4987, 4294901760
    %4989 = vmatpush1.msra.mxu0 %v4988
    %4990 = vmatprep.subr.mxu0 0.0
    %v4991 = vand.u32 %v3957, 4294901760
    %v4992 = vsub.f32 %v3957, %v4991
    %v4993 = vand.u32 %v4992, 4294901760
    %v4994 = vsub.f32 %v4992, %v4993
    %v4995 = vand.u32 %v4994, 4294901760
    %4996 = vmatpush1.msra.mxu0 %v4995
    %4997 = vmatprep.subr.mxu0 0.0
    %v4998 = vand.u32 %v3958, 4294901760
    %v4999 = vsub.f32 %v3958, %v4998
    %v5000 = vand.u32 %v4999, 4294901760
    %v5001 = vsub.f32 %v4999, %v5000
    %v5002 = vand.u32 %v5001, 4294901760
    %5003 = vmatpush1.msra.mxu0 %v5002
    %5004 = vmatprep.subr.mxu0 0.0
    %v5005 = vand.u32 %v3959, 4294901760
    %v5006 = vsub.f32 %v3959, %v5005
    %v5007 = vand.u32 %v5006, 4294901760
    %v5008 = vsub.f32 %v5006, %v5007
    %v5009 = vand.u32 %v5008, 4294901760
    %5010 = vmatpush1.msra.mxu0 %v5009
    %5011 = vmatprep.subr.mxu0 0.0
    %v5012 = vand.u32 %v3960, 4294901760
    %v5013 = vsub.f32 %v3960, %v5012
    %v5014 = vand.u32 %v5013, 4294901760
    %v5015 = vsub.f32 %v5013, %v5014
    %v5016 = vand.u32 %v5015, 4294901760
    %5017 = vmatpush1.msra.mxu0 %v5016
    %5018 = vmatprep.subr.mxu0 0.0
    %v5019 = vand.u32 %v3961, 4294901760
    %v5020 = vsub.f32 %v3961, %v5019
    %v5021 = vand.u32 %v5020, 4294901760
    %v5022 = vsub.f32 %v5020, %v5021
    %v5023 = vand.u32 %v5022, 4294901760
    %5024 = vmatpush1.msra.mxu0 %v5023
    %5025 = vmatprep.subr.mxu0 0.0
    %v5026 = vand.u32 %v3962, 4294901760
    %v5027 = vsub.f32 %v3962, %v5026
    %v5028 = vand.u32 %v5027, 4294901760
    %v5029 = vsub.f32 %v5027, %v5028
    %v5030 = vand.u32 %v5029, 4294901760
    %5031 = vmatpush1.msra.mxu0 %v5030
    %5032 = vmatprep.subr.mxu0 0.0
    %v5033 = vand.u32 %v3963, 4294901760
    %v5034 = vsub.f32 %v3963, %v5033
    %v5035 = vand.u32 %v5034, 4294901760
    %v5036 = vsub.f32 %v5034, %v5035
    %v5037 = vand.u32 %v5036, 4294901760
    %5038 = vmatpush1.msra.mxu0 %v5037
    %5039 = vmatprep.subr.mxu0 0.0
    %v5040 = vand.u32 %v3964, 4294901760
    %v5041 = vsub.f32 %v3964, %v5040
    %v5042 = vand.u32 %v5041, 4294901760
    %v5043 = vsub.f32 %v5041, %v5042
    %v5044 = vand.u32 %v5043, 4294901760
    %5045 = vmatpush1.msra.mxu0 %v5044
    %5046 = vmatprep.subr.mxu0 0.0
    %v5047 = vand.u32 %v3965, 4294901760
    %v5048 = vsub.f32 %v3965, %v5047
    %v5049 = vand.u32 %v5048, 4294901760
    %v5050 = vsub.f32 %v5048, %v5049
    %v5051 = vand.u32 %v5050, 4294901760
    %5052 = vmatpush1.msra.mxu0 %v5051
    %5053 = vmatprep.subr.mxu0 0.0
    %v5054 = vand.u32 %v3966, 4294901760
    %v5055 = vsub.f32 %v3966, %v5054
    %v5056 = vand.u32 %v5055, 4294901760
    %v5057 = vsub.f32 %v5055, %v5056
    %v5058 = vand.u32 %v5057, 4294901760
    %5059 = vmatpush1.msra.mxu0 %v5058
    %5060 = vmatprep.subr.mxu0 0.0
    %v5061 = vand.u32 %v3967, 4294901760
    %v5062 = vsub.f32 %v3967, %v5061
    %v5063 = vand.u32 %v5062, 4294901760
    %v5064 = vsub.f32 %v5062, %v5063
    %v5065 = vand.u32 %v5064, 4294901760
    %5066 = vmatpush1.msra.mxu0 %v5065
    %5067 = vmatprep.subr.mxu0 0.0
    %v5068 = vand.u32 %v3968, 4294901760
    %v5069 = vsub.f32 %v3968, %v5068
    %v5070 = vand.u32 %v5069, 4294901760
    %v5071 = vsub.f32 %v5069, %v5070
    %v5072 = vand.u32 %v5071, 4294901760
    %5073 = vmatpush1.msra.mxu0 %v5072
    %5074 = vmatprep.subr.mxu0 0.0
    %v5075 = vand.u32 %v3969, 4294901760
    %v5076 = vsub.f32 %v3969, %v5075
    %v5077 = vand.u32 %v5076, 4294901760
    %v5078 = vsub.f32 %v5076, %v5077
    %v5079 = vand.u32 %v5078, 4294901760
    %5080 = vmatpush1.msra.mxu0 %v5079
    %5081 = vmatprep.subr.mxu0 0.0
    %v5082 = vand.u32 %v3970, 4294901760
    %v5083 = vsub.f32 %v3970, %v5082
    %v5084 = vand.u32 %v5083, 4294901760
    %v5085 = vsub.f32 %v5083, %v5084
    %v5086 = vand.u32 %v5085, 4294901760
    %5087 = vmatpush1.msra.mxu0 %v5086
    %5088 = vmatprep.subr.mxu0 0.0
    %v5089 = vand.u32 %v3971, 4294901760
    %v5090 = vsub.f32 %v3971, %v5089
    %v5091 = vand.u32 %v5090, 4294901760
    %v5092 = vsub.f32 %v5090, %v5091
    %v5093 = vand.u32 %v5092, 4294901760
    %5094 = vmatpush1.msra.mxu0 %v5093
    %5095 = vmatprep.subr.mxu0 0.0
    %v5096 = vand.u32 %v3972, 4294901760
    %v5097 = vsub.f32 %v3972, %v5096
    %v5098 = vand.u32 %v5097, 4294901760
    %v5099 = vsub.f32 %v5097, %v5098
    %v5100 = vand.u32 %v5099, 4294901760
    %5101 = vmatpush1.msra.mxu0 %v5100
    %5102 = vmatprep.subr.mxu0 0.0
    %v5103 = vand.u32 %v3973, 4294901760
    %v5104 = vsub.f32 %v3973, %v5103
    %v5105 = vand.u32 %v5104, 4294901760
    %v5106 = vsub.f32 %v5104, %v5105
    %v5107 = vand.u32 %v5106, 4294901760
    %5108 = vmatpush1.msra.mxu0 %v5107
    %5109 = vmatprep.subr.mxu0 0.0
    %v5110 = vand.u32 %v3974, 4294901760
    %v5111 = vsub.f32 %v3974, %v5110
    %v5112 = vand.u32 %v5111, 4294901760
    %v5113 = vsub.f32 %v5111, %v5112
    %v5114 = vand.u32 %v5113, 4294901760
    %5115 = vmatpush1.msra.mxu0 %v5114
    %5116 = vmatprep.subr.mxu0 0.0
    %v5117 = vand.u32 %v3975, 4294901760
    %v5118 = vsub.f32 %v3975, %v5117
    %v5119 = vand.u32 %v5118, 4294901760
    %v5120 = vsub.f32 %v5118, %v5119
    %v5121 = vand.u32 %v5120, 4294901760
    %5122 = vmatpush1.msra.mxu0 %v5121
    %5123 = vmatprep.subr.mxu0 0.0
    %v5124 = vand.u32 %v3976, 4294901760
    %v5125 = vsub.f32 %v3976, %v5124
    %v5126 = vand.u32 %v5125, 4294901760
    %v5127 = vsub.f32 %v5125, %v5126
    %v5128 = vand.u32 %v5127, 4294901760
    %5129 = vmatpush1.msra.mxu0 %v5128
    %5130 = vmatprep.subr.mxu0 0.0
    %v5131 = vand.u32 %v3977, 4294901760
    %v5132 = vsub.f32 %v3977, %v5131
    %v5133 = vand.u32 %v5132, 4294901760
    %v5134 = vsub.f32 %v5132, %v5133
    %v5135 = vand.u32 %v5134, 4294901760
    %5136 = vmatpush1.msra.mxu0 %v5135
    %5137 = vmatprep.subr.mxu0 0.0
    %v5138 = vand.u32 %v3978, 4294901760
    %v5139 = vsub.f32 %v3978, %v5138
    %v5140 = vand.u32 %v5139, 4294901760
    %v5141 = vsub.f32 %v5139, %v5140
    %v5142 = vand.u32 %v5141, 4294901760
    %5143 = vmatpush1.msra.mxu0 %v5142
    %5144 = vmatprep.subr.mxu0 0.0
    %v5145 = vand.u32 %v3979, 4294901760
    %v5146 = vsub.f32 %v3979, %v5145
    %v5147 = vand.u32 %v5146, 4294901760
    %v5148 = vsub.f32 %v5146, %v5147
    %v5149 = vand.u32 %v5148, 4294901760
    %5150 = vmatpush1.msra.mxu0 %v5149
    %5151 = vmatprep.subr.mxu0 0.0
    %v5152 = vand.u32 %v3980, 4294901760
    %v5153 = vsub.f32 %v3980, %v5152
    %v5154 = vand.u32 %v5153, 4294901760
    %v5155 = vsub.f32 %v5153, %v5154
    %v5156 = vand.u32 %v5155, 4294901760
    %5157 = vmatpush1.msra.mxu0 %v5156
    %5158 = vmatprep.subr.mxu0 0.0
    %v5159 = vand.u32 %v3981, 4294901760
    %v5160 = vsub.f32 %v3981, %v5159
    %v5161 = vand.u32 %v5160, 4294901760
    %v5162 = vsub.f32 %v5160, %v5161
    %v5163 = vand.u32 %v5162, 4294901760
    %5164 = vmatpush1.msra.mxu0 %v5163
    %5165 = vmatprep.subr.mxu0 0.0
    %v5166 = vand.u32 %v3982, 4294901760
    %v5167 = vsub.f32 %v3982, %v5166
    %v5168 = vand.u32 %v5167, 4294901760
    %v5169 = vsub.f32 %v5167, %v5168
    %v5170 = vand.u32 %v5169, 4294901760
    %5171 = vmatpush1.msra.mxu0 %v5170
    %5172 = vmatprep.subr.mxu0 0.0
    %v5173 = vand.u32 %v3983, 4294901760
    %v5174 = vsub.f32 %v3983, %v5173
    %v5175 = vand.u32 %v5174, 4294901760
    %v5176 = vsub.f32 %v5174, %v5175
    %v5177 = vand.u32 %v5176, 4294901760
    %5178 = vmatpush1.msra.mxu0 %v5177
    %5179 = vmatprep.subr.mxu0 0.0
    %v5180 = vand.u32 %v3984, 4294901760
    %v5181 = vsub.f32 %v3984, %v5180
    %v5182 = vand.u32 %v5181, 4294901760
    %v5183 = vsub.f32 %v5181, %v5182
    %v5184 = vand.u32 %v5183, 4294901760
    %5185 = vmatpush1.msra.mxu0 %v5184
    %5186 = vmatprep.subr.mxu0 0.0
    %v5187 = vand.u32 %v3985, 4294901760
    %v5188 = vsub.f32 %v3985, %v5187
    %v5189 = vand.u32 %v5188, 4294901760
    %v5190 = vsub.f32 %v5188, %v5189
    %v5191 = vand.u32 %v5190, 4294901760
    %5192 = vmatpush1.msra.mxu0 %v5191
    %5193 = vmatprep.subr.mxu0 0.0
    %v5194 = vand.u32 %v3986, 4294901760
    %v5195 = vsub.f32 %v3986, %v5194
    %v5196 = vand.u32 %v5195, 4294901760
    %v5197 = vsub.f32 %v5195, %v5196
    %v5198 = vand.u32 %v5197, 4294901760
    %5199 = vmatpush1.msra.mxu0 %v5198
    %v5200 = vand.u32 %v3920, 4294901760
    %5201 = vmatprep.mubr.f32.mxu0 %v5200
    %v5202 = vand.u32 %v3918, 4294901760
    %5203 = vmatmul.mubr.f32.gmra.mrb[0].mxu0 %v5202
    %v5204 = vpop.f32.mrb[0].mxu0
    %v5205 = vadd.f32 %v4973, %v5204
    %v5206 = vpop.f32.mrb[0].mxu0
    %5207 = vdwg.mxu0
    %5208 = vmatprep.subr.mxu0 0.0
    %v5209 = vand.u32 %v3955, 4294901760
    %v5210 = vsub.f32 %v3955, %v5209
    %5211 = vmatpush1.msra.mxu0 %v5210
    %5212 = vmatprep.subr.mxu0 0.0
    %v5213 = vand.u32 %v3956, 4294901760
    %v5214 = vsub.f32 %v3956, %v5213
    %5215 = vmatpush1.msra.mxu0 %v5214
    %5216 = vmatprep.subr.mxu0 0.0
    %v5217 = vand.u32 %v3957, 4294901760
    %v5218 = vsub.f32 %v3957, %v5217
    %5219 = vmatpush1.msra.mxu0 %v5218
    %5220 = vmatprep.subr.mxu0 0.0
    %v5221 = vand.u32 %v3958, 4294901760
    %v5222 = vsub.f32 %v3958, %v5221
    %5223 = vmatpush1.msra.mxu0 %v5222
    %5224 = vmatprep.subr.mxu0 0.0
    %v5225 = vand.u32 %v3959, 4294901760
    %v5226 = vsub.f32 %v3959, %v5225
    %5227 = vmatpush1.msra.mxu0 %v5226
    %5228 = vmatprep.subr.mxu0 0.0
    %v5229 = vand.u32 %v3960, 4294901760
    %v5230 = vsub.f32 %v3960, %v5229
    %5231 = vmatpush1.msra.mxu0 %v5230
    %5232 = vmatprep.subr.mxu0 0.0
    %v5233 = vand.u32 %v3961, 4294901760
    %v5234 = vsub.f32 %v3961, %v5233
    %5235 = vmatpush1.msra.mxu0 %v5234
    %5236 = vmatprep.subr.mxu0 0.0
    %v5237 = vand.u32 %v3962, 4294901760
    %v5238 = vsub.f32 %v3962, %v5237
    %5239 = vmatpush1.msra.mxu0 %v5238
    %5240 = vmatprep.subr.mxu0 0.0
    %v5241 = vand.u32 %v3963, 4294901760
    %v5242 = vsub.f32 %v3963, %v5241
    %5243 = vmatpush1.msra.mxu0 %v5242
    %5244 = vmatprep.subr.mxu0 0.0
    %v5245 = vand.u32 %v3964, 4294901760
    %v5246 = vsub.f32 %v3964, %v5245
    %5247 = vmatpush1.msra.mxu0 %v5246
    %5248 = vmatprep.subr.mxu0 0.0
    %v5249 = vand.u32 %v3965, 4294901760
    %v5250 = vsub.f32 %v3965, %v5249
    %5251 = vmatpush1.msra.mxu0 %v5250
    %5252 = vmatprep.subr.mxu0 0.0
    %v5253 = vand.u32 %v3966, 4294901760
    %v5254 = vsub.f32 %v3966, %v5253
    %5255 = vmatpush1.msra.mxu0 %v5254
    %5256 = vmatprep.subr.mxu0 0.0
    %v5257 = vand.u32 %v3967, 4294901760
    %v5258 = vsub.f32 %v3967, %v5257
    %5259 = vmatpush1.msra.mxu0 %v5258
    %5260 = vmatprep.subr.mxu0 0.0
    %v5261 = vand.u32 %v3968, 4294901760
    %v5262 = vsub.f32 %v3968, %v5261
    %5263 = vmatpush1.msra.mxu0 %v5262
    %5264 = vmatprep.subr.mxu0 0.0
    %v5265 = vand.u32 %v3969, 4294901760
    %v5266 = vsub.f32 %v3969, %v5265
    %5267 = vmatpush1.msra.mxu0 %v5266
    %5268 = vmatprep.subr.mxu0 0.0
    %v5269 = vand.u32 %v3970, 4294901760
    %v5270 = vsub.f32 %v3970, %v5269
    %5271 = vmatpush1.msra.mxu0 %v5270
    %5272 = vmatprep.subr.mxu0 0.0
    %v5273 = vand.u32 %v3971, 4294901760
    %v5274 = vsub.f32 %v3971, %v5273
    %5275 = vmatpush1.msra.mxu0 %v5274
    %5276 = vmatprep.subr.mxu0 0.0
    %v5277 = vand.u32 %v3972, 4294901760
    %v5278 = vsub.f32 %v3972, %v5277
    %5279 = vmatpush1.msra.mxu0 %v5278
    %5280 = vmatprep.subr.mxu0 0.0
    %v5281 = vand.u32 %v3973, 4294901760
    %v5282 = vsub.f32 %v3973, %v5281
    %5283 = vmatpush1.msra.mxu0 %v5282
    %5284 = vmatprep.subr.mxu0 0.0
    %v5285 = vand.u32 %v3974, 4294901760
    %v5286 = vsub.f32 %v3974, %v5285
    %5287 = vmatpush1.msra.mxu0 %v5286
    %5288 = vmatprep.subr.mxu0 0.0
    %v5289 = vand.u32 %v3975, 4294901760
    %v5290 = vsub.f32 %v3975, %v5289
    %5291 = vmatpush1.msra.mxu0 %v5290
    %5292 = vmatprep.subr.mxu0 0.0
    %v5293 = vand.u32 %v3976, 4294901760
    %v5294 = vsub.f32 %v3976, %v5293
    %5295 = vmatpush1.msra.mxu0 %v5294
    %5296 = vmatprep.subr.mxu0 0.0
    %v5297 = vand.u32 %v3977, 4294901760
    %v5298 = vsub.f32 %v3977, %v5297
    %5299 = vmatpush1.msra.mxu0 %v5298
    %5300 = vmatprep.subr.mxu0 0.0
    %v5301 = vand.u32 %v3978, 4294901760
    %v5302 = vsub.f32 %v3978, %v5301
    %5303 = vmatpush1.msra.mxu0 %v5302
    %5304 = vmatprep.subr.mxu0 0.0
    %v5305 = vand.u32 %v3979, 4294901760
    %v5306 = vsub.f32 %v3979, %v5305
    %5307 = vmatpush1.msra.mxu0 %v5306
    %5308 = vmatprep.subr.mxu0 0.0
    %v5309 = vand.u32 %v3980, 4294901760
    %v5310 = vsub.f32 %v3980, %v5309
    %5311 = vmatpush1.msra.mxu0 %v5310
    %5312 = vmatprep.subr.mxu0 0.0
    %v5313 = vand.u32 %v3981, 4294901760
    %v5314 = vsub.f32 %v3981, %v5313
    %5315 = vmatpush1.msra.mxu0 %v5314
    %5316 = vmatprep.subr.mxu0 0.0
    %v5317 = vand.u32 %v3982, 4294901760
    %v5318 = vsub.f32 %v3982, %v5317
    %5319 = vmatpush1.msra.mxu0 %v5318
    %5320 = vmatprep.subr.mxu0 0.0
    %v5321 = vand.u32 %v3983, 4294901760
    %v5322 = vsub.f32 %v3983, %v5321
    %5323 = vmatpush1.msra.mxu0 %v5322
    %5324 = vmatprep.subr.mxu0 0.0
    %v5325 = vand.u32 %v3984, 4294901760
    %v5326 = vsub.f32 %v3984, %v5325
    %5327 = vmatpush1.msra.mxu0 %v5326
    %5328 = vmatprep.subr.mxu0 0.0
    %v5329 = vand.u32 %v3985, 4294901760
    %v5330 = vsub.f32 %v3985, %v5329
    %5331 = vmatpush1.msra.mxu0 %v5330
    %5332 = vmatprep.subr.mxu0 0.0
    %v5333 = vand.u32 %v3986, 4294901760
    %v5334 = vsub.f32 %v3986, %v5333
    %5335 = vmatpush1.msra.mxu0 %v5334
    %v5336 = vand.u32 %v3920, 4294901760
    %v5337 = vsub.f32 %v3920, %v5336
    %5338 = vmatprep.mubr.f32.mxu0 %v5337
    %v5339 = vand.u32 %v3918, 4294901760
    %v5340 = vsub.f32 %v3918, %v5339
    %5341 = vmatmul.mubr.f32.gmra.mrb[0].mxu0 %v5340
    %v5342 = vpop.f32.mrb[0].mxu0
    %v5343 = vadd.f32 %v5205, %v5342
    %v5344 = vpop.f32.mrb[0].mxu0
    %5345 = vdwg.mxu0
    %5346 = vmatprep.subr.mxu0 0.0
    %v5347 = vand.u32 %v3955, 4294901760
    %5348 = vmatpush1.msra.mxu0 %v5347
    %5349 = vmatprep.subr.mxu0 0.0
    %v5350 = vand.u32 %v3956, 4294901760
    %5351 = vmatpush1.msra.mxu0 %v5350
    %5352 = vmatprep.subr.mxu0 0.0
    %v5353 = vand.u32 %v3957, 4294901760
    %5354 = vmatpush1.msra.mxu0 %v5353
    %5355 = vmatprep.subr.mxu0 0.0
    %v5356 = vand.u32 %v3958, 4294901760
    %5357 = vmatpush1.msra.mxu0 %v5356
    %5358 = vmatprep.subr.mxu0 0.0
    %v5359 = vand.u32 %v3959, 4294901760
    %5360 = vmatpush1.msra.mxu0 %v5359
    %5361 = vmatprep.subr.mxu0 0.0
    %v5362 = vand.u32 %v3960, 4294901760
    %5363 = vmatpush1.msra.mxu0 %v5362
    %5364 = vmatprep.subr.mxu0 0.0
    %v5365 = vand.u32 %v3961, 4294901760
    %5366 = vmatpush1.msra.mxu0 %v5365
    %5367 = vmatprep.subr.mxu0 0.0
    %v5368 = vand.u32 %v3962, 4294901760
    %5369 = vmatpush1.msra.mxu0 %v5368
    %5370 = vmatprep.subr.mxu0 0.0
    %v5371 = vand.u32 %v3963, 4294901760
    %5372 = vmatpush1.msra.mxu0 %v5371
    %5373 = vmatprep.subr.mxu0 0.0
    %v5374 = vand.u32 %v3964, 4294901760
    %5375 = vmatpush1.msra.mxu0 %v5374
    %5376 = vmatprep.subr.mxu0 0.0
    %v5377 = vand.u32 %v3965, 4294901760
    %5378 = vmatpush1.msra.mxu0 %v5377
    %5379 = vmatprep.subr.mxu0 0.0
    %v5380 = vand.u32 %v3966, 4294901760
    %5381 = vmatpush1.msra.mxu0 %v5380
    %5382 = vmatprep.subr.mxu0 0.0
    %v5383 = vand.u32 %v3967, 4294901760
    %5384 = vmatpush1.msra.mxu0 %v5383
    %5385 = vmatprep.subr.mxu0 0.0
    %v5386 = vand.u32 %v3968, 4294901760
    %5387 = vmatpush1.msra.mxu0 %v5386
    %5388 = vmatprep.subr.mxu0 0.0
    %v5389 = vand.u32 %v3969, 4294901760
    %5390 = vmatpush1.msra.mxu0 %v5389
    %5391 = vmatprep.subr.mxu0 0.0
    %v5392 = vand.u32 %v3970, 4294901760
    %5393 = vmatpush1.msra.mxu0 %v5392
    %5394 = vmatprep.subr.mxu0 0.0
    %v5395 = vand.u32 %v3971, 4294901760
    %5396 = vmatpush1.msra.mxu0 %v5395
    %5397 = vmatprep.subr.mxu0 0.0
    %v5398 = vand.u32 %v3972, 4294901760
    %5399 = vmatpush1.msra.mxu0 %v5398
    %5400 = vmatprep.subr.mxu0 0.0
    %v5401 = vand.u32 %v3973, 4294901760
    %5402 = vmatpush1.msra.mxu0 %v5401
    %5403 = vmatprep.subr.mxu0 0.0
    %v5404 = vand.u32 %v3974, 4294901760
    %5405 = vmatpush1.msra.mxu0 %v5404
    %5406 = vmatprep.subr.mxu0 0.0
    %v5407 = vand.u32 %v3975, 4294901760
    %5408 = vmatpush1.msra.mxu0 %v5407
    %5409 = vmatprep.subr.mxu0 0.0
    %v5410 = vand.u32 %v3976, 4294901760
    %5411 = vmatpush1.msra.mxu0 %v5410
    %5412 = vmatprep.subr.mxu0 0.0
    %v5413 = vand.u32 %v3977, 4294901760
    %5414 = vmatpush1.msra.mxu0 %v5413
    %5415 = vmatprep.subr.mxu0 0.0
    %v5416 = vand.u32 %v3978, 4294901760
    %5417 = vmatpush1.msra.mxu0 %v5416
    %5418 = vmatprep.subr.mxu0 0.0
    %v5419 = vand.u32 %v3979, 4294901760
    %5420 = vmatpush1.msra.mxu0 %v5419
    %5421 = vmatprep.subr.mxu0 0.0
    %v5422 = vand.u32 %v3980, 4294901760
    %5423 = vmatpush1.msra.mxu0 %v5422
    %5424 = vmatprep.subr.mxu0 0.0
    %v5425 = vand.u32 %v3981, 4294901760
    %5426 = vmatpush1.msra.mxu0 %v5425
    %5427 = vmatprep.subr.mxu0 0.0
    %v5428 = vand.u32 %v3982, 4294901760
    %5429 = vmatpush1.msra.mxu0 %v5428
    %5430 = vmatprep.subr.mxu0 0.0
    %v5431 = vand.u32 %v3983, 4294901760
    %5432 = vmatpush1.msra.mxu0 %v5431
    %5433 = vmatprep.subr.mxu0 0.0
    %v5434 = vand.u32 %v3984, 4294901760
    %5435 = vmatpush1.msra.mxu0 %v5434
    %5436 = vmatprep.subr.mxu0 0.0
    %v5437 = vand.u32 %v3985, 4294901760
    %5438 = vmatpush1.msra.mxu0 %v5437
    %5439 = vmatprep.subr.mxu0 0.0
    %v5440 = vand.u32 %v3986, 4294901760
    %5441 = vmatpush1.msra.mxu0 %v5440
    %v5442 = vand.u32 %v3920, 4294901760
    %v5443 = vsub.f32 %v3920, %v5442
    %v5444 = vand.u32 %v5443, 4294901760
    %5445 = vmatprep.mubr.f32.mxu0 %v5444
    %v5446 = vand.u32 %v3918, 4294901760
    %v5447 = vsub.f32 %v3918, %v5446
    %v5448 = vand.u32 %v5447, 4294901760
    %5449 = vmatmul.mubr.f32.gmra.mrb[0].mxu0 %v5448
    %v5450 = vpop.f32.mrb[0].mxu0
    %v5451 = vadd.f32 %v5343, %v5450
    %v5452 = vpop.f32.mrb[0].mxu0
    %5453 = vdwg.mxu0
    %5454 = vmatprep.subr.mxu0 0.0
    %v5455 = vand.u32 %v3955, 4294901760
    %v5456 = vsub.f32 %v3955, %v5455
    %v5457 = vand.u32 %v5456, 4294901760
    %5458 = vmatpush1.msra.mxu0 %v5457
    %5459 = vmatprep.subr.mxu0 0.0
    %v5460 = vand.u32 %v3956, 4294901760
    %v5461 = vsub.f32 %v3956, %v5460
    %v5462 = vand.u32 %v5461, 4294901760
    %5463 = vmatpush1.msra.mxu0 %v5462
    %5464 = vmatprep.subr.mxu0 0.0
    %v5465 = vand.u32 %v3957, 4294901760
    %v5466 = vsub.f32 %v3957, %v5465
    %v5467 = vand.u32 %v5466, 4294901760
    %5468 = vmatpush1.msra.mxu0 %v5467
    %5469 = vmatprep.subr.mxu0 0.0
    %v5470 = vand.u32 %v3958, 4294901760
    %v5471 = vsub.f32 %v3958, %v5470
    %v5472 = vand.u32 %v5471, 4294901760
    %5473 = vmatpush1.msra.mxu0 %v5472
    %5474 = vmatprep.subr.mxu0 0.0
    %v5475 = vand.u32 %v3959, 4294901760
    %v5476 = vsub.f32 %v3959, %v5475
    %v5477 = vand.u32 %v5476, 4294901760
    %5478 = vmatpush1.msra.mxu0 %v5477
    %5479 = vmatprep.subr.mxu0 0.0
    %v5480 = vand.u32 %v3960, 4294901760
    %v5481 = vsub.f32 %v3960, %v5480
    %v5482 = vand.u32 %v5481, 4294901760
    %5483 = vmatpush1.msra.mxu0 %v5482
    %5484 = vmatprep.subr.mxu0 0.0
    %v5485 = vand.u32 %v3961, 4294901760
    %v5486 = vsub.f32 %v3961, %v5485
    %v5487 = vand.u32 %v5486, 4294901760
    %5488 = vmatpush1.msra.mxu0 %v5487
    %5489 = vmatprep.subr.mxu0 0.0
    %v5490 = vand.u32 %v3962, 4294901760
    %v5491 = vsub.f32 %v3962, %v5490
    %v5492 = vand.u32 %v5491, 4294901760
    %5493 = vmatpush1.msra.mxu0 %v5492
    %5494 = vmatprep.subr.mxu0 0.0
    %v5495 = vand.u32 %v3963, 4294901760
    %v5496 = vsub.f32 %v3963, %v5495
    %v5497 = vand.u32 %v5496, 4294901760
    %5498 = vmatpush1.msra.mxu0 %v5497
    %5499 = vmatprep.subr.mxu0 0.0
    %v5500 = vand.u32 %v3964, 4294901760
    %v5501 = vsub.f32 %v3964, %v5500
    %v5502 = vand.u32 %v5501, 4294901760
    %5503 = vmatpush1.msra.mxu0 %v5502
    %5504 = vmatprep.subr.mxu0 0.0
    %v5505 = vand.u32 %v3965, 4294901760
    %v5506 = vsub.f32 %v3965, %v5505
    %v5507 = vand.u32 %v5506, 4294901760
    %5508 = vmatpush1.msra.mxu0 %v5507
    %5509 = vmatprep.subr.mxu0 0.0
    %v5510 = vand.u32 %v3966, 4294901760
    %v5511 = vsub.f32 %v3966, %v5510
    %v5512 = vand.u32 %v5511, 4294901760
    %5513 = vmatpush1.msra.mxu0 %v5512
    %5514 = vmatprep.subr.mxu0 0.0
    %v5515 = vand.u32 %v3967, 4294901760
    %v5516 = vsub.f32 %v3967, %v5515
    %v5517 = vand.u32 %v5516, 4294901760
    %5518 = vmatpush1.msra.mxu0 %v5517
    %5519 = vmatprep.subr.mxu0 0.0
    %v5520 = vand.u32 %v3968, 4294901760
    %v5521 = vsub.f32 %v3968, %v5520
    %v5522 = vand.u32 %v5521, 4294901760
    %5523 = vmatpush1.msra.mxu0 %v5522
    %5524 = vmatprep.subr.mxu0 0.0
    %v5525 = vand.u32 %v3969, 4294901760
    %v5526 = vsub.f32 %v3969, %v5525
    %v5527 = vand.u32 %v5526, 4294901760
    %5528 = vmatpush1.msra.mxu0 %v5527
    %5529 = vmatprep.subr.mxu0 0.0
    %v5530 = vand.u32 %v3970, 4294901760
    %v5531 = vsub.f32 %v3970, %v5530
    %v5532 = vand.u32 %v5531, 4294901760
    %5533 = vmatpush1.msra.mxu0 %v5532
    %5534 = vmatprep.subr.mxu0 0.0
    %v5535 = vand.u32 %v3971, 4294901760
    %v5536 = vsub.f32 %v3971, %v5535
    %v5537 = vand.u32 %v5536, 4294901760
    %5538 = vmatpush1.msra.mxu0 %v5537
    %5539 = vmatprep.subr.mxu0 0.0
    %v5540 = vand.u32 %v3972, 4294901760
    %v5541 = vsub.f32 %v3972, %v5540
    %v5542 = vand.u32 %v5541, 4294901760
    %5543 = vmatpush1.msra.mxu0 %v5542
    %5544 = vmatprep.subr.mxu0 0.0
    %v5545 = vand.u32 %v3973, 4294901760
    %v5546 = vsub.f32 %v3973, %v5545
    %v5547 = vand.u32 %v5546, 4294901760
    %5548 = vmatpush1.msra.mxu0 %v5547
    %5549 = vmatprep.subr.mxu0 0.0
    %v5550 = vand.u32 %v3974, 4294901760
    %v5551 = vsub.f32 %v3974, %v5550
    %v5552 = vand.u32 %v5551, 4294901760
    %5553 = vmatpush1.msra.mxu0 %v5552
    %5554 = vmatprep.subr.mxu0 0.0
    %v5555 = vand.u32 %v3975, 4294901760
    %v5556 = vsub.f32 %v3975, %v5555
    %v5557 = vand.u32 %v5556, 4294901760
    %5558 = vmatpush1.msra.mxu0 %v5557
    %5559 = vmatprep.subr.mxu0 0.0
    %v5560 = vand.u32 %v3976, 4294901760
    %v5561 = vsub.f32 %v3976, %v5560
    %v5562 = vand.u32 %v5561, 4294901760
    %5563 = vmatpush1.msra.mxu0 %v5562
    %5564 = vmatprep.subr.mxu0 0.0
    %v5565 = vand.u32 %v3977, 4294901760
    %v5566 = vsub.f32 %v3977, %v5565
    %v5567 = vand.u32 %v5566, 4294901760
    %5568 = vmatpush1.msra.mxu0 %v5567
    %5569 = vmatprep.subr.mxu0 0.0
    %v5570 = vand.u32 %v3978, 4294901760
    %v5571 = vsub.f32 %v3978, %v5570
    %v5572 = vand.u32 %v5571, 4294901760
    %5573 = vmatpush1.msra.mxu0 %v5572
    %5574 = vmatprep.subr.mxu0 0.0
    %v5575 = vand.u32 %v3979, 4294901760
    %v5576 = vsub.f32 %v3979, %v5575
    %v5577 = vand.u32 %v5576, 4294901760
    %5578 = vmatpush1.msra.mxu0 %v5577
    %5579 = vmatprep.subr.mxu0 0.0
    %v5580 = vand.u32 %v3980, 4294901760
    %v5581 = vsub.f32 %v3980, %v5580
    %v5582 = vand.u32 %v5581, 4294901760
    %5583 = vmatpush1.msra.mxu0 %v5582
    %5584 = vmatprep.subr.mxu0 0.0
    %v5585 = vand.u32 %v3981, 4294901760
    %v5586 = vsub.f32 %v3981, %v5585
    %v5587 = vand.u32 %v5586, 4294901760
    %5588 = vmatpush1.msra.mxu0 %v5587
    %5589 = vmatprep.subr.mxu0 0.0
    %v5590 = vand.u32 %v3982, 4294901760
    %v5591 = vsub.f32 %v3982, %v5590
    %v5592 = vand.u32 %v5591, 4294901760
    %5593 = vmatpush1.msra.mxu0 %v5592
    %5594 = vmatprep.subr.mxu0 0.0
    %v5595 = vand.u32 %v3983, 4294901760
    %v5596 = vsub.f32 %v3983, %v5595
    %v5597 = vand.u32 %v5596, 4294901760
    %5598 = vmatpush1.msra.mxu0 %v5597
    %5599 = vmatprep.subr.mxu0 0.0
    %v5600 = vand.u32 %v3984, 4294901760
    %v5601 = vsub.f32 %v3984, %v5600
    %v5602 = vand.u32 %v5601, 4294901760
    %5603 = vmatpush1.msra.mxu0 %v5602
    %5604 = vmatprep.subr.mxu0 0.0
    %v5605 = vand.u32 %v3985, 4294901760
    %v5606 = vsub.f32 %v3985, %v5605
    %v5607 = vand.u32 %v5606, 4294901760
    %5608 = vmatpush1.msra.mxu0 %v5607
    %5609 = vmatprep.subr.mxu0 0.0
    %v5610 = vand.u32 %v3986, 4294901760
    %v5611 = vsub.f32 %v3986, %v5610
    %v5612 = vand.u32 %v5611, 4294901760
    %5613 = vmatpush1.msra.mxu0 %v5612
    %v5614 = vand.u32 %v3920, 4294901760
    %5615 = vmatprep.mubr.f32.mxu0 %v5614
    %v5616 = vand.u32 %v3918, 4294901760
    %5617 = vmatmul.mubr.f32.gmra.mrb[0].mxu0 %v5616
    %v5618 = vpop.f32.mrb[0].mxu0
    %v5619 = vadd.f32 %v5451, %v5618
    %v5620 = vpop.f32.mrb[0].mxu0
    %5621 = vdwg.mxu0
    %5622 = vmatprep.subr.mxu0 0.0
    %v5623 = vand.u32 %v3955, 4294901760
    %5624 = vmatpush1.msra.mxu0 %v5623
    %5625 = vmatprep.subr.mxu0 0.0
    %v5626 = vand.u32 %v3956, 4294901760
    %5627 = vmatpush1.msra.mxu0 %v5626
    %5628 = vmatprep.subr.mxu0 0.0
    %v5629 = vand.u32 %v3957, 4294901760
    %5630 = vmatpush1.msra.mxu0 %v5629
    %5631 = vmatprep.subr.mxu0 0.0
    %v5632 = vand.u32 %v3958, 4294901760
    %5633 = vmatpush1.msra.mxu0 %v5632
    %5634 = vmatprep.subr.mxu0 0.0
    %v5635 = vand.u32 %v3959, 4294901760
    %5636 = vmatpush1.msra.mxu0 %v5635
    %5637 = vmatprep.subr.mxu0 0.0
    %v5638 = vand.u32 %v3960, 4294901760
    %5639 = vmatpush1.msra.mxu0 %v5638
    %5640 = vmatprep.subr.mxu0 0.0
    %v5641 = vand.u32 %v3961, 4294901760
    %5642 = vmatpush1.msra.mxu0 %v5641
    %5643 = vmatprep.subr.mxu0 0.0
    %v5644 = vand.u32 %v3962, 4294901760
    %5645 = vmatpush1.msra.mxu0 %v5644
    %5646 = vmatprep.subr.mxu0 0.0
    %v5647 = vand.u32 %v3963, 4294901760
    %5648 = vmatpush1.msra.mxu0 %v5647
    %5649 = vmatprep.subr.mxu0 0.0
    %v5650 = vand.u32 %v3964, 4294901760
    %5651 = vmatpush1.msra.mxu0 %v5650
    %5652 = vmatprep.subr.mxu0 0.0
    %v5653 = vand.u32 %v3965, 4294901760
    %5654 = vmatpush1.msra.mxu0 %v5653
    %5655 = vmatprep.subr.mxu0 0.0
    %v5656 = vand.u32 %v3966, 4294901760
    %5657 = vmatpush1.msra.mxu0 %v5656
    %5658 = vmatprep.subr.mxu0 0.0
    %v5659 = vand.u32 %v3967, 4294901760
    %5660 = vmatpush1.msra.mxu0 %v5659
    %5661 = vmatprep.subr.mxu0 0.0
    %v5662 = vand.u32 %v3968, 4294901760
    %5663 = vmatpush1.msra.mxu0 %v5662
    %5664 = vmatprep.subr.mxu0 0.0
    %v5665 = vand.u32 %v3969, 4294901760
    %5666 = vmatpush1.msra.mxu0 %v5665
    %5667 = vmatprep.subr.mxu0 0.0
    %v5668 = vand.u32 %v3970, 4294901760
    %5669 = vmatpush1.msra.mxu0 %v5668
    %5670 = vmatprep.subr.mxu0 0.0
    %v5671 = vand.u32 %v3971, 4294901760
    %5672 = vmatpush1.msra.mxu0 %v5671
    %5673 = vmatprep.subr.mxu0 0.0
    %v5674 = vand.u32 %v3972, 4294901760
    %5675 = vmatpush1.msra.mxu0 %v5674
    %5676 = vmatprep.subr.mxu0 0.0
    %v5677 = vand.u32 %v3973, 4294901760
    %5678 = vmatpush1.msra.mxu0 %v5677
    %5679 = vmatprep.subr.mxu0 0.0
    %v5680 = vand.u32 %v3974, 4294901760
    %5681 = vmatpush1.msra.mxu0 %v5680
    %5682 = vmatprep.subr.mxu0 0.0
    %v5683 = vand.u32 %v3975, 4294901760
    %5684 = vmatpush1.msra.mxu0 %v5683
    %5685 = vmatprep.subr.mxu0 0.0
    %v5686 = vand.u32 %v3976, 4294901760
    %5687 = vmatpush1.msra.mxu0 %v5686
    %5688 = vmatprep.subr.mxu0 0.0
    %v5689 = vand.u32 %v3977, 4294901760
    %5690 = vmatpush1.msra.mxu0 %v5689
    %5691 = vmatprep.subr.mxu0 0.0
    %v5692 = vand.u32 %v3978, 4294901760
    %5693 = vmatpush1.msra.mxu0 %v5692
    %5694 = vmatprep.subr.mxu0 0.0
    %v5695 = vand.u32 %v3979, 4294901760
    %5696 = vmatpush1.msra.mxu0 %v5695
    %5697 = vmatprep.subr.mxu0 0.0
    %v5698 = vand.u32 %v3980, 4294901760
    %5699 = vmatpush1.msra.mxu0 %v5698
    %5700 = vmatprep.subr.mxu0 0.0
    %v5701 = vand.u32 %v3981, 4294901760
    %5702 = vmatpush1.msra.mxu0 %v5701
    %5703 = vmatprep.subr.mxu0 0.0
    %v5704 = vand.u32 %v3982, 4294901760
    %5705 = vmatpush1.msra.mxu0 %v5704
    %5706 = vmatprep.subr.mxu0 0.0
    %v5707 = vand.u32 %v3983, 4294901760
    %5708 = vmatpush1.msra.mxu0 %v5707
    %5709 = vmatprep.subr.mxu0 0.0
    %v5710 = vand.u32 %v3984, 4294901760
    %5711 = vmatpush1.msra.mxu0 %v5710
    %5712 = vmatprep.subr.mxu0 0.0
    %v5713 = vand.u32 %v3985, 4294901760
    %5714 = vmatpush1.msra.mxu0 %v5713
    %5715 = vmatprep.subr.mxu0 0.0
    %v5716 = vand.u32 %v3986, 4294901760
    %5717 = vmatpush1.msra.mxu0 %v5716
    %v5718 = vand.u32 %v3920, 4294901760
    %5719 = vmatprep.mubr.f32.mxu0 %v5718
    %v5720 = vand.u32 %v3918, 4294901760
    %5721 = vmatmul.mubr.f32.gmra.mrb[0].mxu0 %v5720
    %v5722 = vpop.f32.mrb[0].mxu0
    %v5723 = vadd.f32 %v5619, %v5722
    %v5724 = vpop.f32.mrb[0].mxu0
    %5725 = vdwg.mxu0
    %5726 = vmatprep.subr.mxu0 0.0
    %v5727 = vand.u32 %v3987, 4294901760
    %5728 = vmatpush1.msra.mxu0 %v5727
    %5729 = vmatprep.subr.mxu0 0.0
    %v5730 = vand.u32 %v3988, 4294901760
    %5731 = vmatpush1.msra.mxu0 %v5730
    %5732 = vmatprep.subr.mxu0 0.0
    %v5733 = vand.u32 %v3989, 4294901760
    %5734 = vmatpush1.msra.mxu0 %v5733
    %5735 = vmatprep.subr.mxu0 0.0
    %v5736 = vand.u32 %v3990, 4294901760
    %5737 = vmatpush1.msra.mxu0 %v5736
    %5738 = vmatprep.subr.mxu0 0.0
    %v5739 = vand.u32 %v3991, 4294901760
    %5740 = vmatpush1.msra.mxu0 %v5739
    %5741 = vmatprep.subr.mxu0 0.0
    %v5742 = vand.u32 %v3992, 4294901760
    %5743 = vmatpush1.msra.mxu0 %v5742
    %5744 = vmatprep.subr.mxu0 0.0
    %v5745 = vand.u32 %v3993, 4294901760
    %5746 = vmatpush1.msra.mxu0 %v5745
    %5747 = vmatprep.subr.mxu0 0.0
    %v5748 = vand.u32 %v3994, 4294901760
    %5749 = vmatpush1.msra.mxu0 %v5748
    %5750 = vmatprep.subr.mxu0 0.0
    %v5751 = vand.u32 %v3995, 4294901760
    %5752 = vmatpush1.msra.mxu0 %v5751
    %5753 = vmatprep.subr.mxu0 0.0
    %v5754 = vand.u32 %v3996, 4294901760
    %5755 = vmatpush1.msra.mxu0 %v5754
    %5756 = vmatprep.subr.mxu0 0.0
    %v5757 = vand.u32 %v3997, 4294901760
    %5758 = vmatpush1.msra.mxu0 %v5757
    %5759 = vmatprep.subr.mxu0 0.0
    %v5760 = vand.u32 %v3998, 4294901760
    %5761 = vmatpush1.msra.mxu0 %v5760
    %5762 = vmatprep.subr.mxu0 0.0
    %5763 = vmatpush1.msra.mxu0 0.0
    %5764 = vmatprep.subr.mxu0 0.0
    %5765 = vmatpush1.msra.mxu0 0.0
    %5766 = vmatprep.subr.mxu0 0.0
    %5767 = vmatpush1.msra.mxu0 0.0
    %5768 = vmatprep.subr.mxu0 0.0
    %5769 = vmatpush1.msra.mxu0 0.0
    %5770 = vmatprep.subr.mxu0 0.0
    %5771 = vmatpush1.msra.mxu0 0.0
    %5772 = vmatprep.subr.mxu0 0.0
    %5773 = vmatpush1.msra.mxu0 0.0
    %5774 = vmatprep.subr.mxu0 0.0
    %5775 = vmatpush1.msra.mxu0 0.0
    %5776 = vmatprep.subr.mxu0 0.0
    %5777 = vmatpush1.msra.mxu0 0.0
    %5778 = vmatprep.subr.mxu0 0.0
    %5779 = vmatpush1.msra.mxu0 0.0
    %5780 = vmatprep.subr.mxu0 0.0
    %5781 = vmatpush1.msra.mxu0 0.0
    %5782 = vmatprep.subr.mxu0 0.0
    %5783 = vmatpush1.msra.mxu0 0.0
    %5784 = vmatprep.subr.mxu0 0.0
    %5785 = vmatpush1.msra.mxu0 0.0
    %5786 = vmatprep.subr.mxu0 0.0
    %5787 = vmatpush1.msra.mxu0 0.0
    %5788 = vmatprep.subr.mxu0 0.0
    %5789 = vmatpush1.msra.mxu0 0.0
    %5790 = vmatprep.subr.mxu0 0.0
    %5791 = vmatpush1.msra.mxu0 0.0
    %5792 = vmatprep.subr.mxu0 0.0
    %5793 = vmatpush1.msra.mxu0 0.0
    %5794 = vmatprep.subr.mxu0 0.0
    %5795 = vmatpush1.msra.mxu0 0.0
    %5796 = vmatprep.subr.mxu0 0.0
    %5797 = vmatpush1.msra.mxu0 0.0
    %5798 = vmatprep.subr.mxu0 0.0
    %5799 = vmatpush1.msra.mxu0 0.0
    %5800 = vmatprep.subr.mxu0 0.0
    %5801 = vmatpush1.msra.mxu0 0.0
    %5802 = vmatprep.mubr.f32.mxu0 0.0
    %v5803 = vand.u32 %v4000, 4294901760
    %v5804 = vsub.f32 %v4000, %v5803
    %v5805 = vand.u32 %v5804, 4294901760
    %v5806 = vsub.f32 %v5804, %v5805
    %v5807 = vand.u32 %v5806, 4294901760
    %5808 = vmatmul.mubr.f32.gmra.mrb[0].mxu0 %v5807
    %v5809 = vpop.f32.mrb[0].mxu0
    %v5810 = vadd.f32 %v5723, %v5809
    %v5811 = vpop.f32.mrb[0].mxu0
    %5812 = vdwg.mxu0
    %5813 = vmatprep.subr.mxu0 0.0
    %v5814 = vand.u32 %v3987, 4294901760
    %v5815 = vsub.f32 %v3987, %v5814
    %v5816 = vand.u32 %v5815, 4294901760
    %v5817 = vsub.f32 %v5815, %v5816
    %v5818 = vand.u32 %v5817, 4294901760
    %5819 = vmatpush1.msra.mxu0 %v5818
    %5820 = vmatprep.subr.mxu0 0.0
    %v5821 = vand.u32 %v3988, 4294901760
    %v5822 = vsub.f32 %v3988, %v5821
    %v5823 = vand.u32 %v5822, 4294901760
    %v5824 = vsub.f32 %v5822, %v5823
    %v5825 = vand.u32 %v5824, 4294901760
    %5826 = vmatpush1.msra.mxu0 %v5825
    %5827 = vmatprep.subr.mxu0 0.0
    %v5828 = vand.u32 %v3989, 4294901760
    %v5829 = vsub.f32 %v3989, %v5828
    %v5830 = vand.u32 %v5829, 4294901760
    %v5831 = vsub.f32 %v5829, %v5830
    %v5832 = vand.u32 %v5831, 4294901760
    %5833 = vmatpush1.msra.mxu0 %v5832
    %5834 = vmatprep.subr.mxu0 0.0
    %v5835 = vand.u32 %v3990, 4294901760
    %v5836 = vsub.f32 %v3990, %v5835
    %v5837 = vand.u32 %v5836, 4294901760
    %v5838 = vsub.f32 %v5836, %v5837
    %v5839 = vand.u32 %v5838, 4294901760
    %5840 = vmatpush1.msra.mxu0 %v5839
    %5841 = vmatprep.subr.mxu0 0.0
    %v5842 = vand.u32 %v3991, 4294901760
    %v5843 = vsub.f32 %v3991, %v5842
    %v5844 = vand.u32 %v5843, 4294901760
    %v5845 = vsub.f32 %v5843, %v5844
    %v5846 = vand.u32 %v5845, 4294901760
    %5847 = vmatpush1.msra.mxu0 %v5846
    %5848 = vmatprep.subr.mxu0 0.0
    %v5849 = vand.u32 %v3992, 4294901760
    %v5850 = vsub.f32 %v3992, %v5849
    %v5851 = vand.u32 %v5850, 4294901760
    %v5852 = vsub.f32 %v5850, %v5851
    %v5853 = vand.u32 %v5852, 4294901760
    %5854 = vmatpush1.msra.mxu0 %v5853
    %5855 = vmatprep.subr.mxu0 0.0
    %v5856 = vand.u32 %v3993, 4294901760
    %v5857 = vsub.f32 %v3993, %v5856
    %v5858 = vand.u32 %v5857, 4294901760
    %v5859 = vsub.f32 %v5857, %v5858
    %v5860 = vand.u32 %v5859, 4294901760
    %5861 = vmatpush1.msra.mxu0 %v5860
    %5862 = vmatprep.subr.mxu0 0.0
    %v5863 = vand.u32 %v3994, 4294901760
    %v5864 = vsub.f32 %v3994, %v5863
    %v5865 = vand.u32 %v5864, 4294901760
    %v5866 = vsub.f32 %v5864, %v5865
    %v5867 = vand.u32 %v5866, 4294901760
    %5868 = vmatpush1.msra.mxu0 %v5867
    %5869 = vmatprep.subr.mxu0 0.0
    %v5870 = vand.u32 %v3995, 4294901760
    %v5871 = vsub.f32 %v3995, %v5870
    %v5872 = vand.u32 %v5871, 4294901760
    %v5873 = vsub.f32 %v5871, %v5872
    %v5874 = vand.u32 %v5873, 4294901760
    %5875 = vmatpush1.msra.mxu0 %v5874
    %5876 = vmatprep.subr.mxu0 0.0
    %v5877 = vand.u32 %v3996, 4294901760
    %v5878 = vsub.f32 %v3996, %v5877
    %v5879 = vand.u32 %v5878, 4294901760
    %v5880 = vsub.f32 %v5878, %v5879
    %v5881 = vand.u32 %v5880, 4294901760
    %5882 = vmatpush1.msra.mxu0 %v5881
    %5883 = vmatprep.subr.mxu0 0.0
    %v5884 = vand.u32 %v3997, 4294901760
    %v5885 = vsub.f32 %v3997, %v5884
    %v5886 = vand.u32 %v5885, 4294901760
    %v5887 = vsub.f32 %v5885, %v5886
    %v5888 = vand.u32 %v5887, 4294901760
    %5889 = vmatpush1.msra.mxu0 %v5888
    %5890 = vmatprep.subr.mxu0 0.0
    %v5891 = vand.u32 %v3998, 4294901760
    %v5892 = vsub.f32 %v3998, %v5891
    %v5893 = vand.u32 %v5892, 4294901760
    %v5894 = vsub.f32 %v5892, %v5893
    %v5895 = vand.u32 %v5894, 4294901760
    %5896 = vmatpush1.msra.mxu0 %v5895
    %5897 = vmatprep.subr.mxu0 0.0
    %5898 = vmatpush1.msra.mxu0 0.0
    %5899 = vmatprep.subr.mxu0 0.0
    %5900 = vmatpush1.msra.mxu0 0.0
    %5901 = vmatprep.subr.mxu0 0.0
    %5902 = vmatpush1.msra.mxu0 0.0
    %5903 = vmatprep.subr.mxu0 0.0
    %5904 = vmatpush1.msra.mxu0 0.0
    %5905 = vmatprep.subr.mxu0 0.0
    %5906 = vmatpush1.msra.mxu0 0.0
    %5907 = vmatprep.subr.mxu0 0.0
    %5908 = vmatpush1.msra.mxu0 0.0
    %5909 = vmatprep.subr.mxu0 0.0
    %5910 = vmatpush1.msra.mxu0 0.0
    %5911 = vmatprep.subr.mxu0 0.0
    %5912 = vmatpush1.msra.mxu0 0.0
    %5913 = vmatprep.subr.mxu0 0.0
    %5914 = vmatpush1.msra.mxu0 0.0
    %5915 = vmatprep.subr.mxu0 0.0
    %5916 = vmatpush1.msra.mxu0 0.0
    %5917 = vmatprep.subr.mxu0 0.0
    %5918 = vmatpush1.msra.mxu0 0.0
    %5919 = vmatprep.subr.mxu0 0.0
    %5920 = vmatpush1.msra.mxu0 0.0
    %5921 = vmatprep.subr.mxu0 0.0
    %5922 = vmatpush1.msra.mxu0 0.0
    %5923 = vmatprep.subr.mxu0 0.0
    %5924 = vmatpush1.msra.mxu0 0.0
    %5925 = vmatprep.subr.mxu0 0.0
    %5926 = vmatpush1.msra.mxu0 0.0
    %5927 = vmatprep.subr.mxu0 0.0
    %5928 = vmatpush1.msra.mxu0 0.0
    %5929 = vmatprep.subr.mxu0 0.0
    %5930 = vmatpush1.msra.mxu0 0.0
    %5931 = vmatprep.subr.mxu0 0.0
    %5932 = vmatpush1.msra.mxu0 0.0
    %5933 = vmatprep.subr.mxu0 0.0
    %5934 = vmatpush1.msra.mxu0 0.0
    %5935 = vmatprep.subr.mxu0 0.0
    %5936 = vmatpush1.msra.mxu0 0.0
    %5937 = vmatprep.mubr.f32.mxu0 0.0
    %v5938 = vand.u32 %v4000, 4294901760
    %5939 = vmatmul.mubr.f32.gmra.mrb[0].mxu0 %v5938
    %v5940 = vpop.f32.mrb[0].mxu0
    %v5941 = vadd.f32 %v5810, %v5940
    %v5942 = vpop.f32.mrb[0].mxu0
    %5943 = vdwg.mxu0
    %5944 = vmatprep.subr.mxu0 0.0
    %v5945 = vand.u32 %v3987, 4294901760
    %v5946 = vsub.f32 %v3987, %v5945
    %5947 = vmatpush1.msra.mxu0 %v5946
    %5948 = vmatprep.subr.mxu0 0.0
    %v5949 = vand.u32 %v3988, 4294901760
    %v5950 = vsub.f32 %v3988, %v5949
    %5951 = vmatpush1.msra.mxu0 %v5950
    %5952 = vmatprep.subr.mxu0 0.0
    %v5953 = vand.u32 %v3989, 4294901760
    %v5954 = vsub.f32 %v3989, %v5953
    %5955 = vmatpush1.msra.mxu0 %v5954
    %5956 = vmatprep.subr.mxu0 0.0
    %v5957 = vand.u32 %v3990, 4294901760
    %v5958 = vsub.f32 %v3990, %v5957
    %5959 = vmatpush1.msra.mxu0 %v5958
    %5960 = vmatprep.subr.mxu0 0.0
    %v5961 = vand.u32 %v3991, 4294901760
    %v5962 = vsub.f32 %v3991, %v5961
    %5963 = vmatpush1.msra.mxu0 %v5962
    %5964 = vmatprep.subr.mxu0 0.0
    %v5965 = vand.u32 %v3992, 4294901760
    %v5966 = vsub.f32 %v3992, %v5965
    %5967 = vmatpush1.msra.mxu0 %v5966
    %5968 = vmatprep.subr.mxu0 0.0
    %v5969 = vand.u32 %v3993, 4294901760
    %v5970 = vsub.f32 %v3993, %v5969
    %5971 = vmatpush1.msra.mxu0 %v5970
    %5972 = vmatprep.subr.mxu0 0.0
    %v5973 = vand.u32 %v3994, 4294901760
    %v5974 = vsub.f32 %v3994, %v5973
    %5975 = vmatpush1.msra.mxu0 %v5974
    %5976 = vmatprep.subr.mxu0 0.0
    %v5977 = vand.u32 %v3995, 4294901760
    %v5978 = vsub.f32 %v3995, %v5977
    %5979 = vmatpush1.msra.mxu0 %v5978
    %5980 = vmatprep.subr.mxu0 0.0
    %v5981 = vand.u32 %v3996, 4294901760
    %v5982 = vsub.f32 %v3996, %v5981
    %5983 = vmatpush1.msra.mxu0 %v5982
    %5984 = vmatprep.subr.mxu0 0.0
    %v5985 = vand.u32 %v3997, 4294901760
    %v5986 = vsub.f32 %v3997, %v5985
    %5987 = vmatpush1.msra.mxu0 %v5986
    %5988 = vmatprep.subr.mxu0 0.0
    %v5989 = vand.u32 %v3998, 4294901760
    %v5990 = vsub.f32 %v3998, %v5989
    %5991 = vmatpush1.msra.mxu0 %v5990
    %5992 = vmatprep.subr.mxu0 0.0
    %5993 = vmatpush1.msra.mxu0 0.0
    %5994 = vmatprep.subr.mxu0 0.0
    %5995 = vmatpush1.msra.mxu0 0.0
    %5996 = vmatprep.subr.mxu0 0.0
    %5997 = vmatpush1.msra.mxu0 0.0
    %5998 = vmatprep.subr.mxu0 0.0
    %5999 = vmatpush1.msra.mxu0 0.0
    %6000 = vmatprep.subr.mxu0 0.0
    %6001 = vmatpush1.msra.mxu0 0.0
    %6002 = vmatprep.subr.mxu0 0.0
    %6003 = vmatpush1.msra.mxu0 0.0
    %6004 = vmatprep.subr.mxu0 0.0
    %6005 = vmatpush1.msra.mxu0 0.0
    %6006 = vmatprep.subr.mxu0 0.0
    %6007 = vmatpush1.msra.mxu0 0.0
    %6008 = vmatprep.subr.mxu0 0.0
    %6009 = vmatpush1.msra.mxu0 0.0
    %6010 = vmatprep.subr.mxu0 0.0
    %6011 = vmatpush1.msra.mxu0 0.0
    %6012 = vmatprep.subr.mxu0 0.0
    %6013 = vmatpush1.msra.mxu0 0.0
    %6014 = vmatprep.subr.mxu0 0.0
    %6015 = vmatpush1.msra.mxu0 0.0
    %6016 = vmatprep.subr.mxu0 0.0
    %6017 = vmatpush1.msra.mxu0 0.0
    %6018 = vmatprep.subr.mxu0 0.0
    %6019 = vmatpush1.msra.mxu0 0.0
    %6020 = vmatprep.subr.mxu0 0.0
    %6021 = vmatpush1.msra.mxu0 0.0
    %6022 = vmatprep.subr.mxu0 0.0
    %6023 = vmatpush1.msra.mxu0 0.0
    %6024 = vmatprep.subr.mxu0 0.0
    %6025 = vmatpush1.msra.mxu0 0.0
    %6026 = vmatprep.subr.mxu0 0.0
    %6027 = vmatpush1.msra.mxu0 0.0
    %6028 = vmatprep.subr.mxu0 0.0
    %6029 = vmatpush1.msra.mxu0 0.0
    %6030 = vmatprep.subr.mxu0 0.0
    %6031 = vmatpush1.msra.mxu0 0.0
    %6032 = vmatprep.mubr.f32.mxu0 0.0
    %v6033 = vand.u32 %v4000, 4294901760
    %v6034 = vsub.f32 %v4000, %v6033
    %6035 = vmatmul.mubr.f32.gmra.mrb[0].mxu0 %v6034
    %v6036 = vpop.f32.mrb[0].mxu0
    %v6037 = vadd.f32 %v5941, %v6036
    %v6038 = vpop.f32.mrb[0].mxu0
    %6039 = vdwg.mxu0
    %6040 = vmatprep.subr.mxu0 0.0
    %v6041 = vand.u32 %v3987, 4294901760
    %6042 = vmatpush1.msra.mxu0 %v6041
    %6043 = vmatprep.subr.mxu0 0.0
    %v6044 = vand.u32 %v3988, 4294901760
    %6045 = vmatpush1.msra.mxu0 %v6044
    %6046 = vmatprep.subr.mxu0 0.0
    %v6047 = vand.u32 %v3989, 4294901760
    %6048 = vmatpush1.msra.mxu0 %v6047
    %6049 = vmatprep.subr.mxu0 0.0
    %v6050 = vand.u32 %v3990, 4294901760
    %6051 = vmatpush1.msra.mxu0 %v6050
    %6052 = vmatprep.subr.mxu0 0.0
    %v6053 = vand.u32 %v3991, 4294901760
    %6054 = vmatpush1.msra.mxu0 %v6053
    %6055 = vmatprep.subr.mxu0 0.0
    %v6056 = vand.u32 %v3992, 4294901760
    %6057 = vmatpush1.msra.mxu0 %v6056
    %6058 = vmatprep.subr.mxu0 0.0
    %v6059 = vand.u32 %v3993, 4294901760
    %6060 = vmatpush1.msra.mxu0 %v6059
    %6061 = vmatprep.subr.mxu0 0.0
    %v6062 = vand.u32 %v3994, 4294901760
    %6063 = vmatpush1.msra.mxu0 %v6062
    %6064 = vmatprep.subr.mxu0 0.0
    %v6065 = vand.u32 %v3995, 4294901760
    %6066 = vmatpush1.msra.mxu0 %v6065
    %6067 = vmatprep.subr.mxu0 0.0
    %v6068 = vand.u32 %v3996, 4294901760
    %6069 = vmatpush1.msra.mxu0 %v6068
    %6070 = vmatprep.subr.mxu0 0.0
    %v6071 = vand.u32 %v3997, 4294901760
    %6072 = vmatpush1.msra.mxu0 %v6071
    %6073 = vmatprep.subr.mxu0 0.0
    %v6074 = vand.u32 %v3998, 4294901760
    %6075 = vmatpush1.msra.mxu0 %v6074
    %6076 = vmatprep.subr.mxu0 0.0
    %6077 = vmatpush1.msra.mxu0 0.0
    %6078 = vmatprep.subr.mxu0 0.0
    %6079 = vmatpush1.msra.mxu0 0.0
    %6080 = vmatprep.subr.mxu0 0.0
    %6081 = vmatpush1.msra.mxu0 0.0
    %6082 = vmatprep.subr.mxu0 0.0
    %6083 = vmatpush1.msra.mxu0 0.0
    %6084 = vmatprep.subr.mxu0 0.0
    %6085 = vmatpush1.msra.mxu0 0.0
    %6086 = vmatprep.subr.mxu0 0.0
    %6087 = vmatpush1.msra.mxu0 0.0
    %6088 = vmatprep.subr.mxu0 0.0
    %6089 = vmatpush1.msra.mxu0 0.0
    %6090 = vmatprep.subr.mxu0 0.0
    %6091 = vmatpush1.msra.mxu0 0.0
    %6092 = vmatprep.subr.mxu0 0.0
    %6093 = vmatpush1.msra.mxu0 0.0
    %6094 = vmatprep.subr.mxu0 0.0
    %6095 = vmatpush1.msra.mxu0 0.0
    %6096 = vmatprep.subr.mxu0 0.0
    %6097 = vmatpush1.msra.mxu0 0.0
    %6098 = vmatprep.subr.mxu0 0.0
    %6099 = vmatpush1.msra.mxu0 0.0
    %6100 = vmatprep.subr.mxu0 0.0
    %6101 = vmatpush1.msra.mxu0 0.0
    %6102 = vmatprep.subr.mxu0 0.0
    %6103 = vmatpush1.msra.mxu0 0.0
    %6104 = vmatprep.subr.mxu0 0.0
    %6105 = vmatpush1.msra.mxu0 0.0
    %6106 = vmatprep.subr.mxu0 0.0
    %6107 = vmatpush1.msra.mxu0 0.0
    %6108 = vmatprep.subr.mxu0 0.0
    %6109 = vmatpush1.msra.mxu0 0.0
    %6110 = vmatprep.subr.mxu0 0.0
    %6111 = vmatpush1.msra.mxu0 0.0
    %6112 = vmatprep.subr.mxu0 0.0
    %6113 = vmatpush1.msra.mxu0 0.0
    %6114 = vmatprep.subr.mxu0 0.0
    %6115 = vmatpush1.msra.mxu0 0.0
    %6116 = vmatprep.mubr.f32.mxu0 0.0
    %v6117 = vand.u32 %v4000, 4294901760
    %v6118 = vsub.f32 %v4000, %v6117
    %v6119 = vand.u32 %v6118, 4294901760
    %6120 = vmatmul.mubr.f32.gmra.mrb[0].mxu0 %v6119
    %v6121 = vpop.f32.mrb[0].mxu0
    %v6122 = vadd.f32 %v6037, %v6121
    %v6123 = vpop.f32.mrb[0].mxu0
    %6124 = vdwg.mxu0
    %6125 = vmatprep.subr.mxu0 0.0
    %v6126 = vand.u32 %v3987, 4294901760
    %v6127 = vsub.f32 %v3987, %v6126
    %v6128 = vand.u32 %v6127, 4294901760
    %6129 = vmatpush1.msra.mxu0 %v6128
    %6130 = vmatprep.subr.mxu0 0.0
    %v6131 = vand.u32 %v3988, 4294901760
    %v6132 = vsub.f32 %v3988, %v6131
    %v6133 = vand.u32 %v6132, 4294901760
    %6134 = vmatpush1.msra.mxu0 %v6133
    %6135 = vmatprep.subr.mxu0 0.0
    %v6136 = vand.u32 %v3989, 4294901760
    %v6137 = vsub.f32 %v3989, %v6136
    %v6138 = vand.u32 %v6137, 4294901760
    %6139 = vmatpush1.msra.mxu0 %v6138
    %6140 = vmatprep.subr.mxu0 0.0
    %v6141 = vand.u32 %v3990, 4294901760
    %v6142 = vsub.f32 %v3990, %v6141
    %v6143 = vand.u32 %v6142, 4294901760
    %6144 = vmatpush1.msra.mxu0 %v6143
    %6145 = vmatprep.subr.mxu0 0.0
    %v6146 = vand.u32 %v3991, 4294901760
    %v6147 = vsub.f32 %v3991, %v6146
    %v6148 = vand.u32 %v6147, 4294901760
    %6149 = vmatpush1.msra.mxu0 %v6148
    %6150 = vmatprep.subr.mxu0 0.0
    %v6151 = vand.u32 %v3992, 4294901760
    %v6152 = vsub.f32 %v3992, %v6151
    %v6153 = vand.u32 %v6152, 4294901760
    %6154 = vmatpush1.msra.mxu0 %v6153
    %6155 = vmatprep.subr.mxu0 0.0
    %v6156 = vand.u32 %v3993, 4294901760
    %v6157 = vsub.f32 %v3993, %v6156
    %v6158 = vand.u32 %v6157, 4294901760
    %6159 = vmatpush1.msra.mxu0 %v6158
    %6160 = vmatprep.subr.mxu0 0.0
    %v6161 = vand.u32 %v3994, 4294901760
    %v6162 = vsub.f32 %v3994, %v6161
    %v6163 = vand.u32 %v6162, 4294901760
    %6164 = vmatpush1.msra.mxu0 %v6163
    %6165 = vmatprep.subr.mxu0 0.0
    %v6166 = vand.u32 %v3995, 4294901760
    %v6167 = vsub.f32 %v3995, %v6166
    %v6168 = vand.u32 %v6167, 4294901760
    %6169 = vmatpush1.msra.mxu0 %v6168
    %6170 = vmatprep.subr.mxu0 0.0
    %v6171 = vand.u32 %v3996, 4294901760
    %v6172 = vsub.f32 %v3996, %v6171
    %v6173 = vand.u32 %v6172, 4294901760
    %6174 = vmatpush1.msra.mxu0 %v6173
    %6175 = vmatprep.subr.mxu0 0.0
    %v6176 = vand.u32 %v3997, 4294901760
    %v6177 = vsub.f32 %v3997, %v6176
    %v6178 = vand.u32 %v6177, 4294901760
    %6179 = vmatpush1.msra.mxu0 %v6178
    %6180 = vmatprep.subr.mxu0 0.0
    %v6181 = vand.u32 %v3998, 4294901760
    %v6182 = vsub.f32 %v3998, %v6181
    %v6183 = vand.u32 %v6182, 4294901760
    %6184 = vmatpush1.msra.mxu0 %v6183
    %6185 = vmatprep.subr.mxu0 0.0
    %6186 = vmatpush1.msra.mxu0 0.0
    %6187 = vmatprep.subr.mxu0 0.0
    %6188 = vmatpush1.msra.mxu0 0.0
    %6189 = vmatprep.subr.mxu0 0.0
    %6190 = vmatpush1.msra.mxu0 0.0
    %6191 = vmatprep.subr.mxu0 0.0
    %6192 = vmatpush1.msra.mxu0 0.0
    %6193 = vmatprep.subr.mxu0 0.0
    %6194 = vmatpush1.msra.mxu0 0.0
    %6195 = vmatprep.subr.mxu0 0.0
    %6196 = vmatpush1.msra.mxu0 0.0
    %6197 = vmatprep.subr.mxu0 0.0
    %6198 = vmatpush1.msra.mxu0 0.0
    %6199 = vmatprep.subr.mxu0 0.0
    %6200 = vmatpush1.msra.mxu0 0.0
    %6201 = vmatprep.subr.mxu0 0.0
    %6202 = vmatpush1.msra.mxu0 0.0
    %6203 = vmatprep.subr.mxu0 0.0
    %6204 = vmatpush1.msra.mxu0 0.0
    %6205 = vmatprep.subr.mxu0 0.0
    %6206 = vmatpush1.msra.mxu0 0.0
    %6207 = vmatprep.subr.mxu0 0.0
    %6208 = vmatpush1.msra.mxu0 0.0
    %6209 = vmatprep.subr.mxu0 0.0
    %6210 = vmatpush1.msra.mxu0 0.0
    %6211 = vmatprep.subr.mxu0 0.0
    %6212 = vmatpush1.msra.mxu0 0.0
    %6213 = vmatprep.subr.mxu0 0.0
    %6214 = vmatpush1.msra.mxu0 0.0
    %6215 = vmatprep.subr.mxu0 0.0
    %6216 = vmatpush1.msra.mxu0 0.0
    %6217 = vmatprep.subr.mxu0 0.0
    %6218 = vmatpush1.msra.mxu0 0.0
    %6219 = vmatprep.subr.mxu0 0.0
    %6220 = vmatpush1.msra.mxu0 0.0
    %6221 = vmatprep.subr.mxu0 0.0
    %6222 = vmatpush1.msra.mxu0 0.0
    %6223 = vmatprep.subr.mxu0 0.0
    %6224 = vmatpush1.msra.mxu0 0.0
    %6225 = vmatprep.mubr.f32.mxu0 0.0
    %v6226 = vand.u32 %v4000, 4294901760
    %6227 = vmatmul.mubr.f32.gmra.mrb[0].mxu0 %v6226
    %v6228 = vpop.f32.mrb[0].mxu0
    %v6229 = vadd.f32 %v6122, %v6228
    %v6230 = vpop.f32.mrb[0].mxu0
    %6231 = vdwg.mxu0
    %6232 = vmatprep.subr.mxu0 0.0
    %v6233 = vand.u32 %v3987, 4294901760
    %6234 = vmatpush1.msra.mxu0 %v6233
    %6235 = vmatprep.subr.mxu0 0.0
    %v6236 = vand.u32 %v3988, 4294901760
    %6237 = vmatpush1.msra.mxu0 %v6236
    %6238 = vmatprep.subr.mxu0 0.0
    %v6239 = vand.u32 %v3989, 4294901760
    %6240 = vmatpush1.msra.mxu0 %v6239
    %6241 = vmatprep.subr.mxu0 0.0
    %v6242 = vand.u32 %v3990, 4294901760
    %6243 = vmatpush1.msra.mxu0 %v6242
    %6244 = vmatprep.subr.mxu0 0.0
    %v6245 = vand.u32 %v3991, 4294901760
    %6246 = vmatpush1.msra.mxu0 %v6245
    %6247 = vmatprep.subr.mxu0 0.0
    %v6248 = vand.u32 %v3992, 4294901760
    %6249 = vmatpush1.msra.mxu0 %v6248
    %6250 = vmatprep.subr.mxu0 0.0
    %v6251 = vand.u32 %v3993, 4294901760
    %6252 = vmatpush1.msra.mxu0 %v6251
    %6253 = vmatprep.subr.mxu0 0.0
    %v6254 = vand.u32 %v3994, 4294901760
    %6255 = vmatpush1.msra.mxu0 %v6254
    %6256 = vmatprep.subr.mxu0 0.0
    %v6257 = vand.u32 %v3995, 4294901760
    %6258 = vmatpush1.msra.mxu0 %v6257
    %6259 = vmatprep.subr.mxu0 0.0
    %v6260 = vand.u32 %v3996, 4294901760
    %6261 = vmatpush1.msra.mxu0 %v6260
    %6262 = vmatprep.subr.mxu0 0.0
    %v6263 = vand.u32 %v3997, 4294901760
    %6264 = vmatpush1.msra.mxu0 %v6263
    %6265 = vmatprep.subr.mxu0 0.0
    %v6266 = vand.u32 %v3998, 4294901760
    %6267 = vmatpush1.msra.mxu0 %v6266
    %6268 = vmatprep.subr.mxu0 0.0
    %6269 = vmatpush1.msra.mxu0 0.0
    %6270 = vmatprep.subr.mxu0 0.0
    %6271 = vmatpush1.msra.mxu0 0.0
    %6272 = vmatprep.subr.mxu0 0.0
    %6273 = vmatpush1.msra.mxu0 0.0
    %6274 = vmatprep.subr.mxu0 0.0
    %6275 = vmatpush1.msra.mxu0 0.0
    %6276 = vmatprep.subr.mxu0 0.0
    %6277 = vmatpush1.msra.mxu0 0.0
    %6278 = vmatprep.subr.mxu0 0.0
    %6279 = vmatpush1.msra.mxu0 0.0
    %6280 = vmatprep.subr.mxu0 0.0
    %6281 = vmatpush1.msra.mxu0 0.0
    %6282 = vmatprep.subr.mxu0 0.0
    %6283 = vmatpush1.msra.mxu0 0.0
    %6284 = vmatprep.subr.mxu0 0.0
    %6285 = vmatpush1.msra.mxu0 0.0
    %6286 = vmatprep.subr.mxu0 0.0
    %6287 = vmatpush1.msra.mxu0 0.0
    %6288 = vmatprep.subr.mxu0 0.0
    %6289 = vmatpush1.msra.mxu0 0.0
    %6290 = vmatprep.subr.mxu0 0.0
    %6291 = vmatpush1.msra.mxu0 0.0
    %6292 = vmatprep.subr.mxu0 0.0
    %6293 = vmatpush1.msra.mxu0 0.0
    %6294 = vmatprep.subr.mxu0 0.0
    %6295 = vmatpush1.msra.mxu0 0.0
    %6296 = vmatprep.subr.mxu0 0.0
    %6297 = vmatpush1.msra.mxu0 0.0
    %6298 = vmatprep.subr.mxu0 0.0
    %6299 = vmatpush1.msra.mxu0 0.0
    %6300 = vmatprep.subr.mxu0 0.0
    %6301 = vmatpush1.msra.mxu0 0.0
    %6302 = vmatprep.subr.mxu0 0.0
    %6303 = vmatpush1.msra.mxu0 0.0
    %6304 = vmatprep.subr.mxu0 0.0
    %6305 = vmatpush1.msra.mxu0 0.0
    %6306 = vmatprep.subr.mxu0 0.0
    %6307 = vmatpush1.msra.mxu0 0.0
    %6308 = vmatprep.mubr.f32.mxu0 0.0
    %v6309 = vand.u32 %v4000, 4294901760
    %6310 = vmatmul.mubr.f32.gmra.mrb[0].mxu0 %v6309
    %v6311 = vpop.f32.mrb[0].mxu0
    %v6312 = vadd.f32 %v6229, %v6311
    %v6313 = vpop.f32.mrb[0].mxu0
    %6314 = vdwg.mxu0
    %v6315 = vmul.f32 %v21, %v3914
    %v6316 = vmul.f32 %v22, %v3916
    %v6317 = vmul.f32 %v23, %v3918
    %v6318 = vmul.f32 %v24, %v3920
    %v6319 = vmul.f32 %v25, %v3922
    %v6321 = vsel %vm102, %v6319, 0
    %6323 = vmatprep.subr.mxu0 0.0
    %v6324 = vand.u32 %v3923, 4294901760
    %6325 = vmatpush1.msra.mxu0 %v6324
    %6326 = vmatprep.subr.mxu0 0.0
    %v6327 = vand.u32 %v3924, 4294901760
    %6328 = vmatpush1.msra.mxu0 %v6327
    %6329 = vmatprep.subr.mxu0 0.0
    %v6330 = vand.u32 %v3925, 4294901760
    %6331 = vmatpush1.msra.mxu0 %v6330
    %6332 = vmatprep.subr.mxu0 0.0
    %v6333 = vand.u32 %v3926, 4294901760
    %6334 = vmatpush1.msra.mxu0 %v6333
    %6335 = vmatprep.subr.mxu0 0.0
    %v6336 = vand.u32 %v3927, 4294901760
    %6337 = vmatpush1.msra.mxu0 %v6336
    %6338 = vmatprep.subr.mxu0 0.0
    %v6339 = vand.u32 %v3928, 4294901760
    %6340 = vmatpush1.msra.mxu0 %v6339
    %6341 = vmatprep.subr.mxu0 0.0
    %v6342 = vand.u32 %v3929, 4294901760
    %6343 = vmatpush1.msra.mxu0 %v6342
    %6344 = vmatprep.subr.mxu0 0.0
    %v6345 = vand.u32 %v3930, 4294901760
    %6346 = vmatpush1.msra.mxu0 %v6345
    %6347 = vmatprep.subr.mxu0 0.0
    %v6348 = vand.u32 %v3931, 4294901760
    %6349 = vmatpush1.msra.mxu0 %v6348
    %6350 = vmatprep.subr.mxu0 0.0
    %v6351 = vand.u32 %v3932, 4294901760
    %6352 = vmatpush1.msra.mxu0 %v6351
    %6353 = vmatprep.subr.mxu0 0.0
    %v6354 = vand.u32 %v3933, 4294901760
    %6355 = vmatpush1.msra.mxu0 %v6354
    %6356 = vmatprep.subr.mxu0 0.0
    %v6357 = vand.u32 %v3934, 4294901760
    %6358 = vmatpush1.msra.mxu0 %v6357
    %6359 = vmatprep.subr.mxu0 0.0
    %v6360 = vand.u32 %v3935, 4294901760
    %6361 = vmatpush1.msra.mxu0 %v6360
    %6362 = vmatprep.subr.mxu0 0.0
    %v6363 = vand.u32 %v3936, 4294901760
    %6364 = vmatpush1.msra.mxu0 %v6363
    %6365 = vmatprep.subr.mxu0 0.0
    %v6366 = vand.u32 %v3937, 4294901760
    %6367 = vmatpush1.msra.mxu0 %v6366
    %6368 = vmatprep.subr.mxu0 0.0
    %v6369 = vand.u32 %v3938, 4294901760
    %6370 = vmatpush1.msra.mxu0 %v6369
    %6371 = vmatprep.subr.mxu0 0.0
    %v6372 = vand.u32 %v3939, 4294901760
    %6373 = vmatpush1.msra.mxu0 %v6372
    %6374 = vmatprep.subr.mxu0 0.0
    %v6375 = vand.u32 %v3940, 4294901760
    %6376 = vmatpush1.msra.mxu0 %v6375
    %6377 = vmatprep.subr.mxu0 0.0
    %v6378 = vand.u32 %v3941, 4294901760
    %6379 = vmatpush1.msra.mxu0 %v6378
    %6380 = vmatprep.subr.mxu0 0.0
    %v6381 = vand.u32 %v3942, 4294901760
    %6382 = vmatpush1.msra.mxu0 %v6381
    %6383 = vmatprep.subr.mxu0 0.0
    %v6384 = vand.u32 %v3943, 4294901760
    %6385 = vmatpush1.msra.mxu0 %v6384
    %6386 = vmatprep.subr.mxu0 0.0
    %v6387 = vand.u32 %v3944, 4294901760
    %6388 = vmatpush1.msra.mxu0 %v6387
    %6389 = vmatprep.subr.mxu0 0.0
    %v6390 = vand.u32 %v3945, 4294901760
    %6391 = vmatpush1.msra.mxu0 %v6390
    %6392 = vmatprep.subr.mxu0 0.0
    %v6393 = vand.u32 %v3946, 4294901760
    %6394 = vmatpush1.msra.mxu0 %v6393
    %6395 = vmatprep.subr.mxu0 0.0
    %v6396 = vand.u32 %v3947, 4294901760
    %6397 = vmatpush1.msra.mxu0 %v6396
    %6398 = vmatprep.subr.mxu0 0.0
    %v6399 = vand.u32 %v3948, 4294901760
    %6400 = vmatpush1.msra.mxu0 %v6399
    %6401 = vmatprep.subr.mxu0 0.0
    %v6402 = vand.u32 %v3949, 4294901760
    %6403 = vmatpush1.msra.mxu0 %v6402
    %6404 = vmatprep.subr.mxu0 0.0
    %v6405 = vand.u32 %v3950, 4294901760
    %6406 = vmatpush1.msra.mxu0 %v6405
    %6407 = vmatprep.subr.mxu0 0.0
    %v6408 = vand.u32 %v3951, 4294901760
    %6409 = vmatpush1.msra.mxu0 %v6408
    %6410 = vmatprep.subr.mxu0 0.0
    %v6411 = vand.u32 %v3952, 4294901760
    %6412 = vmatpush1.msra.mxu0 %v6411
    %6413 = vmatprep.subr.mxu0 0.0
    %v6414 = vand.u32 %v3953, 4294901760
    %6415 = vmatpush1.msra.mxu0 %v6414
    %6416 = vmatprep.subr.mxu0 0.0
    %v6417 = vand.u32 %v3954, 4294901760
    %6418 = vmatpush1.msra.mxu0 %v6417
    %v6419 = vand.u32 %v6316, 4294901760
    %v6420 = vsub.f32 %v6316, %v6419
    %v6421 = vand.u32 %v6420, 4294901760
    %v6422 = vsub.f32 %v6420, %v6421
    %v6423 = vand.u32 %v6422, 4294901760
    %6424 = vmatprep.mubr.f32.mxu0 %v6423
    %v6425 = vand.u32 %v6315, 4294901760
    %v6426 = vsub.f32 %v6315, %v6425
    %v6427 = vand.u32 %v6426, 4294901760
    %v6428 = vsub.f32 %v6426, %v6427
    %v6429 = vand.u32 %v6428, 4294901760
    %6430 = vmatmul.mubr.f32.gmra.mrb[0].mxu0 %v6429
    %v6431 = vpop.f32.mrb[0].mxu0
    %v6432 = vadd.f32 0.0, %v6431
    %v6433 = vpop.f32.mrb[0].mxu0
    %6434 = vdwg.mxu0
    %6435 = vmatprep.subr.mxu0 0.0
    %v6436 = vand.u32 %v3923, 4294901760
    %v6437 = vsub.f32 %v3923, %v6436
    %v6438 = vand.u32 %v6437, 4294901760
    %v6439 = vsub.f32 %v6437, %v6438
    %v6440 = vand.u32 %v6439, 4294901760
    %6441 = vmatpush1.msra.mxu0 %v6440
    %6442 = vmatprep.subr.mxu0 0.0
    %v6443 = vand.u32 %v3924, 4294901760
    %v6444 = vsub.f32 %v3924, %v6443
    %v6445 = vand.u32 %v6444, 4294901760
    %v6446 = vsub.f32 %v6444, %v6445
    %v6447 = vand.u32 %v6446, 4294901760
    %6448 = vmatpush1.msra.mxu0 %v6447
    %6449 = vmatprep.subr.mxu0 0.0
    %v6450 = vand.u32 %v3925, 4294901760
    %v6451 = vsub.f32 %v3925, %v6450
    %v6452 = vand.u32 %v6451, 4294901760
    %v6453 = vsub.f32 %v6451, %v6452
    %v6454 = vand.u32 %v6453, 4294901760
    %6455 = vmatpush1.msra.mxu0 %v6454
    %6456 = vmatprep.subr.mxu0 0.0
    %v6457 = vand.u32 %v3926, 4294901760
    %v6458 = vsub.f32 %v3926, %v6457
    %v6459 = vand.u32 %v6458, 4294901760
    %v6460 = vsub.f32 %v6458, %v6459
    %v6461 = vand.u32 %v6460, 4294901760
    %6462 = vmatpush1.msra.mxu0 %v6461
    %6463 = vmatprep.subr.mxu0 0.0
    %v6464 = vand.u32 %v3927, 4294901760
    %v6465 = vsub.f32 %v3927, %v6464
    %v6466 = vand.u32 %v6465, 4294901760
    %v6467 = vsub.f32 %v6465, %v6466
    %v6468 = vand.u32 %v6467, 4294901760
    %6469 = vmatpush1.msra.mxu0 %v6468
    %6470 = vmatprep.subr.mxu0 0.0
    %v6471 = vand.u32 %v3928, 4294901760
    %v6472 = vsub.f32 %v3928, %v6471
    %v6473 = vand.u32 %v6472, 4294901760
    %v6474 = vsub.f32 %v6472, %v6473
    %v6475 = vand.u32 %v6474, 4294901760
    %6476 = vmatpush1.msra.mxu0 %v6475
    %6477 = vmatprep.subr.mxu0 0.0
    %v6478 = vand.u32 %v3929, 4294901760
    %v6479 = vsub.f32 %v3929, %v6478
    %v6480 = vand.u32 %v6479, 4294901760
    %v6481 = vsub.f32 %v6479, %v6480
    %v6482 = vand.u32 %v6481, 4294901760
    %6483 = vmatpush1.msra.mxu0 %v6482
    %6484 = vmatprep.subr.mxu0 0.0
    %v6485 = vand.u32 %v3930, 4294901760
    %v6486 = vsub.f32 %v3930, %v6485
    %v6487 = vand.u32 %v6486, 4294901760
    %v6488 = vsub.f32 %v6486, %v6487
    %v6489 = vand.u32 %v6488, 4294901760
    %6490 = vmatpush1.msra.mxu0 %v6489
    %6491 = vmatprep.subr.mxu0 0.0
    %v6492 = vand.u32 %v3931, 4294901760
    %v6493 = vsub.f32 %v3931, %v6492
    %v6494 = vand.u32 %v6493, 4294901760
    %v6495 = vsub.f32 %v6493, %v6494
    %v6496 = vand.u32 %v6495, 4294901760
    %6497 = vmatpush1.msra.mxu0 %v6496
    %6498 = vmatprep.subr.mxu0 0.0
    %v6499 = vand.u32 %v3932, 4294901760
    %v6500 = vsub.f32 %v3932, %v6499
    %v6501 = vand.u32 %v6500, 4294901760
    %v6502 = vsub.f32 %v6500, %v6501
    %v6503 = vand.u32 %v6502, 4294901760
    %6504 = vmatpush1.msra.mxu0 %v6503
    %6505 = vmatprep.subr.mxu0 0.0
    %v6506 = vand.u32 %v3933, 4294901760
    %v6507 = vsub.f32 %v3933, %v6506
    %v6508 = vand.u32 %v6507, 4294901760
    %v6509 = vsub.f32 %v6507, %v6508
    %v6510 = vand.u32 %v6509, 4294901760
    %6511 = vmatpush1.msra.mxu0 %v6510
    %6512 = vmatprep.subr.mxu0 0.0
    %v6513 = vand.u32 %v3934, 4294901760
    %v6514 = vsub.f32 %v3934, %v6513
    %v6515 = vand.u32 %v6514, 4294901760
    %v6516 = vsub.f32 %v6514, %v6515
    %v6517 = vand.u32 %v6516, 4294901760
    %6518 = vmatpush1.msra.mxu0 %v6517
    %6519 = vmatprep.subr.mxu0 0.0
    %v6520 = vand.u32 %v3935, 4294901760
    %v6521 = vsub.f32 %v3935, %v6520
    %v6522 = vand.u32 %v6521, 4294901760
    %v6523 = vsub.f32 %v6521, %v6522
    %v6524 = vand.u32 %v6523, 4294901760
    %6525 = vmatpush1.msra.mxu0 %v6524
    %6526 = vmatprep.subr.mxu0 0.0
    %v6527 = vand.u32 %v3936, 4294901760
    %v6528 = vsub.f32 %v3936, %v6527
    %v6529 = vand.u32 %v6528, 4294901760
    %v6530 = vsub.f32 %v6528, %v6529
    %v6531 = vand.u32 %v6530, 4294901760
    %6532 = vmatpush1.msra.mxu0 %v6531
    %6533 = vmatprep.subr.mxu0 0.0
    %v6534 = vand.u32 %v3937, 4294901760
    %v6535 = vsub.f32 %v3937, %v6534
    %v6536 = vand.u32 %v6535, 4294901760
    %v6537 = vsub.f32 %v6535, %v6536
    %v6538 = vand.u32 %v6537, 4294901760
    %6539 = vmatpush1.msra.mxu0 %v6538
    %6540 = vmatprep.subr.mxu0 0.0
    %v6541 = vand.u32 %v3938, 4294901760
    %v6542 = vsub.f32 %v3938, %v6541
    %v6543 = vand.u32 %v6542, 4294901760
    %v6544 = vsub.f32 %v6542, %v6543
    %v6545 = vand.u32 %v6544, 4294901760
    %6546 = vmatpush1.msra.mxu0 %v6545
    %6547 = vmatprep.subr.mxu0 0.0
    %v6548 = vand.u32 %v3939, 4294901760
    %v6549 = vsub.f32 %v3939, %v6548
    %v6550 = vand.u32 %v6549, 4294901760
    %v6551 = vsub.f32 %v6549, %v6550
    %v6552 = vand.u32 %v6551, 4294901760
    %6553 = vmatpush1.msra.mxu0 %v6552
    %6554 = vmatprep.subr.mxu0 0.0
    %v6555 = vand.u32 %v3940, 4294901760
    %v6556 = vsub.f32 %v3940, %v6555
    %v6557 = vand.u32 %v6556, 4294901760
    %v6558 = vsub.f32 %v6556, %v6557
    %v6559 = vand.u32 %v6558, 4294901760
    %6560 = vmatpush1.msra.mxu0 %v6559
    %6561 = vmatprep.subr.mxu0 0.0
    %v6562 = vand.u32 %v3941, 4294901760
    %v6563 = vsub.f32 %v3941, %v6562
    %v6564 = vand.u32 %v6563, 4294901760
    %v6565 = vsub.f32 %v6563, %v6564
    %v6566 = vand.u32 %v6565, 4294901760
    %6567 = vmatpush1.msra.mxu0 %v6566
    %6568 = vmatprep.subr.mxu0 0.0
    %v6569 = vand.u32 %v3942, 4294901760
    %v6570 = vsub.f32 %v3942, %v6569
    %v6571 = vand.u32 %v6570, 4294901760
    %v6572 = vsub.f32 %v6570, %v6571
    %v6573 = vand.u32 %v6572, 4294901760
    %6574 = vmatpush1.msra.mxu0 %v6573
    %6575 = vmatprep.subr.mxu0 0.0
    %v6576 = vand.u32 %v3943, 4294901760
    %v6577 = vsub.f32 %v3943, %v6576
    %v6578 = vand.u32 %v6577, 4294901760
    %v6579 = vsub.f32 %v6577, %v6578
    %v6580 = vand.u32 %v6579, 4294901760
    %6581 = vmatpush1.msra.mxu0 %v6580
    %6582 = vmatprep.subr.mxu0 0.0
    %v6583 = vand.u32 %v3944, 4294901760
    %v6584 = vsub.f32 %v3944, %v6583
    %v6585 = vand.u32 %v6584, 4294901760
    %v6586 = vsub.f32 %v6584, %v6585
    %v6587 = vand.u32 %v6586, 4294901760
    %6588 = vmatpush1.msra.mxu0 %v6587
    %6589 = vmatprep.subr.mxu0 0.0
    %v6590 = vand.u32 %v3945, 4294901760
    %v6591 = vsub.f32 %v3945, %v6590
    %v6592 = vand.u32 %v6591, 4294901760
    %v6593 = vsub.f32 %v6591, %v6592
    %v6594 = vand.u32 %v6593, 4294901760
    %6595 = vmatpush1.msra.mxu0 %v6594
    %6596 = vmatprep.subr.mxu0 0.0
    %v6597 = vand.u32 %v3946, 4294901760
    %v6598 = vsub.f32 %v3946, %v6597
    %v6599 = vand.u32 %v6598, 4294901760
    %v6600 = vsub.f32 %v6598, %v6599
    %v6601 = vand.u32 %v6600, 4294901760
    %6602 = vmatpush1.msra.mxu0 %v6601
    %6603 = vmatprep.subr.mxu0 0.0
    %v6604 = vand.u32 %v3947, 4294901760
    %v6605 = vsub.f32 %v3947, %v6604
    %v6606 = vand.u32 %v6605, 4294901760
    %v6607 = vsub.f32 %v6605, %v6606
    %v6608 = vand.u32 %v6607, 4294901760
    %6609 = vmatpush1.msra.mxu0 %v6608
    %6610 = vmatprep.subr.mxu0 0.0
    %v6611 = vand.u32 %v3948, 4294901760
    %v6612 = vsub.f32 %v3948, %v6611
    %v6613 = vand.u32 %v6612, 4294901760
    %v6614 = vsub.f32 %v6612, %v6613
    %v6615 = vand.u32 %v6614, 4294901760
    %6616 = vmatpush1.msra.mxu0 %v6615
    %6617 = vmatprep.subr.mxu0 0.0
    %v6618 = vand.u32 %v3949, 4294901760
    %v6619 = vsub.f32 %v3949, %v6618
    %v6620 = vand.u32 %v6619, 4294901760
    %v6621 = vsub.f32 %v6619, %v6620
    %v6622 = vand.u32 %v6621, 4294901760
    %6623 = vmatpush1.msra.mxu0 %v6622
    %6624 = vmatprep.subr.mxu0 0.0
    %v6625 = vand.u32 %v3950, 4294901760
    %v6626 = vsub.f32 %v3950, %v6625
    %v6627 = vand.u32 %v6626, 4294901760
    %v6628 = vsub.f32 %v6626, %v6627
    %v6629 = vand.u32 %v6628, 4294901760
    %6630 = vmatpush1.msra.mxu0 %v6629
    %6631 = vmatprep.subr.mxu0 0.0
    %v6632 = vand.u32 %v3951, 4294901760
    %v6633 = vsub.f32 %v3951, %v6632
    %v6634 = vand.u32 %v6633, 4294901760
    %v6635 = vsub.f32 %v6633, %v6634
    %v6636 = vand.u32 %v6635, 4294901760
    %6637 = vmatpush1.msra.mxu0 %v6636
    %6638 = vmatprep.subr.mxu0 0.0
    %v6639 = vand.u32 %v3952, 4294901760
    %v6640 = vsub.f32 %v3952, %v6639
    %v6641 = vand.u32 %v6640, 4294901760
    %v6642 = vsub.f32 %v6640, %v6641
    %v6643 = vand.u32 %v6642, 4294901760
    %6644 = vmatpush1.msra.mxu0 %v6643
    %6645 = vmatprep.subr.mxu0 0.0
    %v6646 = vand.u32 %v3953, 4294901760
    %v6647 = vsub.f32 %v3953, %v6646
    %v6648 = vand.u32 %v6647, 4294901760
    %v6649 = vsub.f32 %v6647, %v6648
    %v6650 = vand.u32 %v6649, 4294901760
    %6651 = vmatpush1.msra.mxu0 %v6650
    %6652 = vmatprep.subr.mxu0 0.0
    %v6653 = vand.u32 %v3954, 4294901760
    %v6654 = vsub.f32 %v3954, %v6653
    %v6655 = vand.u32 %v6654, 4294901760
    %v6656 = vsub.f32 %v6654, %v6655
    %v6657 = vand.u32 %v6656, 4294901760
    %6658 = vmatpush1.msra.mxu0 %v6657
    %v6659 = vand.u32 %v6316, 4294901760
    %6660 = vmatprep.mubr.f32.mxu0 %v6659
    %v6661 = vand.u32 %v6315, 4294901760
    %6662 = vmatmul.mubr.f32.gmra.mrb[0].mxu0 %v6661
    %v6663 = vpop.f32.mrb[0].mxu0
    %v6664 = vadd.f32 %v6432, %v6663
    %v6665 = vpop.f32.mrb[0].mxu0
    %6666 = vdwg.mxu0
    %6667 = vmatprep.subr.mxu0 0.0
    %v6668 = vand.u32 %v3923, 4294901760
    %v6669 = vsub.f32 %v3923, %v6668
    %6670 = vmatpush1.msra.mxu0 %v6669
    %6671 = vmatprep.subr.mxu0 0.0
    %v6672 = vand.u32 %v3924, 4294901760
    %v6673 = vsub.f32 %v3924, %v6672
    %6674 = vmatpush1.msra.mxu0 %v6673
    %6675 = vmatprep.subr.mxu0 0.0
    %v6676 = vand.u32 %v3925, 4294901760
    %v6677 = vsub.f32 %v3925, %v6676
    %6678 = vmatpush1.msra.mxu0 %v6677
    %6679 = vmatprep.subr.mxu0 0.0
    %v6680 = vand.u32 %v3926, 4294901760
    %v6681 = vsub.f32 %v3926, %v6680
    %6682 = vmatpush1.msra.mxu0 %v6681
    %6683 = vmatprep.subr.mxu0 0.0
    %v6684 = vand.u32 %v3927, 4294901760
    %v6685 = vsub.f32 %v3927, %v6684
    %6686 = vmatpush1.msra.mxu0 %v6685
    %6687 = vmatprep.subr.mxu0 0.0
    %v6688 = vand.u32 %v3928, 4294901760
    %v6689 = vsub.f32 %v3928, %v6688
    %6690 = vmatpush1.msra.mxu0 %v6689
    %6691 = vmatprep.subr.mxu0 0.0
    %v6692 = vand.u32 %v3929, 4294901760
    %v6693 = vsub.f32 %v3929, %v6692
    %6694 = vmatpush1.msra.mxu0 %v6693
    %6695 = vmatprep.subr.mxu0 0.0
    %v6696 = vand.u32 %v3930, 4294901760
    %v6697 = vsub.f32 %v3930, %v6696
    %6698 = vmatpush1.msra.mxu0 %v6697
    %6699 = vmatprep.subr.mxu0 0.0
    %v6700 = vand.u32 %v3931, 4294901760
    %v6701 = vsub.f32 %v3931, %v6700
    %6702 = vmatpush1.msra.mxu0 %v6701
    %6703 = vmatprep.subr.mxu0 0.0
    %v6704 = vand.u32 %v3932, 4294901760
    %v6705 = vsub.f32 %v3932, %v6704
    %6706 = vmatpush1.msra.mxu0 %v6705
    %6707 = vmatprep.subr.mxu0 0.0
    %v6708 = vand.u32 %v3933, 4294901760
    %v6709 = vsub.f32 %v3933, %v6708
    %6710 = vmatpush1.msra.mxu0 %v6709
    %6711 = vmatprep.subr.mxu0 0.0
    %v6712 = vand.u32 %v3934, 4294901760
    %v6713 = vsub.f32 %v3934, %v6712
    %6714 = vmatpush1.msra.mxu0 %v6713
    %6715 = vmatprep.subr.mxu0 0.0
    %v6716 = vand.u32 %v3935, 4294901760
    %v6717 = vsub.f32 %v3935, %v6716
    %6718 = vmatpush1.msra.mxu0 %v6717
    %6719 = vmatprep.subr.mxu0 0.0
    %v6720 = vand.u32 %v3936, 4294901760
    %v6721 = vsub.f32 %v3936, %v6720
    %6722 = vmatpush1.msra.mxu0 %v6721
    %6723 = vmatprep.subr.mxu0 0.0
    %v6724 = vand.u32 %v3937, 4294901760
    %v6725 = vsub.f32 %v3937, %v6724
    %6726 = vmatpush1.msra.mxu0 %v6725
    %6727 = vmatprep.subr.mxu0 0.0
    %v6728 = vand.u32 %v3938, 4294901760
    %v6729 = vsub.f32 %v3938, %v6728
    %6730 = vmatpush1.msra.mxu0 %v6729
    %6731 = vmatprep.subr.mxu0 0.0
    %v6732 = vand.u32 %v3939, 4294901760
    %v6733 = vsub.f32 %v3939, %v6732
    %6734 = vmatpush1.msra.mxu0 %v6733
    %6735 = vmatprep.subr.mxu0 0.0
    %v6736 = vand.u32 %v3940, 4294901760
    %v6737 = vsub.f32 %v3940, %v6736
    %6738 = vmatpush1.msra.mxu0 %v6737
    %6739 = vmatprep.subr.mxu0 0.0
    %v6740 = vand.u32 %v3941, 4294901760
    %v6741 = vsub.f32 %v3941, %v6740
    %6742 = vmatpush1.msra.mxu0 %v6741
    %6743 = vmatprep.subr.mxu0 0.0
    %v6744 = vand.u32 %v3942, 4294901760
    %v6745 = vsub.f32 %v3942, %v6744
    %6746 = vmatpush1.msra.mxu0 %v6745
    %6747 = vmatprep.subr.mxu0 0.0
    %v6748 = vand.u32 %v3943, 4294901760
    %v6749 = vsub.f32 %v3943, %v6748
    %6750 = vmatpush1.msra.mxu0 %v6749
    %6751 = vmatprep.subr.mxu0 0.0
    %v6752 = vand.u32 %v3944, 4294901760
    %v6753 = vsub.f32 %v3944, %v6752
    %6754 = vmatpush1.msra.mxu0 %v6753
    %6755 = vmatprep.subr.mxu0 0.0
    %v6756 = vand.u32 %v3945, 4294901760
    %v6757 = vsub.f32 %v3945, %v6756
    %6758 = vmatpush1.msra.mxu0 %v6757
    %6759 = vmatprep.subr.mxu0 0.0
    %v6760 = vand.u32 %v3946, 4294901760
    %v6761 = vsub.f32 %v3946, %v6760
    %6762 = vmatpush1.msra.mxu0 %v6761
    %6763 = vmatprep.subr.mxu0 0.0
    %v6764 = vand.u32 %v3947, 4294901760
    %v6765 = vsub.f32 %v3947, %v6764
    %6766 = vmatpush1.msra.mxu0 %v6765
    %6767 = vmatprep.subr.mxu0 0.0
    %v6768 = vand.u32 %v3948, 4294901760
    %v6769 = vsub.f32 %v3948, %v6768
    %6770 = vmatpush1.msra.mxu0 %v6769
    %6771 = vmatprep.subr.mxu0 0.0
    %v6772 = vand.u32 %v3949, 4294901760
    %v6773 = vsub.f32 %v3949, %v6772
    %6774 = vmatpush1.msra.mxu0 %v6773
    %6775 = vmatprep.subr.mxu0 0.0
    %v6776 = vand.u32 %v3950, 4294901760
    %v6777 = vsub.f32 %v3950, %v6776
    %6778 = vmatpush1.msra.mxu0 %v6777
    %6779 = vmatprep.subr.mxu0 0.0
    %v6780 = vand.u32 %v3951, 4294901760
    %v6781 = vsub.f32 %v3951, %v6780
    %6782 = vmatpush1.msra.mxu0 %v6781
    %6783 = vmatprep.subr.mxu0 0.0
    %v6784 = vand.u32 %v3952, 4294901760
    %v6785 = vsub.f32 %v3952, %v6784
    %6786 = vmatpush1.msra.mxu0 %v6785
    %6787 = vmatprep.subr.mxu0 0.0
    %v6788 = vand.u32 %v3953, 4294901760
    %v6789 = vsub.f32 %v3953, %v6788
    %6790 = vmatpush1.msra.mxu0 %v6789
    %6791 = vmatprep.subr.mxu0 0.0
    %v6792 = vand.u32 %v3954, 4294901760
    %v6793 = vsub.f32 %v3954, %v6792
    %6794 = vmatpush1.msra.mxu0 %v6793
    %v6795 = vand.u32 %v6316, 4294901760
    %v6796 = vsub.f32 %v6316, %v6795
    %6797 = vmatprep.mubr.f32.mxu0 %v6796
    %v6798 = vand.u32 %v6315, 4294901760
    %v6799 = vsub.f32 %v6315, %v6798
    %6800 = vmatmul.mubr.f32.gmra.mrb[0].mxu0 %v6799
    %v6801 = vpop.f32.mrb[0].mxu0
    %v6802 = vadd.f32 %v6664, %v6801
    %v6803 = vpop.f32.mrb[0].mxu0
    %6804 = vdwg.mxu0
    %6805 = vmatprep.subr.mxu0 0.0
    %v6806 = vand.u32 %v3923, 4294901760
    %6807 = vmatpush1.msra.mxu0 %v6806
    %6808 = vmatprep.subr.mxu0 0.0
    %v6809 = vand.u32 %v3924, 4294901760
    %6810 = vmatpush1.msra.mxu0 %v6809
    %6811 = vmatprep.subr.mxu0 0.0
    %v6812 = vand.u32 %v3925, 4294901760
    %6813 = vmatpush1.msra.mxu0 %v6812
    %6814 = vmatprep.subr.mxu0 0.0
    %v6815 = vand.u32 %v3926, 4294901760
    %6816 = vmatpush1.msra.mxu0 %v6815
    %6817 = vmatprep.subr.mxu0 0.0
    %v6818 = vand.u32 %v3927, 4294901760
    %6819 = vmatpush1.msra.mxu0 %v6818
    %6820 = vmatprep.subr.mxu0 0.0
    %v6821 = vand.u32 %v3928, 4294901760
    %6822 = vmatpush1.msra.mxu0 %v6821
    %6823 = vmatprep.subr.mxu0 0.0
    %v6824 = vand.u32 %v3929, 4294901760
    %6825 = vmatpush1.msra.mxu0 %v6824
    %6826 = vmatprep.subr.mxu0 0.0
    %v6827 = vand.u32 %v3930, 4294901760
    %6828 = vmatpush1.msra.mxu0 %v6827
    %6829 = vmatprep.subr.mxu0 0.0
    %v6830 = vand.u32 %v3931, 4294901760
    %6831 = vmatpush1.msra.mxu0 %v6830
    %6832 = vmatprep.subr.mxu0 0.0
    %v6833 = vand.u32 %v3932, 4294901760
    %6834 = vmatpush1.msra.mxu0 %v6833
    %6835 = vmatprep.subr.mxu0 0.0
    %v6836 = vand.u32 %v3933, 4294901760
    %6837 = vmatpush1.msra.mxu0 %v6836
    %6838 = vmatprep.subr.mxu0 0.0
    %v6839 = vand.u32 %v3934, 4294901760
    %6840 = vmatpush1.msra.mxu0 %v6839
    %6841 = vmatprep.subr.mxu0 0.0
    %v6842 = vand.u32 %v3935, 4294901760
    %6843 = vmatpush1.msra.mxu0 %v6842
    %6844 = vmatprep.subr.mxu0 0.0
    %v6845 = vand.u32 %v3936, 4294901760
    %6846 = vmatpush1.msra.mxu0 %v6845
    %6847 = vmatprep.subr.mxu0 0.0
    %v6848 = vand.u32 %v3937, 4294901760
    %6849 = vmatpush1.msra.mxu0 %v6848
    %6850 = vmatprep.subr.mxu0 0.0
    %v6851 = vand.u32 %v3938, 4294901760
    %6852 = vmatpush1.msra.mxu0 %v6851
    %6853 = vmatprep.subr.mxu0 0.0
    %v6854 = vand.u32 %v3939, 4294901760
    %6855 = vmatpush1.msra.mxu0 %v6854
    %6856 = vmatprep.subr.mxu0 0.0
    %v6857 = vand.u32 %v3940, 4294901760
    %6858 = vmatpush1.msra.mxu0 %v6857
    %6859 = vmatprep.subr.mxu0 0.0
    %v6860 = vand.u32 %v3941, 4294901760
    %6861 = vmatpush1.msra.mxu0 %v6860
    %6862 = vmatprep.subr.mxu0 0.0
    %v6863 = vand.u32 %v3942, 4294901760
    %6864 = vmatpush1.msra.mxu0 %v6863
    %6865 = vmatprep.subr.mxu0 0.0
    %v6866 = vand.u32 %v3943, 4294901760
    %6867 = vmatpush1.msra.mxu0 %v6866
    %6868 = vmatprep.subr.mxu0 0.0
    %v6869 = vand.u32 %v3944, 4294901760
    %6870 = vmatpush1.msra.mxu0 %v6869
    %6871 = vmatprep.subr.mxu0 0.0
    %v6872 = vand.u32 %v3945, 4294901760
    %6873 = vmatpush1.msra.mxu0 %v6872
    %6874 = vmatprep.subr.mxu0 0.0
    %v6875 = vand.u32 %v3946, 4294901760
    %6876 = vmatpush1.msra.mxu0 %v6875
    %6877 = vmatprep.subr.mxu0 0.0
    %v6878 = vand.u32 %v3947, 4294901760
    %6879 = vmatpush1.msra.mxu0 %v6878
    %6880 = vmatprep.subr.mxu0 0.0
    %v6881 = vand.u32 %v3948, 4294901760
    %6882 = vmatpush1.msra.mxu0 %v6881
    %6883 = vmatprep.subr.mxu0 0.0
    %v6884 = vand.u32 %v3949, 4294901760
    %6885 = vmatpush1.msra.mxu0 %v6884
    %6886 = vmatprep.subr.mxu0 0.0
    %v6887 = vand.u32 %v3950, 4294901760
    %6888 = vmatpush1.msra.mxu0 %v6887
    %6889 = vmatprep.subr.mxu0 0.0
    %v6890 = vand.u32 %v3951, 4294901760
    %6891 = vmatpush1.msra.mxu0 %v6890
    %6892 = vmatprep.subr.mxu0 0.0
    %v6893 = vand.u32 %v3952, 4294901760
    %6894 = vmatpush1.msra.mxu0 %v6893
    %6895 = vmatprep.subr.mxu0 0.0
    %v6896 = vand.u32 %v3953, 4294901760
    %6897 = vmatpush1.msra.mxu0 %v6896
    %6898 = vmatprep.subr.mxu0 0.0
    %v6899 = vand.u32 %v3954, 4294901760
    %6900 = vmatpush1.msra.mxu0 %v6899
    %v6901 = vand.u32 %v6316, 4294901760
    %v6902 = vsub.f32 %v6316, %v6901
    %v6903 = vand.u32 %v6902, 4294901760
    %6904 = vmatprep.mubr.f32.mxu0 %v6903
    %v6905 = vand.u32 %v6315, 4294901760
    %v6906 = vsub.f32 %v6315, %v6905
    %v6907 = vand.u32 %v6906, 4294901760
    %6908 = vmatmul.mubr.f32.gmra.mrb[0].mxu0 %v6907
    %v6909 = vpop.f32.mrb[0].mxu0
    %v6910 = vadd.f32 %v6802, %v6909
    %v6911 = vpop.f32.mrb[0].mxu0
    %6912 = vdwg.mxu0
    %6913 = vmatprep.subr.mxu0 0.0
    %v6914 = vand.u32 %v3923, 4294901760
    %v6915 = vsub.f32 %v3923, %v6914
    %v6916 = vand.u32 %v6915, 4294901760
    %6917 = vmatpush1.msra.mxu0 %v6916
    %6918 = vmatprep.subr.mxu0 0.0
    %v6919 = vand.u32 %v3924, 4294901760
    %v6920 = vsub.f32 %v3924, %v6919
    %v6921 = vand.u32 %v6920, 4294901760
    %6922 = vmatpush1.msra.mxu0 %v6921
    %6923 = vmatprep.subr.mxu0 0.0
    %v6924 = vand.u32 %v3925, 4294901760
    %v6925 = vsub.f32 %v3925, %v6924
    %v6926 = vand.u32 %v6925, 4294901760
    %6927 = vmatpush1.msra.mxu0 %v6926
    %6928 = vmatprep.subr.mxu0 0.0
    %v6929 = vand.u32 %v3926, 4294901760
    %v6930 = vsub.f32 %v3926, %v6929
    %v6931 = vand.u32 %v6930, 4294901760
    %6932 = vmatpush1.msra.mxu0 %v6931
    %6933 = vmatprep.subr.mxu0 0.0
    %v6934 = vand.u32 %v3927, 4294901760
    %v6935 = vsub.f32 %v3927, %v6934
    %v6936 = vand.u32 %v6935, 4294901760
    %6937 = vmatpush1.msra.mxu0 %v6936
    %6938 = vmatprep.subr.mxu0 0.0
    %v6939 = vand.u32 %v3928, 4294901760
    %v6940 = vsub.f32 %v3928, %v6939
    %v6941 = vand.u32 %v6940, 4294901760
    %6942 = vmatpush1.msra.mxu0 %v6941
    %6943 = vmatprep.subr.mxu0 0.0
    %v6944 = vand.u32 %v3929, 4294901760
    %v6945 = vsub.f32 %v3929, %v6944
    %v6946 = vand.u32 %v6945, 4294901760
    %6947 = vmatpush1.msra.mxu0 %v6946
    %6948 = vmatprep.subr.mxu0 0.0
    %v6949 = vand.u32 %v3930, 4294901760
    %v6950 = vsub.f32 %v3930, %v6949
    %v6951 = vand.u32 %v6950, 4294901760
    %6952 = vmatpush1.msra.mxu0 %v6951
    %6953 = vmatprep.subr.mxu0 0.0
    %v6954 = vand.u32 %v3931, 4294901760
    %v6955 = vsub.f32 %v3931, %v6954
    %v6956 = vand.u32 %v6955, 4294901760
    %6957 = vmatpush1.msra.mxu0 %v6956
    %6958 = vmatprep.subr.mxu0 0.0
    %v6959 = vand.u32 %v3932, 4294901760
    %v6960 = vsub.f32 %v3932, %v6959
    %v6961 = vand.u32 %v6960, 4294901760
    %6962 = vmatpush1.msra.mxu0 %v6961
    %6963 = vmatprep.subr.mxu0 0.0
    %v6964 = vand.u32 %v3933, 4294901760
    %v6965 = vsub.f32 %v3933, %v6964
    %v6966 = vand.u32 %v6965, 4294901760
    %6967 = vmatpush1.msra.mxu0 %v6966
    %6968 = vmatprep.subr.mxu0 0.0
    %v6969 = vand.u32 %v3934, 4294901760
    %v6970 = vsub.f32 %v3934, %v6969
    %v6971 = vand.u32 %v6970, 4294901760
    %6972 = vmatpush1.msra.mxu0 %v6971
    %6973 = vmatprep.subr.mxu0 0.0
    %v6974 = vand.u32 %v3935, 4294901760
    %v6975 = vsub.f32 %v3935, %v6974
    %v6976 = vand.u32 %v6975, 4294901760
    %6977 = vmatpush1.msra.mxu0 %v6976
    %6978 = vmatprep.subr.mxu0 0.0
    %v6979 = vand.u32 %v3936, 4294901760
    %v6980 = vsub.f32 %v3936, %v6979
    %v6981 = vand.u32 %v6980, 4294901760
    %6982 = vmatpush1.msra.mxu0 %v6981
    %6983 = vmatprep.subr.mxu0 0.0
    %v6984 = vand.u32 %v3937, 4294901760
    %v6985 = vsub.f32 %v3937, %v6984
    %v6986 = vand.u32 %v6985, 4294901760
    %6987 = vmatpush1.msra.mxu0 %v6986
    %6988 = vmatprep.subr.mxu0 0.0
    %v6989 = vand.u32 %v3938, 4294901760
    %v6990 = vsub.f32 %v3938, %v6989
    %v6991 = vand.u32 %v6990, 4294901760
    %6992 = vmatpush1.msra.mxu0 %v6991
    %6993 = vmatprep.subr.mxu0 0.0
    %v6994 = vand.u32 %v3939, 4294901760
    %v6995 = vsub.f32 %v3939, %v6994
    %v6996 = vand.u32 %v6995, 4294901760
    %6997 = vmatpush1.msra.mxu0 %v6996
    %6998 = vmatprep.subr.mxu0 0.0
    %v6999 = vand.u32 %v3940, 4294901760
    %v7000 = vsub.f32 %v3940, %v6999
    %v7001 = vand.u32 %v7000, 4294901760
    %7002 = vmatpush1.msra.mxu0 %v7001
    %7003 = vmatprep.subr.mxu0 0.0
    %v7004 = vand.u32 %v3941, 4294901760
    %v7005 = vsub.f32 %v3941, %v7004
    %v7006 = vand.u32 %v7005, 4294901760
    %7007 = vmatpush1.msra.mxu0 %v7006
    %7008 = vmatprep.subr.mxu0 0.0
    %v7009 = vand.u32 %v3942, 4294901760
    %v7010 = vsub.f32 %v3942, %v7009
    %v7011 = vand.u32 %v7010, 4294901760
    %7012 = vmatpush1.msra.mxu0 %v7011
    %7013 = vmatprep.subr.mxu0 0.0
    %v7014 = vand.u32 %v3943, 4294901760
    %v7015 = vsub.f32 %v3943, %v7014
    %v7016 = vand.u32 %v7015, 4294901760
    %7017 = vmatpush1.msra.mxu0 %v7016
    %7018 = vmatprep.subr.mxu0 0.0
    %v7019 = vand.u32 %v3944, 4294901760
    %v7020 = vsub.f32 %v3944, %v7019
    %v7021 = vand.u32 %v7020, 4294901760
    %7022 = vmatpush1.msra.mxu0 %v7021
    %7023 = vmatprep.subr.mxu0 0.0
    %v7024 = vand.u32 %v3945, 4294901760
    %v7025 = vsub.f32 %v3945, %v7024
    %v7026 = vand.u32 %v7025, 4294901760
    %7027 = vmatpush1.msra.mxu0 %v7026
    %7028 = vmatprep.subr.mxu0 0.0
    %v7029 = vand.u32 %v3946, 4294901760
    %v7030 = vsub.f32 %v3946, %v7029
    %v7031 = vand.u32 %v7030, 4294901760
    %7032 = vmatpush1.msra.mxu0 %v7031
    %7033 = vmatprep.subr.mxu0 0.0
    %v7034 = vand.u32 %v3947, 4294901760
    %v7035 = vsub.f32 %v3947, %v7034
    %v7036 = vand.u32 %v7035, 4294901760
    %7037 = vmatpush1.msra.mxu0 %v7036
    %7038 = vmatprep.subr.mxu0 0.0
    %v7039 = vand.u32 %v3948, 4294901760
    %v7040 = vsub.f32 %v3948, %v7039
    %v7041 = vand.u32 %v7040, 4294901760
    %7042 = vmatpush1.msra.mxu0 %v7041
    %7043 = vmatprep.subr.mxu0 0.0
    %v7044 = vand.u32 %v3949, 4294901760
    %v7045 = vsub.f32 %v3949, %v7044
    %v7046 = vand.u32 %v7045, 4294901760
    %7047 = vmatpush1.msra.mxu0 %v7046
    %7048 = vmatprep.subr.mxu0 0.0
    %v7049 = vand.u32 %v3950, 4294901760
    %v7050 = vsub.f32 %v3950, %v7049
    %v7051 = vand.u32 %v7050, 4294901760
    %7052 = vmatpush1.msra.mxu0 %v7051
    %7053 = vmatprep.subr.mxu0 0.0
    %v7054 = vand.u32 %v3951, 4294901760
    %v7055 = vsub.f32 %v3951, %v7054
    %v7056 = vand.u32 %v7055, 4294901760
    %7057 = vmatpush1.msra.mxu0 %v7056
    %7058 = vmatprep.subr.mxu0 0.0
    %v7059 = vand.u32 %v3952, 4294901760
    %v7060 = vsub.f32 %v3952, %v7059
    %v7061 = vand.u32 %v7060, 4294901760
    %7062 = vmatpush1.msra.mxu0 %v7061
    %7063 = vmatprep.subr.mxu0 0.0
    %v7064 = vand.u32 %v3953, 4294901760
    %v7065 = vsub.f32 %v3953, %v7064
    %v7066 = vand.u32 %v7065, 4294901760
    %7067 = vmatpush1.msra.mxu0 %v7066
    %7068 = vmatprep.subr.mxu0 0.0
    %v7069 = vand.u32 %v3954, 4294901760
    %v7070 = vsub.f32 %v3954, %v7069
    %v7071 = vand.u32 %v7070, 4294901760
    %7072 = vmatpush1.msra.mxu0 %v7071
    %v7073 = vand.u32 %v6316, 4294901760
    %7074 = vmatprep.mubr.f32.mxu0 %v7073
    %v7075 = vand.u32 %v6315, 4294901760
    %7076 = vmatmul.mubr.f32.gmra.mrb[0].mxu0 %v7075
    %v7077 = vpop.f32.mrb[0].mxu0
    %v7078 = vadd.f32 %v6910, %v7077
    %v7079 = vpop.f32.mrb[0].mxu0
    %7080 = vdwg.mxu0
    %7081 = vmatprep.subr.mxu0 0.0
    %v7082 = vand.u32 %v3923, 4294901760
    %7083 = vmatpush1.msra.mxu0 %v7082
    %7084 = vmatprep.subr.mxu0 0.0
    %v7085 = vand.u32 %v3924, 4294901760
    %7086 = vmatpush1.msra.mxu0 %v7085
    %7087 = vmatprep.subr.mxu0 0.0
    %v7088 = vand.u32 %v3925, 4294901760
    %7089 = vmatpush1.msra.mxu0 %v7088
    %7090 = vmatprep.subr.mxu0 0.0
    %v7091 = vand.u32 %v3926, 4294901760
    %7092 = vmatpush1.msra.mxu0 %v7091
    %7093 = vmatprep.subr.mxu0 0.0
    %v7094 = vand.u32 %v3927, 4294901760
    %7095 = vmatpush1.msra.mxu0 %v7094
    %7096 = vmatprep.subr.mxu0 0.0
    %v7097 = vand.u32 %v3928, 4294901760
    %7098 = vmatpush1.msra.mxu0 %v7097
    %7099 = vmatprep.subr.mxu0 0.0
    %v7100 = vand.u32 %v3929, 4294901760
    %7101 = vmatpush1.msra.mxu0 %v7100
    %7102 = vmatprep.subr.mxu0 0.0
    %v7103 = vand.u32 %v3930, 4294901760
    %7104 = vmatpush1.msra.mxu0 %v7103
    %7105 = vmatprep.subr.mxu0 0.0
    %v7106 = vand.u32 %v3931, 4294901760
    %7107 = vmatpush1.msra.mxu0 %v7106
    %7108 = vmatprep.subr.mxu0 0.0
    %v7109 = vand.u32 %v3932, 4294901760
    %7110 = vmatpush1.msra.mxu0 %v7109
    %7111 = vmatprep.subr.mxu0 0.0
    %v7112 = vand.u32 %v3933, 4294901760
    %7113 = vmatpush1.msra.mxu0 %v7112
    %7114 = vmatprep.subr.mxu0 0.0
    %v7115 = vand.u32 %v3934, 4294901760
    %7116 = vmatpush1.msra.mxu0 %v7115
    %7117 = vmatprep.subr.mxu0 0.0
    %v7118 = vand.u32 %v3935, 4294901760
    %7119 = vmatpush1.msra.mxu0 %v7118
    %7120 = vmatprep.subr.mxu0 0.0
    %v7121 = vand.u32 %v3936, 4294901760
    %7122 = vmatpush1.msra.mxu0 %v7121
    %7123 = vmatprep.subr.mxu0 0.0
    %v7124 = vand.u32 %v3937, 4294901760
    %7125 = vmatpush1.msra.mxu0 %v7124
    %7126 = vmatprep.subr.mxu0 0.0
    %v7127 = vand.u32 %v3938, 4294901760
    %7128 = vmatpush1.msra.mxu0 %v7127
    %7129 = vmatprep.subr.mxu0 0.0
    %v7130 = vand.u32 %v3939, 4294901760
    %7131 = vmatpush1.msra.mxu0 %v7130
    %7132 = vmatprep.subr.mxu0 0.0
    %v7133 = vand.u32 %v3940, 4294901760
    %7134 = vmatpush1.msra.mxu0 %v7133
    %7135 = vmatprep.subr.mxu0 0.0
    %v7136 = vand.u32 %v3941, 4294901760
    %7137 = vmatpush1.msra.mxu0 %v7136
    %7138 = vmatprep.subr.mxu0 0.0
    %v7139 = vand.u32 %v3942, 4294901760
    %7140 = vmatpush1.msra.mxu0 %v7139
    %7141 = vmatprep.subr.mxu0 0.0
    %v7142 = vand.u32 %v3943, 4294901760
    %7143 = vmatpush1.msra.mxu0 %v7142
    %7144 = vmatprep.subr.mxu0 0.0
    %v7145 = vand.u32 %v3944, 4294901760
    %7146 = vmatpush1.msra.mxu0 %v7145
    %7147 = vmatprep.subr.mxu0 0.0
    %v7148 = vand.u32 %v3945, 4294901760
    %7149 = vmatpush1.msra.mxu0 %v7148
    %7150 = vmatprep.subr.mxu0 0.0
    %v7151 = vand.u32 %v3946, 4294901760
    %7152 = vmatpush1.msra.mxu0 %v7151
    %7153 = vmatprep.subr.mxu0 0.0
    %v7154 = vand.u32 %v3947, 4294901760
    %7155 = vmatpush1.msra.mxu0 %v7154
    %7156 = vmatprep.subr.mxu0 0.0
    %v7157 = vand.u32 %v3948, 4294901760
    %7158 = vmatpush1.msra.mxu0 %v7157
    %7159 = vmatprep.subr.mxu0 0.0
    %v7160 = vand.u32 %v3949, 4294901760
    %7161 = vmatpush1.msra.mxu0 %v7160
    %7162 = vmatprep.subr.mxu0 0.0
    %v7163 = vand.u32 %v3950, 4294901760
    %7164 = vmatpush1.msra.mxu0 %v7163
    %7165 = vmatprep.subr.mxu0 0.0
    %v7166 = vand.u32 %v3951, 4294901760
    %7167 = vmatpush1.msra.mxu0 %v7166
    %7168 = vmatprep.subr.mxu0 0.0
    %v7169 = vand.u32 %v3952, 4294901760
    %7170 = vmatpush1.msra.mxu0 %v7169
    %7171 = vmatprep.subr.mxu0 0.0
    %v7172 = vand.u32 %v3953, 4294901760
    %7173 = vmatpush1.msra.mxu0 %v7172
    %7174 = vmatprep.subr.mxu0 0.0
    %v7175 = vand.u32 %v3954, 4294901760
    %7176 = vmatpush1.msra.mxu0 %v7175
    %v7177 = vand.u32 %v6316, 4294901760
    %7178 = vmatprep.mubr.f32.mxu0 %v7177
    %v7179 = vand.u32 %v6315, 4294901760
    %7180 = vmatmul.mubr.f32.gmra.mrb[0].mxu0 %v7179
    %v7181 = vpop.f32.mrb[0].mxu0
    %v7182 = vadd.f32 %v7078, %v7181
    %v7183 = vpop.f32.mrb[0].mxu0
    %7184 = vdwg.mxu0
    %7185 = vmatprep.subr.mxu0 0.0
    %v7186 = vand.u32 %v3955, 4294901760
    %7187 = vmatpush1.msra.mxu0 %v7186
    %7188 = vmatprep.subr.mxu0 0.0
    %v7189 = vand.u32 %v3956, 4294901760
    %7190 = vmatpush1.msra.mxu0 %v7189
    %7191 = vmatprep.subr.mxu0 0.0
    %v7192 = vand.u32 %v3957, 4294901760
    %7193 = vmatpush1.msra.mxu0 %v7192
    %7194 = vmatprep.subr.mxu0 0.0
    %v7195 = vand.u32 %v3958, 4294901760
    %7196 = vmatpush1.msra.mxu0 %v7195
    %7197 = vmatprep.subr.mxu0 0.0
    %v7198 = vand.u32 %v3959, 4294901760
    %7199 = vmatpush1.msra.mxu0 %v7198
    %7200 = vmatprep.subr.mxu0 0.0
    %v7201 = vand.u32 %v3960, 4294901760
    %7202 = vmatpush1.msra.mxu0 %v7201
    %7203 = vmatprep.subr.mxu0 0.0
    %v7204 = vand.u32 %v3961, 4294901760
    %7205 = vmatpush1.msra.mxu0 %v7204
    %7206 = vmatprep.subr.mxu0 0.0
    %v7207 = vand.u32 %v3962, 4294901760
    %7208 = vmatpush1.msra.mxu0 %v7207
    %7209 = vmatprep.subr.mxu0 0.0
    %v7210 = vand.u32 %v3963, 4294901760
    %7211 = vmatpush1.msra.mxu0 %v7210
    %7212 = vmatprep.subr.mxu0 0.0
    %v7213 = vand.u32 %v3964, 4294901760
    %7214 = vmatpush1.msra.mxu0 %v7213
    %7215 = vmatprep.subr.mxu0 0.0
    %v7216 = vand.u32 %v3965, 4294901760
    %7217 = vmatpush1.msra.mxu0 %v7216
    %7218 = vmatprep.subr.mxu0 0.0
    %v7219 = vand.u32 %v3966, 4294901760
    %7220 = vmatpush1.msra.mxu0 %v7219
    %7221 = vmatprep.subr.mxu0 0.0
    %v7222 = vand.u32 %v3967, 4294901760
    %7223 = vmatpush1.msra.mxu0 %v7222
    %7224 = vmatprep.subr.mxu0 0.0
    %v7225 = vand.u32 %v3968, 4294901760
    %7226 = vmatpush1.msra.mxu0 %v7225
    %7227 = vmatprep.subr.mxu0 0.0
    %v7228 = vand.u32 %v3969, 4294901760
    %7229 = vmatpush1.msra.mxu0 %v7228
    %7230 = vmatprep.subr.mxu0 0.0
    %v7231 = vand.u32 %v3970, 4294901760
    %7232 = vmatpush1.msra.mxu0 %v7231
    %7233 = vmatprep.subr.mxu0 0.0
    %v7234 = vand.u32 %v3971, 4294901760
    %7235 = vmatpush1.msra.mxu0 %v7234
    %7236 = vmatprep.subr.mxu0 0.0
    %v7237 = vand.u32 %v3972, 4294901760
    %7238 = vmatpush1.msra.mxu0 %v7237
    %7239 = vmatprep.subr.mxu0 0.0
    %v7240 = vand.u32 %v3973, 4294901760
    %7241 = vmatpush1.msra.mxu0 %v7240
    %7242 = vmatprep.subr.mxu0 0.0
    %v7243 = vand.u32 %v3974, 4294901760
    %7244 = vmatpush1.msra.mxu0 %v7243
    %7245 = vmatprep.subr.mxu0 0.0
    %v7246 = vand.u32 %v3975, 4294901760
    %7247 = vmatpush1.msra.mxu0 %v7246
    %7248 = vmatprep.subr.mxu0 0.0
    %v7249 = vand.u32 %v3976, 4294901760
    %7250 = vmatpush1.msra.mxu0 %v7249
    %7251 = vmatprep.subr.mxu0 0.0
    %v7252 = vand.u32 %v3977, 4294901760
    %7253 = vmatpush1.msra.mxu0 %v7252
    %7254 = vmatprep.subr.mxu0 0.0
    %v7255 = vand.u32 %v3978, 4294901760
    %7256 = vmatpush1.msra.mxu0 %v7255
    %7257 = vmatprep.subr.mxu0 0.0
    %v7258 = vand.u32 %v3979, 4294901760
    %7259 = vmatpush1.msra.mxu0 %v7258
    %7260 = vmatprep.subr.mxu0 0.0
    %v7261 = vand.u32 %v3980, 4294901760
    %7262 = vmatpush1.msra.mxu0 %v7261
    %7263 = vmatprep.subr.mxu0 0.0
    %v7264 = vand.u32 %v3981, 4294901760
    %7265 = vmatpush1.msra.mxu0 %v7264
    %7266 = vmatprep.subr.mxu0 0.0
    %v7267 = vand.u32 %v3982, 4294901760
    %7268 = vmatpush1.msra.mxu0 %v7267
    %7269 = vmatprep.subr.mxu0 0.0
    %v7270 = vand.u32 %v3983, 4294901760
    %7271 = vmatpush1.msra.mxu0 %v7270
    %7272 = vmatprep.subr.mxu0 0.0
    %v7273 = vand.u32 %v3984, 4294901760
    %7274 = vmatpush1.msra.mxu0 %v7273
    %7275 = vmatprep.subr.mxu0 0.0
    %v7276 = vand.u32 %v3985, 4294901760
    %7277 = vmatpush1.msra.mxu0 %v7276
    %7278 = vmatprep.subr.mxu0 0.0
    %v7279 = vand.u32 %v3986, 4294901760
    %7280 = vmatpush1.msra.mxu0 %v7279
    %v7281 = vand.u32 %v6318, 4294901760
    %v7282 = vsub.f32 %v6318, %v7281
    %v7283 = vand.u32 %v7282, 4294901760
    %v7284 = vsub.f32 %v7282, %v7283
    %v7285 = vand.u32 %v7284, 4294901760
    %7286 = vmatprep.mubr.f32.mxu0 %v7285
    %v7287 = vand.u32 %v6317, 4294901760
    %v7288 = vsub.f32 %v6317, %v7287
    %v7289 = vand.u32 %v7288, 4294901760
    %v7290 = vsub.f32 %v7288, %v7289
    %v7291 = vand.u32 %v7290, 4294901760
    %7292 = vmatmul.mubr.f32.gmra.mrb[0].mxu0 %v7291
    %v7293 = vpop.f32.mrb[0].mxu0
    %v7294 = vadd.f32 %v7182, %v7293
    %v7295 = vpop.f32.mrb[0].mxu0
    %7296 = vdwg.mxu0
    %7297 = vmatprep.subr.mxu0 0.0
    %v7298 = vand.u32 %v3955, 4294901760
    %v7299 = vsub.f32 %v3955, %v7298
    %v7300 = vand.u32 %v7299, 4294901760
    %v7301 = vsub.f32 %v7299, %v7300
    %v7302 = vand.u32 %v7301, 4294901760
    %7303 = vmatpush1.msra.mxu0 %v7302
    %7304 = vmatprep.subr.mxu0 0.0
    %v7305 = vand.u32 %v3956, 4294901760
    %v7306 = vsub.f32 %v3956, %v7305
    %v7307 = vand.u32 %v7306, 4294901760
    %v7308 = vsub.f32 %v7306, %v7307
    %v7309 = vand.u32 %v7308, 4294901760
    %7310 = vmatpush1.msra.mxu0 %v7309
    %7311 = vmatprep.subr.mxu0 0.0
    %v7312 = vand.u32 %v3957, 4294901760
    %v7313 = vsub.f32 %v3957, %v7312
    %v7314 = vand.u32 %v7313, 4294901760
    %v7315 = vsub.f32 %v7313, %v7314
    %v7316 = vand.u32 %v7315, 4294901760
    %7317 = vmatpush1.msra.mxu0 %v7316
    %7318 = vmatprep.subr.mxu0 0.0
    %v7319 = vand.u32 %v3958, 4294901760
    %v7320 = vsub.f32 %v3958, %v7319
    %v7321 = vand.u32 %v7320, 4294901760
    %v7322 = vsub.f32 %v7320, %v7321
    %v7323 = vand.u32 %v7322, 4294901760
    %7324 = vmatpush1.msra.mxu0 %v7323
    %7325 = vmatprep.subr.mxu0 0.0
    %v7326 = vand.u32 %v3959, 4294901760
    %v7327 = vsub.f32 %v3959, %v7326
    %v7328 = vand.u32 %v7327, 4294901760
    %v7329 = vsub.f32 %v7327, %v7328
    %v7330 = vand.u32 %v7329, 4294901760
    %7331 = vmatpush1.msra.mxu0 %v7330
    %7332 = vmatprep.subr.mxu0 0.0
    %v7333 = vand.u32 %v3960, 4294901760
    %v7334 = vsub.f32 %v3960, %v7333
    %v7335 = vand.u32 %v7334, 4294901760
    %v7336 = vsub.f32 %v7334, %v7335
    %v7337 = vand.u32 %v7336, 4294901760
    %7338 = vmatpush1.msra.mxu0 %v7337
    %7339 = vmatprep.subr.mxu0 0.0
    %v7340 = vand.u32 %v3961, 4294901760
    %v7341 = vsub.f32 %v3961, %v7340
    %v7342 = vand.u32 %v7341, 4294901760
    %v7343 = vsub.f32 %v7341, %v7342
    %v7344 = vand.u32 %v7343, 4294901760
    %7345 = vmatpush1.msra.mxu0 %v7344
    %7346 = vmatprep.subr.mxu0 0.0
    %v7347 = vand.u32 %v3962, 4294901760
    %v7348 = vsub.f32 %v3962, %v7347
    %v7349 = vand.u32 %v7348, 4294901760
    %v7350 = vsub.f32 %v7348, %v7349
    %v7351 = vand.u32 %v7350, 4294901760
    %7352 = vmatpush1.msra.mxu0 %v7351
    %7353 = vmatprep.subr.mxu0 0.0
    %v7354 = vand.u32 %v3963, 4294901760
    %v7355 = vsub.f32 %v3963, %v7354
    %v7356 = vand.u32 %v7355, 4294901760
    %v7357 = vsub.f32 %v7355, %v7356
    %v7358 = vand.u32 %v7357, 4294901760
    %7359 = vmatpush1.msra.mxu0 %v7358
    %7360 = vmatprep.subr.mxu0 0.0
    %v7361 = vand.u32 %v3964, 4294901760
    %v7362 = vsub.f32 %v3964, %v7361
    %v7363 = vand.u32 %v7362, 4294901760
    %v7364 = vsub.f32 %v7362, %v7363
    %v7365 = vand.u32 %v7364, 4294901760
    %7366 = vmatpush1.msra.mxu0 %v7365
    %7367 = vmatprep.subr.mxu0 0.0
    %v7368 = vand.u32 %v3965, 4294901760
    %v7369 = vsub.f32 %v3965, %v7368
    %v7370 = vand.u32 %v7369, 4294901760
    %v7371 = vsub.f32 %v7369, %v7370
    %v7372 = vand.u32 %v7371, 4294901760
    %7373 = vmatpush1.msra.mxu0 %v7372
    %7374 = vmatprep.subr.mxu0 0.0
    %v7375 = vand.u32 %v3966, 4294901760
    %v7376 = vsub.f32 %v3966, %v7375
    %v7377 = vand.u32 %v7376, 4294901760
    %v7378 = vsub.f32 %v7376, %v7377
    %v7379 = vand.u32 %v7378, 4294901760
    %7380 = vmatpush1.msra.mxu0 %v7379
    %7381 = vmatprep.subr.mxu0 0.0
    %v7382 = vand.u32 %v3967, 4294901760
    %v7383 = vsub.f32 %v3967, %v7382
    %v7384 = vand.u32 %v7383, 4294901760
    %v7385 = vsub.f32 %v7383, %v7384
    %v7386 = vand.u32 %v7385, 4294901760
    %7387 = vmatpush1.msra.mxu0 %v7386
    %7388 = vmatprep.subr.mxu0 0.0
    %v7389 = vand.u32 %v3968, 4294901760
    %v7390 = vsub.f32 %v3968, %v7389
    %v7391 = vand.u32 %v7390, 4294901760
    %v7392 = vsub.f32 %v7390, %v7391
    %v7393 = vand.u32 %v7392, 4294901760
    %7394 = vmatpush1.msra.mxu0 %v7393
    %7395 = vmatprep.subr.mxu0 0.0
    %v7396 = vand.u32 %v3969, 4294901760
    %v7397 = vsub.f32 %v3969, %v7396
    %v7398 = vand.u32 %v7397, 4294901760
    %v7399 = vsub.f32 %v7397, %v7398
    %v7400 = vand.u32 %v7399, 4294901760
    %7401 = vmatpush1.msra.mxu0 %v7400
    %7402 = vmatprep.subr.mxu0 0.0
    %v7403 = vand.u32 %v3970, 4294901760
    %v7404 = vsub.f32 %v3970, %v7403
    %v7405 = vand.u32 %v7404, 4294901760
    %v7406 = vsub.f32 %v7404, %v7405
    %v7407 = vand.u32 %v7406, 4294901760
    %7408 = vmatpush1.msra.mxu0 %v7407
    %7409 = vmatprep.subr.mxu0 0.0
    %v7410 = vand.u32 %v3971, 4294901760
    %v7411 = vsub.f32 %v3971, %v7410
    %v7412 = vand.u32 %v7411, 4294901760
    %v7413 = vsub.f32 %v7411, %v7412
    %v7414 = vand.u32 %v7413, 4294901760
    %7415 = vmatpush1.msra.mxu0 %v7414
    %7416 = vmatprep.subr.mxu0 0.0
    %v7417 = vand.u32 %v3972, 4294901760
    %v7418 = vsub.f32 %v3972, %v7417
    %v7419 = vand.u32 %v7418, 4294901760
    %v7420 = vsub.f32 %v7418, %v7419
    %v7421 = vand.u32 %v7420, 4294901760
    %7422 = vmatpush1.msra.mxu0 %v7421
    %7423 = vmatprep.subr.mxu0 0.0
    %v7424 = vand.u32 %v3973, 4294901760
    %v7425 = vsub.f32 %v3973, %v7424
    %v7426 = vand.u32 %v7425, 4294901760
    %v7427 = vsub.f32 %v7425, %v7426
    %v7428 = vand.u32 %v7427, 4294901760
    %7429 = vmatpush1.msra.mxu0 %v7428
    %7430 = vmatprep.subr.mxu0 0.0
    %v7431 = vand.u32 %v3974, 4294901760
    %v7432 = vsub.f32 %v3974, %v7431
    %v7433 = vand.u32 %v7432, 4294901760
    %v7434 = vsub.f32 %v7432, %v7433
    %v7435 = vand.u32 %v7434, 4294901760
    %7436 = vmatpush1.msra.mxu0 %v7435
    %7437 = vmatprep.subr.mxu0 0.0
    %v7438 = vand.u32 %v3975, 4294901760
    %v7439 = vsub.f32 %v3975, %v7438
    %v7440 = vand.u32 %v7439, 4294901760
    %v7441 = vsub.f32 %v7439, %v7440
    %v7442 = vand.u32 %v7441, 4294901760
    %7443 = vmatpush1.msra.mxu0 %v7442
    %7444 = vmatprep.subr.mxu0 0.0
    %v7445 = vand.u32 %v3976, 4294901760
    %v7446 = vsub.f32 %v3976, %v7445
    %v7447 = vand.u32 %v7446, 4294901760
    %v7448 = vsub.f32 %v7446, %v7447
    %v7449 = vand.u32 %v7448, 4294901760
    %7450 = vmatpush1.msra.mxu0 %v7449
    %7451 = vmatprep.subr.mxu0 0.0
    %v7452 = vand.u32 %v3977, 4294901760
    %v7453 = vsub.f32 %v3977, %v7452
    %v7454 = vand.u32 %v7453, 4294901760
    %v7455 = vsub.f32 %v7453, %v7454
    %v7456 = vand.u32 %v7455, 4294901760
    %7457 = vmatpush1.msra.mxu0 %v7456
    %7458 = vmatprep.subr.mxu0 0.0
    %v7459 = vand.u32 %v3978, 4294901760
    %v7460 = vsub.f32 %v3978, %v7459
    %v7461 = vand.u32 %v7460, 4294901760
    %v7462 = vsub.f32 %v7460, %v7461
    %v7463 = vand.u32 %v7462, 4294901760
    %7464 = vmatpush1.msra.mxu0 %v7463
    %7465 = vmatprep.subr.mxu0 0.0
    %v7466 = vand.u32 %v3979, 4294901760
    %v7467 = vsub.f32 %v3979, %v7466
    %v7468 = vand.u32 %v7467, 4294901760
    %v7469 = vsub.f32 %v7467, %v7468
    %v7470 = vand.u32 %v7469, 4294901760
    %7471 = vmatpush1.msra.mxu0 %v7470
    %7472 = vmatprep.subr.mxu0 0.0
    %v7473 = vand.u32 %v3980, 4294901760
    %v7474 = vsub.f32 %v3980, %v7473
    %v7475 = vand.u32 %v7474, 4294901760
    %v7476 = vsub.f32 %v7474, %v7475
    %v7477 = vand.u32 %v7476, 4294901760
    %7478 = vmatpush1.msra.mxu0 %v7477
    %7479 = vmatprep.subr.mxu0 0.0
    %v7480 = vand.u32 %v3981, 4294901760
    %v7481 = vsub.f32 %v3981, %v7480
    %v7482 = vand.u32 %v7481, 4294901760
    %v7483 = vsub.f32 %v7481, %v7482
    %v7484 = vand.u32 %v7483, 4294901760
    %7485 = vmatpush1.msra.mxu0 %v7484
    %7486 = vmatprep.subr.mxu0 0.0
    %v7487 = vand.u32 %v3982, 4294901760
    %v7488 = vsub.f32 %v3982, %v7487
    %v7489 = vand.u32 %v7488, 4294901760
    %v7490 = vsub.f32 %v7488, %v7489
    %v7491 = vand.u32 %v7490, 4294901760
    %7492 = vmatpush1.msra.mxu0 %v7491
    %7493 = vmatprep.subr.mxu0 0.0
    %v7494 = vand.u32 %v3983, 4294901760
    %v7495 = vsub.f32 %v3983, %v7494
    %v7496 = vand.u32 %v7495, 4294901760
    %v7497 = vsub.f32 %v7495, %v7496
    %v7498 = vand.u32 %v7497, 4294901760
    %7499 = vmatpush1.msra.mxu0 %v7498
    %7500 = vmatprep.subr.mxu0 0.0
    %v7501 = vand.u32 %v3984, 4294901760
    %v7502 = vsub.f32 %v3984, %v7501
    %v7503 = vand.u32 %v7502, 4294901760
    %v7504 = vsub.f32 %v7502, %v7503
    %v7505 = vand.u32 %v7504, 4294901760
    %7506 = vmatpush1.msra.mxu0 %v7505
    %7507 = vmatprep.subr.mxu0 0.0
    %v7508 = vand.u32 %v3985, 4294901760
    %v7509 = vsub.f32 %v3985, %v7508
    %v7510 = vand.u32 %v7509, 4294901760
    %v7511 = vsub.f32 %v7509, %v7510
    %v7512 = vand.u32 %v7511, 4294901760
    %7513 = vmatpush1.msra.mxu0 %v7512
    %7514 = vmatprep.subr.mxu0 0.0
    %v7515 = vand.u32 %v3986, 4294901760
    %v7516 = vsub.f32 %v3986, %v7515
    %v7517 = vand.u32 %v7516, 4294901760
    %v7518 = vsub.f32 %v7516, %v7517
    %v7519 = vand.u32 %v7518, 4294901760
    %7520 = vmatpush1.msra.mxu0 %v7519
    %v7521 = vand.u32 %v6318, 4294901760
    %7522 = vmatprep.mubr.f32.mxu0 %v7521
    %v7523 = vand.u32 %v6317, 4294901760
    %7524 = vmatmul.mubr.f32.gmra.mrb[0].mxu0 %v7523
    %v7525 = vpop.f32.mrb[0].mxu0
    %v7526 = vadd.f32 %v7294, %v7525
    %v7527 = vpop.f32.mrb[0].mxu0
    %7528 = vdwg.mxu0
    %7529 = vmatprep.subr.mxu0 0.0
    %v7530 = vand.u32 %v3955, 4294901760
    %v7531 = vsub.f32 %v3955, %v7530
    %7532 = vmatpush1.msra.mxu0 %v7531
    %7533 = vmatprep.subr.mxu0 0.0
    %v7534 = vand.u32 %v3956, 4294901760
    %v7535 = vsub.f32 %v3956, %v7534
    %7536 = vmatpush1.msra.mxu0 %v7535
    %7537 = vmatprep.subr.mxu0 0.0
    %v7538 = vand.u32 %v3957, 4294901760
    %v7539 = vsub.f32 %v3957, %v7538
    %7540 = vmatpush1.msra.mxu0 %v7539
    %7541 = vmatprep.subr.mxu0 0.0
    %v7542 = vand.u32 %v3958, 4294901760
    %v7543 = vsub.f32 %v3958, %v7542
    %7544 = vmatpush1.msra.mxu0 %v7543
    %7545 = vmatprep.subr.mxu0 0.0
    %v7546 = vand.u32 %v3959, 4294901760
    %v7547 = vsub.f32 %v3959, %v7546
    %7548 = vmatpush1.msra.mxu0 %v7547
    %7549 = vmatprep.subr.mxu0 0.0
    %v7550 = vand.u32 %v3960, 4294901760
    %v7551 = vsub.f32 %v3960, %v7550
    %7552 = vmatpush1.msra.mxu0 %v7551
    %7553 = vmatprep.subr.mxu0 0.0
    %v7554 = vand.u32 %v3961, 4294901760
    %v7555 = vsub.f32 %v3961, %v7554
    %7556 = vmatpush1.msra.mxu0 %v7555
    %7557 = vmatprep.subr.mxu0 0.0
    %v7558 = vand.u32 %v3962, 4294901760
    %v7559 = vsub.f32 %v3962, %v7558
    %7560 = vmatpush1.msra.mxu0 %v7559
    %7561 = vmatprep.subr.mxu0 0.0
    %v7562 = vand.u32 %v3963, 4294901760
    %v7563 = vsub.f32 %v3963, %v7562
    %7564 = vmatpush1.msra.mxu0 %v7563
    %7565 = vmatprep.subr.mxu0 0.0
    %v7566 = vand.u32 %v3964, 4294901760
    %v7567 = vsub.f32 %v3964, %v7566
    %7568 = vmatpush1.msra.mxu0 %v7567
    %7569 = vmatprep.subr.mxu0 0.0
    %v7570 = vand.u32 %v3965, 4294901760
    %v7571 = vsub.f32 %v3965, %v7570
    %7572 = vmatpush1.msra.mxu0 %v7571
    %7573 = vmatprep.subr.mxu0 0.0
    %v7574 = vand.u32 %v3966, 4294901760
    %v7575 = vsub.f32 %v3966, %v7574
    %7576 = vmatpush1.msra.mxu0 %v7575
    %7577 = vmatprep.subr.mxu0 0.0
    %v7578 = vand.u32 %v3967, 4294901760
    %v7579 = vsub.f32 %v3967, %v7578
    %7580 = vmatpush1.msra.mxu0 %v7579
    %7581 = vmatprep.subr.mxu0 0.0
    %v7582 = vand.u32 %v3968, 4294901760
    %v7583 = vsub.f32 %v3968, %v7582
    %7584 = vmatpush1.msra.mxu0 %v7583
    %7585 = vmatprep.subr.mxu0 0.0
    %v7586 = vand.u32 %v3969, 4294901760
    %v7587 = vsub.f32 %v3969, %v7586
    %7588 = vmatpush1.msra.mxu0 %v7587
    %7589 = vmatprep.subr.mxu0 0.0
    %v7590 = vand.u32 %v3970, 4294901760
    %v7591 = vsub.f32 %v3970, %v7590
    %7592 = vmatpush1.msra.mxu0 %v7591
    %7593 = vmatprep.subr.mxu0 0.0
    %v7594 = vand.u32 %v3971, 4294901760
    %v7595 = vsub.f32 %v3971, %v7594
    %7596 = vmatpush1.msra.mxu0 %v7595
    %7597 = vmatprep.subr.mxu0 0.0
    %v7598 = vand.u32 %v3972, 4294901760
    %v7599 = vsub.f32 %v3972, %v7598
    %7600 = vmatpush1.msra.mxu0 %v7599
    %7601 = vmatprep.subr.mxu0 0.0
    %v7602 = vand.u32 %v3973, 4294901760
    %v7603 = vsub.f32 %v3973, %v7602
    %7604 = vmatpush1.msra.mxu0 %v7603
    %7605 = vmatprep.subr.mxu0 0.0
    %v7606 = vand.u32 %v3974, 4294901760
    %v7607 = vsub.f32 %v3974, %v7606
    %7608 = vmatpush1.msra.mxu0 %v7607
    %7609 = vmatprep.subr.mxu0 0.0
    %v7610 = vand.u32 %v3975, 4294901760
    %v7611 = vsub.f32 %v3975, %v7610
    %7612 = vmatpush1.msra.mxu0 %v7611
    %7613 = vmatprep.subr.mxu0 0.0
    %v7614 = vand.u32 %v3976, 4294901760
    %v7615 = vsub.f32 %v3976, %v7614
    %7616 = vmatpush1.msra.mxu0 %v7615
    %7617 = vmatprep.subr.mxu0 0.0
    %v7618 = vand.u32 %v3977, 4294901760
    %v7619 = vsub.f32 %v3977, %v7618
    %7620 = vmatpush1.msra.mxu0 %v7619
    %7621 = vmatprep.subr.mxu0 0.0
    %v7622 = vand.u32 %v3978, 4294901760
    %v7623 = vsub.f32 %v3978, %v7622
    %7624 = vmatpush1.msra.mxu0 %v7623
    %7625 = vmatprep.subr.mxu0 0.0
    %v7626 = vand.u32 %v3979, 4294901760
    %v7627 = vsub.f32 %v3979, %v7626
    %7628 = vmatpush1.msra.mxu0 %v7627
    %7629 = vmatprep.subr.mxu0 0.0
    %v7630 = vand.u32 %v3980, 4294901760
    %v7631 = vsub.f32 %v3980, %v7630
    %7632 = vmatpush1.msra.mxu0 %v7631
    %7633 = vmatprep.subr.mxu0 0.0
    %v7634 = vand.u32 %v3981, 4294901760
    %v7635 = vsub.f32 %v3981, %v7634
    %7636 = vmatpush1.msra.mxu0 %v7635
    %7637 = vmatprep.subr.mxu0 0.0
    %v7638 = vand.u32 %v3982, 4294901760
    %v7639 = vsub.f32 %v3982, %v7638
    %7640 = vmatpush1.msra.mxu0 %v7639
    %7641 = vmatprep.subr.mxu0 0.0
    %v7642 = vand.u32 %v3983, 4294901760
    %v7643 = vsub.f32 %v3983, %v7642
    %7644 = vmatpush1.msra.mxu0 %v7643
    %7645 = vmatprep.subr.mxu0 0.0
    %v7646 = vand.u32 %v3984, 4294901760
    %v7647 = vsub.f32 %v3984, %v7646
    %7648 = vmatpush1.msra.mxu0 %v7647
    %7649 = vmatprep.subr.mxu0 0.0
    %v7650 = vand.u32 %v3985, 4294901760
    %v7651 = vsub.f32 %v3985, %v7650
    %7652 = vmatpush1.msra.mxu0 %v7651
    %7653 = vmatprep.subr.mxu0 0.0
    %v7654 = vand.u32 %v3986, 4294901760
    %v7655 = vsub.f32 %v3986, %v7654
    %7656 = vmatpush1.msra.mxu0 %v7655
    %v7657 = vand.u32 %v6318, 4294901760
    %v7658 = vsub.f32 %v6318, %v7657
    %7659 = vmatprep.mubr.f32.mxu0 %v7658
    %v7660 = vand.u32 %v6317, 4294901760
    %v7661 = vsub.f32 %v6317, %v7660
    %7662 = vmatmul.mubr.f32.gmra.mrb[0].mxu0 %v7661
    %v7663 = vpop.f32.mrb[0].mxu0
    %v7664 = vadd.f32 %v7526, %v7663
    %v7665 = vpop.f32.mrb[0].mxu0
    %7666 = vdwg.mxu0
    %7667 = vmatprep.subr.mxu0 0.0
    %v7668 = vand.u32 %v3955, 4294901760
    %7669 = vmatpush1.msra.mxu0 %v7668
    %7670 = vmatprep.subr.mxu0 0.0
    %v7671 = vand.u32 %v3956, 4294901760
    %7672 = vmatpush1.msra.mxu0 %v7671
    %7673 = vmatprep.subr.mxu0 0.0
    %v7674 = vand.u32 %v3957, 4294901760
    %7675 = vmatpush1.msra.mxu0 %v7674
    %7676 = vmatprep.subr.mxu0 0.0
    %v7677 = vand.u32 %v3958, 4294901760
    %7678 = vmatpush1.msra.mxu0 %v7677
    %7679 = vmatprep.subr.mxu0 0.0
    %v7680 = vand.u32 %v3959, 4294901760
    %7681 = vmatpush1.msra.mxu0 %v7680
    %7682 = vmatprep.subr.mxu0 0.0
    %v7683 = vand.u32 %v3960, 4294901760
    %7684 = vmatpush1.msra.mxu0 %v7683
    %7685 = vmatprep.subr.mxu0 0.0
    %v7686 = vand.u32 %v3961, 4294901760
    %7687 = vmatpush1.msra.mxu0 %v7686
    %7688 = vmatprep.subr.mxu0 0.0
    %v7689 = vand.u32 %v3962, 4294901760
    %7690 = vmatpush1.msra.mxu0 %v7689
    %7691 = vmatprep.subr.mxu0 0.0
    %v7692 = vand.u32 %v3963, 4294901760
    %7693 = vmatpush1.msra.mxu0 %v7692
    %7694 = vmatprep.subr.mxu0 0.0
    %v7695 = vand.u32 %v3964, 4294901760
    %7696 = vmatpush1.msra.mxu0 %v7695
    %7697 = vmatprep.subr.mxu0 0.0
    %v7698 = vand.u32 %v3965, 4294901760
    %7699 = vmatpush1.msra.mxu0 %v7698
    %7700 = vmatprep.subr.mxu0 0.0
    %v7701 = vand.u32 %v3966, 4294901760
    %7702 = vmatpush1.msra.mxu0 %v7701
    %7703 = vmatprep.subr.mxu0 0.0
    %v7704 = vand.u32 %v3967, 4294901760
    %7705 = vmatpush1.msra.mxu0 %v7704
    %7706 = vmatprep.subr.mxu0 0.0
    %v7707 = vand.u32 %v3968, 4294901760
    %7708 = vmatpush1.msra.mxu0 %v7707
    %7709 = vmatprep.subr.mxu0 0.0
    %v7710 = vand.u32 %v3969, 4294901760
    %7711 = vmatpush1.msra.mxu0 %v7710
    %7712 = vmatprep.subr.mxu0 0.0
    %v7713 = vand.u32 %v3970, 4294901760
    %7714 = vmatpush1.msra.mxu0 %v7713
    %7715 = vmatprep.subr.mxu0 0.0
    %v7716 = vand.u32 %v3971, 4294901760
    %7717 = vmatpush1.msra.mxu0 %v7716
    %7718 = vmatprep.subr.mxu0 0.0
    %v7719 = vand.u32 %v3972, 4294901760
    %7720 = vmatpush1.msra.mxu0 %v7719
    %7721 = vmatprep.subr.mxu0 0.0
    %v7722 = vand.u32 %v3973, 4294901760
    %7723 = vmatpush1.msra.mxu0 %v7722
    %7724 = vmatprep.subr.mxu0 0.0
    %v7725 = vand.u32 %v3974, 4294901760
    %7726 = vmatpush1.msra.mxu0 %v7725
    %7727 = vmatprep.subr.mxu0 0.0
    %v7728 = vand.u32 %v3975, 4294901760
    %7729 = vmatpush1.msra.mxu0 %v7728
    %7730 = vmatprep.subr.mxu0 0.0
    %v7731 = vand.u32 %v3976, 4294901760
    %7732 = vmatpush1.msra.mxu0 %v7731
    %7733 = vmatprep.subr.mxu0 0.0
    %v7734 = vand.u32 %v3977, 4294901760
    %7735 = vmatpush1.msra.mxu0 %v7734
    %7736 = vmatprep.subr.mxu0 0.0
    %v7737 = vand.u32 %v3978, 4294901760
    %7738 = vmatpush1.msra.mxu0 %v7737
    %7739 = vmatprep.subr.mxu0 0.0
    %v7740 = vand.u32 %v3979, 4294901760
    %7741 = vmatpush1.msra.mxu0 %v7740
    %7742 = vmatprep.subr.mxu0 0.0
    %v7743 = vand.u32 %v3980, 4294901760
    %7744 = vmatpush1.msra.mxu0 %v7743
    %7745 = vmatprep.subr.mxu0 0.0
    %v7746 = vand.u32 %v3981, 4294901760
    %7747 = vmatpush1.msra.mxu0 %v7746
    %7748 = vmatprep.subr.mxu0 0.0
    %v7749 = vand.u32 %v3982, 4294901760
    %7750 = vmatpush1.msra.mxu0 %v7749
    %7751 = vmatprep.subr.mxu0 0.0
    %v7752 = vand.u32 %v3983, 4294901760
    %7753 = vmatpush1.msra.mxu0 %v7752
    %7754 = vmatprep.subr.mxu0 0.0
    %v7755 = vand.u32 %v3984, 4294901760
    %7756 = vmatpush1.msra.mxu0 %v7755
    %7757 = vmatprep.subr.mxu0 0.0
    %v7758 = vand.u32 %v3985, 4294901760
    %7759 = vmatpush1.msra.mxu0 %v7758
    %7760 = vmatprep.subr.mxu0 0.0
    %v7761 = vand.u32 %v3986, 4294901760
    %7762 = vmatpush1.msra.mxu0 %v7761
    %v7763 = vand.u32 %v6318, 4294901760
    %v7764 = vsub.f32 %v6318, %v7763
    %v7765 = vand.u32 %v7764, 4294901760
    %7766 = vmatprep.mubr.f32.mxu0 %v7765
    %v7767 = vand.u32 %v6317, 4294901760
    %v7768 = vsub.f32 %v6317, %v7767
    %v7769 = vand.u32 %v7768, 4294901760
    %7770 = vmatmul.mubr.f32.gmra.mrb[0].mxu0 %v7769
    %v7771 = vpop.f32.mrb[0].mxu0
    %v7772 = vadd.f32 %v7664, %v7771
    %v7773 = vpop.f32.mrb[0].mxu0
    %7774 = vdwg.mxu0
    %7775 = vmatprep.subr.mxu0 0.0
    %v7776 = vand.u32 %v3955, 4294901760
    %v7777 = vsub.f32 %v3955, %v7776
    %v7778 = vand.u32 %v7777, 4294901760
    %7779 = vmatpush1.msra.mxu0 %v7778
    %7780 = vmatprep.subr.mxu0 0.0
    %v7781 = vand.u32 %v3956, 4294901760
    %v7782 = vsub.f32 %v3956, %v7781
    %v7783 = vand.u32 %v7782, 4294901760
    %7784 = vmatpush1.msra.mxu0 %v7783
    %7785 = vmatprep.subr.mxu0 0.0
    %v7786 = vand.u32 %v3957, 4294901760
    %v7787 = vsub.f32 %v3957, %v7786
    %v7788 = vand.u32 %v7787, 4294901760
    %7789 = vmatpush1.msra.mxu0 %v7788
    %7790 = vmatprep.subr.mxu0 0.0
    %v7791 = vand.u32 %v3958, 4294901760
    %v7792 = vsub.f32 %v3958, %v7791
    %v7793 = vand.u32 %v7792, 4294901760
    %7794 = vmatpush1.msra.mxu0 %v7793
    %7795 = vmatprep.subr.mxu0 0.0
    %v7796 = vand.u32 %v3959, 4294901760
    %v7797 = vsub.f32 %v3959, %v7796
    %v7798 = vand.u32 %v7797, 4294901760
    %7799 = vmatpush1.msra.mxu0 %v7798
    %7800 = vmatprep.subr.mxu0 0.0
    %v7801 = vand.u32 %v3960, 4294901760
    %v7802 = vsub.f32 %v3960, %v7801
    %v7803 = vand.u32 %v7802, 4294901760
    %7804 = vmatpush1.msra.mxu0 %v7803
    %7805 = vmatprep.subr.mxu0 0.0
    %v7806 = vand.u32 %v3961, 4294901760
    %v7807 = vsub.f32 %v3961, %v7806
    %v7808 = vand.u32 %v7807, 4294901760
    %7809 = vmatpush1.msra.mxu0 %v7808
    %7810 = vmatprep.subr.mxu0 0.0
    %v7811 = vand.u32 %v3962, 4294901760
    %v7812 = vsub.f32 %v3962, %v7811
    %v7813 = vand.u32 %v7812, 4294901760
    %7814 = vmatpush1.msra.mxu0 %v7813
    %7815 = vmatprep.subr.mxu0 0.0
    %v7816 = vand.u32 %v3963, 4294901760
    %v7817 = vsub.f32 %v3963, %v7816
    %v7818 = vand.u32 %v7817, 4294901760
    %7819 = vmatpush1.msra.mxu0 %v7818
    %7820 = vmatprep.subr.mxu0 0.0
    %v7821 = vand.u32 %v3964, 4294901760
    %v7822 = vsub.f32 %v3964, %v7821
    %v7823 = vand.u32 %v7822, 4294901760
    %7824 = vmatpush1.msra.mxu0 %v7823
    %7825 = vmatprep.subr.mxu0 0.0
    %v7826 = vand.u32 %v3965, 4294901760
    %v7827 = vsub.f32 %v3965, %v7826
    %v7828 = vand.u32 %v7827, 4294901760
    %7829 = vmatpush1.msra.mxu0 %v7828
    %7830 = vmatprep.subr.mxu0 0.0
    %v7831 = vand.u32 %v3966, 4294901760
    %v7832 = vsub.f32 %v3966, %v7831
    %v7833 = vand.u32 %v7832, 4294901760
    %7834 = vmatpush1.msra.mxu0 %v7833
    %7835 = vmatprep.subr.mxu0 0.0
    %v7836 = vand.u32 %v3967, 4294901760
    %v7837 = vsub.f32 %v3967, %v7836
    %v7838 = vand.u32 %v7837, 4294901760
    %7839 = vmatpush1.msra.mxu0 %v7838
    %7840 = vmatprep.subr.mxu0 0.0
    %v7841 = vand.u32 %v3968, 4294901760
    %v7842 = vsub.f32 %v3968, %v7841
    %v7843 = vand.u32 %v7842, 4294901760
    %7844 = vmatpush1.msra.mxu0 %v7843
    %7845 = vmatprep.subr.mxu0 0.0
    %v7846 = vand.u32 %v3969, 4294901760
    %v7847 = vsub.f32 %v3969, %v7846
    %v7848 = vand.u32 %v7847, 4294901760
    %7849 = vmatpush1.msra.mxu0 %v7848
    %7850 = vmatprep.subr.mxu0 0.0
    %v7851 = vand.u32 %v3970, 4294901760
    %v7852 = vsub.f32 %v3970, %v7851
    %v7853 = vand.u32 %v7852, 4294901760
    %7854 = vmatpush1.msra.mxu0 %v7853
    %7855 = vmatprep.subr.mxu0 0.0
    %v7856 = vand.u32 %v3971, 4294901760
    %v7857 = vsub.f32 %v3971, %v7856
    %v7858 = vand.u32 %v7857, 4294901760
    %7859 = vmatpush1.msra.mxu0 %v7858
    %7860 = vmatprep.subr.mxu0 0.0
    %v7861 = vand.u32 %v3972, 4294901760
    %v7862 = vsub.f32 %v3972, %v7861
    %v7863 = vand.u32 %v7862, 4294901760
    %7864 = vmatpush1.msra.mxu0 %v7863
    %7865 = vmatprep.subr.mxu0 0.0
    %v7866 = vand.u32 %v3973, 4294901760
    %v7867 = vsub.f32 %v3973, %v7866
    %v7868 = vand.u32 %v7867, 4294901760
    %7869 = vmatpush1.msra.mxu0 %v7868
    %7870 = vmatprep.subr.mxu0 0.0
    %v7871 = vand.u32 %v3974, 4294901760
    %v7872 = vsub.f32 %v3974, %v7871
    %v7873 = vand.u32 %v7872, 4294901760
    %7874 = vmatpush1.msra.mxu0 %v7873
    %7875 = vmatprep.subr.mxu0 0.0
    %v7876 = vand.u32 %v3975, 4294901760
    %v7877 = vsub.f32 %v3975, %v7876
    %v7878 = vand.u32 %v7877, 4294901760
    %7879 = vmatpush1.msra.mxu0 %v7878
    %7880 = vmatprep.subr.mxu0 0.0
    %v7881 = vand.u32 %v3976, 4294901760
    %v7882 = vsub.f32 %v3976, %v7881
    %v7883 = vand.u32 %v7882, 4294901760
    %7884 = vmatpush1.msra.mxu0 %v7883
    %7885 = vmatprep.subr.mxu0 0.0
    %v7886 = vand.u32 %v3977, 4294901760
    %v7887 = vsub.f32 %v3977, %v7886
    %v7888 = vand.u32 %v7887, 4294901760
    %7889 = vmatpush1.msra.mxu0 %v7888
    %7890 = vmatprep.subr.mxu0 0.0
    %v7891 = vand.u32 %v3978, 4294901760
    %v7892 = vsub.f32 %v3978, %v7891
    %v7893 = vand.u32 %v7892, 4294901760
    %7894 = vmatpush1.msra.mxu0 %v7893
    %7895 = vmatprep.subr.mxu0 0.0
    %v7896 = vand.u32 %v3979, 4294901760
    %v7897 = vsub.f32 %v3979, %v7896
    %v7898 = vand.u32 %v7897, 4294901760
    %7899 = vmatpush1.msra.mxu0 %v7898
    %7900 = vmatprep.subr.mxu0 0.0
    %v7901 = vand.u32 %v3980, 4294901760
    %v7902 = vsub.f32 %v3980, %v7901
    %v7903 = vand.u32 %v7902, 4294901760
    %7904 = vmatpush1.msra.mxu0 %v7903
    %7905 = vmatprep.subr.mxu0 0.0
    %v7906 = vand.u32 %v3981, 4294901760
    %v7907 = vsub.f32 %v3981, %v7906
    %v7908 = vand.u32 %v7907, 4294901760
    %7909 = vmatpush1.msra.mxu0 %v7908
    %7910 = vmatprep.subr.mxu0 0.0
    %v7911 = vand.u32 %v3982, 4294901760
    %v7912 = vsub.f32 %v3982, %v7911
    %v7913 = vand.u32 %v7912, 4294901760
    %7914 = vmatpush1.msra.mxu0 %v7913
    %7915 = vmatprep.subr.mxu0 0.0
    %v7916 = vand.u32 %v3983, 4294901760
    %v7917 = vsub.f32 %v3983, %v7916
    %v7918 = vand.u32 %v7917, 4294901760
    %7919 = vmatpush1.msra.mxu0 %v7918
    %7920 = vmatprep.subr.mxu0 0.0
    %v7921 = vand.u32 %v3984, 4294901760
    %v7922 = vsub.f32 %v3984, %v7921
    %v7923 = vand.u32 %v7922, 4294901760
    %7924 = vmatpush1.msra.mxu0 %v7923
    %7925 = vmatprep.subr.mxu0 0.0
    %v7926 = vand.u32 %v3985, 4294901760
    %v7927 = vsub.f32 %v3985, %v7926
    %v7928 = vand.u32 %v7927, 4294901760
    %7929 = vmatpush1.msra.mxu0 %v7928
    %7930 = vmatprep.subr.mxu0 0.0
    %v7931 = vand.u32 %v3986, 4294901760
    %v7932 = vsub.f32 %v3986, %v7931
    %v7933 = vand.u32 %v7932, 4294901760
    %7934 = vmatpush1.msra.mxu0 %v7933
    %v7935 = vand.u32 %v6318, 4294901760
    %7936 = vmatprep.mubr.f32.mxu0 %v7935
    %v7937 = vand.u32 %v6317, 4294901760
    %7938 = vmatmul.mubr.f32.gmra.mrb[0].mxu0 %v7937
    %v7939 = vpop.f32.mrb[0].mxu0
    %v7940 = vadd.f32 %v7772, %v7939
    %v7941 = vpop.f32.mrb[0].mxu0
    %7942 = vdwg.mxu0
    %7943 = vmatprep.subr.mxu0 0.0
    %v7944 = vand.u32 %v3955, 4294901760
    %7945 = vmatpush1.msra.mxu0 %v7944
    %7946 = vmatprep.subr.mxu0 0.0
    %v7947 = vand.u32 %v3956, 4294901760
    %7948 = vmatpush1.msra.mxu0 %v7947
    %7949 = vmatprep.subr.mxu0 0.0
    %v7950 = vand.u32 %v3957, 4294901760
    %7951 = vmatpush1.msra.mxu0 %v7950
    %7952 = vmatprep.subr.mxu0 0.0
    %v7953 = vand.u32 %v3958, 4294901760
    %7954 = vmatpush1.msra.mxu0 %v7953
    %7955 = vmatprep.subr.mxu0 0.0
    %v7956 = vand.u32 %v3959, 4294901760
    %7957 = vmatpush1.msra.mxu0 %v7956
    %7958 = vmatprep.subr.mxu0 0.0
    %v7959 = vand.u32 %v3960, 4294901760
    %7960 = vmatpush1.msra.mxu0 %v7959
    %7961 = vmatprep.subr.mxu0 0.0
    %v7962 = vand.u32 %v3961, 4294901760
    %7963 = vmatpush1.msra.mxu0 %v7962
    %7964 = vmatprep.subr.mxu0 0.0
    %v7965 = vand.u32 %v3962, 4294901760
    %7966 = vmatpush1.msra.mxu0 %v7965
    %7967 = vmatprep.subr.mxu0 0.0
    %v7968 = vand.u32 %v3963, 4294901760
    %7969 = vmatpush1.msra.mxu0 %v7968
    %7970 = vmatprep.subr.mxu0 0.0
    %v7971 = vand.u32 %v3964, 4294901760
    %7972 = vmatpush1.msra.mxu0 %v7971
    %7973 = vmatprep.subr.mxu0 0.0
    %v7974 = vand.u32 %v3965, 4294901760
    %7975 = vmatpush1.msra.mxu0 %v7974
    %7976 = vmatprep.subr.mxu0 0.0
    %v7977 = vand.u32 %v3966, 4294901760
    %7978 = vmatpush1.msra.mxu0 %v7977
    %7979 = vmatprep.subr.mxu0 0.0
    %v7980 = vand.u32 %v3967, 4294901760
    %7981 = vmatpush1.msra.mxu0 %v7980
    %7982 = vmatprep.subr.mxu0 0.0
    %v7983 = vand.u32 %v3968, 4294901760
    %7984 = vmatpush1.msra.mxu0 %v7983
    %7985 = vmatprep.subr.mxu0 0.0
    %v7986 = vand.u32 %v3969, 4294901760
    %7987 = vmatpush1.msra.mxu0 %v7986
    %7988 = vmatprep.subr.mxu0 0.0
    %v7989 = vand.u32 %v3970, 4294901760
    %7990 = vmatpush1.msra.mxu0 %v7989
    %7991 = vmatprep.subr.mxu0 0.0
    %v7992 = vand.u32 %v3971, 4294901760
    %7993 = vmatpush1.msra.mxu0 %v7992
    %7994 = vmatprep.subr.mxu0 0.0
    %v7995 = vand.u32 %v3972, 4294901760
    %7996 = vmatpush1.msra.mxu0 %v7995
    %7997 = vmatprep.subr.mxu0 0.0
    %v7998 = vand.u32 %v3973, 4294901760
    %7999 = vmatpush1.msra.mxu0 %v7998
    %8000 = vmatprep.subr.mxu0 0.0
    %v8001 = vand.u32 %v3974, 4294901760
    %8002 = vmatpush1.msra.mxu0 %v8001
    %8003 = vmatprep.subr.mxu0 0.0
    %v8004 = vand.u32 %v3975, 4294901760
    %8005 = vmatpush1.msra.mxu0 %v8004
    %8006 = vmatprep.subr.mxu0 0.0
    %v8007 = vand.u32 %v3976, 4294901760
    %8008 = vmatpush1.msra.mxu0 %v8007
    %8009 = vmatprep.subr.mxu0 0.0
    %v8010 = vand.u32 %v3977, 4294901760
    %8011 = vmatpush1.msra.mxu0 %v8010
    %8012 = vmatprep.subr.mxu0 0.0
    %v8013 = vand.u32 %v3978, 4294901760
    %8014 = vmatpush1.msra.mxu0 %v8013
    %8015 = vmatprep.subr.mxu0 0.0
    %v8016 = vand.u32 %v3979, 4294901760
    %8017 = vmatpush1.msra.mxu0 %v8016
    %8018 = vmatprep.subr.mxu0 0.0
    %v8019 = vand.u32 %v3980, 4294901760
    %8020 = vmatpush1.msra.mxu0 %v8019
    %8021 = vmatprep.subr.mxu0 0.0
    %v8022 = vand.u32 %v3981, 4294901760
    %8023 = vmatpush1.msra.mxu0 %v8022
    %8024 = vmatprep.subr.mxu0 0.0
    %v8025 = vand.u32 %v3982, 4294901760
    %8026 = vmatpush1.msra.mxu0 %v8025
    %8027 = vmatprep.subr.mxu0 0.0
    %v8028 = vand.u32 %v3983, 4294901760
    %8029 = vmatpush1.msra.mxu0 %v8028
    %8030 = vmatprep.subr.mxu0 0.0
    %v8031 = vand.u32 %v3984, 4294901760
    %8032 = vmatpush1.msra.mxu0 %v8031
    %8033 = vmatprep.subr.mxu0 0.0
    %v8034 = vand.u32 %v3985, 4294901760
    %8035 = vmatpush1.msra.mxu0 %v8034
    %8036 = vmatprep.subr.mxu0 0.0
    %v8037 = vand.u32 %v3986, 4294901760
    %8038 = vmatpush1.msra.mxu0 %v8037
    %v8039 = vand.u32 %v6318, 4294901760
    %8040 = vmatprep.mubr.f32.mxu0 %v8039
    %v8041 = vand.u32 %v6317, 4294901760
    %8042 = vmatmul.mubr.f32.gmra.mrb[0].mxu0 %v8041
    %v8043 = vpop.f32.mrb[0].mxu0
    %v8044 = vadd.f32 %v7940, %v8043
    %v8045 = vpop.f32.mrb[0].mxu0
    %8046 = vdwg.mxu0
    %8047 = vmatprep.subr.mxu0 0.0
    %v8048 = vand.u32 %v3987, 4294901760
    %8049 = vmatpush1.msra.mxu0 %v8048
    %8050 = vmatprep.subr.mxu0 0.0
    %v8051 = vand.u32 %v3988, 4294901760
    %8052 = vmatpush1.msra.mxu0 %v8051
    %8053 = vmatprep.subr.mxu0 0.0
    %v8054 = vand.u32 %v3989, 4294901760
    %8055 = vmatpush1.msra.mxu0 %v8054
    %8056 = vmatprep.subr.mxu0 0.0
    %v8057 = vand.u32 %v3990, 4294901760
    %8058 = vmatpush1.msra.mxu0 %v8057
    %8059 = vmatprep.subr.mxu0 0.0
    %v8060 = vand.u32 %v3991, 4294901760
    %8061 = vmatpush1.msra.mxu0 %v8060
    %8062 = vmatprep.subr.mxu0 0.0
    %v8063 = vand.u32 %v3992, 4294901760
    %8064 = vmatpush1.msra.mxu0 %v8063
    %8065 = vmatprep.subr.mxu0 0.0
    %v8066 = vand.u32 %v3993, 4294901760
    %8067 = vmatpush1.msra.mxu0 %v8066
    %8068 = vmatprep.subr.mxu0 0.0
    %v8069 = vand.u32 %v3994, 4294901760
    %8070 = vmatpush1.msra.mxu0 %v8069
    %8071 = vmatprep.subr.mxu0 0.0
    %v8072 = vand.u32 %v3995, 4294901760
    %8073 = vmatpush1.msra.mxu0 %v8072
    %8074 = vmatprep.subr.mxu0 0.0
    %v8075 = vand.u32 %v3996, 4294901760
    %8076 = vmatpush1.msra.mxu0 %v8075
    %8077 = vmatprep.subr.mxu0 0.0
    %v8078 = vand.u32 %v3997, 4294901760
    %8079 = vmatpush1.msra.mxu0 %v8078
    %8080 = vmatprep.subr.mxu0 0.0
    %v8081 = vand.u32 %v3998, 4294901760
    %8082 = vmatpush1.msra.mxu0 %v8081
    %8083 = vmatprep.subr.mxu0 0.0
    %8084 = vmatpush1.msra.mxu0 0.0
    %8085 = vmatprep.subr.mxu0 0.0
    %8086 = vmatpush1.msra.mxu0 0.0
    %8087 = vmatprep.subr.mxu0 0.0
    %8088 = vmatpush1.msra.mxu0 0.0
    %8089 = vmatprep.subr.mxu0 0.0
    %8090 = vmatpush1.msra.mxu0 0.0
    %8091 = vmatprep.subr.mxu0 0.0
    %8092 = vmatpush1.msra.mxu0 0.0
    %8093 = vmatprep.subr.mxu0 0.0
    %8094 = vmatpush1.msra.mxu0 0.0
    %8095 = vmatprep.subr.mxu0 0.0
    %8096 = vmatpush1.msra.mxu0 0.0
    %8097 = vmatprep.subr.mxu0 0.0
    %8098 = vmatpush1.msra.mxu0 0.0
    %8099 = vmatprep.subr.mxu0 0.0
    %8100 = vmatpush1.msra.mxu0 0.0
    %8101 = vmatprep.subr.mxu0 0.0
    %8102 = vmatpush1.msra.mxu0 0.0
    %8103 = vmatprep.subr.mxu0 0.0
    %8104 = vmatpush1.msra.mxu0 0.0
    %8105 = vmatprep.subr.mxu0 0.0
    %8106 = vmatpush1.msra.mxu0 0.0
    %8107 = vmatprep.subr.mxu0 0.0
    %8108 = vmatpush1.msra.mxu0 0.0
    %8109 = vmatprep.subr.mxu0 0.0
    %8110 = vmatpush1.msra.mxu0 0.0
    %8111 = vmatprep.subr.mxu0 0.0
    %8112 = vmatpush1.msra.mxu0 0.0
    %8113 = vmatprep.subr.mxu0 0.0
    %8114 = vmatpush1.msra.mxu0 0.0
    %8115 = vmatprep.subr.mxu0 0.0
    %8116 = vmatpush1.msra.mxu0 0.0
    %8117 = vmatprep.subr.mxu0 0.0
    %8118 = vmatpush1.msra.mxu0 0.0
    %8119 = vmatprep.subr.mxu0 0.0
    %8120 = vmatpush1.msra.mxu0 0.0
    %8121 = vmatprep.subr.mxu0 0.0
    %8122 = vmatpush1.msra.mxu0 0.0
    %8123 = vmatprep.mubr.f32.mxu0 0.0
    %v8124 = vand.u32 %v6321, 4294901760
    %v8125 = vsub.f32 %v6321, %v8124
    %v8126 = vand.u32 %v8125, 4294901760
    %v8127 = vsub.f32 %v8125, %v8126
    %v8128 = vand.u32 %v8127, 4294901760
    %8129 = vmatmul.mubr.f32.gmra.mrb[0].mxu0 %v8128
    %v8130 = vpop.f32.mrb[0].mxu0
    %v8131 = vadd.f32 %v8044, %v8130
    %v8132 = vpop.f32.mrb[0].mxu0
    %8133 = vdwg.mxu0
    %8134 = vmatprep.subr.mxu0 0.0
    %v8135 = vand.u32 %v3987, 4294901760
    %v8136 = vsub.f32 %v3987, %v8135
    %v8137 = vand.u32 %v8136, 4294901760
    %v8138 = vsub.f32 %v8136, %v8137
    %v8139 = vand.u32 %v8138, 4294901760
    %8140 = vmatpush1.msra.mxu0 %v8139
    %8141 = vmatprep.subr.mxu0 0.0
    %v8142 = vand.u32 %v3988, 4294901760
    %v8143 = vsub.f32 %v3988, %v8142
    %v8144 = vand.u32 %v8143, 4294901760
    %v8145 = vsub.f32 %v8143, %v8144
    %v8146 = vand.u32 %v8145, 4294901760
    %8147 = vmatpush1.msra.mxu0 %v8146
    %8148 = vmatprep.subr.mxu0 0.0
    %v8149 = vand.u32 %v3989, 4294901760
    %v8150 = vsub.f32 %v3989, %v8149
    %v8151 = vand.u32 %v8150, 4294901760
    %v8152 = vsub.f32 %v8150, %v8151
    %v8153 = vand.u32 %v8152, 4294901760
    %8154 = vmatpush1.msra.mxu0 %v8153
    %8155 = vmatprep.subr.mxu0 0.0
    %v8156 = vand.u32 %v3990, 4294901760
    %v8157 = vsub.f32 %v3990, %v8156
    %v8158 = vand.u32 %v8157, 4294901760
    %v8159 = vsub.f32 %v8157, %v8158
    %v8160 = vand.u32 %v8159, 4294901760
    %8161 = vmatpush1.msra.mxu0 %v8160
    %8162 = vmatprep.subr.mxu0 0.0
    %v8163 = vand.u32 %v3991, 4294901760
    %v8164 = vsub.f32 %v3991, %v8163
    %v8165 = vand.u32 %v8164, 4294901760
    %v8166 = vsub.f32 %v8164, %v8165
    %v8167 = vand.u32 %v8166, 4294901760
    %8168 = vmatpush1.msra.mxu0 %v8167
    %8169 = vmatprep.subr.mxu0 0.0
    %v8170 = vand.u32 %v3992, 4294901760
    %v8171 = vsub.f32 %v3992, %v8170
    %v8172 = vand.u32 %v8171, 4294901760
    %v8173 = vsub.f32 %v8171, %v8172
    %v8174 = vand.u32 %v8173, 4294901760
    %8175 = vmatpush1.msra.mxu0 %v8174
    %8176 = vmatprep.subr.mxu0 0.0
    %v8177 = vand.u32 %v3993, 4294901760
    %v8178 = vsub.f32 %v3993, %v8177
    %v8179 = vand.u32 %v8178, 4294901760
    %v8180 = vsub.f32 %v8178, %v8179
    %v8181 = vand.u32 %v8180, 4294901760
    %8182 = vmatpush1.msra.mxu0 %v8181
    %8183 = vmatprep.subr.mxu0 0.0
    %v8184 = vand.u32 %v3994, 4294901760
    %v8185 = vsub.f32 %v3994, %v8184
    %v8186 = vand.u32 %v8185, 4294901760
    %v8187 = vsub.f32 %v8185, %v8186
    %v8188 = vand.u32 %v8187, 4294901760
    %8189 = vmatpush1.msra.mxu0 %v8188
    %8190 = vmatprep.subr.mxu0 0.0
    %v8191 = vand.u32 %v3995, 4294901760
    %v8192 = vsub.f32 %v3995, %v8191
    %v8193 = vand.u32 %v8192, 4294901760
    %v8194 = vsub.f32 %v8192, %v8193
    %v8195 = vand.u32 %v8194, 4294901760
    %8196 = vmatpush1.msra.mxu0 %v8195
    %8197 = vmatprep.subr.mxu0 0.0
    %v8198 = vand.u32 %v3996, 4294901760
    %v8199 = vsub.f32 %v3996, %v8198
    %v8200 = vand.u32 %v8199, 4294901760
    %v8201 = vsub.f32 %v8199, %v8200
    %v8202 = vand.u32 %v8201, 4294901760
    %8203 = vmatpush1.msra.mxu0 %v8202
    %8204 = vmatprep.subr.mxu0 0.0
    %v8205 = vand.u32 %v3997, 4294901760
    %v8206 = vsub.f32 %v3997, %v8205
    %v8207 = vand.u32 %v8206, 4294901760
    %v8208 = vsub.f32 %v8206, %v8207
    %v8209 = vand.u32 %v8208, 4294901760
    %8210 = vmatpush1.msra.mxu0 %v8209
    %8211 = vmatprep.subr.mxu0 0.0
    %v8212 = vand.u32 %v3998, 4294901760
    %v8213 = vsub.f32 %v3998, %v8212
    %v8214 = vand.u32 %v8213, 4294901760
    %v8215 = vsub.f32 %v8213, %v8214
    %v8216 = vand.u32 %v8215, 4294901760
    %8217 = vmatpush1.msra.mxu0 %v8216
    %8218 = vmatprep.subr.mxu0 0.0
    %8219 = vmatpush1.msra.mxu0 0.0
    %8220 = vmatprep.subr.mxu0 0.0
    %8221 = vmatpush1.msra.mxu0 0.0
    %8222 = vmatprep.subr.mxu0 0.0
    %8223 = vmatpush1.msra.mxu0 0.0
    %8224 = vmatprep.subr.mxu0 0.0
    %8225 = vmatpush1.msra.mxu0 0.0
    %8226 = vmatprep.subr.mxu0 0.0
    %8227 = vmatpush1.msra.mxu0 0.0
    %8228 = vmatprep.subr.mxu0 0.0
    %8229 = vmatpush1.msra.mxu0 0.0
    %8230 = vmatprep.subr.mxu0 0.0
    %8231 = vmatpush1.msra.mxu0 0.0
    %8232 = vmatprep.subr.mxu0 0.0
    %8233 = vmatpush1.msra.mxu0 0.0
    %8234 = vmatprep.subr.mxu0 0.0
    %8235 = vmatpush1.msra.mxu0 0.0
    %8236 = vmatprep.subr.mxu0 0.0
    %8237 = vmatpush1.msra.mxu0 0.0
    %8238 = vmatprep.subr.mxu0 0.0
    %8239 = vmatpush1.msra.mxu0 0.0
    %8240 = vmatprep.subr.mxu0 0.0
    %8241 = vmatpush1.msra.mxu0 0.0
    %8242 = vmatprep.subr.mxu0 0.0
    %8243 = vmatpush1.msra.mxu0 0.0
    %8244 = vmatprep.subr.mxu0 0.0
    %8245 = vmatpush1.msra.mxu0 0.0
    %8246 = vmatprep.subr.mxu0 0.0
    %8247 = vmatpush1.msra.mxu0 0.0
    %8248 = vmatprep.subr.mxu0 0.0
    %8249 = vmatpush1.msra.mxu0 0.0
    %8250 = vmatprep.subr.mxu0 0.0
    %8251 = vmatpush1.msra.mxu0 0.0
    %8252 = vmatprep.subr.mxu0 0.0
    %8253 = vmatpush1.msra.mxu0 0.0
    %8254 = vmatprep.subr.mxu0 0.0
    %8255 = vmatpush1.msra.mxu0 0.0
    %8256 = vmatprep.subr.mxu0 0.0
    %8257 = vmatpush1.msra.mxu0 0.0
    %8258 = vmatprep.mubr.f32.mxu0 0.0
    %v8259 = vand.u32 %v6321, 4294901760
    %8260 = vmatmul.mubr.f32.gmra.mrb[0].mxu0 %v8259
    %v8261 = vpop.f32.mrb[0].mxu0
    %v8262 = vadd.f32 %v8131, %v8261
    %v8263 = vpop.f32.mrb[0].mxu0
    %8264 = vdwg.mxu0
    %8265 = vmatprep.subr.mxu0 0.0
    %v8266 = vand.u32 %v3987, 4294901760
    %v8267 = vsub.f32 %v3987, %v8266
    %8268 = vmatpush1.msra.mxu0 %v8267
    %8269 = vmatprep.subr.mxu0 0.0
    %v8270 = vand.u32 %v3988, 4294901760
    %v8271 = vsub.f32 %v3988, %v8270
    %8272 = vmatpush1.msra.mxu0 %v8271
    %8273 = vmatprep.subr.mxu0 0.0
    %v8274 = vand.u32 %v3989, 4294901760
    %v8275 = vsub.f32 %v3989, %v8274
    %8276 = vmatpush1.msra.mxu0 %v8275
    %8277 = vmatprep.subr.mxu0 0.0
    %v8278 = vand.u32 %v3990, 4294901760
    %v8279 = vsub.f32 %v3990, %v8278
    %8280 = vmatpush1.msra.mxu0 %v8279
    %8281 = vmatprep.subr.mxu0 0.0
    %v8282 = vand.u32 %v3991, 4294901760
    %v8283 = vsub.f32 %v3991, %v8282
    %8284 = vmatpush1.msra.mxu0 %v8283
    %8285 = vmatprep.subr.mxu0 0.0
    %v8286 = vand.u32 %v3992, 4294901760
    %v8287 = vsub.f32 %v3992, %v8286
    %8288 = vmatpush1.msra.mxu0 %v8287
    %8289 = vmatprep.subr.mxu0 0.0
    %v8290 = vand.u32 %v3993, 4294901760
    %v8291 = vsub.f32 %v3993, %v8290
    %8292 = vmatpush1.msra.mxu0 %v8291
    %8293 = vmatprep.subr.mxu0 0.0
    %v8294 = vand.u32 %v3994, 4294901760
    %v8295 = vsub.f32 %v3994, %v8294
    %8296 = vmatpush1.msra.mxu0 %v8295
    %8297 = vmatprep.subr.mxu0 0.0
    %v8298 = vand.u32 %v3995, 4294901760
    %v8299 = vsub.f32 %v3995, %v8298
    %8300 = vmatpush1.msra.mxu0 %v8299
    %8301 = vmatprep.subr.mxu0 0.0
    %v8302 = vand.u32 %v3996, 4294901760
    %v8303 = vsub.f32 %v3996, %v8302
    %8304 = vmatpush1.msra.mxu0 %v8303
    %8305 = vmatprep.subr.mxu0 0.0
    %v8306 = vand.u32 %v3997, 4294901760
    %v8307 = vsub.f32 %v3997, %v8306
    %8308 = vmatpush1.msra.mxu0 %v8307
    %8309 = vmatprep.subr.mxu0 0.0
    %v8310 = vand.u32 %v3998, 4294901760
    %v8311 = vsub.f32 %v3998, %v8310
    %8312 = vmatpush1.msra.mxu0 %v8311
    %8313 = vmatprep.subr.mxu0 0.0
    %8314 = vmatpush1.msra.mxu0 0.0
    %8315 = vmatprep.subr.mxu0 0.0
    %8316 = vmatpush1.msra.mxu0 0.0
    %8317 = vmatprep.subr.mxu0 0.0
    %8318 = vmatpush1.msra.mxu0 0.0
    %8319 = vmatprep.subr.mxu0 0.0
    %8320 = vmatpush1.msra.mxu0 0.0
    %8321 = vmatprep.subr.mxu0 0.0
    %8322 = vmatpush1.msra.mxu0 0.0
    %8323 = vmatprep.subr.mxu0 0.0
    %8324 = vmatpush1.msra.mxu0 0.0
    %8325 = vmatprep.subr.mxu0 0.0
    %8326 = vmatpush1.msra.mxu0 0.0
    %8327 = vmatprep.subr.mxu0 0.0
    %8328 = vmatpush1.msra.mxu0 0.0
    %8329 = vmatprep.subr.mxu0 0.0
    %8330 = vmatpush1.msra.mxu0 0.0
    %8331 = vmatprep.subr.mxu0 0.0
    %8332 = vmatpush1.msra.mxu0 0.0
    %8333 = vmatprep.subr.mxu0 0.0
    %8334 = vmatpush1.msra.mxu0 0.0
    %8335 = vmatprep.subr.mxu0 0.0
    %8336 = vmatpush1.msra.mxu0 0.0
    %8337 = vmatprep.subr.mxu0 0.0
    %8338 = vmatpush1.msra.mxu0 0.0
    %8339 = vmatprep.subr.mxu0 0.0
    %8340 = vmatpush1.msra.mxu0 0.0
    %8341 = vmatprep.subr.mxu0 0.0
    %8342 = vmatpush1.msra.mxu0 0.0
    %8343 = vmatprep.subr.mxu0 0.0
    %8344 = vmatpush1.msra.mxu0 0.0
    %8345 = vmatprep.subr.mxu0 0.0
    %8346 = vmatpush1.msra.mxu0 0.0
    %8347 = vmatprep.subr.mxu0 0.0
    %8348 = vmatpush1.msra.mxu0 0.0
    %8349 = vmatprep.subr.mxu0 0.0
    %8350 = vmatpush1.msra.mxu0 0.0
    %8351 = vmatprep.subr.mxu0 0.0
    %8352 = vmatpush1.msra.mxu0 0.0
    %8353 = vmatprep.mubr.f32.mxu0 0.0
    %v8354 = vand.u32 %v6321, 4294901760
    %v8355 = vsub.f32 %v6321, %v8354
    %8356 = vmatmul.mubr.f32.gmra.mrb[0].mxu0 %v8355
    %v8357 = vpop.f32.mrb[0].mxu0
    %v8358 = vadd.f32 %v8262, %v8357
    %v8359 = vpop.f32.mrb[0].mxu0
    %8360 = vdwg.mxu0
    %8361 = vmatprep.subr.mxu0 0.0
    %v8362 = vand.u32 %v3987, 4294901760
    %8363 = vmatpush1.msra.mxu0 %v8362
    %8364 = vmatprep.subr.mxu0 0.0
    %v8365 = vand.u32 %v3988, 4294901760
    %8366 = vmatpush1.msra.mxu0 %v8365
    %8367 = vmatprep.subr.mxu0 0.0
    %v8368 = vand.u32 %v3989, 4294901760
    %8369 = vmatpush1.msra.mxu0 %v8368
    %8370 = vmatprep.subr.mxu0 0.0
    %v8371 = vand.u32 %v3990, 4294901760
    %8372 = vmatpush1.msra.mxu0 %v8371
    %8373 = vmatprep.subr.mxu0 0.0
    %v8374 = vand.u32 %v3991, 4294901760
    %8375 = vmatpush1.msra.mxu0 %v8374
    %8376 = vmatprep.subr.mxu0 0.0
    %v8377 = vand.u32 %v3992, 4294901760
    %8378 = vmatpush1.msra.mxu0 %v8377
    %8379 = vmatprep.subr.mxu0 0.0
    %v8380 = vand.u32 %v3993, 4294901760
    %8381 = vmatpush1.msra.mxu0 %v8380
    %8382 = vmatprep.subr.mxu0 0.0
    %v8383 = vand.u32 %v3994, 4294901760
    %8384 = vmatpush1.msra.mxu0 %v8383
    %8385 = vmatprep.subr.mxu0 0.0
    %v8386 = vand.u32 %v3995, 4294901760
    %8387 = vmatpush1.msra.mxu0 %v8386
    %8388 = vmatprep.subr.mxu0 0.0
    %v8389 = vand.u32 %v3996, 4294901760
    %8390 = vmatpush1.msra.mxu0 %v8389
    %8391 = vmatprep.subr.mxu0 0.0
    %v8392 = vand.u32 %v3997, 4294901760
    %8393 = vmatpush1.msra.mxu0 %v8392
    %8394 = vmatprep.subr.mxu0 0.0
    %v8395 = vand.u32 %v3998, 4294901760
    %8396 = vmatpush1.msra.mxu0 %v8395
    %8397 = vmatprep.subr.mxu0 0.0
    %8398 = vmatpush1.msra.mxu0 0.0
    %8399 = vmatprep.subr.mxu0 0.0
    %8400 = vmatpush1.msra.mxu0 0.0
    %8401 = vmatprep.subr.mxu0 0.0
    %8402 = vmatpush1.msra.mxu0 0.0
    %8403 = vmatprep.subr.mxu0 0.0
    %8404 = vmatpush1.msra.mxu0 0.0
    %8405 = vmatprep.subr.mxu0 0.0
    %8406 = vmatpush1.msra.mxu0 0.0
    %8407 = vmatprep.subr.mxu0 0.0
    %8408 = vmatpush1.msra.mxu0 0.0
    %8409 = vmatprep.subr.mxu0 0.0
    %8410 = vmatpush1.msra.mxu0 0.0
    %8411 = vmatprep.subr.mxu0 0.0
    %8412 = vmatpush1.msra.mxu0 0.0
    %8413 = vmatprep.subr.mxu0 0.0
    %8414 = vmatpush1.msra.mxu0 0.0
    %8415 = vmatprep.subr.mxu0 0.0
    %8416 = vmatpush1.msra.mxu0 0.0
    %8417 = vmatprep.subr.mxu0 0.0
    %8418 = vmatpush1.msra.mxu0 0.0
    %8419 = vmatprep.subr.mxu0 0.0
    %8420 = vmatpush1.msra.mxu0 0.0
    %8421 = vmatprep.subr.mxu0 0.0
    %8422 = vmatpush1.msra.mxu0 0.0
    %8423 = vmatprep.subr.mxu0 0.0
    %8424 = vmatpush1.msra.mxu0 0.0
    %8425 = vmatprep.subr.mxu0 0.0
    %8426 = vmatpush1.msra.mxu0 0.0
    %8427 = vmatprep.subr.mxu0 0.0
    %8428 = vmatpush1.msra.mxu0 0.0
    %8429 = vmatprep.subr.mxu0 0.0
    %8430 = vmatpush1.msra.mxu0 0.0
    %8431 = vmatprep.subr.mxu0 0.0
    %8432 = vmatpush1.msra.mxu0 0.0
    %8433 = vmatprep.subr.mxu0 0.0
    %8434 = vmatpush1.msra.mxu0 0.0
    %8435 = vmatprep.subr.mxu0 0.0
    %8436 = vmatpush1.msra.mxu0 0.0
    %8437 = vmatprep.mubr.f32.mxu0 0.0
    %v8438 = vand.u32 %v6321, 4294901760
    %v8439 = vsub.f32 %v6321, %v8438
    %v8440 = vand.u32 %v8439, 4294901760
    %8441 = vmatmul.mubr.f32.gmra.mrb[0].mxu0 %v8440
    %v8442 = vpop.f32.mrb[0].mxu0
    %v8443 = vadd.f32 %v8358, %v8442
    %v8444 = vpop.f32.mrb[0].mxu0
    %8445 = vdwg.mxu0
    %8446 = vmatprep.subr.mxu0 0.0
    %v8447 = vand.u32 %v3987, 4294901760
    %v8448 = vsub.f32 %v3987, %v8447
    %v8449 = vand.u32 %v8448, 4294901760
    %8450 = vmatpush1.msra.mxu0 %v8449
    %8451 = vmatprep.subr.mxu0 0.0
    %v8452 = vand.u32 %v3988, 4294901760
    %v8453 = vsub.f32 %v3988, %v8452
    %v8454 = vand.u32 %v8453, 4294901760
    %8455 = vmatpush1.msra.mxu0 %v8454
    %8456 = vmatprep.subr.mxu0 0.0
    %v8457 = vand.u32 %v3989, 4294901760
    %v8458 = vsub.f32 %v3989, %v8457
    %v8459 = vand.u32 %v8458, 4294901760
    %8460 = vmatpush1.msra.mxu0 %v8459
    %8461 = vmatprep.subr.mxu0 0.0
    %v8462 = vand.u32 %v3990, 4294901760
    %v8463 = vsub.f32 %v3990, %v8462
    %v8464 = vand.u32 %v8463, 4294901760
    %8465 = vmatpush1.msra.mxu0 %v8464
    %8466 = vmatprep.subr.mxu0 0.0
    %v8467 = vand.u32 %v3991, 4294901760
    %v8468 = vsub.f32 %v3991, %v8467
    %v8469 = vand.u32 %v8468, 4294901760
    %8470 = vmatpush1.msra.mxu0 %v8469
    %8471 = vmatprep.subr.mxu0 0.0
    %v8472 = vand.u32 %v3992, 4294901760
    %v8473 = vsub.f32 %v3992, %v8472
    %v8474 = vand.u32 %v8473, 4294901760
    %8475 = vmatpush1.msra.mxu0 %v8474
    %8476 = vmatprep.subr.mxu0 0.0
    %v8477 = vand.u32 %v3993, 4294901760
    %v8478 = vsub.f32 %v3993, %v8477
    %v8479 = vand.u32 %v8478, 4294901760
    %8480 = vmatpush1.msra.mxu0 %v8479
    %8481 = vmatprep.subr.mxu0 0.0
    %v8482 = vand.u32 %v3994, 4294901760
    %v8483 = vsub.f32 %v3994, %v8482
    %v8484 = vand.u32 %v8483, 4294901760
    %8485 = vmatpush1.msra.mxu0 %v8484
    %8486 = vmatprep.subr.mxu0 0.0
    %v8487 = vand.u32 %v3995, 4294901760
    %v8488 = vsub.f32 %v3995, %v8487
    %v8489 = vand.u32 %v8488, 4294901760
    %8490 = vmatpush1.msra.mxu0 %v8489
    %8491 = vmatprep.subr.mxu0 0.0
    %v8492 = vand.u32 %v3996, 4294901760
    %v8493 = vsub.f32 %v3996, %v8492
    %v8494 = vand.u32 %v8493, 4294901760
    %8495 = vmatpush1.msra.mxu0 %v8494
    %8496 = vmatprep.subr.mxu0 0.0
    %v8497 = vand.u32 %v3997, 4294901760
    %v8498 = vsub.f32 %v3997, %v8497
    %v8499 = vand.u32 %v8498, 4294901760
    %8500 = vmatpush1.msra.mxu0 %v8499
    %8501 = vmatprep.subr.mxu0 0.0
    %v8502 = vand.u32 %v3998, 4294901760
    %v8503 = vsub.f32 %v3998, %v8502
    %v8504 = vand.u32 %v8503, 4294901760
    %8505 = vmatpush1.msra.mxu0 %v8504
    %8506 = vmatprep.subr.mxu0 0.0
    %8507 = vmatpush1.msra.mxu0 0.0
    %8508 = vmatprep.subr.mxu0 0.0
    %8509 = vmatpush1.msra.mxu0 0.0
    %8510 = vmatprep.subr.mxu0 0.0
    %8511 = vmatpush1.msra.mxu0 0.0
    %8512 = vmatprep.subr.mxu0 0.0
    %8513 = vmatpush1.msra.mxu0 0.0
    %8514 = vmatprep.subr.mxu0 0.0
    %8515 = vmatpush1.msra.mxu0 0.0
    %8516 = vmatprep.subr.mxu0 0.0
    %8517 = vmatpush1.msra.mxu0 0.0
    %8518 = vmatprep.subr.mxu0 0.0
    %8519 = vmatpush1.msra.mxu0 0.0
    %8520 = vmatprep.subr.mxu0 0.0
    %8521 = vmatpush1.msra.mxu0 0.0
    %8522 = vmatprep.subr.mxu0 0.0
    %8523 = vmatpush1.msra.mxu0 0.0
    %8524 = vmatprep.subr.mxu0 0.0
    %8525 = vmatpush1.msra.mxu0 0.0
    %8526 = vmatprep.subr.mxu0 0.0
    %8527 = vmatpush1.msra.mxu0 0.0
    %8528 = vmatprep.subr.mxu0 0.0
    %8529 = vmatpush1.msra.mxu0 0.0
    %8530 = vmatprep.subr.mxu0 0.0
    %8531 = vmatpush1.msra.mxu0 0.0
    %8532 = vmatprep.subr.mxu0 0.0
    %8533 = vmatpush1.msra.mxu0 0.0
    %8534 = vmatprep.subr.mxu0 0.0
    %8535 = vmatpush1.msra.mxu0 0.0
    %8536 = vmatprep.subr.mxu0 0.0
    %8537 = vmatpush1.msra.mxu0 0.0
    %8538 = vmatprep.subr.mxu0 0.0
    %8539 = vmatpush1.msra.mxu0 0.0
    %8540 = vmatprep.subr.mxu0 0.0
    %8541 = vmatpush1.msra.mxu0 0.0
    %8542 = vmatprep.subr.mxu0 0.0
    %8543 = vmatpush1.msra.mxu0 0.0
    %8544 = vmatprep.subr.mxu0 0.0
    %8545 = vmatpush1.msra.mxu0 0.0
    %8546 = vmatprep.mubr.f32.mxu0 0.0
    %v8547 = vand.u32 %v6321, 4294901760
    %8548 = vmatmul.mubr.f32.gmra.mrb[0].mxu0 %v8547
    %v8549 = vpop.f32.mrb[0].mxu0
    %v8550 = vadd.f32 %v8443, %v8549
    %v8551 = vpop.f32.mrb[0].mxu0
    %8552 = vdwg.mxu0
    %8553 = vmatprep.subr.mxu0 0.0
    %v8554 = vand.u32 %v3987, 4294901760
    %8555 = vmatpush1.msra.mxu0 %v8554
    %8556 = vmatprep.subr.mxu0 0.0
    %v8557 = vand.u32 %v3988, 4294901760
    %8558 = vmatpush1.msra.mxu0 %v8557
    %8559 = vmatprep.subr.mxu0 0.0
    %v8560 = vand.u32 %v3989, 4294901760
    %8561 = vmatpush1.msra.mxu0 %v8560
    %8562 = vmatprep.subr.mxu0 0.0
    %v8563 = vand.u32 %v3990, 4294901760
    %8564 = vmatpush1.msra.mxu0 %v8563
    %8565 = vmatprep.subr.mxu0 0.0
    %v8566 = vand.u32 %v3991, 4294901760
    %8567 = vmatpush1.msra.mxu0 %v8566
    %8568 = vmatprep.subr.mxu0 0.0
    %v8569 = vand.u32 %v3992, 4294901760
    %8570 = vmatpush1.msra.mxu0 %v8569
    %8571 = vmatprep.subr.mxu0 0.0
    %v8572 = vand.u32 %v3993, 4294901760
    %8573 = vmatpush1.msra.mxu0 %v8572
    %8574 = vmatprep.subr.mxu0 0.0
    %v8575 = vand.u32 %v3994, 4294901760
    %8576 = vmatpush1.msra.mxu0 %v8575
    %8577 = vmatprep.subr.mxu0 0.0
    %v8578 = vand.u32 %v3995, 4294901760
    %8579 = vmatpush1.msra.mxu0 %v8578
    %8580 = vmatprep.subr.mxu0 0.0
    %v8581 = vand.u32 %v3996, 4294901760
    %8582 = vmatpush1.msra.mxu0 %v8581
    %8583 = vmatprep.subr.mxu0 0.0
    %v8584 = vand.u32 %v3997, 4294901760
    %8585 = vmatpush1.msra.mxu0 %v8584
    %8586 = vmatprep.subr.mxu0 0.0
    %v8587 = vand.u32 %v3998, 4294901760
    %8588 = vmatpush1.msra.mxu0 %v8587
    %8589 = vmatprep.subr.mxu0 0.0
    %8590 = vmatpush1.msra.mxu0 0.0
    %8591 = vmatprep.subr.mxu0 0.0
    %8592 = vmatpush1.msra.mxu0 0.0
    %8593 = vmatprep.subr.mxu0 0.0
    %8594 = vmatpush1.msra.mxu0 0.0
    %8595 = vmatprep.subr.mxu0 0.0
    %8596 = vmatpush1.msra.mxu0 0.0
    %8597 = vmatprep.subr.mxu0 0.0
    %8598 = vmatpush1.msra.mxu0 0.0
    %8599 = vmatprep.subr.mxu0 0.0
    %8600 = vmatpush1.msra.mxu0 0.0
    %8601 = vmatprep.subr.mxu0 0.0
    %8602 = vmatpush1.msra.mxu0 0.0
    %8603 = vmatprep.subr.mxu0 0.0
    %8604 = vmatpush1.msra.mxu0 0.0
    %8605 = vmatprep.subr.mxu0 0.0
    %8606 = vmatpush1.msra.mxu0 0.0
    %8607 = vmatprep.subr.mxu0 0.0
    %8608 = vmatpush1.msra.mxu0 0.0
    %8609 = vmatprep.subr.mxu0 0.0
    %8610 = vmatpush1.msra.mxu0 0.0
    %8611 = vmatprep.subr.mxu0 0.0
    %8612 = vmatpush1.msra.mxu0 0.0
    %8613 = vmatprep.subr.mxu0 0.0
    %8614 = vmatpush1.msra.mxu0 0.0
    %8615 = vmatprep.subr.mxu0 0.0
    %8616 = vmatpush1.msra.mxu0 0.0
    %8617 = vmatprep.subr.mxu0 0.0
    %8618 = vmatpush1.msra.mxu0 0.0
    %8619 = vmatprep.subr.mxu0 0.0
    %8620 = vmatpush1.msra.mxu0 0.0
    %8621 = vmatprep.subr.mxu0 0.0
    %8622 = vmatpush1.msra.mxu0 0.0
    %8623 = vmatprep.subr.mxu0 0.0
    %8624 = vmatpush1.msra.mxu0 0.0
    %8625 = vmatprep.subr.mxu0 0.0
    %8626 = vmatpush1.msra.mxu0 0.0
    %8627 = vmatprep.subr.mxu0 0.0
    %8628 = vmatpush1.msra.mxu0 0.0
    %8629 = vmatprep.mubr.f32.mxu0 0.0
    %v8630 = vand.u32 %v6321, 4294901760
    %8631 = vmatmul.mubr.f32.gmra.mrb[0].mxu0 %v8630
    %v8632 = vpop.f32.mrb[0].mxu0
    %v8633 = vadd.f32 %v8550, %v8632
    %v8634 = vpop.f32.mrb[0].mxu0
    %8635 = vdwg.mxu0
    %v8636 = vrcp.pop %v6312
    %v8637 = vmul.f32 %v6312, %v8636
    %v8638 = vsub.f32 2.0, %v8637
    %v8639 = vmul.f32 %v8636, %v8638
    %v8640 = vmul.f32 %v8633, %v8639
    %vm8641 = vcmask 261120
    %8642 = vst.msk [vmem:[#allocation2] sm:$0xff] %vm8641, %v8640
    // Predicated region
    $region22: #{tpu_custom_call.1} parent=1 // pred_check
      _
    $region23: #{tpu_custom_call.1} parent=1 // pred_check_branch
      %8644 = sbr.rel (0) target = $region25
    $region24: #{tpu_custom_call.1} parent=1 // pred_region
      %s8646 = ssub.s32 128, 128
      %8647 = vsyncadd [#allocation3], %s8646
      %s8649 = sshll.u32 [#allocation2], 4
      %s8650 = int_to_ptr.vmem [resolvable:$true] %s8649
      %8652 = dma.vmem_to_hbm [thread:$0]  %s8650, 128, %s5, [#allocation3]
    $region25: #{tpu_custom_call.1} parent=1 // pred_fallthru
      _
    // Predicated region
    $region26: #{tpu_custom_call.1} parent=1 // pred_check
      _
    $region27: #{tpu_custom_call.1} parent=1 // pred_check_branch
      %8654 = sbr.rel (0) target = $region29
    $region28: #{tpu_custom_call.1} parent=1 // pred_region
      %8655 = dma.done [#allocation3], 128
    $region29: #{tpu_custom_call.1} parent=1 // pred_fallthru
      _
    %8656 = vsyncpa [#allocation3], 1

</llo_original>
